<compile_context>
chip_gen: v5e
topology: v5e:2x2
jax: 0.10.0
libtpu: 0.0.40
codegen_flags: <defaults>
</compile_context>

<pallas_src>
import functools
import math

import numpy as np
import jax
import jax.numpy as jnp
from jax.experimental import pallas as pl
from jax.experimental.pallas import tpu as pltpu

# ----------------------------- hyperparameters ------------------------------
INPUT_DIM = (16, 16)
KERNEL_SIZES = [(5, 5), (3, 3)]
CNN_OUT_CH = [32, 64]
CNN_IN_CH = [2, 32]              # SINGLETRL: [2] + cnn_out_channels[:-1]
CONV_STRIDE = (2, 2)
CONV_OUTPUT = 128
RNN_NEURONS = 128
RNN_LAYERS = 2
FC_NEURONS = [128, 64]
OUTPUT_SIZE = 6                  # ortho6d
BN_EPS = 1e-5

# conv output spatial sizes (valid padding)
OH1 = (INPUT_DIM[0] - KERNEL_SIZES[0][0]) // CONV_STRIDE[0] + 1   # 6
OW1 = (INPUT_DIM[1] - KERNEL_SIZES[0][1]) // CONV_STRIDE[1] + 1   # 6
OH2 = (OH1 - KERNEL_SIZES[1][0]) // CONV_STRIDE[0] + 1            # 2
OW2 = (OW1 - KERNEL_SIZES[1][1]) // CONV_STRIDE[1] + 1            # 2
NPOS1 = OH1 * OW1                                                 # 36
NPOS2 = OH2 * OW2                                                 # 4
K0 = CNN_IN_CH[0] * INPUT_DIM[0] * INPUT_DIM[1]                   # 512
N0 = NPOS1 * CNN_OUT_CH[0]                                        # 1152
N1 = NPOS2 * CNN_OUT_CH[1]                                        # 256 (= flat CNN out)


# ------------------------------ fused kernel --------------------------------
def _fused_kernel(x_ref, w0e_ref, s0_ref, t0_ref, w1e_ref, s1_ref, t1_ref,
                  fcw_ref, fcb_ref,
                  wih0_ref, b0_ref, whh0_ref, w1cat_ref, b1_ref,
                  wm0_ref, bm0_ref, wm1_ref, bm1_ref, wm2_ref, bm2_ref,
                  o_ref, *, B, T, H):
    """Whole TactilePlacingNet forward in one kernel.

    x_ref:    (B, S, T, 256) raw frames, last dim = row-major flattened 16x16.
    w0e_ref:  (512, 1152)  conv0 scattered/expanded GEMM weight (bf16).
    w1e_ref:  (1152, 256)  conv1 scattered/expanded GEMM weight (bf16).
    fcw_ref:  (256, 128)   post-CNN linear, rows in (pos, ch) order (bf16).
    wih0_ref: (128, 512)   LSTM0 W_ih^T;  whh0_ref: (128, 512) W_hh^T (bf16).
    w1cat_ref:(256, 512)   [LSTM1 W_ih^T ; W_hh^T] stacked (bf16).
    o_ref:    (B, 9)       rotation matrix, row-major flattened.
    """
    nb = B * T
    S = x_ref.shape[1]

    # ---------------- CNN: three lane-dense GEMMs, zero shuffles ------------
    xv = x_ref[...]                                                 # (B,S,T,256) f32
    xs = jnp.concatenate([xv[:, s] for s in range(S)], axis=-1)     # (B,T,S*256)
    xs = xs.reshape(nb, S * xv.shape[-1]).astype(jnp.bfloat16)      # rows = (b, t)

    # conv0 (bias folded into BN shift) -> BN -> ReLU
    y1 = jnp.dot(xs, w0e_ref[...], preferred_element_type=jnp.float32)   # (nb,1152)
    a1 = jnp.maximum(y1 * s0_ref[...] + t0_ref[...], 0.0)

    # conv1 -> BN -> ReLU
    y2 = jnp.dot(a1.astype(jnp.bfloat16), w1e_ref[...],
                 preferred_element_type=jnp.float32)                     # (nb,256)
    a2 = jnp.maximum(y2 * s1_ref[...] + t1_ref[...], 0.0)

    # post-CNN Linear + ReLU (single GEMM; fc rows pre-permuted to (pos, ch))
    feats = jnp.maximum(
        jnp.dot(a2.astype(jnp.bfloat16), fcw_ref[...],
                preferred_element_type=jnp.float32) + fcb_ref[...], 0.0)  # (nb,128)

    # LSTM layer-0 input projection for all timesteps in one GEMM
    xp = jnp.dot(feats.astype(jnp.bfloat16), wih0_ref[...],
                 preferred_element_type=jnp.float32) + b0_ref[...]        # (nb,4H)
    xp = xp.reshape(B, T, 4 * H)                                          # (b, t) rows

    # ---------------- 2-layer LSTM, T=8 fully unrolled -----------------------
    whh0 = whh0_ref[...]          # (H, 4H)  bf16
    w1c = w1cat_ref[...]          # (2H, 4H) bf16 = [wih1^T ; whh1^T]
    b1 = b1_ref[...]

    h0 = jnp.zeros((B, H), jnp.float32)
    c0 = jnp.zeros((B, H), jnp.float32)
    h1 = jnp.zeros((B, H), jnp.float32)
    c1 = jnp.zeros((B, H), jnp.float32)

    # TODO(synk): for long sequences switch to lax.fori_loop with VMEM scratch
    # carries; T=8 is small enough to fully unroll here.
    for t in range(T):
        x_t = xp[:, t, :]                                             # (B, 4H)
        # ---- layer 0 ----
        g0 = x_t + jnp.dot(h0.astype(jnp.bfloat16), whh0,
                           preferred_element_type=jnp.float32)
        i0 = jax.nn.sigmoid(g0[:, 0:H])
        f0 = jax.nn.sigmoid(g0[:, H:2 * H])
        n0 = jnp.tanh(g0[:, 2 * H:3 * H])
        o0 = jax.nn.sigmoid(g0[:, 3 * H:4 * H])
        c0 = f0 * c0 + i0 * n0
        h0 = o0 * jnp.tanh(c0)
        # ---- layer 1: one dot on concat([h0, h1]) ----
        hcat = jnp.concatenate([h0, h1], axis=1).astype(jnp.bfloat16)  # (B, 2H)
        g1 = jnp.dot(hcat, w1c, preferred_element_type=jnp.float32) + b1
        i1 = jax.nn.sigmoid(g1[:, 0:H])
        f1 = jax.nn.sigmoid(g1[:, H:2 * H])
        n1 = jnp.tanh(g1[:, 2 * H:3 * H])
        o1 = jax.nn.sigmoid(g1[:, 3 * H:4 * H])
        c1 = f1 * c1 + i1 * n1
        h1 = o1 * jnp.tanh(c1)

    # ---------------- MLP head (Dropout = identity in eval) ------------------
    m = jnp.maximum(jnp.dot(h1.astype(jnp.bfloat16), wm0_ref[...],
                            preferred_element_type=jnp.float32) + bm0_ref[...], 0.0)
    m = jnp.maximum(jnp.dot(m.astype(jnp.bfloat16), wm1_ref[...],
                            preferred_element_type=jnp.float32) + bm1_ref[...], 0.0)
    o6 = jnp.dot(m.astype(jnp.bfloat16), wm2_ref[...],
                 preferred_element_type=jnp.float32) + bm2_ref[...]       # (B, 6)

    # ---------------- ortho6d -> rotation matrix (fused) ---------------------
    def _norm(v):
        mag = jnp.sqrt(jnp.sum(v * v, axis=1, keepdims=True))
        return v / jnp.maximum(mag, 1e-8)

    def _cross(a, b):
        a0_, a1_, a2_ = a[:, 0:1], a[:, 1:2], a[:, 2:3]
        b0_, b1_, b2_ = b[:, 0:1], b[:, 1:2], b[:, 2:3]
        return jnp.concatenate(
            [a1_ * b2_ - a2_ * b1_, a2_ * b0_ - a0_ * b2_, a0_ * b1_ - a1_ * b0_],
            axis=1)

    xn = _norm(o6[:, 0:3])
    zn = _norm(_cross(xn, o6[:, 3:6]))
    yn = _cross(zn, xn)
    # R[b, i, j] with columns (x, y, z); flattened row-major -> (B, 9)
    o_ref[...] = jnp.concatenate(
        [xn[:, 0:1], yn[:, 0:1], zn[:, 0:1],
         xn[:, 1:2], yn[:, 1:2], zn[:, 1:2],
         xn[:, 2:3], yn[:, 2:3], zn[:, 2:3]], axis=1)


# ------------------------------ parameters -----------------------------------
def _uniform(key, shape, fan_in):
    bound = 1.0 / math.sqrt(fan_in)
    return jax.random.uniform(key, shape, jnp.float32, -bound, bound)


def init_params(key):
    """Weights in PyTorch-canonical shapes, then scattered / permuted ONCE into
    the layouts the fused kernel consumes (no per-call work at runtime)."""
    p = {}
    keys = iter(jax.random.split(key, 24))
    f32 = np.float32
    sh, sw = CONV_STRIDE

    # --- conv0: Conv2d(2, 32, 5x5, stride 2) + BatchNorm2d(32) eval + ReLU ---
    (kh0, kw0), cin0, cout0 = KERNEL_SIZES[0], CNN_IN_CH[0], CNN_OUT_CH[0]
    fan0 = cin0 * kh0 * kw0
    w0 = np.asarray(_uniform(next(keys), (cout0, cin0, kh0, kw0), fan0))
    b0 = np.asarray(_uniform(next(keys), (cout0,), fan0))
    # scattered/expanded im2col GEMM weight: rows = input pixel (c, h, w) flat,
    # cols = (output position q, output channel o).
    w0e = np.zeros((cin0, INPUT_DIM[0], INPUT_DIM[1], NPOS1, cout0), f32)
    for oi in range(OH1):
        for oj in range(OW1):
            q = oi * OW1 + oj
            for di in range(kh0):
                for dj in range(kw0):
                    w0e[:, sh * oi + di, sw * oj + dj, q, :] = w0[:, :, di, dj].T
    p["w0exp"] = jnp.asarray(w0e.reshape(K0, N0), dtype=jnp.bfloat16)
    # eval-mode BN fold (fresh running stats: mean=0, var=1, gamma=1, beta=0)
    s0 = np.ones((cout0,), f32) / np.sqrt(f32(1.0) + BN_EPS)
    t0 = b0 * s0
    p["bn0_scale"] = jnp.asarray(np.tile(s0, NPOS1).reshape(1, N0))
    p["bn0_shift"] = jnp.asarray(np.tile(t0, NPOS1).reshape(1, N0))

    # --- conv1: Conv2d(32, 64, 3x3, stride 2) + BatchNorm2d(64) eval + ReLU ---
    (kh1, kw1), cin1, cout1 = KERNEL_SIZES[1], CNN_IN_CH[1], CNN_OUT_CH[1]
    fan1 = cin1 * kh1 * kw1
    w1 = np.asarray(_uniform(next(keys), (cout1, cin1, kh1, kw1), fan1))
    b1 = np.asarray(_uniform(next(keys), (cout1,), fan1))
    # rows = conv0 activation (q, c) flat, cols = (p, o)
    w1e = np.zeros((NPOS1, cin1, NPOS2, cout1), f32)
    for pi in range(OH2):
        for pj in range(OW2):
            pp = pi * OW2 + pj
            for di in range(kh1):
                for dj in range(kw1):
                    q = (sh * pi + di) * OW1 + (sw * pj + dj)
                    w1e[q, :, pp, :] = w1[:, :, di, dj].T
    p["w1exp"] = jnp.asarray(w1e.reshape(N0, N1), dtype=jnp.bfloat16)
    s1 = np.ones((cout1,), f32) / np.sqrt(f32(1.0) + BN_EPS)
    t1 = b1 * s1
    p["bn1_scale"] = jnp.asarray(np.tile(s1, NPOS2).reshape(1, N1))
    p["bn1_shift"] = jnp.asarray(np.tile(t1, NPOS2).reshape(1, N1))

    # --- post-CNN Linear: 256 -> 128 (PyTorch flatten is NCHW) ---
    fc_w_pt = np.asarray(_uniform(next(keys), (CONV_OUTPUT, N1), N1))   # (128, 256)
    fc_b = _uniform(next(keys), (CONV_OUTPUT,), N1)
    # permute rows from NCHW flat (c*4 + p) to the kernel's (p*64 + c) order
    fc_w = (fc_w_pt.T.reshape(cout1, OH2, OW2, CONV_OUTPUT)
            .transpose(1, 2, 0, 3).reshape(N1, CONV_OUTPUT))
    p["fc_w"] = jnp.asarray(fc_w, dtype=jnp.bfloat16)
    p["fc_b"] = fc_b.reshape(1, CONV_OUTPUT)

    # --- 2-layer LSTM, input 128, hidden 128 (PyTorch gate order i,f,g,o) ---
    H = RNN_NEURONS
    wih0 = _uniform(next(keys), (4 * H, CONV_OUTPUT), H)
    whh0 = _uniform(next(keys), (4 * H, H), H)
    bih0 = _uniform(next(keys), (4 * H,), H)
    bhh0 = _uniform(next(keys), (4 * H,), H)
    p["lstm0_wih_t"] = jnp.asarray(wih0.T, dtype=jnp.bfloat16)          # (128, 512)
    p["lstm0_whh_t"] = jnp.asarray(whh0.T, dtype=jnp.bfloat16)          # (128, 512)
    p["lstm0_b"] = (bih0 + bhh0).reshape(1, 4 * H)

    wih1 = _uniform(next(keys), (4 * H, H), H)
    whh1 = _uniform(next(keys), (4 * H, H), H)
    bih1 = _uniform(next(keys), (4 * H,), H)
    bhh1 = _uniform(next(keys), (4 * H,), H)
    p["lstm1_w_cat"] = jnp.asarray(jnp.concatenate([wih1.T, whh1.T], axis=0),
                                   dtype=jnp.bfloat16)                  # (256, 512)
    p["lstm1_b"] = (bih1 + bhh1).reshape(1, 4 * H)

    # --- MLP: 128 -> 128 -> 64 -> 6 ---
    dims = [H, FC_NEURONS[0], FC_NEURONS[1], OUTPUT_SIZE]
    for i in range(3):
        w = _uniform(next(keys), (dims[i + 1], dims[i]), dims[i])
        b = _uniform(next(keys), (dims[i + 1],), dims[i])
        p[f"mlp{i}_w"] = jnp.asarray(w.T, dtype=jnp.bfloat16)
        p[f"mlp{i}_b"] = b.reshape(1, dims[i + 1])
    return p


# -------------------------------- forward ------------------------------------
@jax.jit
def tactile_placing_net_forward(params, x, gr, ft):
    """x: (B, sensors=2, T, H, W); gr: (B, 4); ft: (B, 6).
    gr / ft unused (with_gripper=False, with_ft=False), kept for signature parity.
    Returns rotation matrices (B, 3, 3) (output_type=ortho6d)."""
    del gr, ft
    B, S, T, hh, ww = x.shape
    H = RNN_NEURONS

    # Row-major-contiguous reshape (free) -- everything else is in the kernel.
    x4 = x.reshape(B, S, T, hh * ww).astype(jnp.float32)

    args = (x4,
            params["w0exp"], params["bn0_scale"], params["bn0_shift"],
            params["w1exp"], params["bn1_scale"], params["bn1_shift"],
            params["fc_w"], params["fc_b"],
            params["lstm0_wih_t"], params["lstm0_b"], params["lstm0_whh_t"],
            params["lstm1_w_cat"], params["lstm1_b"],
            params["mlp0_w"], params["mlp0_b"],
            params["mlp1_w"], params["mlp1_b"],
            params["mlp2_w"], params["mlp2_b"])

    nb = B * T
    flops = (2 * nb * (K0 * N0 + N0 * N1 + N1 * CONV_OUTPUT + CONV_OUTPUT * 4 * H)
             + 2 * B * T * (H * 4 * H + 2 * H * 4 * H)
             + 2 * B * (H * FC_NEURONS[0] + FC_NEURONS[0] * FC_NEURONS[1]
                        + FC_NEURONS[1] * OUTPUT_SIZE))
    transcendentals = B * T * RNN_LAYERS * 5 * H
    bytes_accessed = sum(int(a.size) * int(a.dtype.itemsize) for a in args) + B * 9 * 4

    # grid=() on purpose: the whole working set is < 4 MiB and the forward is
    # launch/latency bound at B*T=16; a "parallel" grid axis (v7x 2nd TC) only
    # pays off for much larger batches.
    out9 = pl.pallas_call(
        functools.partial(_fused_kernel, B=B, T=T, H=H),
        out_shape=jax.ShapeDtypeStruct((B, 9), jnp.float32),
        in_specs=[pl.BlockSpec(memory_space=pltpu.MemorySpace.VMEM)] * len(args),
        out_specs=pl.BlockSpec(memory_space=pltpu.MemorySpace.VMEM),
        cost_estimate=pl.CostEstimate(flops=int(flops),
                                      transcendentals=int(transcendentals),
                                      bytes_accessed=int(bytes_accessed)),
    )(*args)

    return out9.reshape(B, 3, 3)


# --------------------------------- main ---------------------------------------
if __name__ == "__main__":
    key = jax.random.PRNGKey(0)
    kx, kg, kf, kp = jax.random.split(key, 4)

    B, SENSORS, T, Hd, Wd = 2, 2, 8, INPUT_DIM[0], INPUT_DIM[1]
    x = jax.random.normal(kx, (B, SENSORS, T, Hd, Wd), jnp.float32)
    gr = jax.random.normal(kg, (B, 4), jnp.float32)
    ft = jax.random.normal(kf, (B, 6), jnp.float32)

    params = init_params(kp)

    out = tactile_placing_net_forward(params, x, gr, ft)
    out = jax.block_until_ready(out)
    assert out.shape == (B, 3, 3) and out.dtype == jnp.float32
    print("KERNEL_OK")
</pallas_src>

<mosaic_0001>
module attributes {stable_mosaic.version = 11 : i64} {
  func.func @_fused_kernel(%arg0: memref<2x2x8x256xf32, #tpu.memory_space<vmem>>, %arg1: memref<512x1152xbf16, #tpu.memory_space<vmem>>, %arg2: memref<1x1152xf32, #tpu.memory_space<vmem>>, %arg3: memref<1x1152xf32, #tpu.memory_space<vmem>>, %arg4: memref<1152x256xbf16, #tpu.memory_space<vmem>>, %arg5: memref<1x256xf32, #tpu.memory_space<vmem>>, %arg6: memref<1x256xf32, #tpu.memory_space<vmem>>, %arg7: memref<256x128xbf16, #tpu.memory_space<vmem>>, %arg8: memref<1x128xf32, #tpu.memory_space<vmem>>, %arg9: memref<128x512xbf16, #tpu.memory_space<vmem>>, %arg10: memref<1x512xf32, #tpu.memory_space<vmem>>, %arg11: memref<128x512xbf16, #tpu.memory_space<vmem>>, %arg12: memref<256x512xbf16, #tpu.memory_space<vmem>>, %arg13: memref<1x512xf32, #tpu.memory_space<vmem>>, %arg14: memref<128x128xbf16, #tpu.memory_space<vmem>>, %arg15: memref<1x128xf32, #tpu.memory_space<vmem>>, %arg16: memref<128x64xbf16, #tpu.memory_space<vmem>>, %arg17: memref<1x64xf32, #tpu.memory_space<vmem>>, %arg18: memref<64x6xbf16, #tpu.memory_space<vmem>>, %arg19: memref<1x6xf32, #tpu.memory_space<vmem>>, %arg20: memref<2x9xf32, #tpu.memory_space<vmem>>) attributes {dimension_semantics = [], scalar_prefetch = 0 : i64, scratch_operands = 0 : i64, tpu.core_type = #tpu.core_type<tc>} {
    %c0 = arith.constant 0 : index
    %c0_0 = arith.constant 0 : index
    %c0_1 = arith.constant 0 : index
    %c0_2 = arith.constant 0 : index
    %0 = vector.load %arg0[%c0, %c0_0, %c0_1, %c0_2] : memref<2x2x8x256xf32, #tpu.memory_space<vmem>>, vector<2x2x8x256xf32>
    %1 = vector.extract_strided_slice %0 {offsets = [0, 0, 0, 0], sizes = [2, 1, 8, 256], strides = [1, 1, 1, 1]} : vector<2x2x8x256xf32> to vector<2x1x8x256xf32>
    %2 = vector.shape_cast %1 : vector<2x1x8x256xf32> to vector<2x8x256xf32>
    %3 = vector.extract_strided_slice %0 {offsets = [0, 1, 0, 0], sizes = [2, 1, 8, 256], strides = [1, 1, 1, 1]} : vector<2x2x8x256xf32> to vector<2x1x8x256xf32>
    %4 = vector.shape_cast %3 : vector<2x1x8x256xf32> to vector<2x8x256xf32>
    %5 = tpu.concatenate %2, %4 in 2 : vector<2x8x256xf32>, vector<2x8x256xf32> -> vector<2x8x512xf32>
    %6 = vector.shape_cast %5 : vector<2x8x512xf32> to vector<16x512xf32>
    %7 = arith.truncf %6 : vector<16x512xf32> to vector<16x512xbf16>
    %c0_3 = arith.constant 0 : index
    %c0_4 = arith.constant 0 : index
    %8 = vector.load %arg1[%c0_3, %c0_4] : memref<512x1152xbf16, #tpu.memory_space<vmem>>, vector<512x1152xbf16>
    %cst = arith.constant dense<0.000000e+00> : vector<16x1152xf32>
    %9 = tpu.matmul %7, %8, %cst {dimension_numbers = #tpu.dot_dimension_numbers<[1], [0], [0], [1], [0, 0, 1, 1], [], []>} : vector<16x512xbf16>, vector<512x1152xbf16>, vector<16x1152xf32> -> vector<16x1152xf32>
    %c0_5 = arith.constant 0 : index
    %c0_6 = arith.constant 0 : index
    %10 = vector.load %arg2[%c0_5, %c0_6] : memref<1x1152xf32, #tpu.memory_space<vmem>>, vector<1x1152xf32>
    %11 = vector.broadcast %10 : vector<1x1152xf32> to vector<16x1152xf32>
    %12 = arith.mulf %9, %11 : vector<16x1152xf32>
    %c0_7 = arith.constant 0 : index
    %c0_8 = arith.constant 0 : index
    %13 = vector.load %arg3[%c0_7, %c0_8] : memref<1x1152xf32, #tpu.memory_space<vmem>>, vector<1x1152xf32>
    %14 = vector.broadcast %13 : vector<1x1152xf32> to vector<16x1152xf32>
    %15 = arith.addf %12, %14 : vector<16x1152xf32>
    %cst_9 = arith.constant 0.000000e+00 : f32
    %16 = vector.broadcast %cst_9 : f32 to vector<16x1152xf32>
    %17 = arith.maximumf %15, %16 : vector<16x1152xf32>
    %18 = arith.truncf %17 : vector<16x1152xf32> to vector<16x1152xbf16>
    %c0_10 = arith.constant 0 : index
    %c0_11 = arith.constant 0 : index
    %19 = vector.load %arg4[%c0_10, %c0_11] : memref<1152x256xbf16, #tpu.memory_space<vmem>>, vector<1152x256xbf16>
    %cst_12 = arith.constant dense<0.000000e+00> : vector<16x256xf32>
    %20 = tpu.matmul %18, %19, %cst_12 {dimension_numbers = #tpu.dot_dimension_numbers<[1], [0], [0], [1], [0, 0, 1, 1], [], []>} : vector<16x1152xbf16>, vector<1152x256xbf16>, vector<16x256xf32> -> vector<16x256xf32>
    %c0_13 = arith.constant 0 : index
    %c0_14 = arith.constant 0 : index
    %21 = vector.load %arg5[%c0_13, %c0_14] : memref<1x256xf32, #tpu.memory_space<vmem>>, vector<1x256xf32>
    %22 = vector.broadcast %21 : vector<1x256xf32> to vector<16x256xf32>
    %23 = arith.mulf %20, %22 : vector<16x256xf32>
    %c0_15 = arith.constant 0 : index
    %c0_16 = arith.constant 0 : index
    %24 = vector.load %arg6[%c0_15, %c0_16] : memref<1x256xf32, #tpu.memory_space<vmem>>, vector<1x256xf32>
    %25 = vector.broadcast %24 : vector<1x256xf32> to vector<16x256xf32>
    %26 = arith.addf %23, %25 : vector<16x256xf32>
    %cst_17 = arith.constant 0.000000e+00 : f32
    %27 = vector.broadcast %cst_17 : f32 to vector<16x256xf32>
    %28 = arith.maximumf %26, %27 : vector<16x256xf32>
    %29 = arith.truncf %28 : vector<16x256xf32> to vector<16x256xbf16>
    %c0_18 = arith.constant 0 : index
    %c0_19 = arith.constant 0 : index
    %30 = vector.load %arg7[%c0_18, %c0_19] : memref<256x128xbf16, #tpu.memory_space<vmem>>, vector<256x128xbf16>
    %cst_20 = arith.constant dense<0.000000e+00> : vector<16x128xf32>
    %31 = tpu.matmul %29, %30, %cst_20 {dimension_numbers = #tpu.dot_dimension_numbers<[1], [0], [0], [1], [0, 0, 1, 1], [], []>} : vector<16x256xbf16>, vector<256x128xbf16>, vector<16x128xf32> -> vector<16x128xf32>
    %c0_21 = arith.constant 0 : index
    %c0_22 = arith.constant 0 : index
    %32 = vector.load %arg8[%c0_21, %c0_22] : memref<1x128xf32, #tpu.memory_space<vmem>>, vector<1x128xf32>
    %33 = vector.broadcast %32 : vector<1x128xf32> to vector<16x128xf32>
    %34 = arith.addf %31, %33 : vector<16x128xf32>
    %cst_23 = arith.constant 0.000000e+00 : f32
    %35 = vector.broadcast %cst_23 : f32 to vector<16x128xf32>
    %36 = arith.maximumf %34, %35 : vector<16x128xf32>
    %37 = arith.truncf %36 : vector<16x128xf32> to vector<16x128xbf16>
    %c0_24 = arith.constant 0 : index
    %c0_25 = arith.constant 0 : index
    %38 = vector.load %arg9[%c0_24, %c0_25] : memref<128x512xbf16, #tpu.memory_space<vmem>>, vector<128x512xbf16>
    %cst_26 = arith.constant dense<0.000000e+00> : vector<16x512xf32>
    %39 = tpu.matmul %37, %38, %cst_26 {dimension_numbers = #tpu.dot_dimension_numbers<[1], [0], [0], [1], [0, 0, 1, 1], [], []>} : vector<16x128xbf16>, vector<128x512xbf16>, vector<16x512xf32> -> vector<16x512xf32>
    %c0_27 = arith.constant 0 : index
    %c0_28 = arith.constant 0 : index
    %40 = vector.load %arg10[%c0_27, %c0_28] : memref<1x512xf32, #tpu.memory_space<vmem>>, vector<1x512xf32>
    %41 = vector.broadcast %40 : vector<1x512xf32> to vector<16x512xf32>
    %42 = arith.addf %39, %41 : vector<16x512xf32>
    %43 = vector.shape_cast %42 : vector<16x512xf32> to vector<2x8x512xf32>
    %c0_29 = arith.constant 0 : index
    %c0_30 = arith.constant 0 : index
    %44 = vector.load %arg11[%c0_29, %c0_30] : memref<128x512xbf16, #tpu.memory_space<vmem>>, vector<128x512xbf16>
    %c0_31 = arith.constant 0 : index
    %c0_32 = arith.constant 0 : index
    %45 = vector.load %arg12[%c0_31, %c0_32] : memref<256x512xbf16, #tpu.memory_space<vmem>>, vector<256x512xbf16>
    %c0_33 = arith.constant 0 : index
    %c0_34 = arith.constant 0 : index
    %46 = vector.load %arg13[%c0_33, %c0_34] : memref<1x512xf32, #tpu.memory_space<vmem>>, vector<1x512xf32>
    %cst_35 = arith.constant 0.000000e+00 : f32
    %47 = vector.broadcast %cst_35 : f32 to vector<2x128xf32>
    %cst_36 = arith.constant 0.000000e+00 : f32
    %48 = vector.broadcast %cst_36 : f32 to vector<2x128xf32>
    %cst_37 = arith.constant 0.000000e+00 : f32
    %49 = vector.broadcast %cst_37 : f32 to vector<2x128xf32>
    %cst_38 = arith.constant 0.000000e+00 : f32
    %50 = vector.broadcast %cst_38 : f32 to vector<2x128xf32>
    %51 = vector.extract_strided_slice %43 {offsets = [0, 0, 0], sizes = [2, 1, 512], strides = [1, 1, 1]} : vector<2x8x512xf32> to vector<2x1x512xf32>
    %52 = vector.shape_cast %51 : vector<2x1x512xf32> to vector<2x512xf32>
    %53 = arith.truncf %47 : vector<2x128xf32> to vector<2x128xbf16>
    %cst_39 = arith.constant dense<0.000000e+00> : vector<2x512xf32>
    %54 = tpu.matmul %53, %44, %cst_39 {dimension_numbers = #tpu.dot_dimension_numbers<[1], [0], [0], [1], [0, 0, 1, 1], [], []>} : vector<2x128xbf16>, vector<128x512xbf16>, vector<2x512xf32> -> vector<2x512xf32>
    %55 = arith.addf %52, %54 : vector<2x512xf32>
    %56 = vector.extract_strided_slice %55 {offsets = [0, 0], sizes = [2, 128], strides = [1, 1]} : vector<2x512xf32> to vector<2x128xf32>
    %57 = arith.negf %56 : vector<2x128xf32>
    %58 = math.exp %57 : vector<2x128xf32>
    %cst_40 = arith.constant 1.000000e+00 : f32
    %59 = vector.broadcast %cst_40 : f32 to vector<2x128xf32>
    %60 = arith.addf %59, %58 : vector<2x128xf32>
    %61 = arith.divf %59, %60 : vector<2x128xf32>
    %62 = vector.extract_strided_slice %55 {offsets = [0, 128], sizes = [2, 128], strides = [1, 1]} : vector<2x512xf32> to vector<2x128xf32>
    %63 = arith.negf %62 : vector<2x128xf32>
    %64 = math.exp %63 : vector<2x128xf32>
    %cst_41 = arith.constant 1.000000e+00 : f32
    %65 = vector.broadcast %cst_41 : f32 to vector<2x128xf32>
    %66 = arith.addf %65, %64 : vector<2x128xf32>
    %67 = arith.divf %65, %66 : vector<2x128xf32>
    %68 = vector.extract_strided_slice %55 {offsets = [0, 256], sizes = [2, 128], strides = [1, 1]} : vector<2x512xf32> to vector<2x128xf32>
    %69 = math.tanh %68 : vector<2x128xf32>
    %70 = vector.extract_strided_slice %55 {offsets = [0, 384], sizes = [2, 128], strides = [1, 1]} : vector<2x512xf32> to vector<2x128xf32>
    %71 = arith.negf %70 : vector<2x128xf32>
    %72 = math.exp %71 : vector<2x128xf32>
    %cst_42 = arith.constant 1.000000e+00 : f32
    %73 = vector.broadcast %cst_42 : f32 to vector<2x128xf32>
    %74 = arith.addf %73, %72 : vector<2x128xf32>
    %75 = arith.divf %73, %74 : vector<2x128xf32>
    %76 = arith.mulf %67, %48 : vector<2x128xf32>
    %77 = arith.mulf %61, %69 : vector<2x128xf32>
    %78 = arith.addf %76, %77 : vector<2x128xf32>
    %79 = math.tanh %78 : vector<2x128xf32>
    %80 = arith.mulf %75, %79 : vector<2x128xf32>
    %81 = tpu.concatenate %80, %49 in 1 : vector<2x128xf32>, vector<2x128xf32> -> vector<2x256xf32>
    %82 = arith.truncf %81 : vector<2x256xf32> to vector<2x256xbf16>
    %cst_43 = arith.constant dense<0.000000e+00> : vector<2x512xf32>
    %83 = tpu.matmul %82, %45, %cst_43 {dimension_numbers = #tpu.dot_dimension_numbers<[1], [0], [0], [1], [0, 0, 1, 1], [], []>} : vector<2x256xbf16>, vector<256x512xbf16>, vector<2x512xf32> -> vector<2x512xf32>
    %84 = vector.broadcast %46 : vector<1x512xf32> to vector<2x512xf32>
    %85 = arith.addf %83, %84 : vector<2x512xf32>
    %86 = vector.extract_strided_slice %85 {offsets = [0, 0], sizes = [2, 128], strides = [1, 1]} : vector<2x512xf32> to vector<2x128xf32>
    %87 = arith.negf %86 : vector<2x128xf32>
    %88 = math.exp %87 : vector<2x128xf32>
    %cst_44 = arith.constant 1.000000e+00 : f32
    %89 = vector.broadcast %cst_44 : f32 to vector<2x128xf32>
    %90 = arith.addf %89, %88 : vector<2x128xf32>
    %91 = arith.divf %89, %90 : vector<2x128xf32>
    %92 = vector.extract_strided_slice %85 {offsets = [0, 128], sizes = [2, 128], strides = [1, 1]} : vector<2x512xf32> to vector<2x128xf32>
    %93 = arith.negf %92 : vector<2x128xf32>
    %94 = math.exp %93 : vector<2x128xf32>
    %cst_45 = arith.constant 1.000000e+00 : f32
    %95 = vector.broadcast %cst_45 : f32 to vector<2x128xf32>
    %96 = arith.addf %95, %94 : vector<2x128xf32>
    %97 = arith.divf %95, %96 : vector<2x128xf32>
    %98 = vector.extract_strided_slice %85 {offsets = [0, 256], sizes = [2, 128], strides = [1, 1]} : vector<2x512xf32> to vector<2x128xf32>
    %99 = math.tanh %98 : vector<2x128xf32>
    %100 = vector.extract_strided_slice %85 {offsets = [0, 384], sizes = [2, 128], strides = [1, 1]} : vector<2x512xf32> to vector<2x128xf32>
    %101 = arith.negf %100 : vector<2x128xf32>
    %102 = math.exp %101 : vector<2x128xf32>
    %cst_46 = arith.constant 1.000000e+00 : f32
    %103 = vector.broadcast %cst_46 : f32 to vector<2x128xf32>
    %104 = arith.addf %103, %102 : vector<2x128xf32>
    %105 = arith.divf %103, %104 : vector<2x128xf32>
    %106 = arith.mulf %97, %50 : vector<2x128xf32>
    %107 = arith.mulf %91, %99 : vector<2x128xf32>
    %108 = arith.addf %106, %107 : vector<2x128xf32>
    %109 = math.tanh %108 : vector<2x128xf32>
    %110 = arith.mulf %105, %109 : vector<2x128xf32>
    %111 = vector.extract_strided_slice %43 {offsets = [0, 1, 0], sizes = [2, 1, 512], strides = [1, 1, 1]} : vector<2x8x512xf32> to vector<2x1x512xf32>
    %112 = vector.shape_cast %111 : vector<2x1x512xf32> to vector<2x512xf32>
    %113 = arith.truncf %80 : vector<2x128xf32> to vector<2x128xbf16>
    %cst_47 = arith.constant dense<0.000000e+00> : vector<2x512xf32>
    %114 = tpu.matmul %113, %44, %cst_47 {dimension_numbers = #tpu.dot_dimension_numbers<[1], [0], [0], [1], [0, 0, 1, 1], [], []>} : vector<2x128xbf16>, vector<128x512xbf16>, vector<2x512xf32> -> vector<2x512xf32>
    %115 = arith.addf %112, %114 : vector<2x512xf32>
    %116 = vector.extract_strided_slice %115 {offsets = [0, 0], sizes = [2, 128], strides = [1, 1]} : vector<2x512xf32> to vector<2x128xf32>
    %117 = arith.negf %116 : vector<2x128xf32>
    %118 = math.exp %117 : vector<2x128xf32>
    %cst_48 = arith.constant 1.000000e+00 : f32
    %119 = vector.broadcast %cst_48 : f32 to vector<2x128xf32>
    %120 = arith.addf %119, %118 : vector<2x128xf32>
    %121 = arith.divf %119, %120 : vector<2x128xf32>
    %122 = vector.extract_strided_slice %115 {offsets = [0, 128], sizes = [2, 128], strides = [1, 1]} : vector<2x512xf32> to vector<2x128xf32>
    %123 = arith.negf %122 : vector<2x128xf32>
    %124 = math.exp %123 : vector<2x128xf32>
    %cst_49 = arith.constant 1.000000e+00 : f32
    %125 = vector.broadcast %cst_49 : f32 to vector<2x128xf32>
    %126 = arith.addf %125, %124 : vector<2x128xf32>
    %127 = arith.divf %125, %126 : vector<2x128xf32>
    %128 = vector.extract_strided_slice %115 {offsets = [0, 256], sizes = [2, 128], strides = [1, 1]} : vector<2x512xf32> to vector<2x128xf32>
    %129 = math.tanh %128 : vector<2x128xf32>
    %130 = vector.extract_strided_slice %115 {offsets = [0, 384], sizes = [2, 128], strides = [1, 1]} : vector<2x512xf32> to vector<2x128xf32>
    %131 = arith.negf %130 : vector<2x128xf32>
    %132 = math.exp %131 : vector<2x128xf32>
    %cst_50 = arith.constant 1.000000e+00 : f32
    %133 = vector.broadcast %cst_50 : f32 to vector<2x128xf32>
    %134 = arith.addf %133, %132 : vector<2x128xf32>
    %135 = arith.divf %133, %134 : vector<2x128xf32>
    %136 = arith.mulf %127, %78 : vector<2x128xf32>
    %137 = arith.mulf %121, %129 : vector<2x128xf32>
    %138 = arith.addf %136, %137 : vector<2x128xf32>
    %139 = math.tanh %138 : vector<2x128xf32>
    %140 = arith.mulf %135, %139 : vector<2x128xf32>
    %141 = tpu.concatenate %140, %110 in 1 : vector<2x128xf32>, vector<2x128xf32> -> vector<2x256xf32>
    %142 = arith.truncf %141 : vector<2x256xf32> to vector<2x256xbf16>
    %cst_51 = arith.constant dense<0.000000e+00> : vector<2x512xf32>
    %143 = tpu.matmul %142, %45, %cst_51 {dimension_numbers = #tpu.dot_dimension_numbers<[1], [0], [0], [1], [0, 0, 1, 1], [], []>} : vector<2x256xbf16>, vector<256x512xbf16>, vector<2x512xf32> -> vector<2x512xf32>
    %144 = vector.broadcast %46 : vector<1x512xf32> to vector<2x512xf32>
    %145 = arith.addf %143, %144 : vector<2x512xf32>
    %146 = vector.extract_strided_slice %145 {offsets = [0, 0], sizes = [2, 128], strides = [1, 1]} : vector<2x512xf32> to vector<2x128xf32>
    %147 = arith.negf %146 : vector<2x128xf32>
    %148 = math.exp %147 : vector<2x128xf32>
    %cst_52 = arith.constant 1.000000e+00 : f32
    %149 = vector.broadcast %cst_52 : f32 to vector<2x128xf32>
    %150 = arith.addf %149, %148 : vector<2x128xf32>
    %151 = arith.divf %149, %150 : vector<2x128xf32>
    %152 = vector.extract_strided_slice %145 {offsets = [0, 128], sizes = [2, 128], strides = [1, 1]} : vector<2x512xf32> to vector<2x128xf32>
    %153 = arith.negf %152 : vector<2x128xf32>
    %154 = math.exp %153 : vector<2x128xf32>
    %cst_53 = arith.constant 1.000000e+00 : f32
    %155 = vector.broadcast %cst_53 : f32 to vector<2x128xf32>
    %156 = arith.addf %155, %154 : vector<2x128xf32>
    %157 = arith.divf %155, %156 : vector<2x128xf32>
    %158 = vector.extract_strided_slice %145 {offsets = [0, 256], sizes = [2, 128], strides = [1, 1]} : vector<2x512xf32> to vector<2x128xf32>
    %159 = math.tanh %158 : vector<2x128xf32>
    %160 = vector.extract_strided_slice %145 {offsets = [0, 384], sizes = [2, 128], strides = [1, 1]} : vector<2x512xf32> to vector<2x128xf32>
    %161 = arith.negf %160 : vector<2x128xf32>
    %162 = math.exp %161 : vector<2x128xf32>
    %cst_54 = arith.constant 1.000000e+00 : f32
    %163 = vector.broadcast %cst_54 : f32 to vector<2x128xf32>
    %164 = arith.addf %163, %162 : vector<2x128xf32>
    %165 = arith.divf %163, %164 : vector<2x128xf32>
    %166 = arith.mulf %157, %108 : vector<2x128xf32>
    %167 = arith.mulf %151, %159 : vector<2x128xf32>
    %168 = arith.addf %166, %167 : vector<2x128xf32>
    %169 = math.tanh %168 : vector<2x128xf32>
    %170 = arith.mulf %165, %169 : vector<2x128xf32>
    %171 = vector.extract_strided_slice %43 {offsets = [0, 2, 0], sizes = [2, 1, 512], strides = [1, 1, 1]} : vector<2x8x512xf32> to vector<2x1x512xf32>
    %172 = vector.shape_cast %171 : vector<2x1x512xf32> to vector<2x512xf32>
    %173 = arith.truncf %140 : vector<2x128xf32> to vector<2x128xbf16>
    %cst_55 = arith.constant dense<0.000000e+00> : vector<2x512xf32>
    %174 = tpu.matmul %173, %44, %cst_55 {dimension_numbers = #tpu.dot_dimension_numbers<[1], [0], [0], [1], [0, 0, 1, 1], [], []>} : vector<2x128xbf16>, vector<128x512xbf16>, vector<2x512xf32> -> vector<2x512xf32>
    %175 = arith.addf %172, %174 : vector<2x512xf32>
    %176 = vector.extract_strided_slice %175 {offsets = [0, 0], sizes = [2, 128], strides = [1, 1]} : vector<2x512xf32> to vector<2x128xf32>
    %177 = arith.negf %176 : vector<2x128xf32>
    %178 = math.exp %177 : vector<2x128xf32>
    %cst_56 = arith.constant 1.000000e+00 : f32
    %179 = vector.broadcast %cst_56 : f32 to vector<2x128xf32>
    %180 = arith.addf %179, %178 : vector<2x128xf32>
    %181 = arith.divf %179, %180 : vector<2x128xf32>
    %182 = vector.extract_strided_slice %175 {offsets = [0, 128], sizes = [2, 128], strides = [1, 1]} : vector<2x512xf32> to vector<2x128xf32>
    %183 = arith.negf %182 : vector<2x128xf32>
    %184 = math.exp %183 : vector<2x128xf32>
    %cst_57 = arith.constant 1.000000e+00 : f32
    %185 = vector.broadcast %cst_57 : f32 to vector<2x128xf32>
    %186 = arith.addf %185, %184 : vector<2x128xf32>
    %187 = arith.divf %185, %186 : vector<2x128xf32>
    %188 = vector.extract_strided_slice %175 {offsets = [0, 256], sizes = [2, 128], strides = [1, 1]} : vector<2x512xf32> to vector<2x128xf32>
    %189 = math.tanh %188 : vector<2x128xf32>
    %190 = vector.extract_strided_slice %175 {offsets = [0, 384], sizes = [2, 128], strides = [1, 1]} : vector<2x512xf32> to vector<2x128xf32>
    %191 = arith.negf %190 : vector<2x128xf32>
    %192 = math.exp %191 : vector<2x128xf32>
    %cst_58 = arith.constant 1.000000e+00 : f32
    %193 = vector.broadcast %cst_58 : f32 to vector<2x128xf32>
    %194 = arith.addf %193, %192 : vector<2x128xf32>
    %195 = arith.divf %193, %194 : vector<2x128xf32>
    %196 = arith.mulf %187, %138 : vector<2x128xf32>
    %197 = arith.mulf %181, %189 : vector<2x128xf32>
    %198 = arith.addf %196, %197 : vector<2x128xf32>
    %199 = math.tanh %198 : vector<2x128xf32>
    %200 = arith.mulf %195, %199 : vector<2x128xf32>
    %201 = tpu.concatenate %200, %170 in 1 : vector<2x128xf32>, vector<2x128xf32> -> vector<2x256xf32>
    %202 = arith.truncf %201 : vector<2x256xf32> to vector<2x256xbf16>
    %cst_59 = arith.constant dense<0.000000e+00> : vector<2x512xf32>
    %203 = tpu.matmul %202, %45, %cst_59 {dimension_numbers = #tpu.dot_dimension_numbers<[1], [0], [0], [1], [0, 0, 1, 1], [], []>} : vector<2x256xbf16>, vector<256x512xbf16>, vector<2x512xf32> -> vector<2x512xf32>
    %204 = vector.broadcast %46 : vector<1x512xf32> to vector<2x512xf32>
    %205 = arith.addf %203, %204 : vector<2x512xf32>
    %206 = vector.extract_strided_slice %205 {offsets = [0, 0], sizes = [2, 128], strides = [1, 1]} : vector<2x512xf32> to vector<2x128xf32>
    %207 = arith.negf %206 : vector<2x128xf32>
    %208 = math.exp %207 : vector<2x128xf32>
    %cst_60 = arith.constant 1.000000e+00 : f32
    %209 = vector.broadcast %cst_60 : f32 to vector<2x128xf32>
    %210 = arith.addf %209, %208 : vector<2x128xf32>
    %211 = arith.divf %209, %210 : vector<2x128xf32>
    %212 = vector.extract_strided_slice %205 {offsets = [0, 128], sizes = [2, 128], strides = [1, 1]} : vector<2x512xf32> to vector<2x128xf32>
    %213 = arith.negf %212 : vector<2x128xf32>
    %214 = math.exp %213 : vector<2x128xf32>
    %cst_61 = arith.constant 1.000000e+00 : f32
    %215 = vector.broadcast %cst_61 : f32 to vector<2x128xf32>
    %216 = arith.addf %215, %214 : vector<2x128xf32>
    %217 = arith.divf %215, %216 : vector<2x128xf32>
    %218 = vector.extract_strided_slice %205 {offsets = [0, 256], sizes = [2, 128], strides = [1, 1]} : vector<2x512xf32> to vector<2x128xf32>
    %219 = math.tanh %218 : vector<2x128xf32>
    %220 = vector.extract_strided_slice %205 {offsets = [0, 384], sizes = [2, 128], strides = [1, 1]} : vector<2x512xf32> to vector<2x128xf32>
    %221 = arith.negf %220 : vector<2x128xf32>
    %222 = math.exp %221 : vector<2x128xf32>
    %cst_62 = arith.constant 1.000000e+00 : f32
    %223 = vector.broadcast %cst_62 : f32 to vector<2x128xf32>
    %224 = arith.addf %223, %222 : vector<2x128xf32>
    %225 = arith.divf %223, %224 : vector<2x128xf32>
    %226 = arith.mulf %217, %168 : vector<2x128xf32>
    %227 = arith.mulf %211, %219 : vector<2x128xf32>
    %228 = arith.addf %226, %227 : vector<2x128xf32>
    %229 = math.tanh %228 : vector<2x128xf32>
    %230 = arith.mulf %225, %229 : vector<2x128xf32>
    %231 = vector.extract_strided_slice %43 {offsets = [0, 3, 0], sizes = [2, 1, 512], strides = [1, 1, 1]} : vector<2x8x512xf32> to vector<2x1x512xf32>
    %232 = vector.shape_cast %231 : vector<2x1x512xf32> to vector<2x512xf32>
    %233 = arith.truncf %200 : vector<2x128xf32> to vector<2x128xbf16>
    %cst_63 = arith.constant dense<0.000000e+00> : vector<2x512xf32>
    %234 = tpu.matmul %233, %44, %cst_63 {dimension_numbers = #tpu.dot_dimension_numbers<[1], [0], [0], [1], [0, 0, 1, 1], [], []>} : vector<2x128xbf16>, vector<128x512xbf16>, vector<2x512xf32> -> vector<2x512xf32>
    %235 = arith.addf %232, %234 : vector<2x512xf32>
    %236 = vector.extract_strided_slice %235 {offsets = [0, 0], sizes = [2, 128], strides = [1, 1]} : vector<2x512xf32> to vector<2x128xf32>
    %237 = arith.negf %236 : vector<2x128xf32>
    %238 = math.exp %237 : vector<2x128xf32>
    %cst_64 = arith.constant 1.000000e+00 : f32
    %239 = vector.broadcast %cst_64 : f32 to vector<2x128xf32>
    %240 = arith.addf %239, %238 : vector<2x128xf32>
    %241 = arith.divf %239, %240 : vector<2x128xf32>
    %242 = vector.extract_strided_slice %235 {offsets = [0, 128], sizes = [2, 128], strides = [1, 1]} : vector<2x512xf32> to vector<2x128xf32>
    %243 = arith.negf %242 : vector<2x128xf32>
    %244 = math.exp %243 : vector<2x128xf32>
    %cst_65 = arith.constant 1.000000e+00 : f32
    %245 = vector.broadcast %cst_65 : f32 to vector<2x128xf32>
    %246 = arith.addf %245, %244 : vector<2x128xf32>
    %247 = arith.divf %245, %246 : vector<2x128xf32>
    %248 = vector.extract_strided_slice %235 {offsets = [0, 256], sizes = [2, 128], strides = [1, 1]} : vector<2x512xf32> to vector<2x128xf32>
    %249 = math.tanh %248 : vector<2x128xf32>
    %250 = vector.extract_strided_slice %235 {offsets = [0, 384], sizes = [2, 128], strides = [1, 1]} : vector<2x512xf32> to vector<2x128xf32>
    %251 = arith.negf %250 : vector<2x128xf32>
    %252 = math.exp %251 : vector<2x128xf32>
    %cst_66 = arith.constant 1.000000e+00 : f32
    %253 = vector.broadcast %cst_66 : f32 to vector<2x128xf32>
    %254 = arith.addf %253, %252 : vector<2x128xf32>
    %255 = arith.divf %253, %254 : vector<2x128xf32>
    %256 = arith.mulf %247, %198 : vector<2x128xf32>
    %257 = arith.mulf %241, %249 : vector<2x128xf32>
    %258 = arith.addf %256, %257 : vector<2x128xf32>
    %259 = math.tanh %258 : vector<2x128xf32>
    %260 = arith.mulf %255, %259 : vector<2x128xf32>
    %261 = tpu.concatenate %260, %230 in 1 : vector<2x128xf32>, vector<2x128xf32> -> vector<2x256xf32>
    %262 = arith.truncf %261 : vector<2x256xf32> to vector<2x256xbf16>
    %cst_67 = arith.constant dense<0.000000e+00> : vector<2x512xf32>
    %263 = tpu.matmul %262, %45, %cst_67 {dimension_numbers = #tpu.dot_dimension_numbers<[1], [0], [0], [1], [0, 0, 1, 1], [], []>} : vector<2x256xbf16>, vector<256x512xbf16>, vector<2x512xf32> -> vector<2x512xf32>
    %264 = vector.broadcast %46 : vector<1x512xf32> to vector<2x512xf32>
    %265 = arith.addf %263, %264 : vector<2x512xf32>
    %266 = vector.extract_strided_slice %265 {offsets = [0, 0], sizes = [2, 128], strides = [1, 1]} : vector<2x512xf32> to vector<2x128xf32>
    %267 = arith.negf %266 : vector<2x128xf32>
    %268 = math.exp %267 : vector<2x128xf32>
    %cst_68 = arith.constant 1.000000e+00 : f32
    %269 = vector.broadcast %cst_68 : f32 to vector<2x128xf32>
    %270 = arith.addf %269, %268 : vector<2x128xf32>
    %271 = arith.divf %269, %270 : vector<2x128xf32>
    %272 = vector.extract_strided_slice %265 {offsets = [0, 128], sizes = [2, 128], strides = [1, 1]} : vector<2x512xf32> to vector<2x128xf32>
    %273 = arith.negf %272 : vector<2x128xf32>
    %274 = math.exp %273 : vector<2x128xf32>
    %cst_69 = arith.constant 1.000000e+00 : f32
    %275 = vector.broadcast %cst_69 : f32 to vector<2x128xf32>
    %276 = arith.addf %275, %274 : vector<2x128xf32>
    %277 = arith.divf %275, %276 : vector<2x128xf32>
    %278 = vector.extract_strided_slice %265 {offsets = [0, 256], sizes = [2, 128], strides = [1, 1]} : vector<2x512xf32> to vector<2x128xf32>
    %279 = math.tanh %278 : vector<2x128xf32>
    %280 = vector.extract_strided_slice %265 {offsets = [0, 384], sizes = [2, 128], strides = [1, 1]} : vector<2x512xf32> to vector<2x128xf32>
    %281 = arith.negf %280 : vector<2x128xf32>
    %282 = math.exp %281 : vector<2x128xf32>
    %cst_70 = arith.constant 1.000000e+00 : f32
    %283 = vector.broadcast %cst_70 : f32 to vector<2x128xf32>
    %284 = arith.addf %283, %282 : vector<2x128xf32>
    %285 = arith.divf %283, %284 : vector<2x128xf32>
    %286 = arith.mulf %277, %228 : vector<2x128xf32>
    %287 = arith.mulf %271, %279 : vector<2x128xf32>
    %288 = arith.addf %286, %287 : vector<2x128xf32>
    %289 = math.tanh %288 : vector<2x128xf32>
    %290 = arith.mulf %285, %289 : vector<2x128xf32>
    %291 = vector.extract_strided_slice %43 {offsets = [0, 4, 0], sizes = [2, 1, 512], strides = [1, 1, 1]} : vector<2x8x512xf32> to vector<2x1x512xf32>
    %292 = vector.shape_cast %291 : vector<2x1x512xf32> to vector<2x512xf32>
    %293 = arith.truncf %260 : vector<2x128xf32> to vector<2x128xbf16>
    %cst_71 = arith.constant dense<0.000000e+00> : vector<2x512xf32>
    %294 = tpu.matmul %293, %44, %cst_71 {dimension_numbers = #tpu.dot_dimension_numbers<[1], [0], [0], [1], [0, 0, 1, 1], [], []>} : vector<2x128xbf16>, vector<128x512xbf16>, vector<2x512xf32> -> vector<2x512xf32>
    %295 = arith.addf %292, %294 : vector<2x512xf32>
    %296 = vector.extract_strided_slice %295 {offsets = [0, 0], sizes = [2, 128], strides = [1, 1]} : vector<2x512xf32> to vector<2x128xf32>
    %297 = arith.negf %296 : vector<2x128xf32>
    %298 = math.exp %297 : vector<2x128xf32>
    %cst_72 = arith.constant 1.000000e+00 : f32
    %299 = vector.broadcast %cst_72 : f32 to vector<2x128xf32>
    %300 = arith.addf %299, %298 : vector<2x128xf32>
    %301 = arith.divf %299, %300 : vector<2x128xf32>
    %302 = vector.extract_strided_slice %295 {offsets = [0, 128], sizes = [2, 128], strides = [1, 1]} : vector<2x512xf32> to vector<2x128xf32>
    %303 = arith.negf %302 : vector<2x128xf32>
    %304 = math.exp %303 : vector<2x128xf32>
    %cst_73 = arith.constant 1.000000e+00 : f32
    %305 = vector.broadcast %cst_73 : f32 to vector<2x128xf32>
    %306 = arith.addf %305, %304 : vector<2x128xf32>
    %307 = arith.divf %305, %306 : vector<2x128xf32>
    %308 = vector.extract_strided_slice %295 {offsets = [0, 256], sizes = [2, 128], strides = [1, 1]} : vector<2x512xf32> to vector<2x128xf32>
    %309 = math.tanh %308 : vector<2x128xf32>
    %310 = vector.extract_strided_slice %295 {offsets = [0, 384], sizes = [2, 128], strides = [1, 1]} : vector<2x512xf32> to vector<2x128xf32>
    %311 = arith.negf %310 : vector<2x128xf32>
    %312 = math.exp %311 : vector<2x128xf32>
    %cst_74 = arith.constant 1.000000e+00 : f32
    %313 = vector.broadcast %cst_74 : f32 to vector<2x128xf32>
    %314 = arith.addf %313, %312 : vector<2x128xf32>
    %315 = arith.divf %313, %314 : vector<2x128xf32>
    %316 = arith.mulf %307, %258 : vector<2x128xf32>
    %317 = arith.mulf %301, %309 : vector<2x128xf32>
    %318 = arith.addf %316, %317 : vector<2x128xf32>
    %319 = math.tanh %318 : vector<2x128xf32>
    %320 = arith.mulf %315, %319 : vector<2x128xf32>
    %321 = tpu.concatenate %320, %290 in 1 : vector<2x128xf32>, vector<2x128xf32> -> vector<2x256xf32>
    %322 = arith.truncf %321 : vector<2x256xf32> to vector<2x256xbf16>
    %cst_75 = arith.constant dense<0.000000e+00> : vector<2x512xf32>
    %323 = tpu.matmul %322, %45, %cst_75 {dimension_numbers = #tpu.dot_dimension_numbers<[1], [0], [0], [1], [0, 0, 1, 1], [], []>} : vector<2x256xbf16>, vector<256x512xbf16>, vector<2x512xf32> -> vector<2x512xf32>
    %324 = vector.broadcast %46 : vector<1x512xf32> to vector<2x512xf32>
    %325 = arith.addf %323, %324 : vector<2x512xf32>
    %326 = vector.extract_strided_slice %325 {offsets = [0, 0], sizes = [2, 128], strides = [1, 1]} : vector<2x512xf32> to vector<2x128xf32>
    %327 = arith.negf %326 : vector<2x128xf32>
    %328 = math.exp %327 : vector<2x128xf32>
    %cst_76 = arith.constant 1.000000e+00 : f32
    %329 = vector.broadcast %cst_76 : f32 to vector<2x128xf32>
    %330 = arith.addf %329, %328 : vector<2x128xf32>
    %331 = arith.divf %329, %330 : vector<2x128xf32>
    %332 = vector.extract_strided_slice %325 {offsets = [0, 128], sizes = [2, 128], strides = [1, 1]} : vector<2x512xf32> to vector<2x128xf32>
    %333 = arith.negf %332 : vector<2x128xf32>
    %334 = math.exp %333 : vector<2x128xf32>
    %cst_77 = arith.constant 1.000000e+00 : f32
    %335 = vector.broadcast %cst_77 : f32 to vector<2x128xf32>
    %336 = arith.addf %335, %334 : vector<2x128xf32>
    %337 = arith.divf %335, %336 : vector<2x128xf32>
    %338 = vector.extract_strided_slice %325 {offsets = [0, 256], sizes = [2, 128], strides = [1, 1]} : vector<2x512xf32> to vector<2x128xf32>
    %339 = math.tanh %338 : vector<2x128xf32>
    %340 = vector.extract_strided_slice %325 {offsets = [0, 384], sizes = [2, 128], strides = [1, 1]} : vector<2x512xf32> to vector<2x128xf32>
    %341 = arith.negf %340 : vector<2x128xf32>
    %342 = math.exp %341 : vector<2x128xf32>
    %cst_78 = arith.constant 1.000000e+00 : f32
    %343 = vector.broadcast %cst_78 : f32 to vector<2x128xf32>
    %344 = arith.addf %343, %342 : vector<2x128xf32>
    %345 = arith.divf %343, %344 : vector<2x128xf32>
    %346 = arith.mulf %337, %288 : vector<2x128xf32>
    %347 = arith.mulf %331, %339 : vector<2x128xf32>
    %348 = arith.addf %346, %347 : vector<2x128xf32>
    %349 = math.tanh %348 : vector<2x128xf32>
    %350 = arith.mulf %345, %349 : vector<2x128xf32>
    %351 = vector.extract_strided_slice %43 {offsets = [0, 5, 0], sizes = [2, 1, 512], strides = [1, 1, 1]} : vector<2x8x512xf32> to vector<2x1x512xf32>
    %352 = vector.shape_cast %351 : vector<2x1x512xf32> to vector<2x512xf32>
    %353 = arith.truncf %320 : vector<2x128xf32> to vector<2x128xbf16>
    %cst_79 = arith.constant dense<0.000000e+00> : vector<2x512xf32>
    %354 = tpu.matmul %353, %44, %cst_79 {dimension_numbers = #tpu.dot_dimension_numbers<[1], [0], [0], [1], [0, 0, 1, 1], [], []>} : vector<2x128xbf16>, vector<128x512xbf16>, vector<2x512xf32> -> vector<2x512xf32>
    %355 = arith.addf %352, %354 : vector<2x512xf32>
    %356 = vector.extract_strided_slice %355 {offsets = [0, 0], sizes = [2, 128], strides = [1, 1]} : vector<2x512xf32> to vector<2x128xf32>
    %357 = arith.negf %356 : vector<2x128xf32>
    %358 = math.exp %357 : vector<2x128xf32>
    %cst_80 = arith.constant 1.000000e+00 : f32
    %359 = vector.broadcast %cst_80 : f32 to vector<2x128xf32>
    %360 = arith.addf %359, %358 : vector<2x128xf32>
    %361 = arith.divf %359, %360 : vector<2x128xf32>
    %362 = vector.extract_strided_slice %355 {offsets = [0, 128], sizes = [2, 128], strides = [1, 1]} : vector<2x512xf32> to vector<2x128xf32>
    %363 = arith.negf %362 : vector<2x128xf32>
    %364 = math.exp %363 : vector<2x128xf32>
    %cst_81 = arith.constant 1.000000e+00 : f32
    %365 = vector.broadcast %cst_81 : f32 to vector<2x128xf32>
    %366 = arith.addf %365, %364 : vector<2x128xf32>
    %367 = arith.divf %365, %366 : vector<2x128xf32>
    %368 = vector.extract_strided_slice %355 {offsets = [0, 256], sizes = [2, 128], strides = [1, 1]} : vector<2x512xf32> to vector<2x128xf32>
    %369 = math.tanh %368 : vector<2x128xf32>
    %370 = vector.extract_strided_slice %355 {offsets = [0, 384], sizes = [2, 128], strides = [1, 1]} : vector<2x512xf32> to vector<2x128xf32>
    %371 = arith.negf %370 : vector<2x128xf32>
    %372 = math.exp %371 : vector<2x128xf32>
    %cst_82 = arith.constant 1.000000e+00 : f32
    %373 = vector.broadcast %cst_82 : f32 to vector<2x128xf32>
    %374 = arith.addf %373, %372 : vector<2x128xf32>
    %375 = arith.divf %373, %374 : vector<2x128xf32>
    %376 = arith.mulf %367, %318 : vector<2x128xf32>
    %377 = arith.mulf %361, %369 : vector<2x128xf32>
    %378 = arith.addf %376, %377 : vector<2x128xf32>
    %379 = math.tanh %378 : vector<2x128xf32>
    %380 = arith.mulf %375, %379 : vector<2x128xf32>
    %381 = tpu.concatenate %380, %350 in 1 : vector<2x128xf32>, vector<2x128xf32> -> vector<2x256xf32>
    %382 = arith.truncf %381 : vector<2x256xf32> to vector<2x256xbf16>
    %cst_83 = arith.constant dense<0.000000e+00> : vector<2x512xf32>
    %383 = tpu.matmul %382, %45, %cst_83 {dimension_numbers = #tpu.dot_dimension_numbers<[1], [0], [0], [1], [0, 0, 1, 1], [], []>} : vector<2x256xbf16>, vector<256x512xbf16>, vector<2x512xf32> -> vector<2x512xf32>
    %384 = vector.broadcast %46 : vector<1x512xf32> to vector<2x512xf32>
    %385 = arith.addf %383, %384 : vector<2x512xf32>
    %386 = vector.extract_strided_slice %385 {offsets = [0, 0], sizes = [2, 128], strides = [1, 1]} : vector<2x512xf32> to vector<2x128xf32>
    %387 = arith.negf %386 : vector<2x128xf32>
    %388 = math.exp %387 : vector<2x128xf32>
    %cst_84 = arith.constant 1.000000e+00 : f32
    %389 = vector.broadcast %cst_84 : f32 to vector<2x128xf32>
    %390 = arith.addf %389, %388 : vector<2x128xf32>
    %391 = arith.divf %389, %390 : vector<2x128xf32>
    %392 = vector.extract_strided_slice %385 {offsets = [0, 128], sizes = [2, 128], strides = [1, 1]} : vector<2x512xf32> to vector<2x128xf32>
    %393 = arith.negf %392 : vector<2x128xf32>
    %394 = math.exp %393 : vector<2x128xf32>
    %cst_85 = arith.constant 1.000000e+00 : f32
    %395 = vector.broadcast %cst_85 : f32 to vector<2x128xf32>
    %396 = arith.addf %395, %394 : vector<2x128xf32>
    %397 = arith.divf %395, %396 : vector<2x128xf32>
    %398 = vector.extract_strided_slice %385 {offsets = [0, 256], sizes = [2, 128], strides = [1, 1]} : vector<2x512xf32> to vector<2x128xf32>
    %399 = math.tanh %398 : vector<2x128xf32>
    %400 = vector.extract_strided_slice %385 {offsets = [0, 384], sizes = [2, 128], strides = [1, 1]} : vector<2x512xf32> to vector<2x128xf32>
    %401 = arith.negf %400 : vector<2x128xf32>
    %402 = math.exp %401 : vector<2x128xf32>
    %cst_86 = arith.constant 1.000000e+00 : f32
    %403 = vector.broadcast %cst_86 : f32 to vector<2x128xf32>
    %404 = arith.addf %403, %402 : vector<2x128xf32>
    %405 = arith.divf %403, %404 : vector<2x128xf32>
    %406 = arith.mulf %397, %348 : vector<2x128xf32>
    %407 = arith.mulf %391, %399 : vector<2x128xf32>
    %408 = arith.addf %406, %407 : vector<2x128xf32>
    %409 = math.tanh %408 : vector<2x128xf32>
    %410 = arith.mulf %405, %409 : vector<2x128xf32>
    %411 = vector.extract_strided_slice %43 {offsets = [0, 6, 0], sizes = [2, 1, 512], strides = [1, 1, 1]} : vector<2x8x512xf32> to vector<2x1x512xf32>
    %412 = vector.shape_cast %411 : vector<2x1x512xf32> to vector<2x512xf32>
    %413 = arith.truncf %380 : vector<2x128xf32> to vector<2x128xbf16>
    %cst_87 = arith.constant dense<0.000000e+00> : vector<2x512xf32>
    %414 = tpu.matmul %413, %44, %cst_87 {dimension_numbers = #tpu.dot_dimension_numbers<[1], [0], [0], [1], [0, 0, 1, 1], [], []>} : vector<2x128xbf16>, vector<128x512xbf16>, vector<2x512xf32> -> vector<2x512xf32>
    %415 = arith.addf %412, %414 : vector<2x512xf32>
    %416 = vector.extract_strided_slice %415 {offsets = [0, 0], sizes = [2, 128], strides = [1, 1]} : vector<2x512xf32> to vector<2x128xf32>
    %417 = arith.negf %416 : vector<2x128xf32>
    %418 = math.exp %417 : vector<2x128xf32>
    %cst_88 = arith.constant 1.000000e+00 : f32
    %419 = vector.broadcast %cst_88 : f32 to vector<2x128xf32>
    %420 = arith.addf %419, %418 : vector<2x128xf32>
    %421 = arith.divf %419, %420 : vector<2x128xf32>
    %422 = vector.extract_strided_slice %415 {offsets = [0, 128], sizes = [2, 128], strides = [1, 1]} : vector<2x512xf32> to vector<2x128xf32>
    %423 = arith.negf %422 : vector<2x128xf32>
    %424 = math.exp %423 : vector<2x128xf32>
    %cst_89 = arith.constant 1.000000e+00 : f32
    %425 = vector.broadcast %cst_89 : f32 to vector<2x128xf32>
    %426 = arith.addf %425, %424 : vector<2x128xf32>
    %427 = arith.divf %425, %426 : vector<2x128xf32>
    %428 = vector.extract_strided_slice %415 {offsets = [0, 256], sizes = [2, 128], strides = [1, 1]} : vector<2x512xf32> to vector<2x128xf32>
    %429 = math.tanh %428 : vector<2x128xf32>
    %430 = vector.extract_strided_slice %415 {offsets = [0, 384], sizes = [2, 128], strides = [1, 1]} : vector<2x512xf32> to vector<2x128xf32>
    %431 = arith.negf %430 : vector<2x128xf32>
    %432 = math.exp %431 : vector<2x128xf32>
    %cst_90 = arith.constant 1.000000e+00 : f32
    %433 = vector.broadcast %cst_90 : f32 to vector<2x128xf32>
    %434 = arith.addf %433, %432 : vector<2x128xf32>
    %435 = arith.divf %433, %434 : vector<2x128xf32>
    %436 = arith.mulf %427, %378 : vector<2x128xf32>
    %437 = arith.mulf %421, %429 : vector<2x128xf32>
    %438 = arith.addf %436, %437 : vector<2x128xf32>
    %439 = math.tanh %438 : vector<2x128xf32>
    %440 = arith.mulf %435, %439 : vector<2x128xf32>
    %441 = tpu.concatenate %440, %410 in 1 : vector<2x128xf32>, vector<2x128xf32> -> vector<2x256xf32>
    %442 = arith.truncf %441 : vector<2x256xf32> to vector<2x256xbf16>
    %cst_91 = arith.constant dense<0.000000e+00> : vector<2x512xf32>
    %443 = tpu.matmul %442, %45, %cst_91 {dimension_numbers = #tpu.dot_dimension_numbers<[1], [0], [0], [1], [0, 0, 1, 1], [], []>} : vector<2x256xbf16>, vector<256x512xbf16>, vector<2x512xf32> -> vector<2x512xf32>
    %444 = vector.broadcast %46 : vector<1x512xf32> to vector<2x512xf32>
    %445 = arith.addf %443, %444 : vector<2x512xf32>
    %446 = vector.extract_strided_slice %445 {offsets = [0, 0], sizes = [2, 128], strides = [1, 1]} : vector<2x512xf32> to vector<2x128xf32>
    %447 = arith.negf %446 : vector<2x128xf32>
    %448 = math.exp %447 : vector<2x128xf32>
    %cst_92 = arith.constant 1.000000e+00 : f32
    %449 = vector.broadcast %cst_92 : f32 to vector<2x128xf32>
    %450 = arith.addf %449, %448 : vector<2x128xf32>
    %451 = arith.divf %449, %450 : vector<2x128xf32>
    %452 = vector.extract_strided_slice %445 {offsets = [0, 128], sizes = [2, 128], strides = [1, 1]} : vector<2x512xf32> to vector<2x128xf32>
    %453 = arith.negf %452 : vector<2x128xf32>
    %454 = math.exp %453 : vector<2x128xf32>
    %cst_93 = arith.constant 1.000000e+00 : f32
    %455 = vector.broadcast %cst_93 : f32 to vector<2x128xf32>
    %456 = arith.addf %455, %454 : vector<2x128xf32>
    %457 = arith.divf %455, %456 : vector<2x128xf32>
    %458 = vector.extract_strided_slice %445 {offsets = [0, 256], sizes = [2, 128], strides = [1, 1]} : vector<2x512xf32> to vector<2x128xf32>
    %459 = math.tanh %458 : vector<2x128xf32>
    %460 = vector.extract_strided_slice %445 {offsets = [0, 384], sizes = [2, 128], strides = [1, 1]} : vector<2x512xf32> to vector<2x128xf32>
    %461 = arith.negf %460 : vector<2x128xf32>
    %462 = math.exp %461 : vector<2x128xf32>
    %cst_94 = arith.constant 1.000000e+00 : f32
    %463 = vector.broadcast %cst_94 : f32 to vector<2x128xf32>
    %464 = arith.addf %463, %462 : vector<2x128xf32>
    %465 = arith.divf %463, %464 : vector<2x128xf32>
    %466 = arith.mulf %457, %408 : vector<2x128xf32>
    %467 = arith.mulf %451, %459 : vector<2x128xf32>
    %468 = arith.addf %466, %467 : vector<2x128xf32>
    %469 = math.tanh %468 : vector<2x128xf32>
    %470 = arith.mulf %465, %469 : vector<2x128xf32>
    %471 = vector.extract_strided_slice %43 {offsets = [0, 7, 0], sizes = [2, 1, 512], strides = [1, 1, 1]} : vector<2x8x512xf32> to vector<2x1x512xf32>
    %472 = vector.shape_cast %471 : vector<2x1x512xf32> to vector<2x512xf32>
    %473 = arith.truncf %440 : vector<2x128xf32> to vector<2x128xbf16>
    %cst_95 = arith.constant dense<0.000000e+00> : vector<2x512xf32>
    %474 = tpu.matmul %473, %44, %cst_95 {dimension_numbers = #tpu.dot_dimension_numbers<[1], [0], [0], [1], [0, 0, 1, 1], [], []>} : vector<2x128xbf16>, vector<128x512xbf16>, vector<2x512xf32> -> vector<2x512xf32>
    %475 = arith.addf %472, %474 : vector<2x512xf32>
    %476 = vector.extract_strided_slice %475 {offsets = [0, 0], sizes = [2, 128], strides = [1, 1]} : vector<2x512xf32> to vector<2x128xf32>
    %477 = arith.negf %476 : vector<2x128xf32>
    %478 = math.exp %477 : vector<2x128xf32>
    %cst_96 = arith.constant 1.000000e+00 : f32
    %479 = vector.broadcast %cst_96 : f32 to vector<2x128xf32>
    %480 = arith.addf %479, %478 : vector<2x128xf32>
    %481 = arith.divf %479, %480 : vector<2x128xf32>
    %482 = vector.extract_strided_slice %475 {offsets = [0, 128], sizes = [2, 128], strides = [1, 1]} : vector<2x512xf32> to vector<2x128xf32>
    %483 = arith.negf %482 : vector<2x128xf32>
    %484 = math.exp %483 : vector<2x128xf32>
    %cst_97 = arith.constant 1.000000e+00 : f32
    %485 = vector.broadcast %cst_97 : f32 to vector<2x128xf32>
    %486 = arith.addf %485, %484 : vector<2x128xf32>
    %487 = arith.divf %485, %486 : vector<2x128xf32>
    %488 = vector.extract_strided_slice %475 {offsets = [0, 256], sizes = [2, 128], strides = [1, 1]} : vector<2x512xf32> to vector<2x128xf32>
    %489 = math.tanh %488 : vector<2x128xf32>
    %490 = vector.extract_strided_slice %475 {offsets = [0, 384], sizes = [2, 128], strides = [1, 1]} : vector<2x512xf32> to vector<2x128xf32>
    %491 = arith.negf %490 : vector<2x128xf32>
    %492 = math.exp %491 : vector<2x128xf32>
    %cst_98 = arith.constant 1.000000e+00 : f32
    %493 = vector.broadcast %cst_98 : f32 to vector<2x128xf32>
    %494 = arith.addf %493, %492 : vector<2x128xf32>
    %495 = arith.divf %493, %494 : vector<2x128xf32>
    %496 = arith.mulf %487, %438 : vector<2x128xf32>
    %497 = arith.mulf %481, %489 : vector<2x128xf32>
    %498 = arith.addf %496, %497 : vector<2x128xf32>
    %499 = math.tanh %498 : vector<2x128xf32>
    %500 = arith.mulf %495, %499 : vector<2x128xf32>
    %501 = tpu.concatenate %500, %470 in 1 : vector<2x128xf32>, vector<2x128xf32> -> vector<2x256xf32>
    %502 = arith.truncf %501 : vector<2x256xf32> to vector<2x256xbf16>
    %cst_99 = arith.constant dense<0.000000e+00> : vector<2x512xf32>
    %503 = tpu.matmul %502, %45, %cst_99 {dimension_numbers = #tpu.dot_dimension_numbers<[1], [0], [0], [1], [0, 0, 1, 1], [], []>} : vector<2x256xbf16>, vector<256x512xbf16>, vector<2x512xf32> -> vector<2x512xf32>
    %504 = vector.broadcast %46 : vector<1x512xf32> to vector<2x512xf32>
    %505 = arith.addf %503, %504 : vector<2x512xf32>
    %506 = vector.extract_strided_slice %505 {offsets = [0, 0], sizes = [2, 128], strides = [1, 1]} : vector<2x512xf32> to vector<2x128xf32>
    %507 = arith.negf %506 : vector<2x128xf32>
    %508 = math.exp %507 : vector<2x128xf32>
    %cst_100 = arith.constant 1.000000e+00 : f32
    %509 = vector.broadcast %cst_100 : f32 to vector<2x128xf32>
    %510 = arith.addf %509, %508 : vector<2x128xf32>
    %511 = arith.divf %509, %510 : vector<2x128xf32>
    %512 = vector.extract_strided_slice %505 {offsets = [0, 128], sizes = [2, 128], strides = [1, 1]} : vector<2x512xf32> to vector<2x128xf32>
    %513 = arith.negf %512 : vector<2x128xf32>
    %514 = math.exp %513 : vector<2x128xf32>
    %cst_101 = arith.constant 1.000000e+00 : f32
    %515 = vector.broadcast %cst_101 : f32 to vector<2x128xf32>
    %516 = arith.addf %515, %514 : vector<2x128xf32>
    %517 = arith.divf %515, %516 : vector<2x128xf32>
    %518 = vector.extract_strided_slice %505 {offsets = [0, 256], sizes = [2, 128], strides = [1, 1]} : vector<2x512xf32> to vector<2x128xf32>
    %519 = math.tanh %518 : vector<2x128xf32>
    %520 = vector.extract_strided_slice %505 {offsets = [0, 384], sizes = [2, 128], strides = [1, 1]} : vector<2x512xf32> to vector<2x128xf32>
    %521 = arith.negf %520 : vector<2x128xf32>
    %522 = math.exp %521 : vector<2x128xf32>
    %cst_102 = arith.constant 1.000000e+00 : f32
    %523 = vector.broadcast %cst_102 : f32 to vector<2x128xf32>
    %524 = arith.addf %523, %522 : vector<2x128xf32>
    %525 = arith.divf %523, %524 : vector<2x128xf32>
    %526 = arith.mulf %517, %468 : vector<2x128xf32>
    %527 = arith.mulf %511, %519 : vector<2x128xf32>
    %528 = arith.addf %526, %527 : vector<2x128xf32>
    %529 = math.tanh %528 : vector<2x128xf32>
    %530 = arith.mulf %525, %529 : vector<2x128xf32>
    %531 = arith.truncf %530 : vector<2x128xf32> to vector<2x128xbf16>
    %c0_103 = arith.constant 0 : index
    %c0_104 = arith.constant 0 : index
    %532 = vector.load %arg14[%c0_103, %c0_104] : memref<128x128xbf16, #tpu.memory_space<vmem>>, vector<128x128xbf16>
    %cst_105 = arith.constant dense<0.000000e+00> : vector<2x128xf32>
    %533 = tpu.matmul %531, %532, %cst_105 {dimension_numbers = #tpu.dot_dimension_numbers<[1], [0], [0], [1], [0, 0, 1, 1], [], []>} : vector<2x128xbf16>, vector<128x128xbf16>, vector<2x128xf32> -> vector<2x128xf32>
    %c0_106 = arith.constant 0 : index
    %c0_107 = arith.constant 0 : index
    %534 = vector.load %arg15[%c0_106, %c0_107] : memref<1x128xf32, #tpu.memory_space<vmem>>, vector<1x128xf32>
    %535 = vector.broadcast %534 : vector<1x128xf32> to vector<2x128xf32>
    %536 = arith.addf %533, %535 : vector<2x128xf32>
    %cst_108 = arith.constant 0.000000e+00 : f32
    %537 = vector.broadcast %cst_108 : f32 to vector<2x128xf32>
    %538 = arith.maximumf %536, %537 : vector<2x128xf32>
    %539 = arith.truncf %538 : vector<2x128xf32> to vector<2x128xbf16>
    %c0_109 = arith.constant 0 : index
    %c0_110 = arith.constant 0 : index
    %540 = vector.load %arg16[%c0_109, %c0_110] : memref<128x64xbf16, #tpu.memory_space<vmem>>, vector<128x64xbf16>
    %cst_111 = arith.constant dense<0.000000e+00> : vector<2x64xf32>
    %541 = tpu.matmul %539, %540, %cst_111 {dimension_numbers = #tpu.dot_dimension_numbers<[1], [0], [0], [1], [0, 0, 1, 1], [], []>} : vector<2x128xbf16>, vector<128x64xbf16>, vector<2x64xf32> -> vector<2x64xf32>
    %c0_112 = arith.constant 0 : index
    %c0_113 = arith.constant 0 : index
    %542 = vector.load %arg17[%c0_112, %c0_113] : memref<1x64xf32, #tpu.memory_space<vmem>>, vector<1x64xf32>
    %543 = vector.broadcast %542 : vector<1x64xf32> to vector<2x64xf32>
    %544 = arith.addf %541, %543 : vector<2x64xf32>
    %cst_114 = arith.constant 0.000000e+00 : f32
    %545 = vector.broadcast %cst_114 : f32 to vector<2x64xf32>
    %546 = arith.maximumf %544, %545 : vector<2x64xf32>
    %547 = arith.truncf %546 : vector<2x64xf32> to vector<2x64xbf16>
    %c0_115 = arith.constant 0 : index
    %c0_116 = arith.constant 0 : index
    %548 = vector.load %arg18[%c0_115, %c0_116] : memref<64x6xbf16, #tpu.memory_space<vmem>>, vector<64x6xbf16>
    %cst_117 = arith.constant dense<0.000000e+00> : vector<2x6xf32>
    %549 = tpu.matmul %547, %548, %cst_117 {dimension_numbers = #tpu.dot_dimension_numbers<[1], [0], [0], [1], [0, 0, 1, 1], [], []>} : vector<2x64xbf16>, vector<64x6xbf16>, vector<2x6xf32> -> vector<2x6xf32>
    %c0_118 = arith.constant 0 : index
    %c0_119 = arith.constant 0 : index
    %550 = vector.load %arg19[%c0_118, %c0_119] : memref<1x6xf32, #tpu.memory_space<vmem>>, vector<1x6xf32>
    %551 = vector.broadcast %550 : vector<1x6xf32> to vector<2x6xf32>
    %552 = arith.addf %549, %551 : vector<2x6xf32>
    %553 = vector.extract_strided_slice %552 {offsets = [0, 0], sizes = [2, 3], strides = [1, 1]} : vector<2x6xf32> to vector<2x3xf32>
    %554 = arith.mulf %553, %553 : vector<2x3xf32>
    %cst_120 = arith.constant dense<0.000000e+00> : vector<2xf32>
    %555 = vector.multi_reduction <add>, %554, %cst_120 [1] : vector<2x3xf32> to vector<2xf32>
    %556 = vector.shape_cast %555 : vector<2xf32> to vector<2x1xf32>
    %557 = math.sqrt %556 : vector<2x1xf32>
    %cst_121 = arith.constant 9.99999993E-9 : f32
    %558 = vector.broadcast %cst_121 : f32 to vector<2x1xf32>
    %559 = arith.maximumf %557, %558 : vector<2x1xf32>
    %560 = vector.broadcast %559 : vector<2x1xf32> to vector<2x3xf32>
    %561 = arith.divf %553, %560 : vector<2x3xf32>
    %562 = vector.extract_strided_slice %552 {offsets = [0, 3], sizes = [2, 3], strides = [1, 1]} : vector<2x6xf32> to vector<2x3xf32>
    %563 = vector.extract_strided_slice %561 {offsets = [0, 0], sizes = [2, 1], strides = [1, 1]} : vector<2x3xf32> to vector<2x1xf32>
    %564 = vector.extract_strided_slice %561 {offsets = [0, 1], sizes = [2, 1], strides = [1, 1]} : vector<2x3xf32> to vector<2x1xf32>
    %565 = vector.extract_strided_slice %561 {offsets = [0, 2], sizes = [2, 1], strides = [1, 1]} : vector<2x3xf32> to vector<2x1xf32>
    %566 = vector.extract_strided_slice %562 {offsets = [0, 0], sizes = [2, 1], strides = [1, 1]} : vector<2x3xf32> to vector<2x1xf32>
    %567 = vector.extract_strided_slice %562 {offsets = [0, 1], sizes = [2, 1], strides = [1, 1]} : vector<2x3xf32> to vector<2x1xf32>
    %568 = vector.extract_strided_slice %562 {offsets = [0, 2], sizes = [2, 1], strides = [1, 1]} : vector<2x3xf32> to vector<2x1xf32>
    %569 = arith.mulf %564, %568 : vector<2x1xf32>
    %570 = arith.mulf %565, %567 : vector<2x1xf32>
    %571 = arith.subf %569, %570 : vector<2x1xf32>
    %572 = arith.mulf %565, %566 : vector<2x1xf32>
    %573 = arith.mulf %563, %568 : vector<2x1xf32>
    %574 = arith.subf %572, %573 : vector<2x1xf32>
    %575 = arith.mulf %563, %567 : vector<2x1xf32>
    %576 = arith.mulf %564, %566 : vector<2x1xf32>
    %577 = arith.subf %575, %576 : vector<2x1xf32>
    %578 = tpu.concatenate %571, %574, %577 in 1 : vector<2x1xf32>, vector<2x1xf32>, vector<2x1xf32> -> vector<2x3xf32>
    %579 = arith.mulf %578, %578 : vector<2x3xf32>
    %cst_122 = arith.constant dense<0.000000e+00> : vector<2xf32>
    %580 = vector.multi_reduction <add>, %579, %cst_122 [1] : vector<2x3xf32> to vector<2xf32>
    %581 = vector.shape_cast %580 : vector<2xf32> to vector<2x1xf32>
    %582 = math.sqrt %581 : vector<2x1xf32>
    %cst_123 = arith.constant 9.99999993E-9 : f32
    %583 = vector.broadcast %cst_123 : f32 to vector<2x1xf32>
    %584 = arith.maximumf %582, %583 : vector<2x1xf32>
    %585 = vector.broadcast %584 : vector<2x1xf32> to vector<2x3xf32>
    %586 = arith.divf %578, %585 : vector<2x3xf32>
    %587 = vector.extract_strided_slice %586 {offsets = [0, 0], sizes = [2, 1], strides = [1, 1]} : vector<2x3xf32> to vector<2x1xf32>
    %588 = vector.extract_strided_slice %586 {offsets = [0, 1], sizes = [2, 1], strides = [1, 1]} : vector<2x3xf32> to vector<2x1xf32>
    %589 = vector.extract_strided_slice %586 {offsets = [0, 2], sizes = [2, 1], strides = [1, 1]} : vector<2x3xf32> to vector<2x1xf32>
    %590 = vector.extract_strided_slice %561 {offsets = [0, 0], sizes = [2, 1], strides = [1, 1]} : vector<2x3xf32> to vector<2x1xf32>
    %591 = vector.extract_strided_slice %561 {offsets = [0, 1], sizes = [2, 1], strides = [1, 1]} : vector<2x3xf32> to vector<2x1xf32>
    %592 = vector.extract_strided_slice %561 {offsets = [0, 2], sizes = [2, 1], strides = [1, 1]} : vector<2x3xf32> to vector<2x1xf32>
    %593 = arith.mulf %588, %592 : vector<2x1xf32>
    %594 = arith.mulf %589, %591 : vector<2x1xf32>
    %595 = arith.subf %593, %594 : vector<2x1xf32>
    %596 = arith.mulf %589, %590 : vector<2x1xf32>
    %597 = arith.mulf %587, %592 : vector<2x1xf32>
    %598 = arith.subf %596, %597 : vector<2x1xf32>
    %599 = arith.mulf %587, %591 : vector<2x1xf32>
    %600 = arith.mulf %588, %590 : vector<2x1xf32>
    %601 = arith.subf %599, %600 : vector<2x1xf32>
    %602 = tpu.concatenate %595, %598, %601 in 1 : vector<2x1xf32>, vector<2x1xf32>, vector<2x1xf32> -> vector<2x3xf32>
    %603 = vector.extract_strided_slice %561 {offsets = [0, 0], sizes = [2, 1], strides = [1, 1]} : vector<2x3xf32> to vector<2x1xf32>
    %604 = vector.extract_strided_slice %602 {offsets = [0, 0], sizes = [2, 1], strides = [1, 1]} : vector<2x3xf32> to vector<2x1xf32>
    %605 = vector.extract_strided_slice %586 {offsets = [0, 0], sizes = [2, 1], strides = [1, 1]} : vector<2x3xf32> to vector<2x1xf32>
    %606 = vector.extract_strided_slice %561 {offsets = [0, 1], sizes = [2, 1], strides = [1, 1]} : vector<2x3xf32> to vector<2x1xf32>
    %607 = vector.extract_strided_slice %602 {offsets = [0, 1], sizes = [2, 1], strides = [1, 1]} : vector<2x3xf32> to vector<2x1xf32>
    %608 = vector.extract_strided_slice %586 {offsets = [0, 1], sizes = [2, 1], strides = [1, 1]} : vector<2x3xf32> to vector<2x1xf32>
    %609 = vector.extract_strided_slice %561 {offsets = [0, 2], sizes = [2, 1], strides = [1, 1]} : vector<2x3xf32> to vector<2x1xf32>
    %610 = vector.extract_strided_slice %602 {offsets = [0, 2], sizes = [2, 1], strides = [1, 1]} : vector<2x3xf32> to vector<2x1xf32>
    %611 = vector.extract_strided_slice %586 {offsets = [0, 2], sizes = [2, 1], strides = [1, 1]} : vector<2x3xf32> to vector<2x1xf32>
    %612 = tpu.concatenate %603, %604, %605, %606, %607, %608, %609, %610, %611 in 1 : vector<2x1xf32>, vector<2x1xf32>, vector<2x1xf32>, vector<2x1xf32>, vector<2x1xf32>, vector<2x1xf32>, vector<2x1xf32>, vector<2x1xf32>, vector<2x1xf32> -> vector<2x9xf32>
    %c0_124 = arith.constant 0 : index
    %c0_125 = arith.constant 0 : index
    %613 = vector.load %arg20[%c0_124, %c0_125] : memref<2x9xf32, #tpu.memory_space<vmem>>, vector<2x9xf32>
    tpu.vector_store %arg20[%c0_124, %c0_125], %612 {strides = array<i32>} : memref<2x9xf32, #tpu.memory_space<vmem>>, vector<2x9xf32>,
    return
  }
}

</mosaic_0001>

<llo_original>
// kernel: tactile_placing_net_forward.1
$region0: #{tactile_placing_net_forward.1}
  #allocation0 [shape = 'u32[]', space=smem, size = 0x4, offset = 0x4, fixed_abs, tag = 'smem constant byte address 0x4 - core index']
  #allocation1 [shape = 'u32[72,128]{1,0:T(1,128)}', space=vmem, size = 0x9000, scoped, tag = 'internal scratch']
  %s0 = inlined_call_operand.vmem [shape: f32[2,2,8,256], index: 0, kind: input, shape index: {}]
  %s1 = inlined_call_operand.hbm [shape: bf16[512,1152], index: 1, kind: input, shape index: {}]
  %s2 = inlined_call_operand.hbm [shape: f32[1,1152], index: 2, kind: input, shape index: {}]
  %s3 = inlined_call_operand.hbm [shape: f32[1,1152], index: 3, kind: input, shape index: {}]
  %s4 = inlined_call_operand.hbm [shape: bf16[1152,256], index: 4, kind: input, shape index: {}]
  %s5 = inlined_call_operand.hbm [shape: f32[1,256], index: 5, kind: input, shape index: {}]
  %s6 = inlined_call_operand.hbm [shape: f32[1,256], index: 6, kind: input, shape index: {}]
  %s7 = inlined_call_operand.hbm [shape: bf16[256,128], index: 7, kind: input, shape index: {}]
  %s8 = inlined_call_operand.hbm [shape: f32[1,128], index: 8, kind: input, shape index: {}]
  %s9 = inlined_call_operand.hbm [shape: bf16[128,512], index: 9, kind: input, shape index: {}]
  %s10 = inlined_call_operand.hbm [shape: f32[1,512], index: 10, kind: input, shape index: {}]
  %s11 = inlined_call_operand.hbm [shape: bf16[128,512], index: 11, kind: input, shape index: {}]
  %s12 = inlined_call_operand.hbm [shape: bf16[256,512], index: 12, kind: input, shape index: {}]
  %s13 = inlined_call_operand.hbm [shape: f32[1,512], index: 13, kind: input, shape index: {}]
  %s14 = inlined_call_operand.hbm [shape: bf16[128,128], index: 14, kind: input, shape index: {}]
  %s15 = inlined_call_operand.hbm [shape: f32[1,128], index: 15, kind: input, shape index: {}]
  %s16 = inlined_call_operand.vmem [shape: bf16[128,64], index: 16, kind: input, shape index: {}]
  %s17 = inlined_call_operand.hbm [shape: f32[1,64], index: 17, kind: input, shape index: {}]
  %s18 = inlined_call_operand.vmem [shape: bf16[64,6], index: 18, kind: input, shape index: {}]
  %s19 = inlined_call_operand.hbm [shape: f32[1,6], index: 19, kind: input, shape index: {}]
  %s20 = inlined_call_operand.vmem [shape: f32[2,9], index: 20, kind: output, shape index: {}]
  %s21 = sld [smem:[#allocation0]]
  $region158: #{tactile_placing_net_forward.1} parent=0
    _
  %s23 = ssub.s32 1, %s21
  %s24 = scalar_select 0, %s23, %s21
  $region1: #{tactile_placing_net_forward.1} parent=0
    #allocation2 [shape = 'u8[1179648]{0}', space=vmem, size = 0x120000, scoped, tag = 'input window, operand 1, single buffered']
    #allocation3 [shape = 's32[1]{0}', space=sflag, size = 0x4, scoped, tag = 'scoped memory for tactile_placing_net_forward.1']
    #allocation4 [shape = 'u8[4608]{0}', space=vmem, size = 0x1400, scoped, tag = 'input window, operand 2, single buffered']
    #allocation5 [shape = 's32[1]{0}', space=sflag, size = 0x4, scoped, tag = 'scoped memory for tactile_placing_net_forward.1']
    #allocation6 [shape = 'u8[4608]{0}', space=vmem, size = 0x1400, scoped, tag = 'input window, operand 3, single buffered']
    #allocation7 [shape = 'u8[589824]{0}', space=vmem, size = 0x90000, scoped, tag = 'input window, operand 4, single buffered']
    #allocation8 [shape = 's32[1]{0}', space=sflag, size = 0x4, scoped, tag = 'scoped memory for tactile_placing_net_forward.1']
    #allocation9 [shape = 'u8[1024]{0}', space=vmem, size = 0x400, scoped, tag = 'input window, operand 5, single buffered']
    #allocation10 [shape = 'u8[1024]{0}', space=vmem, size = 0x400, scoped, tag = 'input window, operand 6, single buffered']
    #allocation11 [shape = 's32[1]{0}', space=sflag, size = 0x4, scoped, tag = 'scoped memory for tactile_placing_net_forward.1']
    #allocation12 [shape = 'u8[65536]{0}', space=vmem, size = 0x10000, scoped, tag = 'input window, operand 7, single buffered']
    #allocation13 [shape = 'u8[512]{0}', space=vmem, size = 0x400, scoped, tag = 'input window, operand 8, single buffered']
    #allocation14 [shape = 's32[1]{0}', space=sflag, size = 0x4, scoped, tag = 'scoped memory for tactile_placing_net_forward.1']
    #allocation15 [shape = 'u8[131072]{0}', space=vmem, size = 0x20000, scoped, tag = 'input window, operand 9, single buffered']
    #allocation16 [shape = 'u8[2048]{0}', space=vmem, size = 0x800, scoped, tag = 'input window, operand 10, single buffered']
    #allocation17 [shape = 's32[1]{0}', space=sflag, size = 0x4, scoped, tag = 'scoped memory for tactile_placing_net_forward.1']
    #allocation18 [shape = 'u8[131072]{0}', space=vmem, size = 0x20000, scoped, tag = 'input window, operand 11, single buffered']
    #allocation19 [shape = 'u8[262144]{0}', space=vmem, size = 0x40000, scoped, tag = 'input window, operand 12, single buffered']
    #allocation20 [shape = 's32[1]{0}', space=sflag, size = 0x4, scoped, tag = 'scoped memory for tactile_placing_net_forward.1']
    #allocation21 [shape = 'u8[2048]{0}', space=vmem, size = 0x800, scoped, tag = 'input window, operand 13, single buffered']
    #allocation22 [shape = 'u8[32768]{0}', space=vmem, size = 0x8000, scoped, tag = 'input window, operand 14, single buffered']
    #allocation23 [shape = 's32[1]{0}', space=sflag, size = 0x4, scoped, tag = 'scoped memory for tactile_placing_net_forward.1']
    #allocation24 [shape = 'u8[512]{0}', space=vmem, size = 0x400, scoped, tag = 'input window, operand 15, single buffered']
    #allocation25 [shape = 'u8[512]{0}', space=vmem, size = 0x400, scoped, tag = 'input window, operand 17, single buffered']
    #allocation26 [shape = 's32[1]{0}', space=sflag, size = 0x4, scoped, tag = 'scoped memory for tactile_placing_net_forward.1']
    #allocation27 [shape = 'u8[512]{0}', space=vmem, size = 0x400, scoped, tag = 'input window, operand 19, single buffered']
    %25 = vsyncpa [#allocation3], 0
    %26 = vsyncpa [#allocation5], 0
    %27 = vsyncpa [#allocation8], 0
    %28 = vsyncpa [#allocation11], 0
    %29 = vsyncpa [#allocation14], 0
    %30 = vsyncpa [#allocation17], 0
    %31 = vsyncpa [#allocation20], 0
    %32 = vsyncpa [#allocation23], 0
    %33 = vsyncpa [#allocation26], 0
    // Predicated region
    $region2: #{tactile_placing_net_forward.1} parent=1 // pred_check
      _
    $region3: #{tactile_placing_net_forward.1} parent=1 // pred_check_branch
      %35 = sbr.rel (0) target = $region5
    $region4: #{tactile_placing_net_forward.1} parent=1 // pred_region
      _
    $region5: #{tactile_placing_net_forward.1} parent=1 // pred_fallthru
      _
    // Predicated region
    $region6: #{tactile_placing_net_forward.1} parent=1 // pred_check
      _
    $region7: #{tactile_placing_net_forward.1} parent=1 // pred_check_branch
      %37 = sbr.rel (0) target = $region9
    $region8: #{tactile_placing_net_forward.1} parent=1 // pred_region
      %39 = vsyncadd [#allocation3], 0
      %s40 = sshll.u32 %s1, 4
      %s41 = int_to_ptr.hbm [resolvable:$true] %s40
      %s42 = sshll.u32 [#allocation2], 4
      %s43 = int_to_ptr.vmem [resolvable:$true] %s42
      %48 = dma.hbm_to_vmem [thread:$0]  %s41, 36864, %s43, [#allocation3], 576, 576, 36
    $region9: #{tactile_placing_net_forward.1} parent=1 // pred_fallthru
      _
    // Predicated region
    $region10: #{tactile_placing_net_forward.1} parent=1 // pred_check
      _
    $region11: #{tactile_placing_net_forward.1} parent=1 // pred_check_branch
      %50 = sbr.rel (0) target = $region13
    $region12: #{tactile_placing_net_forward.1} parent=1 // pred_region
      %52 = vsyncadd [#allocation5], 0
      %s54 = sshll.u32 %s2, 4
      %s55 = int_to_ptr.hbm [resolvable:$true] %s54
      %s56 = sshll.u32 [#allocation4], 4
      %s57 = int_to_ptr.vmem [resolvable:$true] %s56
      %59 = dma.hbm_to_vmem [thread:$0]  %s55, 144, %s57, [#allocation5]
    $region13: #{tactile_placing_net_forward.1} parent=1 // pred_fallthru
      _
    // Predicated region
    $region14: #{tactile_placing_net_forward.1} parent=1 // pred_check
      _
    $region15: #{tactile_placing_net_forward.1} parent=1 // pred_check_branch
      %61 = sbr.rel (0) target = $region17
    $region16: #{tactile_placing_net_forward.1} parent=1 // pred_region
      %63 = vsyncadd [#allocation5], 0
      %s65 = sshll.u32 %s3, 4
      %s66 = int_to_ptr.hbm [resolvable:$true] %s65
      %s67 = sshll.u32 [#allocation6], 4
      %s68 = int_to_ptr.vmem [resolvable:$true] %s67
      %70 = dma.hbm_to_vmem [thread:$0]  %s66, 144, %s68, [#allocation5]
    $region17: #{tactile_placing_net_forward.1} parent=1 // pred_fallthru
      _
    // Predicated region
    $region18: #{tactile_placing_net_forward.1} parent=1 // pred_check
      _
    $region19: #{tactile_placing_net_forward.1} parent=1 // pred_check_branch
      %72 = sbr.rel (0) target = $region21
    $region20: #{tactile_placing_net_forward.1} parent=1 // pred_region
      %74 = vsyncadd [#allocation8], 0
      %s75 = sshll.u32 %s4, 4
      %s76 = int_to_ptr.hbm [resolvable:$true] %s75
      %s77 = sshll.u32 [#allocation7], 4
      %s78 = int_to_ptr.vmem [resolvable:$true] %s77
      %83 = dma.hbm_to_vmem [thread:$0]  %s76, 18432, %s78, [#allocation8], 128, 128, 8
    $region21: #{tactile_placing_net_forward.1} parent=1 // pred_fallthru
      _
    // Predicated region
    $region22: #{tactile_placing_net_forward.1} parent=1 // pred_check
      _
    $region23: #{tactile_placing_net_forward.1} parent=1 // pred_check_branch
      %85 = sbr.rel (0) target = $region25
    $region24: #{tactile_placing_net_forward.1} parent=1 // pred_region
      %87 = vsyncadd [#allocation8], 0
      %s89 = sshll.u32 %s5, 4
      %s90 = int_to_ptr.hbm [resolvable:$true] %s89
      %s91 = sshll.u32 [#allocation9], 4
      %s92 = int_to_ptr.vmem [resolvable:$true] %s91
      %94 = dma.hbm_to_vmem [thread:$0]  %s90, 32, %s92, [#allocation8]
    $region25: #{tactile_placing_net_forward.1} parent=1 // pred_fallthru
      _
    // Predicated region
    $region26: #{tactile_placing_net_forward.1} parent=1 // pred_check
      _
    $region27: #{tactile_placing_net_forward.1} parent=1 // pred_check_branch
      %96 = sbr.rel (0) target = $region29
    $region28: #{tactile_placing_net_forward.1} parent=1 // pred_region
      %98 = vsyncadd [#allocation11], 0
      %s100 = sshll.u32 %s6, 4
      %s101 = int_to_ptr.hbm [resolvable:$true] %s100
      %s102 = sshll.u32 [#allocation10], 4
      %s103 = int_to_ptr.vmem [resolvable:$true] %s102
      %105 = dma.hbm_to_vmem [thread:$0]  %s101, 32, %s103, [#allocation11]
    $region29: #{tactile_placing_net_forward.1} parent=1 // pred_fallthru
      _
    // Predicated region
    $region30: #{tactile_placing_net_forward.1} parent=1 // pred_check
      _
    $region31: #{tactile_placing_net_forward.1} parent=1 // pred_check_branch
      %107 = sbr.rel (0) target = $region33
    $region32: #{tactile_placing_net_forward.1} parent=1 // pred_region
      %109 = vsyncadd [#allocation11], 0
      %s110 = sshll.u32 %s7, 4
      %s111 = int_to_ptr.hbm [resolvable:$true] %s110
      %s112 = sshll.u32 [#allocation12], 4
      %s113 = int_to_ptr.vmem [resolvable:$true] %s112
      %118 = dma.hbm_to_vmem [thread:$0]  %s111, 2048, %s113, [#allocation11], 64, 64, 4
    $region33: #{tactile_placing_net_forward.1} parent=1 // pred_fallthru
      _
    // Predicated region
    $region34: #{tactile_placing_net_forward.1} parent=1 // pred_check
      _
    $region35: #{tactile_placing_net_forward.1} parent=1 // pred_check_branch
      %120 = sbr.rel (0) target = $region37
    $region36: #{tactile_placing_net_forward.1} parent=1 // pred_region
      %122 = vsyncadd [#allocation14], 0
      %s124 = sshll.u32 %s8, 4
      %s125 = int_to_ptr.hbm [resolvable:$true] %s124
      %s126 = sshll.u32 [#allocation13], 4
      %s127 = int_to_ptr.vmem [resolvable:$true] %s126
      %129 = dma.hbm_to_vmem [thread:$0]  %s125, 16, %s127, [#allocation14]
    $region37: #{tactile_placing_net_forward.1} parent=1 // pred_fallthru
      _
    // Predicated region
    $region38: #{tactile_placing_net_forward.1} parent=1 // pred_check
      _
    $region39: #{tactile_placing_net_forward.1} parent=1 // pred_check_branch
      %131 = sbr.rel (0) target = $region41
    $region40: #{tactile_placing_net_forward.1} parent=1 // pred_region
      %133 = vsyncadd [#allocation14], 0
      %s134 = sshll.u32 %s9, 4
      %s135 = int_to_ptr.hbm [resolvable:$true] %s134
      %s136 = sshll.u32 [#allocation15], 4
      %s137 = int_to_ptr.vmem [resolvable:$true] %s136
      %142 = dma.hbm_to_vmem [thread:$0]  %s135, 4096, %s137, [#allocation14], 256, 256, 16
    $region41: #{tactile_placing_net_forward.1} parent=1 // pred_fallthru
      _
    // Predicated region
    $region42: #{tactile_placing_net_forward.1} parent=1 // pred_check
      _
    $region43: #{tactile_placing_net_forward.1} parent=1 // pred_check_branch
      %144 = sbr.rel (0) target = $region45
    $region44: #{tactile_placing_net_forward.1} parent=1 // pred_region
      %146 = vsyncadd [#allocation17], 0
      %s148 = sshll.u32 %s10, 4
      %s149 = int_to_ptr.hbm [resolvable:$true] %s148
      %s150 = sshll.u32 [#allocation16], 4
      %s151 = int_to_ptr.vmem [resolvable:$true] %s150
      %153 = dma.hbm_to_vmem [thread:$0]  %s149, 64, %s151, [#allocation17]
    $region45: #{tactile_placing_net_forward.1} parent=1 // pred_fallthru
      _
    // Predicated region
    $region46: #{tactile_placing_net_forward.1} parent=1 // pred_check
      _
    $region47: #{tactile_placing_net_forward.1} parent=1 // pred_check_branch
      %155 = sbr.rel (0) target = $region49
    $region48: #{tactile_placing_net_forward.1} parent=1 // pred_region
      %157 = vsyncadd [#allocation17], 0
      %s158 = sshll.u32 %s11, 4
      %s159 = int_to_ptr.hbm [resolvable:$true] %s158
      %s160 = sshll.u32 [#allocation18], 4
      %s161 = int_to_ptr.vmem [resolvable:$true] %s160
      %166 = dma.hbm_to_vmem [thread:$0]  %s159, 4096, %s161, [#allocation17], 256, 256, 16
    $region49: #{tactile_placing_net_forward.1} parent=1 // pred_fallthru
      _
    // Predicated region
    $region50: #{tactile_placing_net_forward.1} parent=1 // pred_check
      _
    $region51: #{tactile_placing_net_forward.1} parent=1 // pred_check_branch
      %168 = sbr.rel (0) target = $region53
    $region52: #{tactile_placing_net_forward.1} parent=1 // pred_region
      %170 = vsyncadd [#allocation20], 0
      %s171 = sshll.u32 %s12, 4
      %s172 = int_to_ptr.hbm [resolvable:$true] %s171
      %s173 = sshll.u32 [#allocation19], 4
      %s174 = int_to_ptr.vmem [resolvable:$true] %s173
      %179 = dma.hbm_to_vmem [thread:$0]  %s172, 8192, %s174, [#allocation20], 256, 256, 16
    $region53: #{tactile_placing_net_forward.1} parent=1 // pred_fallthru
      _
    // Predicated region
    $region54: #{tactile_placing_net_forward.1} parent=1 // pred_check
      _
    $region55: #{tactile_placing_net_forward.1} parent=1 // pred_check_branch
      %181 = sbr.rel (0) target = $region57
    $region56: #{tactile_placing_net_forward.1} parent=1 // pred_region
      %183 = vsyncadd [#allocation20], 0
      %s185 = sshll.u32 %s13, 4
      %s186 = int_to_ptr.hbm [resolvable:$true] %s185
      %s187 = sshll.u32 [#allocation21], 4
      %s188 = int_to_ptr.vmem [resolvable:$true] %s187
      %190 = dma.hbm_to_vmem [thread:$0]  %s186, 64, %s188, [#allocation20]
    $region57: #{tactile_placing_net_forward.1} parent=1 // pred_fallthru
      _
    // Predicated region
    $region58: #{tactile_placing_net_forward.1} parent=1 // pred_check
      _
    $region59: #{tactile_placing_net_forward.1} parent=1 // pred_check_branch
      %192 = sbr.rel (0) target = $region61
    $region60: #{tactile_placing_net_forward.1} parent=1 // pred_region
      %194 = vsyncadd [#allocation23], 0
      %s195 = sshll.u32 %s14, 4
      %s196 = int_to_ptr.hbm [resolvable:$true] %s195
      %s197 = sshll.u32 [#allocation22], 4
      %s198 = int_to_ptr.vmem [resolvable:$true] %s197
      %203 = dma.hbm_to_vmem [thread:$0]  %s196, 1024, %s198, [#allocation23], 64, 64, 4
    $region61: #{tactile_placing_net_forward.1} parent=1 // pred_fallthru
      _
    // Predicated region
    $region62: #{tactile_placing_net_forward.1} parent=1 // pred_check
      _
    $region63: #{tactile_placing_net_forward.1} parent=1 // pred_check_branch
      %205 = sbr.rel (0) target = $region65
    $region64: #{tactile_placing_net_forward.1} parent=1 // pred_region
      %207 = vsyncadd [#allocation23], 0
      %s209 = sshll.u32 %s15, 4
      %s210 = int_to_ptr.hbm [resolvable:$true] %s209
      %s211 = sshll.u32 [#allocation24], 4
      %s212 = int_to_ptr.vmem [resolvable:$true] %s211
      %214 = dma.hbm_to_vmem [thread:$0]  %s210, 16, %s212, [#allocation23]
    $region65: #{tactile_placing_net_forward.1} parent=1 // pred_fallthru
      _
    // Predicated region
    $region66: #{tactile_placing_net_forward.1} parent=1 // pred_check
      _
    $region67: #{tactile_placing_net_forward.1} parent=1 // pred_check_branch
      %216 = sbr.rel (0) target = $region69
    $region68: #{tactile_placing_net_forward.1} parent=1 // pred_region
      _
    $region69: #{tactile_placing_net_forward.1} parent=1 // pred_fallthru
      _
    // Predicated region
    $region70: #{tactile_placing_net_forward.1} parent=1 // pred_check
      _
    $region71: #{tactile_placing_net_forward.1} parent=1 // pred_check_branch
      %218 = sbr.rel (0) target = $region73
    $region72: #{tactile_placing_net_forward.1} parent=1 // pred_region
      %220 = vsyncadd [#allocation26], 0
      %s222 = sshll.u32 %s17, 4
      %s223 = int_to_ptr.hbm [resolvable:$true] %s222
      %s224 = sshll.u32 [#allocation25], 4
      %s225 = int_to_ptr.vmem [resolvable:$true] %s224
      %227 = dma.hbm_to_vmem [thread:$0]  %s223, 16, %s225, [#allocation26]
    $region73: #{tactile_placing_net_forward.1} parent=1 // pred_fallthru
      _
    // Predicated region
    $region74: #{tactile_placing_net_forward.1} parent=1 // pred_check
      _
    $region75: #{tactile_placing_net_forward.1} parent=1 // pred_check_branch
      %229 = sbr.rel (0) target = $region77
    $region76: #{tactile_placing_net_forward.1} parent=1 // pred_region
      _
    $region77: #{tactile_placing_net_forward.1} parent=1 // pred_fallthru
      _
    // Predicated region
    $region78: #{tactile_placing_net_forward.1} parent=1 // pred_check
      _
    $region79: #{tactile_placing_net_forward.1} parent=1 // pred_check_branch
      %231 = sbr.rel (0) target = $region81
    $region80: #{tactile_placing_net_forward.1} parent=1 // pred_region
      %233 = vsyncadd [#allocation26], 0
      %s235 = sshll.u32 %s19, 4
      %s236 = int_to_ptr.hbm [resolvable:$true] %s235
      %s237 = sshll.u32 [#allocation27], 4
      %s238 = int_to_ptr.vmem [resolvable:$true] %s237
      %240 = dma.hbm_to_vmem [thread:$0]  %s236, 16, %s238, [#allocation26]
    $region81: #{tactile_placing_net_forward.1} parent=1 // pred_fallthru
      _
    // Predicated region
    $region82: #{tactile_placing_net_forward.1} parent=1 // pred_check
      _
    $region83: #{tactile_placing_net_forward.1} parent=1 // pred_check_branch
      %242 = sbr.rel (0) target = $region85
    $region84: #{tactile_placing_net_forward.1} parent=1 // pred_region
      %244 = dma.done [#allocation3], 36864
    $region85: #{tactile_placing_net_forward.1} parent=1 // pred_fallthru
      _
    // Predicated region
    $region86: #{tactile_placing_net_forward.1} parent=1 // pred_check
      _
    $region87: #{tactile_placing_net_forward.1} parent=1 // pred_check_branch
      %246 = sbr.rel (0) target = $region89
    $region88: #{tactile_placing_net_forward.1} parent=1 // pred_region
      %248 = dma.done [#allocation5], 144
    $region89: #{tactile_placing_net_forward.1} parent=1 // pred_fallthru
      _
    // Predicated region
    $region90: #{tactile_placing_net_forward.1} parent=1 // pred_check
      _
    $region91: #{tactile_placing_net_forward.1} parent=1 // pred_check_branch
      %250 = sbr.rel (0) target = $region93
    $region92: #{tactile_placing_net_forward.1} parent=1 // pred_region
      %252 = dma.done [#allocation5], 144
    $region93: #{tactile_placing_net_forward.1} parent=1 // pred_fallthru
      _
    // Predicated region
    $region94: #{tactile_placing_net_forward.1} parent=1 // pred_check
      _
    $region95: #{tactile_placing_net_forward.1} parent=1 // pred_check_branch
      %254 = sbr.rel (0) target = $region97
    $region96: #{tactile_placing_net_forward.1} parent=1 // pred_region
      %256 = dma.done [#allocation8], 18432
    $region97: #{tactile_placing_net_forward.1} parent=1 // pred_fallthru
      _
    // Predicated region
    $region98: #{tactile_placing_net_forward.1} parent=1 // pred_check
      _
    $region99: #{tactile_placing_net_forward.1} parent=1 // pred_check_branch
      %258 = sbr.rel (0) target = $region101
    $region100: #{tactile_placing_net_forward.1} parent=1 // pred_region
      %260 = dma.done [#allocation8], 32
    $region101: #{tactile_placing_net_forward.1} parent=1 // pred_fallthru
      _
    // Predicated region
    $region102: #{tactile_placing_net_forward.1} parent=1 // pred_check
      _
    $region103: #{tactile_placing_net_forward.1} parent=1 // pred_check_branch
      %262 = sbr.rel (0) target = $region105
    $region104: #{tactile_placing_net_forward.1} parent=1 // pred_region
      %264 = dma.done [#allocation11], 32
    $region105: #{tactile_placing_net_forward.1} parent=1 // pred_fallthru
      _
    // Predicated region
    $region106: #{tactile_placing_net_forward.1} parent=1 // pred_check
      _
    $region107: #{tactile_placing_net_forward.1} parent=1 // pred_check_branch
      %266 = sbr.rel (0) target = $region109
    $region108: #{tactile_placing_net_forward.1} parent=1 // pred_region
      %268 = dma.done [#allocation11], 2048
    $region109: #{tactile_placing_net_forward.1} parent=1 // pred_fallthru
      _
    // Predicated region
    $region110: #{tactile_placing_net_forward.1} parent=1 // pred_check
      _
    $region111: #{tactile_placing_net_forward.1} parent=1 // pred_check_branch
      %270 = sbr.rel (0) target = $region113
    $region112: #{tactile_placing_net_forward.1} parent=1 // pred_region
      %272 = dma.done [#allocation14], 16
    $region113: #{tactile_placing_net_forward.1} parent=1 // pred_fallthru
      _
    // Predicated region
    $region114: #{tactile_placing_net_forward.1} parent=1 // pred_check
      _
    $region115: #{tactile_placing_net_forward.1} parent=1 // pred_check_branch
      %274 = sbr.rel (0) target = $region117
    $region116: #{tactile_placing_net_forward.1} parent=1 // pred_region
      %276 = dma.done [#allocation14], 4096
    $region117: #{tactile_placing_net_forward.1} parent=1 // pred_fallthru
      _
    // Predicated region
    $region118: #{tactile_placing_net_forward.1} parent=1 // pred_check
      _
    $region119: #{tactile_placing_net_forward.1} parent=1 // pred_check_branch
      %278 = sbr.rel (0) target = $region121
    $region120: #{tactile_placing_net_forward.1} parent=1 // pred_region
      %280 = dma.done [#allocation17], 64
    $region121: #{tactile_placing_net_forward.1} parent=1 // pred_fallthru
      _
    // Predicated region
    $region122: #{tactile_placing_net_forward.1} parent=1 // pred_check
      _
    $region123: #{tactile_placing_net_forward.1} parent=1 // pred_check_branch
      %282 = sbr.rel (0) target = $region125
    $region124: #{tactile_placing_net_forward.1} parent=1 // pred_region
      %284 = dma.done [#allocation17], 4096
    $region125: #{tactile_placing_net_forward.1} parent=1 // pred_fallthru
      _
    // Predicated region
    $region126: #{tactile_placing_net_forward.1} parent=1 // pred_check
      _
    $region127: #{tactile_placing_net_forward.1} parent=1 // pred_check_branch
      %286 = sbr.rel (0) target = $region129
    $region128: #{tactile_placing_net_forward.1} parent=1 // pred_region
      %288 = dma.done [#allocation20], 8192
    $region129: #{tactile_placing_net_forward.1} parent=1 // pred_fallthru
      _
    // Predicated region
    $region130: #{tactile_placing_net_forward.1} parent=1 // pred_check
      _
    $region131: #{tactile_placing_net_forward.1} parent=1 // pred_check_branch
      %290 = sbr.rel (0) target = $region133
    $region132: #{tactile_placing_net_forward.1} parent=1 // pred_region
      %292 = dma.done [#allocation20], 64
    $region133: #{tactile_placing_net_forward.1} parent=1 // pred_fallthru
      _
    // Predicated region
    $region134: #{tactile_placing_net_forward.1} parent=1 // pred_check
      _
    $region135: #{tactile_placing_net_forward.1} parent=1 // pred_check_branch
      %294 = sbr.rel (0) target = $region137
    $region136: #{tactile_placing_net_forward.1} parent=1 // pred_region
      %296 = dma.done [#allocation23], 1024
    $region137: #{tactile_placing_net_forward.1} parent=1 // pred_fallthru
      _
    // Predicated region
    $region138: #{tactile_placing_net_forward.1} parent=1 // pred_check
      _
    $region139: #{tactile_placing_net_forward.1} parent=1 // pred_check_branch
      %298 = sbr.rel (0) target = $region141
    $region140: #{tactile_placing_net_forward.1} parent=1 // pred_region
      %300 = dma.done [#allocation23], 16
    $region141: #{tactile_placing_net_forward.1} parent=1 // pred_fallthru
      _
    // Predicated region
    $region142: #{tactile_placing_net_forward.1} parent=1 // pred_check
      _
    $region143: #{tactile_placing_net_forward.1} parent=1 // pred_check_branch
      %302 = sbr.rel (0) target = $region145
    $region144: #{tactile_placing_net_forward.1} parent=1 // pred_region
      %304 = dma.done [#allocation26], 16
    $region145: #{tactile_placing_net_forward.1} parent=1 // pred_fallthru
      _
    // Predicated region
    $region146: #{tactile_placing_net_forward.1} parent=1 // pred_check
      _
    $region147: #{tactile_placing_net_forward.1} parent=1 // pred_check_branch
      %306 = sbr.rel (0) target = $region149
    $region148: #{tactile_placing_net_forward.1} parent=1 // pred_region
      %308 = dma.done [#allocation26], 16
    $region149: #{tactile_placing_net_forward.1} parent=1 // pred_fallthru
      _
    %v310 = vld [vmem:[%s0] sm:$0xff]
    %v311 = vld [vmem:[%s0 + $0x8] sm:$0xff]
    %v312 = vld [vmem:[%s0 + $0x10] sm:$0xff]
    %v313 = vld [vmem:[%s0 + $0x18] sm:$0xff]
    %v314 = vld [vmem:[%s0 + $0x20] sm:$0xff]
    %v315 = vld [vmem:[%s0 + $0x28] sm:$0xff]
    %v316 = vld [vmem:[%s0 + $0x30] sm:$0xff]
    %v317 = vld [vmem:[%s0 + $0x38] sm:$0xff]
    %v318 = vpack.c.bf16 %v314, %v310
    %v319 = vpack.c.bf16 %v315, %v311
    %v320 = vpack.c.bf16 %v316, %v312
    %v321 = vpack.c.bf16 %v317, %v313
    %v322 = vld [vmem:[#allocation2] sm:$0xff]
    %v323 = vld [vmem:[#allocation2 + $0x8] sm:$0xff]
    %v324 = vld [vmem:[#allocation2 + $0x10] sm:$0xff]
    %v325 = vld [vmem:[#allocation2 + $0x18] sm:$0xff]
    %v326 = vld [vmem:[#allocation2 + $0x20] sm:$0xf]
    %v327 = vld [vmem:[#allocation2 + $0x24] sm:$0xff]
    %v328 = vld [vmem:[#allocation2 + $0x2c] sm:$0xff]
    %v329 = vld [vmem:[#allocation2 + $0x34] sm:$0xff]
    %v330 = vld [vmem:[#allocation2 + $0x3c] sm:$0xff]
    %v331 = vld [vmem:[#allocation2 + $0x44] sm:$0xf]
    %v332 = vld [vmem:[#allocation2 + $0x48] sm:$0xff]
    %v333 = vld [vmem:[#allocation2 + $0x50] sm:$0xff]
    %v334 = vld [vmem:[#allocation2 + $0x58] sm:$0xff]
    %v335 = vld [vmem:[#allocation2 + $0x60] sm:$0xff]
    %v336 = vld [vmem:[#allocation2 + $0x68] sm:$0xf]
    %v337 = vld [vmem:[#allocation2 + $0x6c] sm:$0xff]
    %v338 = vld [vmem:[#allocation2 + $0x74] sm:$0xff]
    %v339 = vld [vmem:[#allocation2 + $0x7c] sm:$0xff]
    %v340 = vld [vmem:[#allocation2 + $0x84] sm:$0xff]
    %v341 = vld [vmem:[#allocation2 + $0x8c] sm:$0xf]
    %v342 = vld [vmem:[#allocation2 + $0x90] sm:$0xff]
    %v343 = vld [vmem:[#allocation2 + $0x98] sm:$0xff]
    %v344 = vld [vmem:[#allocation2 + $0xa0] sm:$0xff]
    %v345 = vld [vmem:[#allocation2 + $0xa8] sm:$0xff]
    %v346 = vld [vmem:[#allocation2 + $0xb0] sm:$0xf]
    %v347 = vld [vmem:[#allocation2 + $0xb4] sm:$0xff]
    %v348 = vld [vmem:[#allocation2 + $0xbc] sm:$0xff]
    %v349 = vld [vmem:[#allocation2 + $0xc4] sm:$0xff]
    %v350 = vld [vmem:[#allocation2 + $0xcc] sm:$0xff]
    %v351 = vld [vmem:[#allocation2 + $0xd4] sm:$0xf]
    %v352 = vld [vmem:[#allocation2 + $0xd8] sm:$0xff]
    %v353 = vld [vmem:[#allocation2 + $0xe0] sm:$0xff]
    %v354 = vld [vmem:[#allocation2 + $0xe8] sm:$0xff]
    %v355 = vld [vmem:[#allocation2 + $0xf0] sm:$0xff]
    %v356 = vld [vmem:[#allocation2 + $0xf8] sm:$0xf]
    %v357 = vld [vmem:[#allocation2 + $0xfc] sm:$0xff]
    %v358 = vld [vmem:[#allocation2 + $0x104] sm:$0xff]
    %v359 = vld [vmem:[#allocation2 + $0x10c] sm:$0xff]
    %v360 = vld [vmem:[#allocation2 + $0x114] sm:$0xff]
    %v361 = vld [vmem:[#allocation2 + $0x11c] sm:$0xf]
    %v362 = vld [vmem:[#allocation2 + $0x120] sm:$0xff]
    %v363 = vld [vmem:[#allocation2 + $0x128] sm:$0xff]
    %v364 = vld [vmem:[#allocation2 + $0x130] sm:$0xff]
    %v365 = vld [vmem:[#allocation2 + $0x138] sm:$0xff]
    %v366 = vld [vmem:[#allocation2 + $0x140] sm:$0xf]
    %v367 = vld [vmem:[#allocation2 + $0x144] sm:$0xff]
    %v368 = vld [vmem:[#allocation2 + $0x14c] sm:$0xff]
    %v369 = vld [vmem:[#allocation2 + $0x154] sm:$0xff]
    %v370 = vld [vmem:[#allocation2 + $0x15c] sm:$0xff]
    %v371 = vld [vmem:[#allocation2 + $0x164] sm:$0xf]
    %v372 = vld [vmem:[#allocation2 + $0x168] sm:$0xff]
    %v373 = vld [vmem:[#allocation2 + $0x170] sm:$0xff]
    %v374 = vld [vmem:[#allocation2 + $0x178] sm:$0xff]
    %v375 = vld [vmem:[#allocation2 + $0x180] sm:$0xff]
    %v376 = vld [vmem:[#allocation2 + $0x188] sm:$0xf]
    %v377 = vld [vmem:[#allocation2 + $0x18c] sm:$0xff]
    %v378 = vld [vmem:[#allocation2 + $0x194] sm:$0xff]
    %v379 = vld [vmem:[#allocation2 + $0x19c] sm:$0xff]
    %v380 = vld [vmem:[#allocation2 + $0x1a4] sm:$0xff]
    %v381 = vld [vmem:[#allocation2 + $0x1ac] sm:$0xf]
    %v382 = vld [vmem:[#allocation2 + $0x1b0] sm:$0xff]
    %v383 = vld [vmem:[#allocation2 + $0x1b8] sm:$0xff]
    %v384 = vld [vmem:[#allocation2 + $0x1c0] sm:$0xff]
    %v385 = vld [vmem:[#allocation2 + $0x1c8] sm:$0xff]
    %v386 = vld [vmem:[#allocation2 + $0x1d0] sm:$0xf]
    %v387 = vld [vmem:[#allocation2 + $0x1d4] sm:$0xff]
    %v388 = vld [vmem:[#allocation2 + $0x1dc] sm:$0xff]
    %v389 = vld [vmem:[#allocation2 + $0x1e4] sm:$0xff]
    %v390 = vld [vmem:[#allocation2 + $0x1ec] sm:$0xff]
    %v391 = vld [vmem:[#allocation2 + $0x1f4] sm:$0xf]
    %v392 = vld [vmem:[#allocation2 + $0x1f8] sm:$0xff]
    %v393 = vld [vmem:[#allocation2 + $0x200] sm:$0xff]
    %v394 = vld [vmem:[#allocation2 + $0x208] sm:$0xff]
    %v395 = vld [vmem:[#allocation2 + $0x210] sm:$0xff]
    %v396 = vld [vmem:[#allocation2 + $0x218] sm:$0xf]
    %v397 = vld [vmem:[#allocation2 + $0x21c] sm:$0xff]
    %v398 = vld [vmem:[#allocation2 + $0x224] sm:$0xff]
    %v399 = vld [vmem:[#allocation2 + $0x22c] sm:$0xff]
    %v400 = vld [vmem:[#allocation2 + $0x234] sm:$0xff]
    %v401 = vld [vmem:[#allocation2 + $0x23c] sm:$0xf]
    %v402 = vld [vmem:[#allocation2 + $0x240] sm:$0xff]
    %v403 = vld [vmem:[#allocation2 + $0x248] sm:$0xff]
    %v404 = vld [vmem:[#allocation2 + $0x250] sm:$0xff]
    %v405 = vld [vmem:[#allocation2 + $0x258] sm:$0xff]
    %v406 = vld [vmem:[#allocation2 + $0x260] sm:$0xf]
    %v407 = vld [vmem:[#allocation2 + $0x264] sm:$0xff]
    %v408 = vld [vmem:[#allocation2 + $0x26c] sm:$0xff]
    %v409 = vld [vmem:[#allocation2 + $0x274] sm:$0xff]
    %v410 = vld [vmem:[#allocation2 + $0x27c] sm:$0xff]
    %v411 = vld [vmem:[#allocation2 + $0x284] sm:$0xf]
    %v412 = vld [vmem:[#allocation2 + $0x288] sm:$0xff]
    %v413 = vld [vmem:[#allocation2 + $0x290] sm:$0xff]
    %v414 = vld [vmem:[#allocation2 + $0x298] sm:$0xff]
    %v415 = vld [vmem:[#allocation2 + $0x2a0] sm:$0xff]
    %v416 = vld [vmem:[#allocation2 + $0x2a8] sm:$0xf]
    %v417 = vld [vmem:[#allocation2 + $0x2ac] sm:$0xff]
    %v418 = vld [vmem:[#allocation2 + $0x2b4] sm:$0xff]
    %v419 = vld [vmem:[#allocation2 + $0x2bc] sm:$0xff]
    %v420 = vld [vmem:[#allocation2 + $0x2c4] sm:$0xff]
    %v421 = vld [vmem:[#allocation2 + $0x2cc] sm:$0xf]
    %v422 = vld [vmem:[#allocation2 + $0x2d0] sm:$0xff]
    %v423 = vld [vmem:[#allocation2 + $0x2d8] sm:$0xff]
    %v424 = vld [vmem:[#allocation2 + $0x2e0] sm:$0xff]
    %v425 = vld [vmem:[#allocation2 + $0x2e8] sm:$0xff]
    %v426 = vld [vmem:[#allocation2 + $0x2f0] sm:$0xf]
    %v427 = vld [vmem:[#allocation2 + $0x2f4] sm:$0xff]
    %v428 = vld [vmem:[#allocation2 + $0x2fc] sm:$0xff]
    %v429 = vld [vmem:[#allocation2 + $0x304] sm:$0xff]
    %v430 = vld [vmem:[#allocation2 + $0x30c] sm:$0xff]
    %v431 = vld [vmem:[#allocation2 + $0x314] sm:$0xf]
    %v432 = vld [vmem:[#allocation2 + $0x318] sm:$0xff]
    %v433 = vld [vmem:[#allocation2 + $0x320] sm:$0xff]
    %v434 = vld [vmem:[#allocation2 + $0x328] sm:$0xff]
    %v435 = vld [vmem:[#allocation2 + $0x330] sm:$0xff]
    %v436 = vld [vmem:[#allocation2 + $0x338] sm:$0xf]
    %v437 = vld [vmem:[#allocation2 + $0x33c] sm:$0xff]
    %v438 = vld [vmem:[#allocation2 + $0x344] sm:$0xff]
    %v439 = vld [vmem:[#allocation2 + $0x34c] sm:$0xff]
    %v440 = vld [vmem:[#allocation2 + $0x354] sm:$0xff]
    %v441 = vld [vmem:[#allocation2 + $0x35c] sm:$0xf]
    %v442 = vld [vmem:[#allocation2 + $0x360] sm:$0xff]
    %v443 = vld [vmem:[#allocation2 + $0x368] sm:$0xff]
    %v444 = vld [vmem:[#allocation2 + $0x370] sm:$0xff]
    %v445 = vld [vmem:[#allocation2 + $0x378] sm:$0xff]
    %v446 = vld [vmem:[#allocation2 + $0x380] sm:$0xf]
    %v447 = vld [vmem:[#allocation2 + $0x384] sm:$0xff]
    %v448 = vld [vmem:[#allocation2 + $0x38c] sm:$0xff]
    %v449 = vld [vmem:[#allocation2 + $0x394] sm:$0xff]
    %v450 = vld [vmem:[#allocation2 + $0x39c] sm:$0xff]
    %v451 = vld [vmem:[#allocation2 + $0x3a4] sm:$0xf]
    %v452 = vld [vmem:[#allocation2 + $0x3a8] sm:$0xff]
    %v453 = vld [vmem:[#allocation2 + $0x3b0] sm:$0xff]
    %v454 = vld [vmem:[#allocation2 + $0x3b8] sm:$0xff]
    %v455 = vld [vmem:[#allocation2 + $0x3c0] sm:$0xff]
    %v456 = vld [vmem:[#allocation2 + $0x3c8] sm:$0xf]
    %v457 = vld [vmem:[#allocation2 + $0x3cc] sm:$0xff]
    %v458 = vld [vmem:[#allocation2 + $0x3d4] sm:$0xff]
    %v459 = vld [vmem:[#allocation2 + $0x3dc] sm:$0xff]
    %v460 = vld [vmem:[#allocation2 + $0x3e4] sm:$0xff]
    %v461 = vld [vmem:[#allocation2 + $0x3ec] sm:$0xf]
    %v462 = vld [vmem:[#allocation2 + $0x3f0] sm:$0xff]
    %v463 = vld [vmem:[#allocation2 + $0x3f8] sm:$0xff]
    %v464 = vld [vmem:[#allocation2 + $0x400] sm:$0xff]
    %v465 = vld [vmem:[#allocation2 + $0x408] sm:$0xff]
    %v466 = vld [vmem:[#allocation2 + $0x410] sm:$0xf]
    %v467 = vld [vmem:[#allocation2 + $0x414] sm:$0xff]
    %v468 = vld [vmem:[#allocation2 + $0x41c] sm:$0xff]
    %v469 = vld [vmem:[#allocation2 + $0x424] sm:$0xff]
    %v470 = vld [vmem:[#allocation2 + $0x42c] sm:$0xff]
    %v471 = vld [vmem:[#allocation2 + $0x434] sm:$0xf]
    %v472 = vld [vmem:[#allocation2 + $0x438] sm:$0xff]
    %v473 = vld [vmem:[#allocation2 + $0x440] sm:$0xff]
    %v474 = vld [vmem:[#allocation2 + $0x448] sm:$0xff]
    %v475 = vld [vmem:[#allocation2 + $0x450] sm:$0xff]
    %v476 = vld [vmem:[#allocation2 + $0x458] sm:$0xf]
    %v477 = vld [vmem:[#allocation2 + $0x45c] sm:$0xff]
    %v478 = vld [vmem:[#allocation2 + $0x464] sm:$0xff]
    %v479 = vld [vmem:[#allocation2 + $0x46c] sm:$0xff]
    %v480 = vld [vmem:[#allocation2 + $0x474] sm:$0xff]
    %v481 = vld [vmem:[#allocation2 + $0x47c] sm:$0xf]
    %v482 = vld [vmem:[#allocation2 + $0x480] sm:$0xff]
    %v483 = vld [vmem:[#allocation2 + $0x488] sm:$0xff]
    %v484 = vld [vmem:[#allocation2 + $0x490] sm:$0xff]
    %v485 = vld [vmem:[#allocation2 + $0x498] sm:$0xff]
    %v486 = vld [vmem:[#allocation2 + $0x4a0] sm:$0xf]
    %v487 = vld [vmem:[#allocation2 + $0x4a4] sm:$0xff]
    %v488 = vld [vmem:[#allocation2 + $0x4ac] sm:$0xff]
    %v489 = vld [vmem:[#allocation2 + $0x4b4] sm:$0xff]
    %v490 = vld [vmem:[#allocation2 + $0x4bc] sm:$0xff]
    %v491 = vld [vmem:[#allocation2 + $0x4c4] sm:$0xf]
    %v492 = vld [vmem:[#allocation2 + $0x4c8] sm:$0xff]
    %v493 = vld [vmem:[#allocation2 + $0x4d0] sm:$0xff]
    %v494 = vld [vmem:[#allocation2 + $0x4d8] sm:$0xff]
    %v495 = vld [vmem:[#allocation2 + $0x4e0] sm:$0xff]
    %v496 = vld [vmem:[#allocation2 + $0x4e8] sm:$0xf]
    %v497 = vld [vmem:[#allocation2 + $0x4ec] sm:$0xff]
    %v498 = vld [vmem:[#allocation2 + $0x4f4] sm:$0xff]
    %v499 = vld [vmem:[#allocation2 + $0x4fc] sm:$0xff]
    %v500 = vld [vmem:[#allocation2 + $0x504] sm:$0xff]
    %v501 = vld [vmem:[#allocation2 + $0x50c] sm:$0xf]
    %v502 = vld [vmem:[#allocation2 + $0x510] sm:$0xff]
    %v503 = vld [vmem:[#allocation2 + $0x518] sm:$0xff]
    %v504 = vld [vmem:[#allocation2 + $0x520] sm:$0xff]
    %v505 = vld [vmem:[#allocation2 + $0x528] sm:$0xff]
    %v506 = vld [vmem:[#allocation2 + $0x530] sm:$0xf]
    %v507 = vld [vmem:[#allocation2 + $0x534] sm:$0xff]
    %v508 = vld [vmem:[#allocation2 + $0x53c] sm:$0xff]
    %v509 = vld [vmem:[#allocation2 + $0x544] sm:$0xff]
    %v510 = vld [vmem:[#allocation2 + $0x54c] sm:$0xff]
    %v511 = vld [vmem:[#allocation2 + $0x554] sm:$0xf]
    %v512 = vld [vmem:[#allocation2 + $0x558] sm:$0xff]
    %v513 = vld [vmem:[#allocation2 + $0x560] sm:$0xff]
    %v514 = vld [vmem:[#allocation2 + $0x568] sm:$0xff]
    %v515 = vld [vmem:[#allocation2 + $0x570] sm:$0xff]
    %v516 = vld [vmem:[#allocation2 + $0x578] sm:$0xf]
    %v517 = vld [vmem:[#allocation2 + $0x57c] sm:$0xff]
    %v518 = vld [vmem:[#allocation2 + $0x584] sm:$0xff]
    %v519 = vld [vmem:[#allocation2 + $0x58c] sm:$0xff]
    %v520 = vld [vmem:[#allocation2 + $0x594] sm:$0xff]
    %v521 = vld [vmem:[#allocation2 + $0x59c] sm:$0xf]
    %v522 = vld [vmem:[#allocation2 + $0x5a0] sm:$0xff]
    %v523 = vld [vmem:[#allocation2 + $0x5a8] sm:$0xff]
    %v524 = vld [vmem:[#allocation2 + $0x5b0] sm:$0xff]
    %v525 = vld [vmem:[#allocation2 + $0x5b8] sm:$0xff]
    %v526 = vld [vmem:[#allocation2 + $0x5c0] sm:$0xf]
    %v527 = vld [vmem:[#allocation2 + $0x5c4] sm:$0xff]
    %v528 = vld [vmem:[#allocation2 + $0x5cc] sm:$0xff]
    %v529 = vld [vmem:[#allocation2 + $0x5d4] sm:$0xff]
    %v530 = vld [vmem:[#allocation2 + $0x5dc] sm:$0xff]
    %v531 = vld [vmem:[#allocation2 + $0x5e4] sm:$0xf]
    %v532 = vld [vmem:[#allocation2 + $0x5e8] sm:$0xff]
    %v533 = vld [vmem:[#allocation2 + $0x5f0] sm:$0xff]
    %v534 = vld [vmem:[#allocation2 + $0x5f8] sm:$0xff]
    %v535 = vld [vmem:[#allocation2 + $0x600] sm:$0xff]
    %v536 = vld [vmem:[#allocation2 + $0x608] sm:$0xf]
    %v537 = vld [vmem:[#allocation2 + $0x60c] sm:$0xff]
    %v538 = vld [vmem:[#allocation2 + $0x614] sm:$0xff]
    %v539 = vld [vmem:[#allocation2 + $0x61c] sm:$0xff]
    %v540 = vld [vmem:[#allocation2 + $0x624] sm:$0xff]
    %v541 = vld [vmem:[#allocation2 + $0x62c] sm:$0xf]
    %v542 = vld [vmem:[#allocation2 + $0x630] sm:$0xff]
    %v543 = vld [vmem:[#allocation2 + $0x638] sm:$0xff]
    %v544 = vld [vmem:[#allocation2 + $0x640] sm:$0xff]
    %v545 = vld [vmem:[#allocation2 + $0x648] sm:$0xff]
    %v546 = vld [vmem:[#allocation2 + $0x650] sm:$0xf]
    %v547 = vld [vmem:[#allocation2 + $0x654] sm:$0xff]
    %v548 = vld [vmem:[#allocation2 + $0x65c] sm:$0xff]
    %v549 = vld [vmem:[#allocation2 + $0x664] sm:$0xff]
    %v550 = vld [vmem:[#allocation2 + $0x66c] sm:$0xff]
    %v551 = vld [vmem:[#allocation2 + $0x674] sm:$0xf]
    %v552 = vld [vmem:[#allocation2 + $0x678] sm:$0xff]
    %v553 = vld [vmem:[#allocation2 + $0x680] sm:$0xff]
    %v554 = vld [vmem:[#allocation2 + $0x688] sm:$0xff]
    %v555 = vld [vmem:[#allocation2 + $0x690] sm:$0xff]
    %v556 = vld [vmem:[#allocation2 + $0x698] sm:$0xf]
    %v557 = vld [vmem:[#allocation2 + $0x69c] sm:$0xff]
    %v558 = vld [vmem:[#allocation2 + $0x6a4] sm:$0xff]
    %v559 = vld [vmem:[#allocation2 + $0x6ac] sm:$0xff]
    %v560 = vld [vmem:[#allocation2 + $0x6b4] sm:$0xff]
    %v561 = vld [vmem:[#allocation2 + $0x6bc] sm:$0xf]
    %v562 = vld [vmem:[#allocation2 + $0x6c0] sm:$0xff]
    %v563 = vld [vmem:[#allocation2 + $0x6c8] sm:$0xff]
    %v564 = vld [vmem:[#allocation2 + $0x6d0] sm:$0xff]
    %v565 = vld [vmem:[#allocation2 + $0x6d8] sm:$0xff]
    %v566 = vld [vmem:[#allocation2 + $0x6e0] sm:$0xf]
    %v567 = vld [vmem:[#allocation2 + $0x6e4] sm:$0xff]
    %v568 = vld [vmem:[#allocation2 + $0x6ec] sm:$0xff]
    %v569 = vld [vmem:[#allocation2 + $0x6f4] sm:$0xff]
    %v570 = vld [vmem:[#allocation2 + $0x6fc] sm:$0xff]
    %v571 = vld [vmem:[#allocation2 + $0x704] sm:$0xf]
    %v572 = vld [vmem:[#allocation2 + $0x708] sm:$0xff]
    %v573 = vld [vmem:[#allocation2 + $0x710] sm:$0xff]
    %v574 = vld [vmem:[#allocation2 + $0x718] sm:$0xff]
    %v575 = vld [vmem:[#allocation2 + $0x720] sm:$0xff]
    %v576 = vld [vmem:[#allocation2 + $0x728] sm:$0xf]
    %v577 = vld [vmem:[#allocation2 + $0x72c] sm:$0xff]
    %v578 = vld [vmem:[#allocation2 + $0x734] sm:$0xff]
    %v579 = vld [vmem:[#allocation2 + $0x73c] sm:$0xff]
    %v580 = vld [vmem:[#allocation2 + $0x744] sm:$0xff]
    %v581 = vld [vmem:[#allocation2 + $0x74c] sm:$0xf]
    %v582 = vld [vmem:[#allocation2 + $0x750] sm:$0xff]
    %v583 = vld [vmem:[#allocation2 + $0x758] sm:$0xff]
    %v584 = vld [vmem:[#allocation2 + $0x760] sm:$0xff]
    %v585 = vld [vmem:[#allocation2 + $0x768] sm:$0xff]
    %v586 = vld [vmem:[#allocation2 + $0x770] sm:$0xf]
    %v587 = vld [vmem:[#allocation2 + $0x774] sm:$0xff]
    %v588 = vld [vmem:[#allocation2 + $0x77c] sm:$0xff]
    %v589 = vld [vmem:[#allocation2 + $0x784] sm:$0xff]
    %v590 = vld [vmem:[#allocation2 + $0x78c] sm:$0xff]
    %v591 = vld [vmem:[#allocation2 + $0x794] sm:$0xf]
    %v592 = vld [vmem:[#allocation2 + $0x798] sm:$0xff]
    %v593 = vld [vmem:[#allocation2 + $0x7a0] sm:$0xff]
    %v594 = vld [vmem:[#allocation2 + $0x7a8] sm:$0xff]
    %v595 = vld [vmem:[#allocation2 + $0x7b0] sm:$0xff]
    %v596 = vld [vmem:[#allocation2 + $0x7b8] sm:$0xf]
    %v597 = vld [vmem:[#allocation2 + $0x7bc] sm:$0xff]
    %v598 = vld [vmem:[#allocation2 + $0x7c4] sm:$0xff]
    %v599 = vld [vmem:[#allocation2 + $0x7cc] sm:$0xff]
    %v600 = vld [vmem:[#allocation2 + $0x7d4] sm:$0xff]
    %v601 = vld [vmem:[#allocation2 + $0x7dc] sm:$0xf]
    %v602 = vld [vmem:[#allocation2 + $0x7e0] sm:$0xff]
    %v603 = vld [vmem:[#allocation2 + $0x7e8] sm:$0xff]
    %v604 = vld [vmem:[#allocation2 + $0x7f0] sm:$0xff]
    %v605 = vld [vmem:[#allocation2 + $0x7f8] sm:$0xff]
    %v606 = vld [vmem:[#allocation2 + $0x800] sm:$0xf]
    %v607 = vld [vmem:[#allocation2 + $0x804] sm:$0xff]
    %v608 = vld [vmem:[#allocation2 + $0x80c] sm:$0xff]
    %v609 = vld [vmem:[#allocation2 + $0x814] sm:$0xff]
    %v610 = vld [vmem:[#allocation2 + $0x81c] sm:$0xff]
    %v611 = vld [vmem:[#allocation2 + $0x824] sm:$0xf]
    %v612 = vld [vmem:[#allocation2 + $0x828] sm:$0xff]
    %v613 = vld [vmem:[#allocation2 + $0x830] sm:$0xff]
    %v614 = vld [vmem:[#allocation2 + $0x838] sm:$0xff]
    %v615 = vld [vmem:[#allocation2 + $0x840] sm:$0xff]
    %v616 = vld [vmem:[#allocation2 + $0x848] sm:$0xf]
    %v617 = vld [vmem:[#allocation2 + $0x84c] sm:$0xff]
    %v618 = vld [vmem:[#allocation2 + $0x854] sm:$0xff]
    %v619 = vld [vmem:[#allocation2 + $0x85c] sm:$0xff]
    %v620 = vld [vmem:[#allocation2 + $0x864] sm:$0xff]
    %v621 = vld [vmem:[#allocation2 + $0x86c] sm:$0xf]
    %v622 = vld [vmem:[#allocation2 + $0x870] sm:$0xff]
    %v623 = vld [vmem:[#allocation2 + $0x878] sm:$0xff]
    %v624 = vld [vmem:[#allocation2 + $0x880] sm:$0xff]
    %v625 = vld [vmem:[#allocation2 + $0x888] sm:$0xff]
    %v626 = vld [vmem:[#allocation2 + $0x890] sm:$0xf]
    %v627 = vld [vmem:[#allocation2 + $0x894] sm:$0xff]
    %v628 = vld [vmem:[#allocation2 + $0x89c] sm:$0xff]
    %v629 = vld [vmem:[#allocation2 + $0x8a4] sm:$0xff]
    %v630 = vld [vmem:[#allocation2 + $0x8ac] sm:$0xff]
    %v631 = vld [vmem:[#allocation2 + $0x8b4] sm:$0xf]
    %v632 = vld [vmem:[#allocation2 + $0x8b8] sm:$0xff]
    %v633 = vld [vmem:[#allocation2 + $0x8c0] sm:$0xff]
    %v634 = vld [vmem:[#allocation2 + $0x8c8] sm:$0xff]
    %v635 = vld [vmem:[#allocation2 + $0x8d0] sm:$0xff]
    %v636 = vld [vmem:[#allocation2 + $0x8d8] sm:$0xf]
    %v637 = vld [vmem:[#allocation2 + $0x8dc] sm:$0xff]
    %v638 = vld [vmem:[#allocation2 + $0x8e4] sm:$0xff]
    %v639 = vld [vmem:[#allocation2 + $0x8ec] sm:$0xff]
    %v640 = vld [vmem:[#allocation2 + $0x8f4] sm:$0xff]
    %v641 = vld [vmem:[#allocation2 + $0x8fc] sm:$0xf]
    %v962 = vunpack.c.l.b16 %v322
    %v963 = vunpack.c.h.b16 %v322
    %v964 = vunpack.c.l.b16 %v323
    %v965 = vunpack.c.h.b16 %v323
    %v966 = vunpack.c.l.b16 %v324
    %v967 = vunpack.c.h.b16 %v324
    %v968 = vunpack.c.l.b16 %v325
    %v969 = vunpack.c.h.b16 %v325
    %v970 = vunpack.c.l.b16 %v326
    %v971 = vunpack.c.l.b16 %v327
    %v972 = vunpack.c.h.b16 %v327
    %v973 = vunpack.c.l.b16 %v328
    %v974 = vunpack.c.h.b16 %v328
    %v975 = vunpack.c.l.b16 %v329
    %v976 = vunpack.c.h.b16 %v329
    %v977 = vunpack.c.l.b16 %v330
    %v978 = vunpack.c.h.b16 %v330
    %v979 = vunpack.c.l.b16 %v331
    %v980 = vunpack.c.l.b16 %v332
    %v981 = vunpack.c.h.b16 %v332
    %v982 = vunpack.c.l.b16 %v333
    %v983 = vunpack.c.h.b16 %v333
    %v984 = vunpack.c.l.b16 %v334
    %v985 = vunpack.c.h.b16 %v334
    %v986 = vunpack.c.l.b16 %v335
    %v987 = vunpack.c.h.b16 %v335
    %v988 = vunpack.c.l.b16 %v336
    %v989 = vunpack.c.l.b16 %v337
    %v990 = vunpack.c.h.b16 %v337
    %v991 = vunpack.c.l.b16 %v338
    %v992 = vunpack.c.h.b16 %v338
    %v993 = vunpack.c.l.b16 %v339
    %v994 = vunpack.c.h.b16 %v339
    %v995 = vunpack.c.l.b16 %v340
    %v996 = vunpack.c.h.b16 %v340
    %v997 = vunpack.c.l.b16 %v341
    %v998 = vunpack.c.l.b16 %v342
    %v999 = vunpack.c.h.b16 %v342
    %v1000 = vunpack.c.l.b16 %v343
    %v1001 = vunpack.c.h.b16 %v343
    %v1002 = vunpack.c.l.b16 %v344
    %v1003 = vunpack.c.h.b16 %v344
    %v1004 = vunpack.c.l.b16 %v345
    %v1005 = vunpack.c.h.b16 %v345
    %v1006 = vunpack.c.l.b16 %v346
    %v1007 = vunpack.c.l.b16 %v347
    %v1008 = vunpack.c.h.b16 %v347
    %v1009 = vunpack.c.l.b16 %v348
    %v1010 = vunpack.c.h.b16 %v348
    %v1011 = vunpack.c.l.b16 %v349
    %v1012 = vunpack.c.h.b16 %v349
    %v1013 = vunpack.c.l.b16 %v350
    %v1014 = vunpack.c.h.b16 %v350
    %v1015 = vunpack.c.l.b16 %v351
    %v1016 = vunpack.c.l.b16 %v352
    %v1017 = vunpack.c.h.b16 %v352
    %v1018 = vunpack.c.l.b16 %v353
    %v1019 = vunpack.c.h.b16 %v353
    %v1020 = vunpack.c.l.b16 %v354
    %v1021 = vunpack.c.h.b16 %v354
    %v1022 = vunpack.c.l.b16 %v355
    %v1023 = vunpack.c.h.b16 %v355
    %v1024 = vunpack.c.l.b16 %v356
    %v1025 = vunpack.c.l.b16 %v357
    %v1026 = vunpack.c.h.b16 %v357
    %v1027 = vunpack.c.l.b16 %v358
    %v1028 = vunpack.c.h.b16 %v358
    %v1029 = vunpack.c.l.b16 %v359
    %v1030 = vunpack.c.h.b16 %v359
    %v1031 = vunpack.c.l.b16 %v360
    %v1032 = vunpack.c.h.b16 %v360
    %v1033 = vunpack.c.l.b16 %v361
    %v1034 = vunpack.c.l.b16 %v362
    %v1035 = vunpack.c.h.b16 %v362
    %v1036 = vunpack.c.l.b16 %v363
    %v1037 = vunpack.c.h.b16 %v363
    %v1038 = vunpack.c.l.b16 %v364
    %v1039 = vunpack.c.h.b16 %v364
    %v1040 = vunpack.c.l.b16 %v365
    %v1041 = vunpack.c.h.b16 %v365
    %v1042 = vunpack.c.l.b16 %v366
    %v1043 = vunpack.c.l.b16 %v367
    %v1044 = vunpack.c.h.b16 %v367
    %v1045 = vunpack.c.l.b16 %v368
    %v1046 = vunpack.c.h.b16 %v368
    %v1047 = vunpack.c.l.b16 %v369
    %v1048 = vunpack.c.h.b16 %v369
    %v1049 = vunpack.c.l.b16 %v370
    %v1050 = vunpack.c.h.b16 %v370
    %v1051 = vunpack.c.l.b16 %v371
    %v1052 = vunpack.c.l.b16 %v372
    %v1053 = vunpack.c.h.b16 %v372
    %v1054 = vunpack.c.l.b16 %v373
    %v1055 = vunpack.c.h.b16 %v373
    %v1056 = vunpack.c.l.b16 %v374
    %v1057 = vunpack.c.h.b16 %v374
    %v1058 = vunpack.c.l.b16 %v375
    %v1059 = vunpack.c.h.b16 %v375
    %v1060 = vunpack.c.l.b16 %v376
    %v1061 = vunpack.c.l.b16 %v377
    %v1062 = vunpack.c.h.b16 %v377
    %v1063 = vunpack.c.l.b16 %v378
    %v1064 = vunpack.c.h.b16 %v378
    %v1065 = vunpack.c.l.b16 %v379
    %v1066 = vunpack.c.h.b16 %v379
    %v1067 = vunpack.c.l.b16 %v380
    %v1068 = vunpack.c.h.b16 %v380
    %v1069 = vunpack.c.l.b16 %v381
    %v1070 = vunpack.c.l.b16 %v382
    %v1071 = vunpack.c.h.b16 %v382
    %v1072 = vunpack.c.l.b16 %v383
    %v1073 = vunpack.c.h.b16 %v383
    %v1074 = vunpack.c.l.b16 %v384
    %v1075 = vunpack.c.h.b16 %v384
    %v1076 = vunpack.c.l.b16 %v385
    %v1077 = vunpack.c.h.b16 %v385
    %v1078 = vunpack.c.l.b16 %v386
    %v1079 = vunpack.c.l.b16 %v387
    %v1080 = vunpack.c.h.b16 %v387
    %v1081 = vunpack.c.l.b16 %v388
    %v1082 = vunpack.c.h.b16 %v388
    %v1083 = vunpack.c.l.b16 %v389
    %v1084 = vunpack.c.h.b16 %v389
    %v1085 = vunpack.c.l.b16 %v390
    %v1086 = vunpack.c.h.b16 %v390
    %v1087 = vunpack.c.l.b16 %v391
    %v1088 = vunpack.c.l.b16 %v392
    %v1089 = vunpack.c.h.b16 %v392
    %v1090 = vunpack.c.l.b16 %v393
    %v1091 = vunpack.c.h.b16 %v393
    %v1092 = vunpack.c.l.b16 %v394
    %v1093 = vunpack.c.h.b16 %v394
    %v1094 = vunpack.c.l.b16 %v395
    %v1095 = vunpack.c.h.b16 %v395
    %v1096 = vunpack.c.l.b16 %v396
    %v1097 = vunpack.c.l.b16 %v397
    %v1098 = vunpack.c.h.b16 %v397
    %v1099 = vunpack.c.l.b16 %v398
    %v1100 = vunpack.c.h.b16 %v398
    %v1101 = vunpack.c.l.b16 %v399
    %v1102 = vunpack.c.h.b16 %v399
    %v1103 = vunpack.c.l.b16 %v400
    %v1104 = vunpack.c.h.b16 %v400
    %v1105 = vunpack.c.l.b16 %v401
    %v1106 = vunpack.c.l.b16 %v402
    %v1107 = vunpack.c.h.b16 %v402
    %v1108 = vunpack.c.l.b16 %v403
    %v1109 = vunpack.c.h.b16 %v403
    %v1110 = vunpack.c.l.b16 %v404
    %v1111 = vunpack.c.h.b16 %v404
    %v1112 = vunpack.c.l.b16 %v405
    %v1113 = vunpack.c.h.b16 %v405
    %v1114 = vunpack.c.l.b16 %v406
    %v1115 = vunpack.c.l.b16 %v407
    %v1116 = vunpack.c.h.b16 %v407
    %v1117 = vunpack.c.l.b16 %v408
    %v1118 = vunpack.c.h.b16 %v408
    %v1119 = vunpack.c.l.b16 %v409
    %v1120 = vunpack.c.h.b16 %v409
    %v1121 = vunpack.c.l.b16 %v410
    %v1122 = vunpack.c.h.b16 %v410
    %v1123 = vunpack.c.l.b16 %v411
    %v1124 = vunpack.c.l.b16 %v412
    %v1125 = vunpack.c.h.b16 %v412
    %v1126 = vunpack.c.l.b16 %v413
    %v1127 = vunpack.c.h.b16 %v413
    %v1128 = vunpack.c.l.b16 %v414
    %v1129 = vunpack.c.h.b16 %v414
    %v1130 = vunpack.c.l.b16 %v415
    %v1131 = vunpack.c.h.b16 %v415
    %v1132 = vunpack.c.l.b16 %v416
    %v1133 = vunpack.c.l.b16 %v417
    %v1134 = vunpack.c.h.b16 %v417
    %v1135 = vunpack.c.l.b16 %v418
    %v1136 = vunpack.c.h.b16 %v418
    %v1137 = vunpack.c.l.b16 %v419
    %v1138 = vunpack.c.h.b16 %v419
    %v1139 = vunpack.c.l.b16 %v420
    %v1140 = vunpack.c.h.b16 %v420
    %v1141 = vunpack.c.l.b16 %v421
    %v1142 = vunpack.c.l.b16 %v422
    %v1143 = vunpack.c.h.b16 %v422
    %v1144 = vunpack.c.l.b16 %v423
    %v1145 = vunpack.c.h.b16 %v423
    %v1146 = vunpack.c.l.b16 %v424
    %v1147 = vunpack.c.h.b16 %v424
    %v1148 = vunpack.c.l.b16 %v425
    %v1149 = vunpack.c.h.b16 %v425
    %v1150 = vunpack.c.l.b16 %v426
    %v1151 = vunpack.c.l.b16 %v427
    %v1152 = vunpack.c.h.b16 %v427
    %v1153 = vunpack.c.l.b16 %v428
    %v1154 = vunpack.c.h.b16 %v428
    %v1155 = vunpack.c.l.b16 %v429
    %v1156 = vunpack.c.h.b16 %v429
    %v1157 = vunpack.c.l.b16 %v430
    %v1158 = vunpack.c.h.b16 %v430
    %v1159 = vunpack.c.l.b16 %v431
    %v1160 = vunpack.c.l.b16 %v432
    %v1161 = vunpack.c.h.b16 %v432
    %v1162 = vunpack.c.l.b16 %v433
    %v1163 = vunpack.c.h.b16 %v433
    %v1164 = vunpack.c.l.b16 %v434
    %v1165 = vunpack.c.h.b16 %v434
    %v1166 = vunpack.c.l.b16 %v435
    %v1167 = vunpack.c.h.b16 %v435
    %v1168 = vunpack.c.l.b16 %v436
    %v1169 = vunpack.c.l.b16 %v437
    %v1170 = vunpack.c.h.b16 %v437
    %v1171 = vunpack.c.l.b16 %v438
    %v1172 = vunpack.c.h.b16 %v438
    %v1173 = vunpack.c.l.b16 %v439
    %v1174 = vunpack.c.h.b16 %v439
    %v1175 = vunpack.c.l.b16 %v440
    %v1176 = vunpack.c.h.b16 %v440
    %v1177 = vunpack.c.l.b16 %v441
    %v1178 = vunpack.c.l.b16 %v442
    %v1179 = vunpack.c.h.b16 %v442
    %v1180 = vunpack.c.l.b16 %v443
    %v1181 = vunpack.c.h.b16 %v443
    %v1182 = vunpack.c.l.b16 %v444
    %v1183 = vunpack.c.h.b16 %v444
    %v1184 = vunpack.c.l.b16 %v445
    %v1185 = vunpack.c.h.b16 %v445
    %v1186 = vunpack.c.l.b16 %v446
    %v1187 = vunpack.c.l.b16 %v447
    %v1188 = vunpack.c.h.b16 %v447
    %v1189 = vunpack.c.l.b16 %v448
    %v1190 = vunpack.c.h.b16 %v448
    %v1191 = vunpack.c.l.b16 %v449
    %v1192 = vunpack.c.h.b16 %v449
    %v1193 = vunpack.c.l.b16 %v450
    %v1194 = vunpack.c.h.b16 %v450
    %v1195 = vunpack.c.l.b16 %v451
    %v1196 = vunpack.c.l.b16 %v452
    %v1197 = vunpack.c.h.b16 %v452
    %v1198 = vunpack.c.l.b16 %v453
    %v1199 = vunpack.c.h.b16 %v453
    %v1200 = vunpack.c.l.b16 %v454
    %v1201 = vunpack.c.h.b16 %v454
    %v1202 = vunpack.c.l.b16 %v455
    %v1203 = vunpack.c.h.b16 %v455
    %v1204 = vunpack.c.l.b16 %v456
    %v1205 = vunpack.c.l.b16 %v457
    %v1206 = vunpack.c.h.b16 %v457
    %v1207 = vunpack.c.l.b16 %v458
    %v1208 = vunpack.c.h.b16 %v458
    %v1209 = vunpack.c.l.b16 %v459
    %v1210 = vunpack.c.h.b16 %v459
    %v1211 = vunpack.c.l.b16 %v460
    %v1212 = vunpack.c.h.b16 %v460
    %v1213 = vunpack.c.l.b16 %v461
    %v1214 = vunpack.c.l.b16 %v462
    %v1215 = vunpack.c.h.b16 %v462
    %v1216 = vunpack.c.l.b16 %v463
    %v1217 = vunpack.c.h.b16 %v463
    %v1218 = vunpack.c.l.b16 %v464
    %v1219 = vunpack.c.h.b16 %v464
    %v1220 = vunpack.c.l.b16 %v465
    %v1221 = vunpack.c.h.b16 %v465
    %v1222 = vunpack.c.l.b16 %v466
    %v1223 = vunpack.c.l.b16 %v467
    %v1224 = vunpack.c.h.b16 %v467
    %v1225 = vunpack.c.l.b16 %v468
    %v1226 = vunpack.c.h.b16 %v468
    %v1227 = vunpack.c.l.b16 %v469
    %v1228 = vunpack.c.h.b16 %v469
    %v1229 = vunpack.c.l.b16 %v470
    %v1230 = vunpack.c.h.b16 %v470
    %v1231 = vunpack.c.l.b16 %v471
    %v1232 = vunpack.c.l.b16 %v472
    %v1233 = vunpack.c.h.b16 %v472
    %v1234 = vunpack.c.l.b16 %v473
    %v1235 = vunpack.c.h.b16 %v473
    %v1236 = vunpack.c.l.b16 %v474
    %v1237 = vunpack.c.h.b16 %v474
    %v1238 = vunpack.c.l.b16 %v475
    %v1239 = vunpack.c.h.b16 %v475
    %v1240 = vunpack.c.l.b16 %v476
    %v1241 = vunpack.c.l.b16 %v477
    %v1242 = vunpack.c.h.b16 %v477
    %v1243 = vunpack.c.l.b16 %v478
    %v1244 = vunpack.c.h.b16 %v478
    %v1245 = vunpack.c.l.b16 %v479
    %v1246 = vunpack.c.h.b16 %v479
    %v1247 = vunpack.c.l.b16 %v480
    %v1248 = vunpack.c.h.b16 %v480
    %v1249 = vunpack.c.l.b16 %v481
    %v1250 = vunpack.c.l.b16 %v482
    %v1251 = vunpack.c.h.b16 %v482
    %v1252 = vunpack.c.l.b16 %v483
    %v1253 = vunpack.c.h.b16 %v483
    %v1254 = vunpack.c.l.b16 %v484
    %v1255 = vunpack.c.h.b16 %v484
    %v1256 = vunpack.c.l.b16 %v485
    %v1257 = vunpack.c.h.b16 %v485
    %v1258 = vunpack.c.l.b16 %v486
    %v1259 = vunpack.c.l.b16 %v487
    %v1260 = vunpack.c.h.b16 %v487
    %v1261 = vunpack.c.l.b16 %v488
    %v1262 = vunpack.c.h.b16 %v488
    %v1263 = vunpack.c.l.b16 %v489
    %v1264 = vunpack.c.h.b16 %v489
    %v1265 = vunpack.c.l.b16 %v490
    %v1266 = vunpack.c.h.b16 %v490
    %v1267 = vunpack.c.l.b16 %v491
    %v1268 = vunpack.c.l.b16 %v492
    %v1269 = vunpack.c.h.b16 %v492
    %v1270 = vunpack.c.l.b16 %v493
    %v1271 = vunpack.c.h.b16 %v493
    %v1272 = vunpack.c.l.b16 %v494
    %v1273 = vunpack.c.h.b16 %v494
    %v1274 = vunpack.c.l.b16 %v495
    %v1275 = vunpack.c.h.b16 %v495
    %v1276 = vunpack.c.l.b16 %v496
    %v1277 = vunpack.c.l.b16 %v497
    %v1278 = vunpack.c.h.b16 %v497
    %v1279 = vunpack.c.l.b16 %v498
    %v1280 = vunpack.c.h.b16 %v498
    %v1281 = vunpack.c.l.b16 %v499
    %v1282 = vunpack.c.h.b16 %v499
    %v1283 = vunpack.c.l.b16 %v500
    %v1284 = vunpack.c.h.b16 %v500
    %v1285 = vunpack.c.l.b16 %v501
    %v1286 = vunpack.c.l.b16 %v502
    %v1287 = vunpack.c.h.b16 %v502
    %v1288 = vunpack.c.l.b16 %v503
    %v1289 = vunpack.c.h.b16 %v503
    %v1290 = vunpack.c.l.b16 %v504
    %v1291 = vunpack.c.h.b16 %v504
    %v1292 = vunpack.c.l.b16 %v505
    %v1293 = vunpack.c.h.b16 %v505
    %v1294 = vunpack.c.l.b16 %v506
    %v1295 = vunpack.c.l.b16 %v507
    %v1296 = vunpack.c.h.b16 %v507
    %v1297 = vunpack.c.l.b16 %v508
    %v1298 = vunpack.c.h.b16 %v508
    %v1299 = vunpack.c.l.b16 %v509
    %v1300 = vunpack.c.h.b16 %v509
    %v1301 = vunpack.c.l.b16 %v510
    %v1302 = vunpack.c.h.b16 %v510
    %v1303 = vunpack.c.l.b16 %v511
    %v1304 = vunpack.c.l.b16 %v512
    %v1305 = vunpack.c.h.b16 %v512
    %v1306 = vunpack.c.l.b16 %v513
    %v1307 = vunpack.c.h.b16 %v513
    %v1308 = vunpack.c.l.b16 %v514
    %v1309 = vunpack.c.h.b16 %v514
    %v1310 = vunpack.c.l.b16 %v515
    %v1311 = vunpack.c.h.b16 %v515
    %v1312 = vunpack.c.l.b16 %v516
    %v1313 = vunpack.c.l.b16 %v517
    %v1314 = vunpack.c.h.b16 %v517
    %v1315 = vunpack.c.l.b16 %v518
    %v1316 = vunpack.c.h.b16 %v518
    %v1317 = vunpack.c.l.b16 %v519
    %v1318 = vunpack.c.h.b16 %v519
    %v1319 = vunpack.c.l.b16 %v520
    %v1320 = vunpack.c.h.b16 %v520
    %v1321 = vunpack.c.l.b16 %v521
    %v1322 = vunpack.c.l.b16 %v522
    %v1323 = vunpack.c.h.b16 %v522
    %v1324 = vunpack.c.l.b16 %v523
    %v1325 = vunpack.c.h.b16 %v523
    %v1326 = vunpack.c.l.b16 %v524
    %v1327 = vunpack.c.h.b16 %v524
    %v1328 = vunpack.c.l.b16 %v525
    %v1329 = vunpack.c.h.b16 %v525
    %v1330 = vunpack.c.l.b16 %v526
    %v1331 = vunpack.c.l.b16 %v527
    %v1332 = vunpack.c.h.b16 %v527
    %v1333 = vunpack.c.l.b16 %v528
    %v1334 = vunpack.c.h.b16 %v528
    %v1335 = vunpack.c.l.b16 %v529
    %v1336 = vunpack.c.h.b16 %v529
    %v1337 = vunpack.c.l.b16 %v530
    %v1338 = vunpack.c.h.b16 %v530
    %v1339 = vunpack.c.l.b16 %v531
    %v1340 = vunpack.c.l.b16 %v532
    %v1341 = vunpack.c.h.b16 %v532
    %v1342 = vunpack.c.l.b16 %v533
    %v1343 = vunpack.c.h.b16 %v533
    %v1344 = vunpack.c.l.b16 %v534
    %v1345 = vunpack.c.h.b16 %v534
    %v1346 = vunpack.c.l.b16 %v535
    %v1347 = vunpack.c.h.b16 %v535
    %v1348 = vunpack.c.l.b16 %v536
    %v1349 = vunpack.c.l.b16 %v537
    %v1350 = vunpack.c.h.b16 %v537
    %v1351 = vunpack.c.l.b16 %v538
    %v1352 = vunpack.c.h.b16 %v538
    %v1353 = vunpack.c.l.b16 %v539
    %v1354 = vunpack.c.h.b16 %v539
    %v1355 = vunpack.c.l.b16 %v540
    %v1356 = vunpack.c.h.b16 %v540
    %v1357 = vunpack.c.l.b16 %v541
    %v1358 = vunpack.c.l.b16 %v542
    %v1359 = vunpack.c.h.b16 %v542
    %v1360 = vunpack.c.l.b16 %v543
    %v1361 = vunpack.c.h.b16 %v543
    %v1362 = vunpack.c.l.b16 %v544
    %v1363 = vunpack.c.h.b16 %v544
    %v1364 = vunpack.c.l.b16 %v545
    %v1365 = vunpack.c.h.b16 %v545
    %v1366 = vunpack.c.l.b16 %v546
    %v1367 = vunpack.c.l.b16 %v547
    %v1368 = vunpack.c.h.b16 %v547
    %v1369 = vunpack.c.l.b16 %v548
    %v1370 = vunpack.c.h.b16 %v548
    %v1371 = vunpack.c.l.b16 %v549
    %v1372 = vunpack.c.h.b16 %v549
    %v1373 = vunpack.c.l.b16 %v550
    %v1374 = vunpack.c.h.b16 %v550
    %v1375 = vunpack.c.l.b16 %v551
    %v1376 = vunpack.c.l.b16 %v552
    %v1377 = vunpack.c.h.b16 %v552
    %v1378 = vunpack.c.l.b16 %v553
    %v1379 = vunpack.c.h.b16 %v553
    %v1380 = vunpack.c.l.b16 %v554
    %v1381 = vunpack.c.h.b16 %v554
    %v1382 = vunpack.c.l.b16 %v555
    %v1383 = vunpack.c.h.b16 %v555
    %v1384 = vunpack.c.l.b16 %v556
    %v1385 = vunpack.c.l.b16 %v557
    %v1386 = vunpack.c.h.b16 %v557
    %v1387 = vunpack.c.l.b16 %v558
    %v1388 = vunpack.c.h.b16 %v558
    %v1389 = vunpack.c.l.b16 %v559
    %v1390 = vunpack.c.h.b16 %v559
    %v1391 = vunpack.c.l.b16 %v560
    %v1392 = vunpack.c.h.b16 %v560
    %v1393 = vunpack.c.l.b16 %v561
    %v1394 = vunpack.c.l.b16 %v562
    %v1395 = vunpack.c.h.b16 %v562
    %v1396 = vunpack.c.l.b16 %v563
    %v1397 = vunpack.c.h.b16 %v563
    %v1398 = vunpack.c.l.b16 %v564
    %v1399 = vunpack.c.h.b16 %v564
    %v1400 = vunpack.c.l.b16 %v565
    %v1401 = vunpack.c.h.b16 %v565
    %v1402 = vunpack.c.l.b16 %v566
    %v1403 = vunpack.c.l.b16 %v567
    %v1404 = vunpack.c.h.b16 %v567
    %v1405 = vunpack.c.l.b16 %v568
    %v1406 = vunpack.c.h.b16 %v568
    %v1407 = vunpack.c.l.b16 %v569
    %v1408 = vunpack.c.h.b16 %v569
    %v1409 = vunpack.c.l.b16 %v570
    %v1410 = vunpack.c.h.b16 %v570
    %v1411 = vunpack.c.l.b16 %v571
    %v1412 = vunpack.c.l.b16 %v572
    %v1413 = vunpack.c.h.b16 %v572
    %v1414 = vunpack.c.l.b16 %v573
    %v1415 = vunpack.c.h.b16 %v573
    %v1416 = vunpack.c.l.b16 %v574
    %v1417 = vunpack.c.h.b16 %v574
    %v1418 = vunpack.c.l.b16 %v575
    %v1419 = vunpack.c.h.b16 %v575
    %v1420 = vunpack.c.l.b16 %v576
    %v1421 = vunpack.c.l.b16 %v577
    %v1422 = vunpack.c.h.b16 %v577
    %v1423 = vunpack.c.l.b16 %v578
    %v1424 = vunpack.c.h.b16 %v578
    %v1425 = vunpack.c.l.b16 %v579
    %v1426 = vunpack.c.h.b16 %v579
    %v1427 = vunpack.c.l.b16 %v580
    %v1428 = vunpack.c.h.b16 %v580
    %v1429 = vunpack.c.l.b16 %v581
    %v1430 = vunpack.c.l.b16 %v582
    %v1431 = vunpack.c.h.b16 %v582
    %v1432 = vunpack.c.l.b16 %v583
    %v1433 = vunpack.c.h.b16 %v583
    %v1434 = vunpack.c.l.b16 %v584
    %v1435 = vunpack.c.h.b16 %v584
    %v1436 = vunpack.c.l.b16 %v585
    %v1437 = vunpack.c.h.b16 %v585
    %v1438 = vunpack.c.l.b16 %v586
    %v1439 = vunpack.c.l.b16 %v587
    %v1440 = vunpack.c.h.b16 %v587
    %v1441 = vunpack.c.l.b16 %v588
    %v1442 = vunpack.c.h.b16 %v588
    %v1443 = vunpack.c.l.b16 %v589
    %v1444 = vunpack.c.h.b16 %v589
    %v1445 = vunpack.c.l.b16 %v590
    %v1446 = vunpack.c.h.b16 %v590
    %v1447 = vunpack.c.l.b16 %v591
    %v1448 = vunpack.c.l.b16 %v592
    %v1449 = vunpack.c.h.b16 %v592
    %v1450 = vunpack.c.l.b16 %v593
    %v1451 = vunpack.c.h.b16 %v593
    %v1452 = vunpack.c.l.b16 %v594
    %v1453 = vunpack.c.h.b16 %v594
    %v1454 = vunpack.c.l.b16 %v595
    %v1455 = vunpack.c.h.b16 %v595
    %v1456 = vunpack.c.l.b16 %v596
    %v1457 = vunpack.c.l.b16 %v597
    %v1458 = vunpack.c.h.b16 %v597
    %v1459 = vunpack.c.l.b16 %v598
    %v1460 = vunpack.c.h.b16 %v598
    %v1461 = vunpack.c.l.b16 %v599
    %v1462 = vunpack.c.h.b16 %v599
    %v1463 = vunpack.c.l.b16 %v600
    %v1464 = vunpack.c.h.b16 %v600
    %v1465 = vunpack.c.l.b16 %v601
    %v1466 = vunpack.c.l.b16 %v602
    %v1467 = vunpack.c.h.b16 %v602
    %v1468 = vunpack.c.l.b16 %v603
    %v1469 = vunpack.c.h.b16 %v603
    %v1470 = vunpack.c.l.b16 %v604
    %v1471 = vunpack.c.h.b16 %v604
    %v1472 = vunpack.c.l.b16 %v605
    %v1473 = vunpack.c.h.b16 %v605
    %v1474 = vunpack.c.l.b16 %v606
    %v1475 = vunpack.c.l.b16 %v607
    %v1476 = vunpack.c.h.b16 %v607
    %v1477 = vunpack.c.l.b16 %v608
    %v1478 = vunpack.c.h.b16 %v608
    %v1479 = vunpack.c.l.b16 %v609
    %v1480 = vunpack.c.h.b16 %v609
    %v1481 = vunpack.c.l.b16 %v610
    %v1482 = vunpack.c.h.b16 %v610
    %v1483 = vunpack.c.l.b16 %v611
    %v1484 = vunpack.c.l.b16 %v612
    %v1485 = vunpack.c.h.b16 %v612
    %v1486 = vunpack.c.l.b16 %v613
    %v1487 = vunpack.c.h.b16 %v613
    %v1488 = vunpack.c.l.b16 %v614
    %v1489 = vunpack.c.h.b16 %v614
    %v1490 = vunpack.c.l.b16 %v615
    %v1491 = vunpack.c.h.b16 %v615
    %v1492 = vunpack.c.l.b16 %v616
    %v1493 = vunpack.c.l.b16 %v617
    %v1494 = vunpack.c.h.b16 %v617
    %v1495 = vunpack.c.l.b16 %v618
    %v1496 = vunpack.c.h.b16 %v618
    %v1497 = vunpack.c.l.b16 %v619
    %v1498 = vunpack.c.h.b16 %v619
    %v1499 = vunpack.c.l.b16 %v620
    %v1500 = vunpack.c.h.b16 %v620
    %v1501 = vunpack.c.l.b16 %v621
    %v1502 = vunpack.c.l.b16 %v622
    %v1503 = vunpack.c.h.b16 %v622
    %v1504 = vunpack.c.l.b16 %v623
    %v1505 = vunpack.c.h.b16 %v623
    %v1506 = vunpack.c.l.b16 %v624
    %v1507 = vunpack.c.h.b16 %v624
    %v1508 = vunpack.c.l.b16 %v625
    %v1509 = vunpack.c.h.b16 %v625
    %v1510 = vunpack.c.l.b16 %v626
    %v1511 = vunpack.c.l.b16 %v627
    %v1512 = vunpack.c.h.b16 %v627
    %v1513 = vunpack.c.l.b16 %v628
    %v1514 = vunpack.c.h.b16 %v628
    %v1515 = vunpack.c.l.b16 %v629
    %v1516 = vunpack.c.h.b16 %v629
    %v1517 = vunpack.c.l.b16 %v630
    %v1518 = vunpack.c.h.b16 %v630
    %v1519 = vunpack.c.l.b16 %v631
    %v1520 = vunpack.c.l.b16 %v632
    %v1521 = vunpack.c.h.b16 %v632
    %v1522 = vunpack.c.l.b16 %v633
    %v1523 = vunpack.c.h.b16 %v633
    %v1524 = vunpack.c.l.b16 %v634
    %v1525 = vunpack.c.h.b16 %v634
    %v1526 = vunpack.c.l.b16 %v635
    %v1527 = vunpack.c.h.b16 %v635
    %v1528 = vunpack.c.l.b16 %v636
    %v1529 = vunpack.c.l.b16 %v637
    %v1530 = vunpack.c.h.b16 %v637
    %v1531 = vunpack.c.l.b16 %v638
    %v1532 = vunpack.c.h.b16 %v638
    %v1533 = vunpack.c.l.b16 %v639
    %v1534 = vunpack.c.h.b16 %v639
    %v1535 = vunpack.c.l.b16 %v640
    %v1536 = vunpack.c.h.b16 %v640
    %v1537 = vunpack.c.l.b16 %v641
    %v1538 = vpack.c.b16 %v971, %v962
    %v1539 = vpack.c.b16 %v972, %v963
    %v1540 = vpack.c.b16 %v973, %v964
    %v1541 = vpack.c.b16 %v974, %v965
    %v1542 = vpack.c.b16 %v975, %v966
    %v1543 = vpack.c.b16 %v976, %v967
    %v1544 = vpack.c.b16 %v977, %v968
    %v1545 = vpack.c.b16 %v978, %v969
    %v1546 = vpack.c.b16 %v979, %v970
    %v1547 = vpack.c.b16 %v989, %v980
    %v1548 = vpack.c.b16 %v990, %v981
    %v1549 = vpack.c.b16 %v991, %v982
    %v1550 = vpack.c.b16 %v992, %v983
    %v1551 = vpack.c.b16 %v993, %v984
    %v1552 = vpack.c.b16 %v994, %v985
    %v1553 = vpack.c.b16 %v995, %v986
    %v1554 = vpack.c.b16 %v996, %v987
    %v1555 = vpack.c.b16 %v997, %v988
    %v1556 = vpack.c.b16 %v1007, %v998
    %v1557 = vpack.c.b16 %v1008, %v999
    %v1558 = vpack.c.b16 %v1009, %v1000
    %v1559 = vpack.c.b16 %v1010, %v1001
    %v1560 = vpack.c.b16 %v1011, %v1002
    %v1561 = vpack.c.b16 %v1012, %v1003
    %v1562 = vpack.c.b16 %v1013, %v1004
    %v1563 = vpack.c.b16 %v1014, %v1005
    %v1564 = vpack.c.b16 %v1015, %v1006
    %v1565 = vpack.c.b16 %v1025, %v1016
    %v1566 = vpack.c.b16 %v1026, %v1017
    %v1567 = vpack.c.b16 %v1027, %v1018
    %v1568 = vpack.c.b16 %v1028, %v1019
    %v1569 = vpack.c.b16 %v1029, %v1020
    %v1570 = vpack.c.b16 %v1030, %v1021
    %v1571 = vpack.c.b16 %v1031, %v1022
    %v1572 = vpack.c.b16 %v1032, %v1023
    %v1573 = vpack.c.b16 %v1033, %v1024
    %v1574 = vpack.c.b16 %v1043, %v1034
    %v1575 = vpack.c.b16 %v1044, %v1035
    %v1576 = vpack.c.b16 %v1045, %v1036
    %v1577 = vpack.c.b16 %v1046, %v1037
    %v1578 = vpack.c.b16 %v1047, %v1038
    %v1579 = vpack.c.b16 %v1048, %v1039
    %v1580 = vpack.c.b16 %v1049, %v1040
    %v1581 = vpack.c.b16 %v1050, %v1041
    %v1582 = vpack.c.b16 %v1051, %v1042
    %v1583 = vpack.c.b16 %v1061, %v1052
    %v1584 = vpack.c.b16 %v1062, %v1053
    %v1585 = vpack.c.b16 %v1063, %v1054
    %v1586 = vpack.c.b16 %v1064, %v1055
    %v1587 = vpack.c.b16 %v1065, %v1056
    %v1588 = vpack.c.b16 %v1066, %v1057
    %v1589 = vpack.c.b16 %v1067, %v1058
    %v1590 = vpack.c.b16 %v1068, %v1059
    %v1591 = vpack.c.b16 %v1069, %v1060
    %v1592 = vpack.c.b16 %v1079, %v1070
    %v1593 = vpack.c.b16 %v1080, %v1071
    %v1594 = vpack.c.b16 %v1081, %v1072
    %v1595 = vpack.c.b16 %v1082, %v1073
    %v1596 = vpack.c.b16 %v1083, %v1074
    %v1597 = vpack.c.b16 %v1084, %v1075
    %v1598 = vpack.c.b16 %v1085, %v1076
    %v1599 = vpack.c.b16 %v1086, %v1077
    %v1600 = vpack.c.b16 %v1087, %v1078
    %v1601 = vpack.c.b16 %v1097, %v1088
    %v1602 = vpack.c.b16 %v1098, %v1089
    %v1603 = vpack.c.b16 %v1099, %v1090
    %v1604 = vpack.c.b16 %v1100, %v1091
    %v1605 = vpack.c.b16 %v1101, %v1092
    %v1606 = vpack.c.b16 %v1102, %v1093
    %v1607 = vpack.c.b16 %v1103, %v1094
    %v1608 = vpack.c.b16 %v1104, %v1095
    %v1609 = vpack.c.b16 %v1105, %v1096
    %v1610 = vpack.c.b16 %v1115, %v1106
    %v1611 = vpack.c.b16 %v1116, %v1107
    %v1612 = vpack.c.b16 %v1117, %v1108
    %v1613 = vpack.c.b16 %v1118, %v1109
    %v1614 = vpack.c.b16 %v1119, %v1110
    %v1615 = vpack.c.b16 %v1120, %v1111
    %v1616 = vpack.c.b16 %v1121, %v1112
    %v1617 = vpack.c.b16 %v1122, %v1113
    %v1618 = vpack.c.b16 %v1123, %v1114
    %v1619 = vpack.c.b16 %v1133, %v1124
    %v1620 = vpack.c.b16 %v1134, %v1125
    %v1621 = vpack.c.b16 %v1135, %v1126
    %v1622 = vpack.c.b16 %v1136, %v1127
    %v1623 = vpack.c.b16 %v1137, %v1128
    %v1624 = vpack.c.b16 %v1138, %v1129
    %v1625 = vpack.c.b16 %v1139, %v1130
    %v1626 = vpack.c.b16 %v1140, %v1131
    %v1627 = vpack.c.b16 %v1141, %v1132
    %v1628 = vpack.c.b16 %v1151, %v1142
    %v1629 = vpack.c.b16 %v1152, %v1143
    %v1630 = vpack.c.b16 %v1153, %v1144
    %v1631 = vpack.c.b16 %v1154, %v1145
    %v1632 = vpack.c.b16 %v1155, %v1146
    %v1633 = vpack.c.b16 %v1156, %v1147
    %v1634 = vpack.c.b16 %v1157, %v1148
    %v1635 = vpack.c.b16 %v1158, %v1149
    %v1636 = vpack.c.b16 %v1159, %v1150
    %v1637 = vpack.c.b16 %v1169, %v1160
    %v1638 = vpack.c.b16 %v1170, %v1161
    %v1639 = vpack.c.b16 %v1171, %v1162
    %v1640 = vpack.c.b16 %v1172, %v1163
    %v1641 = vpack.c.b16 %v1173, %v1164
    %v1642 = vpack.c.b16 %v1174, %v1165
    %v1643 = vpack.c.b16 %v1175, %v1166
    %v1644 = vpack.c.b16 %v1176, %v1167
    %v1645 = vpack.c.b16 %v1177, %v1168
    %v1646 = vpack.c.b16 %v1187, %v1178
    %v1647 = vpack.c.b16 %v1188, %v1179
    %v1648 = vpack.c.b16 %v1189, %v1180
    %v1649 = vpack.c.b16 %v1190, %v1181
    %v1650 = vpack.c.b16 %v1191, %v1182
    %v1651 = vpack.c.b16 %v1192, %v1183
    %v1652 = vpack.c.b16 %v1193, %v1184
    %v1653 = vpack.c.b16 %v1194, %v1185
    %v1654 = vpack.c.b16 %v1195, %v1186
    %v1655 = vpack.c.b16 %v1205, %v1196
    %v1656 = vpack.c.b16 %v1206, %v1197
    %v1657 = vpack.c.b16 %v1207, %v1198
    %v1658 = vpack.c.b16 %v1208, %v1199
    %v1659 = vpack.c.b16 %v1209, %v1200
    %v1660 = vpack.c.b16 %v1210, %v1201
    %v1661 = vpack.c.b16 %v1211, %v1202
    %v1662 = vpack.c.b16 %v1212, %v1203
    %v1663 = vpack.c.b16 %v1213, %v1204
    %v1664 = vpack.c.b16 %v1223, %v1214
    %v1665 = vpack.c.b16 %v1224, %v1215
    %v1666 = vpack.c.b16 %v1225, %v1216
    %v1667 = vpack.c.b16 %v1226, %v1217
    %v1668 = vpack.c.b16 %v1227, %v1218
    %v1669 = vpack.c.b16 %v1228, %v1219
    %v1670 = vpack.c.b16 %v1229, %v1220
    %v1671 = vpack.c.b16 %v1230, %v1221
    %v1672 = vpack.c.b16 %v1231, %v1222
    %v1673 = vpack.c.b16 %v1241, %v1232
    %v1674 = vpack.c.b16 %v1242, %v1233
    %v1675 = vpack.c.b16 %v1243, %v1234
    %v1676 = vpack.c.b16 %v1244, %v1235
    %v1677 = vpack.c.b16 %v1245, %v1236
    %v1678 = vpack.c.b16 %v1246, %v1237
    %v1679 = vpack.c.b16 %v1247, %v1238
    %v1680 = vpack.c.b16 %v1248, %v1239
    %v1681 = vpack.c.b16 %v1249, %v1240
    %v1682 = vpack.c.b16 %v1259, %v1250
    %v1683 = vpack.c.b16 %v1260, %v1251
    %v1684 = vpack.c.b16 %v1261, %v1252
    %v1685 = vpack.c.b16 %v1262, %v1253
    %v1686 = vpack.c.b16 %v1263, %v1254
    %v1687 = vpack.c.b16 %v1264, %v1255
    %v1688 = vpack.c.b16 %v1265, %v1256
    %v1689 = vpack.c.b16 %v1266, %v1257
    %v1690 = vpack.c.b16 %v1267, %v1258
    %v1691 = vpack.c.b16 %v1277, %v1268
    %v1692 = vpack.c.b16 %v1278, %v1269
    %v1693 = vpack.c.b16 %v1279, %v1270
    %v1694 = vpack.c.b16 %v1280, %v1271
    %v1695 = vpack.c.b16 %v1281, %v1272
    %v1696 = vpack.c.b16 %v1282, %v1273
    %v1697 = vpack.c.b16 %v1283, %v1274
    %v1698 = vpack.c.b16 %v1284, %v1275
    %v1699 = vpack.c.b16 %v1285, %v1276
    %v1700 = vpack.c.b16 %v1295, %v1286
    %v1701 = vpack.c.b16 %v1296, %v1287
    %v1702 = vpack.c.b16 %v1297, %v1288
    %v1703 = vpack.c.b16 %v1298, %v1289
    %v1704 = vpack.c.b16 %v1299, %v1290
    %v1705 = vpack.c.b16 %v1300, %v1291
    %v1706 = vpack.c.b16 %v1301, %v1292
    %v1707 = vpack.c.b16 %v1302, %v1293
    %v1708 = vpack.c.b16 %v1303, %v1294
    %v1709 = vpack.c.b16 %v1313, %v1304
    %v1710 = vpack.c.b16 %v1314, %v1305
    %v1711 = vpack.c.b16 %v1315, %v1306
    %v1712 = vpack.c.b16 %v1316, %v1307
    %v1713 = vpack.c.b16 %v1317, %v1308
    %v1714 = vpack.c.b16 %v1318, %v1309
    %v1715 = vpack.c.b16 %v1319, %v1310
    %v1716 = vpack.c.b16 %v1320, %v1311
    %v1717 = vpack.c.b16 %v1321, %v1312
    %v1718 = vpack.c.b16 %v1331, %v1322
    %v1719 = vpack.c.b16 %v1332, %v1323
    %v1720 = vpack.c.b16 %v1333, %v1324
    %v1721 = vpack.c.b16 %v1334, %v1325
    %v1722 = vpack.c.b16 %v1335, %v1326
    %v1723 = vpack.c.b16 %v1336, %v1327
    %v1724 = vpack.c.b16 %v1337, %v1328
    %v1725 = vpack.c.b16 %v1338, %v1329
    %v1726 = vpack.c.b16 %v1339, %v1330
    %v1727 = vpack.c.b16 %v1349, %v1340
    %v1728 = vpack.c.b16 %v1350, %v1341
    %v1729 = vpack.c.b16 %v1351, %v1342
    %v1730 = vpack.c.b16 %v1352, %v1343
    %v1731 = vpack.c.b16 %v1353, %v1344
    %v1732 = vpack.c.b16 %v1354, %v1345
    %v1733 = vpack.c.b16 %v1355, %v1346
    %v1734 = vpack.c.b16 %v1356, %v1347
    %v1735 = vpack.c.b16 %v1357, %v1348
    %v1736 = vpack.c.b16 %v1367, %v1358
    %v1737 = vpack.c.b16 %v1368, %v1359
    %v1738 = vpack.c.b16 %v1369, %v1360
    %v1739 = vpack.c.b16 %v1370, %v1361
    %v1740 = vpack.c.b16 %v1371, %v1362
    %v1741 = vpack.c.b16 %v1372, %v1363
    %v1742 = vpack.c.b16 %v1373, %v1364
    %v1743 = vpack.c.b16 %v1374, %v1365
    %v1744 = vpack.c.b16 %v1375, %v1366
    %v1745 = vpack.c.b16 %v1385, %v1376
    %v1746 = vpack.c.b16 %v1386, %v1377
    %v1747 = vpack.c.b16 %v1387, %v1378
    %v1748 = vpack.c.b16 %v1388, %v1379
    %v1749 = vpack.c.b16 %v1389, %v1380
    %v1750 = vpack.c.b16 %v1390, %v1381
    %v1751 = vpack.c.b16 %v1391, %v1382
    %v1752 = vpack.c.b16 %v1392, %v1383
    %v1753 = vpack.c.b16 %v1393, %v1384
    %v1754 = vpack.c.b16 %v1403, %v1394
    %v1755 = vpack.c.b16 %v1404, %v1395
    %v1756 = vpack.c.b16 %v1405, %v1396
    %v1757 = vpack.c.b16 %v1406, %v1397
    %v1758 = vpack.c.b16 %v1407, %v1398
    %v1759 = vpack.c.b16 %v1408, %v1399
    %v1760 = vpack.c.b16 %v1409, %v1400
    %v1761 = vpack.c.b16 %v1410, %v1401
    %v1762 = vpack.c.b16 %v1411, %v1402
    %v1763 = vpack.c.b16 %v1421, %v1412
    %v1764 = vpack.c.b16 %v1422, %v1413
    %v1765 = vpack.c.b16 %v1423, %v1414
    %v1766 = vpack.c.b16 %v1424, %v1415
    %v1767 = vpack.c.b16 %v1425, %v1416
    %v1768 = vpack.c.b16 %v1426, %v1417
    %v1769 = vpack.c.b16 %v1427, %v1418
    %v1770 = vpack.c.b16 %v1428, %v1419
    %v1771 = vpack.c.b16 %v1429, %v1420
    %v1772 = vpack.c.b16 %v1439, %v1430
    %v1773 = vpack.c.b16 %v1440, %v1431
    %v1774 = vpack.c.b16 %v1441, %v1432
    %v1775 = vpack.c.b16 %v1442, %v1433
    %v1776 = vpack.c.b16 %v1443, %v1434
    %v1777 = vpack.c.b16 %v1444, %v1435
    %v1778 = vpack.c.b16 %v1445, %v1436
    %v1779 = vpack.c.b16 %v1446, %v1437
    %v1780 = vpack.c.b16 %v1447, %v1438
    %v1781 = vpack.c.b16 %v1457, %v1448
    %v1782 = vpack.c.b16 %v1458, %v1449
    %v1783 = vpack.c.b16 %v1459, %v1450
    %v1784 = vpack.c.b16 %v1460, %v1451
    %v1785 = vpack.c.b16 %v1461, %v1452
    %v1786 = vpack.c.b16 %v1462, %v1453
    %v1787 = vpack.c.b16 %v1463, %v1454
    %v1788 = vpack.c.b16 %v1464, %v1455
    %v1789 = vpack.c.b16 %v1465, %v1456
    %v1790 = vpack.c.b16 %v1475, %v1466
    %v1791 = vpack.c.b16 %v1476, %v1467
    %v1792 = vpack.c.b16 %v1477, %v1468
    %v1793 = vpack.c.b16 %v1478, %v1469
    %v1794 = vpack.c.b16 %v1479, %v1470
    %v1795 = vpack.c.b16 %v1480, %v1471
    %v1796 = vpack.c.b16 %v1481, %v1472
    %v1797 = vpack.c.b16 %v1482, %v1473
    %v1798 = vpack.c.b16 %v1483, %v1474
    %v1799 = vpack.c.b16 %v1493, %v1484
    %v1800 = vpack.c.b16 %v1494, %v1485
    %v1801 = vpack.c.b16 %v1495, %v1486
    %v1802 = vpack.c.b16 %v1496, %v1487
    %v1803 = vpack.c.b16 %v1497, %v1488
    %v1804 = vpack.c.b16 %v1498, %v1489
    %v1805 = vpack.c.b16 %v1499, %v1490
    %v1806 = vpack.c.b16 %v1500, %v1491
    %v1807 = vpack.c.b16 %v1501, %v1492
    %v1808 = vpack.c.b16 %v1511, %v1502
    %v1809 = vpack.c.b16 %v1512, %v1503
    %v1810 = vpack.c.b16 %v1513, %v1504
    %v1811 = vpack.c.b16 %v1514, %v1505
    %v1812 = vpack.c.b16 %v1515, %v1506
    %v1813 = vpack.c.b16 %v1516, %v1507
    %v1814 = vpack.c.b16 %v1517, %v1508
    %v1815 = vpack.c.b16 %v1518, %v1509
    %v1816 = vpack.c.b16 %v1519, %v1510
    %v1817 = vpack.c.b16 %v1529, %v1520
    %v1818 = vpack.c.b16 %v1530, %v1521
    %v1819 = vpack.c.b16 %v1531, %v1522
    %v1820 = vpack.c.b16 %v1532, %v1523
    %v1821 = vpack.c.b16 %v1533, %v1524
    %v1822 = vpack.c.b16 %v1534, %v1525
    %v1823 = vpack.c.b16 %v1535, %v1526
    %v1824 = vpack.c.b16 %v1536, %v1527
    %v1825 = vpack.c.b16 %v1537, %v1528
    %2114 = vmatpush.bf16.msra.mxu0 %v1601
    %2115 = vmatpush.bf16.msra.mxu0 %v1592
    %2116 = vmatpush.bf16.msra.mxu0 %v1583
    %2117 = vmatpush.bf16.msra.mxu0 %v1574
    %2118 = vmatpush.bf16.msra.mxu0 %v1565
    %2119 = vmatpush.bf16.msra.mxu0 %v1556
    %2120 = vmatpush.bf16.msra.mxu0 %v1547
    %2121 = vmatpush.bf16.msra.mxu0 %v1538
    %2122 = vmatmul.bf16.gmra.mxu0 %v318
    %v2123 = vpop.f32.mrf.mxu0
    %v2124 = vadd.f32 0.0, %v2123
    %v2125 = vpop.f32.mrf.mxu0
    %v2126 = vadd.f32 0.0, %v2125
    %2127 = vdwg.mxu0
    %2128 = vmatpush.bf16.msra.mxu0 %v1673
    %2129 = vmatpush.bf16.msra.mxu0 %v1664
    %2130 = vmatpush.bf16.msra.mxu0 %v1655
    %2131 = vmatpush.bf16.msra.mxu0 %v1646
    %2132 = vmatpush.bf16.msra.mxu0 %v1637
    %2133 = vmatpush.bf16.msra.mxu0 %v1628
    %2134 = vmatpush.bf16.msra.mxu0 %v1619
    %2135 = vmatpush.bf16.msra.mxu0 %v1610
    %2136 = vmatmul.bf16.gmra.mxu0 %v319
    %v2137 = vpop.f32.mrf.mxu0
    %v2138 = vadd.f32 %v2124, %v2137
    %v2139 = vpop.f32.mrf.mxu0
    %v2140 = vadd.f32 %v2126, %v2139
    %2141 = vdwg.mxu0
    %2142 = vmatpush.bf16.msra.mxu0 %v1745
    %2143 = vmatpush.bf16.msra.mxu0 %v1736
    %2144 = vmatpush.bf16.msra.mxu0 %v1727
    %2145 = vmatpush.bf16.msra.mxu0 %v1718
    %2146 = vmatpush.bf16.msra.mxu0 %v1709
    %2147 = vmatpush.bf16.msra.mxu0 %v1700
    %2148 = vmatpush.bf16.msra.mxu0 %v1691
    %2149 = vmatpush.bf16.msra.mxu0 %v1682
    %2150 = vmatmul.bf16.gmra.mxu0 %v320
    %v2151 = vpop.f32.mrf.mxu0
    %v2152 = vadd.f32 %v2138, %v2151
    %v2153 = vpop.f32.mrf.mxu0
    %v2154 = vadd.f32 %v2140, %v2153
    %2155 = vdwg.mxu0
    %2156 = vmatpush.bf16.msra.mxu0 %v1817
    %2157 = vmatpush.bf16.msra.mxu0 %v1808
    %2158 = vmatpush.bf16.msra.mxu0 %v1799
    %2159 = vmatpush.bf16.msra.mxu0 %v1790
    %2160 = vmatpush.bf16.msra.mxu0 %v1781
    %2161 = vmatpush.bf16.msra.mxu0 %v1772
    %2162 = vmatpush.bf16.msra.mxu0 %v1763
    %2163 = vmatpush.bf16.msra.mxu0 %v1754
    %2164 = vmatmul.bf16.gmra.mxu0 %v321
    %v2165 = vpop.f32.mrf.mxu0
    %v2166 = vadd.f32 %v2152, %v2165
    %v2167 = vpop.f32.mrf.mxu0
    %v2168 = vadd.f32 %v2154, %v2167
    %2169 = vdwg.mxu0
    %2170 = vmatpush.bf16.msra.mxu0 %v1602
    %2171 = vmatpush.bf16.msra.mxu0 %v1593
    %2172 = vmatpush.bf16.msra.mxu0 %v1584
    %2173 = vmatpush.bf16.msra.mxu0 %v1575
    %2174 = vmatpush.bf16.msra.mxu0 %v1566
    %2175 = vmatpush.bf16.msra.mxu0 %v1557
    %2176 = vmatpush.bf16.msra.mxu0 %v1548
    %2177 = vmatpush.bf16.msra.mxu0 %v1539
    %2178 = vmatmul.bf16.gmra.mxu0 %v318
    %v2179 = vpop.f32.mrf.mxu0
    %v2180 = vadd.f32 0.0, %v2179
    %v2181 = vpop.f32.mrf.mxu0
    %v2182 = vadd.f32 0.0, %v2181
    %2183 = vdwg.mxu0
    %2184 = vmatpush.bf16.msra.mxu0 %v1674
    %2185 = vmatpush.bf16.msra.mxu0 %v1665
    %2186 = vmatpush.bf16.msra.mxu0 %v1656
    %2187 = vmatpush.bf16.msra.mxu0 %v1647
    %2188 = vmatpush.bf16.msra.mxu0 %v1638
    %2189 = vmatpush.bf16.msra.mxu0 %v1629
    %2190 = vmatpush.bf16.msra.mxu0 %v1620
    %2191 = vmatpush.bf16.msra.mxu0 %v1611
    %2192 = vmatmul.bf16.gmra.mxu0 %v319
    %v2193 = vpop.f32.mrf.mxu0
    %v2194 = vadd.f32 %v2180, %v2193
    %v2195 = vpop.f32.mrf.mxu0
    %v2196 = vadd.f32 %v2182, %v2195
    %2197 = vdwg.mxu0
    %2198 = vmatpush.bf16.msra.mxu0 %v1746
    %2199 = vmatpush.bf16.msra.mxu0 %v1737
    %2200 = vmatpush.bf16.msra.mxu0 %v1728
    %2201 = vmatpush.bf16.msra.mxu0 %v1719
    %2202 = vmatpush.bf16.msra.mxu0 %v1710
    %2203 = vmatpush.bf16.msra.mxu0 %v1701
    %2204 = vmatpush.bf16.msra.mxu0 %v1692
    %2205 = vmatpush.bf16.msra.mxu0 %v1683
    %2206 = vmatmul.bf16.gmra.mxu0 %v320
    %v2207 = vpop.f32.mrf.mxu0
    %v2208 = vadd.f32 %v2194, %v2207
    %v2209 = vpop.f32.mrf.mxu0
    %v2210 = vadd.f32 %v2196, %v2209
    %2211 = vdwg.mxu0
    %2212 = vmatpush.bf16.msra.mxu0 %v1818
    %2213 = vmatpush.bf16.msra.mxu0 %v1809
    %2214 = vmatpush.bf16.msra.mxu0 %v1800
    %2215 = vmatpush.bf16.msra.mxu0 %v1791
    %2216 = vmatpush.bf16.msra.mxu0 %v1782
    %2217 = vmatpush.bf16.msra.mxu0 %v1773
    %2218 = vmatpush.bf16.msra.mxu0 %v1764
    %2219 = vmatpush.bf16.msra.mxu0 %v1755
    %2220 = vmatmul.bf16.gmra.mxu0 %v321
    %v2221 = vpop.f32.mrf.mxu0
    %v2222 = vadd.f32 %v2208, %v2221
    %v2223 = vpop.f32.mrf.mxu0
    %v2224 = vadd.f32 %v2210, %v2223
    %2225 = vdwg.mxu0
    %2226 = vmatpush.bf16.msra.mxu0 %v1603
    %2227 = vmatpush.bf16.msra.mxu0 %v1594
    %2228 = vmatpush.bf16.msra.mxu0 %v1585
    %2229 = vmatpush.bf16.msra.mxu0 %v1576
    %2230 = vmatpush.bf16.msra.mxu0 %v1567
    %2231 = vmatpush.bf16.msra.mxu0 %v1558
    %2232 = vmatpush.bf16.msra.mxu0 %v1549
    %2233 = vmatpush.bf16.msra.mxu0 %v1540
    %2234 = vmatmul.bf16.gmra.mxu0 %v318
    %v2235 = vpop.f32.mrf.mxu0
    %v2236 = vadd.f32 0.0, %v2235
    %v2237 = vpop.f32.mrf.mxu0
    %v2238 = vadd.f32 0.0, %v2237
    %2239 = vdwg.mxu0
    %2240 = vmatpush.bf16.msra.mxu0 %v1675
    %2241 = vmatpush.bf16.msra.mxu0 %v1666
    %2242 = vmatpush.bf16.msra.mxu0 %v1657
    %2243 = vmatpush.bf16.msra.mxu0 %v1648
    %2244 = vmatpush.bf16.msra.mxu0 %v1639
    %2245 = vmatpush.bf16.msra.mxu0 %v1630
    %2246 = vmatpush.bf16.msra.mxu0 %v1621
    %2247 = vmatpush.bf16.msra.mxu0 %v1612
    %2248 = vmatmul.bf16.gmra.mxu0 %v319
    %v2249 = vpop.f32.mrf.mxu0
    %v2250 = vadd.f32 %v2236, %v2249
    %v2251 = vpop.f32.mrf.mxu0
    %v2252 = vadd.f32 %v2238, %v2251
    %2253 = vdwg.mxu0
    %2254 = vmatpush.bf16.msra.mxu0 %v1747
    %2255 = vmatpush.bf16.msra.mxu0 %v1738
    %2256 = vmatpush.bf16.msra.mxu0 %v1729
    %2257 = vmatpush.bf16.msra.mxu0 %v1720
    %2258 = vmatpush.bf16.msra.mxu0 %v1711
    %2259 = vmatpush.bf16.msra.mxu0 %v1702
    %2260 = vmatpush.bf16.msra.mxu0 %v1693
    %2261 = vmatpush.bf16.msra.mxu0 %v1684
    %2262 = vmatmul.bf16.gmra.mxu0 %v320
    %v2263 = vpop.f32.mrf.mxu0
    %v2264 = vadd.f32 %v2250, %v2263
    %v2265 = vpop.f32.mrf.mxu0
    %v2266 = vadd.f32 %v2252, %v2265
    %2267 = vdwg.mxu0
    %2268 = vmatpush.bf16.msra.mxu0 %v1819
    %2269 = vmatpush.bf16.msra.mxu0 %v1810
    %2270 = vmatpush.bf16.msra.mxu0 %v1801
    %2271 = vmatpush.bf16.msra.mxu0 %v1792
    %2272 = vmatpush.bf16.msra.mxu0 %v1783
    %2273 = vmatpush.bf16.msra.mxu0 %v1774
    %2274 = vmatpush.bf16.msra.mxu0 %v1765
    %2275 = vmatpush.bf16.msra.mxu0 %v1756
    %2276 = vmatmul.bf16.gmra.mxu0 %v321
    %v2277 = vpop.f32.mrf.mxu0
    %v2278 = vadd.f32 %v2264, %v2277
    %v2279 = vpop.f32.mrf.mxu0
    %v2280 = vadd.f32 %v2266, %v2279
    %2281 = vdwg.mxu0
    %2282 = vmatpush.bf16.msra.mxu0 %v1604
    %2283 = vmatpush.bf16.msra.mxu0 %v1595
    %2284 = vmatpush.bf16.msra.mxu0 %v1586
    %2285 = vmatpush.bf16.msra.mxu0 %v1577
    %2286 = vmatpush.bf16.msra.mxu0 %v1568
    %2287 = vmatpush.bf16.msra.mxu0 %v1559
    %2288 = vmatpush.bf16.msra.mxu0 %v1550
    %2289 = vmatpush.bf16.msra.mxu0 %v1541
    %2290 = vmatmul.bf16.gmra.mxu0 %v318
    %v2291 = vpop.f32.mrf.mxu0
    %v2292 = vadd.f32 0.0, %v2291
    %v2293 = vpop.f32.mrf.mxu0
    %v2294 = vadd.f32 0.0, %v2293
    %2295 = vdwg.mxu0
    %2296 = vmatpush.bf16.msra.mxu0 %v1676
    %2297 = vmatpush.bf16.msra.mxu0 %v1667
    %2298 = vmatpush.bf16.msra.mxu0 %v1658
    %2299 = vmatpush.bf16.msra.mxu0 %v1649
    %2300 = vmatpush.bf16.msra.mxu0 %v1640
    %2301 = vmatpush.bf16.msra.mxu0 %v1631
    %2302 = vmatpush.bf16.msra.mxu0 %v1622
    %2303 = vmatpush.bf16.msra.mxu0 %v1613
    %2304 = vmatmul.bf16.gmra.mxu0 %v319
    %v2305 = vpop.f32.mrf.mxu0
    %v2306 = vadd.f32 %v2292, %v2305
    %v2307 = vpop.f32.mrf.mxu0
    %v2308 = vadd.f32 %v2294, %v2307
    %2309 = vdwg.mxu0
    %2310 = vmatpush.bf16.msra.mxu0 %v1748
    %2311 = vmatpush.bf16.msra.mxu0 %v1739
    %2312 = vmatpush.bf16.msra.mxu0 %v1730
    %2313 = vmatpush.bf16.msra.mxu0 %v1721
    %2314 = vmatpush.bf16.msra.mxu0 %v1712
    %2315 = vmatpush.bf16.msra.mxu0 %v1703
    %2316 = vmatpush.bf16.msra.mxu0 %v1694
    %2317 = vmatpush.bf16.msra.mxu0 %v1685
    %2318 = vmatmul.bf16.gmra.mxu0 %v320
    %v2319 = vpop.f32.mrf.mxu0
    %v2320 = vadd.f32 %v2306, %v2319
    %v2321 = vpop.f32.mrf.mxu0
    %v2322 = vadd.f32 %v2308, %v2321
    %2323 = vdwg.mxu0
    %2324 = vmatpush.bf16.msra.mxu0 %v1820
    %2325 = vmatpush.bf16.msra.mxu0 %v1811
    %2326 = vmatpush.bf16.msra.mxu0 %v1802
    %2327 = vmatpush.bf16.msra.mxu0 %v1793
    %2328 = vmatpush.bf16.msra.mxu0 %v1784
    %2329 = vmatpush.bf16.msra.mxu0 %v1775
    %2330 = vmatpush.bf16.msra.mxu0 %v1766
    %2331 = vmatpush.bf16.msra.mxu0 %v1757
    %2332 = vmatmul.bf16.gmra.mxu0 %v321
    %v2333 = vpop.f32.mrf.mxu0
    %v2334 = vadd.f32 %v2320, %v2333
    %v2335 = vpop.f32.mrf.mxu0
    %v2336 = vadd.f32 %v2322, %v2335
    %2337 = vdwg.mxu0
    %2338 = vmatpush.bf16.msra.mxu0 %v1605
    %2339 = vmatpush.bf16.msra.mxu0 %v1596
    %2340 = vmatpush.bf16.msra.mxu0 %v1587
    %2341 = vmatpush.bf16.msra.mxu0 %v1578
    %2342 = vmatpush.bf16.msra.mxu0 %v1569
    %2343 = vmatpush.bf16.msra.mxu0 %v1560
    %2344 = vmatpush.bf16.msra.mxu0 %v1551
    %2345 = vmatpush.bf16.msra.mxu0 %v1542
    %2346 = vmatmul.bf16.gmra.mxu0 %v318
    %v2347 = vpop.f32.mrf.mxu0
    %v2348 = vadd.f32 0.0, %v2347
    %v2349 = vpop.f32.mrf.mxu0
    %v2350 = vadd.f32 0.0, %v2349
    %2351 = vdwg.mxu0
    %2352 = vmatpush.bf16.msra.mxu0 %v1677
    %2353 = vmatpush.bf16.msra.mxu0 %v1668
    %2354 = vmatpush.bf16.msra.mxu0 %v1659
    %2355 = vmatpush.bf16.msra.mxu0 %v1650
    %2356 = vmatpush.bf16.msra.mxu0 %v1641
    %2357 = vmatpush.bf16.msra.mxu0 %v1632
    %2358 = vmatpush.bf16.msra.mxu0 %v1623
    %2359 = vmatpush.bf16.msra.mxu0 %v1614
    %2360 = vmatmul.bf16.gmra.mxu0 %v319
    %v2361 = vpop.f32.mrf.mxu0
    %v2362 = vadd.f32 %v2348, %v2361
    %v2363 = vpop.f32.mrf.mxu0
    %v2364 = vadd.f32 %v2350, %v2363
    %2365 = vdwg.mxu0
    %2366 = vmatpush.bf16.msra.mxu0 %v1749
    %2367 = vmatpush.bf16.msra.mxu0 %v1740
    %2368 = vmatpush.bf16.msra.mxu0 %v1731
    %2369 = vmatpush.bf16.msra.mxu0 %v1722
    %2370 = vmatpush.bf16.msra.mxu0 %v1713
    %2371 = vmatpush.bf16.msra.mxu0 %v1704
    %2372 = vmatpush.bf16.msra.mxu0 %v1695
    %2373 = vmatpush.bf16.msra.mxu0 %v1686
    %2374 = vmatmul.bf16.gmra.mxu0 %v320
    %v2375 = vpop.f32.mrf.mxu0
    %v2376 = vadd.f32 %v2362, %v2375
    %v2377 = vpop.f32.mrf.mxu0
    %v2378 = vadd.f32 %v2364, %v2377
    %2379 = vdwg.mxu0
    %2380 = vmatpush.bf16.msra.mxu0 %v1821
    %2381 = vmatpush.bf16.msra.mxu0 %v1812
    %2382 = vmatpush.bf16.msra.mxu0 %v1803
    %2383 = vmatpush.bf16.msra.mxu0 %v1794
    %2384 = vmatpush.bf16.msra.mxu0 %v1785
    %2385 = vmatpush.bf16.msra.mxu0 %v1776
    %2386 = vmatpush.bf16.msra.mxu0 %v1767
    %2387 = vmatpush.bf16.msra.mxu0 %v1758
    %2388 = vmatmul.bf16.gmra.mxu0 %v321
    %v2389 = vpop.f32.mrf.mxu0
    %v2390 = vadd.f32 %v2376, %v2389
    %v2391 = vpop.f32.mrf.mxu0
    %v2392 = vadd.f32 %v2378, %v2391
    %2393 = vdwg.mxu0
    %2394 = vmatpush.bf16.msra.mxu0 %v1606
    %2395 = vmatpush.bf16.msra.mxu0 %v1597
    %2396 = vmatpush.bf16.msra.mxu0 %v1588
    %2397 = vmatpush.bf16.msra.mxu0 %v1579
    %2398 = vmatpush.bf16.msra.mxu0 %v1570
    %2399 = vmatpush.bf16.msra.mxu0 %v1561
    %2400 = vmatpush.bf16.msra.mxu0 %v1552
    %2401 = vmatpush.bf16.msra.mxu0 %v1543
    %2402 = vmatmul.bf16.gmra.mxu0 %v318
    %v2403 = vpop.f32.mrf.mxu0
    %v2404 = vadd.f32 0.0, %v2403
    %v2405 = vpop.f32.mrf.mxu0
    %v2406 = vadd.f32 0.0, %v2405
    %2407 = vdwg.mxu0
    %2408 = vmatpush.bf16.msra.mxu0 %v1678
    %2409 = vmatpush.bf16.msra.mxu0 %v1669
    %2410 = vmatpush.bf16.msra.mxu0 %v1660
    %2411 = vmatpush.bf16.msra.mxu0 %v1651
    %2412 = vmatpush.bf16.msra.mxu0 %v1642
    %2413 = vmatpush.bf16.msra.mxu0 %v1633
    %2414 = vmatpush.bf16.msra.mxu0 %v1624
    %2415 = vmatpush.bf16.msra.mxu0 %v1615
    %2416 = vmatmul.bf16.gmra.mxu0 %v319
    %v2417 = vpop.f32.mrf.mxu0
    %v2418 = vadd.f32 %v2404, %v2417
    %v2419 = vpop.f32.mrf.mxu0
    %v2420 = vadd.f32 %v2406, %v2419
    %2421 = vdwg.mxu0
    %2422 = vmatpush.bf16.msra.mxu0 %v1750
    %2423 = vmatpush.bf16.msra.mxu0 %v1741
    %2424 = vmatpush.bf16.msra.mxu0 %v1732
    %2425 = vmatpush.bf16.msra.mxu0 %v1723
    %2426 = vmatpush.bf16.msra.mxu0 %v1714
    %2427 = vmatpush.bf16.msra.mxu0 %v1705
    %2428 = vmatpush.bf16.msra.mxu0 %v1696
    %2429 = vmatpush.bf16.msra.mxu0 %v1687
    %2430 = vmatmul.bf16.gmra.mxu0 %v320
    %v2431 = vpop.f32.mrf.mxu0
    %v2432 = vadd.f32 %v2418, %v2431
    %v2433 = vpop.f32.mrf.mxu0
    %v2434 = vadd.f32 %v2420, %v2433
    %2435 = vdwg.mxu0
    %2436 = vmatpush.bf16.msra.mxu0 %v1822
    %2437 = vmatpush.bf16.msra.mxu0 %v1813
    %2438 = vmatpush.bf16.msra.mxu0 %v1804
    %2439 = vmatpush.bf16.msra.mxu0 %v1795
    %2440 = vmatpush.bf16.msra.mxu0 %v1786
    %2441 = vmatpush.bf16.msra.mxu0 %v1777
    %2442 = vmatpush.bf16.msra.mxu0 %v1768
    %2443 = vmatpush.bf16.msra.mxu0 %v1759
    %2444 = vmatmul.bf16.gmra.mxu0 %v321
    %v2445 = vpop.f32.mrf.mxu0
    %v2446 = vadd.f32 %v2432, %v2445
    %v2447 = vpop.f32.mrf.mxu0
    %v2448 = vadd.f32 %v2434, %v2447
    %2449 = vdwg.mxu0
    %2450 = vmatpush.bf16.msra.mxu0 %v1607
    %2451 = vmatpush.bf16.msra.mxu0 %v1598
    %2452 = vmatpush.bf16.msra.mxu0 %v1589
    %2453 = vmatpush.bf16.msra.mxu0 %v1580
    %2454 = vmatpush.bf16.msra.mxu0 %v1571
    %2455 = vmatpush.bf16.msra.mxu0 %v1562
    %2456 = vmatpush.bf16.msra.mxu0 %v1553
    %2457 = vmatpush.bf16.msra.mxu0 %v1544
    %2458 = vmatmul.bf16.gmra.mxu0 %v318
    %v2459 = vpop.f32.mrf.mxu0
    %v2460 = vadd.f32 0.0, %v2459
    %v2461 = vpop.f32.mrf.mxu0
    %v2462 = vadd.f32 0.0, %v2461
    %2463 = vdwg.mxu0
    %2464 = vmatpush.bf16.msra.mxu0 %v1679
    %2465 = vmatpush.bf16.msra.mxu0 %v1670
    %2466 = vmatpush.bf16.msra.mxu0 %v1661
    %2467 = vmatpush.bf16.msra.mxu0 %v1652
    %2468 = vmatpush.bf16.msra.mxu0 %v1643
    %2469 = vmatpush.bf16.msra.mxu0 %v1634
    %2470 = vmatpush.bf16.msra.mxu0 %v1625
    %2471 = vmatpush.bf16.msra.mxu0 %v1616
    %2472 = vmatmul.bf16.gmra.mxu0 %v319
    %v2473 = vpop.f32.mrf.mxu0
    %v2474 = vadd.f32 %v2460, %v2473
    %v2475 = vpop.f32.mrf.mxu0
    %v2476 = vadd.f32 %v2462, %v2475
    %2477 = vdwg.mxu0
    %2478 = vmatpush.bf16.msra.mxu0 %v1751
    %2479 = vmatpush.bf16.msra.mxu0 %v1742
    %2480 = vmatpush.bf16.msra.mxu0 %v1733
    %2481 = vmatpush.bf16.msra.mxu0 %v1724
    %2482 = vmatpush.bf16.msra.mxu0 %v1715
    %2483 = vmatpush.bf16.msra.mxu0 %v1706
    %2484 = vmatpush.bf16.msra.mxu0 %v1697
    %2485 = vmatpush.bf16.msra.mxu0 %v1688
    %2486 = vmatmul.bf16.gmra.mxu0 %v320
    %v2487 = vpop.f32.mrf.mxu0
    %v2488 = vadd.f32 %v2474, %v2487
    %v2489 = vpop.f32.mrf.mxu0
    %v2490 = vadd.f32 %v2476, %v2489
    %2491 = vdwg.mxu0
    %2492 = vmatpush.bf16.msra.mxu0 %v1823
    %2493 = vmatpush.bf16.msra.mxu0 %v1814
    %2494 = vmatpush.bf16.msra.mxu0 %v1805
    %2495 = vmatpush.bf16.msra.mxu0 %v1796
    %2496 = vmatpush.bf16.msra.mxu0 %v1787
    %2497 = vmatpush.bf16.msra.mxu0 %v1778
    %2498 = vmatpush.bf16.msra.mxu0 %v1769
    %2499 = vmatpush.bf16.msra.mxu0 %v1760
    %2500 = vmatmul.bf16.gmra.mxu0 %v321
    %v2501 = vpop.f32.mrf.mxu0
    %v2502 = vadd.f32 %v2488, %v2501
    %v2503 = vpop.f32.mrf.mxu0
    %v2504 = vadd.f32 %v2490, %v2503
    %2505 = vdwg.mxu0
    %2506 = vmatpush.bf16.msra.mxu0 %v1608
    %2507 = vmatpush.bf16.msra.mxu0 %v1599
    %2508 = vmatpush.bf16.msra.mxu0 %v1590
    %2509 = vmatpush.bf16.msra.mxu0 %v1581
    %2510 = vmatpush.bf16.msra.mxu0 %v1572
    %2511 = vmatpush.bf16.msra.mxu0 %v1563
    %2512 = vmatpush.bf16.msra.mxu0 %v1554
    %2513 = vmatpush.bf16.msra.mxu0 %v1545
    %2514 = vmatmul.bf16.gmra.mxu0 %v318
    %v2515 = vpop.f32.mrf.mxu0
    %v2516 = vadd.f32 0.0, %v2515
    %v2517 = vpop.f32.mrf.mxu0
    %v2518 = vadd.f32 0.0, %v2517
    %2519 = vdwg.mxu0
    %2520 = vmatpush.bf16.msra.mxu0 %v1680
    %2521 = vmatpush.bf16.msra.mxu0 %v1671
    %2522 = vmatpush.bf16.msra.mxu0 %v1662
    %2523 = vmatpush.bf16.msra.mxu0 %v1653
    %2524 = vmatpush.bf16.msra.mxu0 %v1644
    %2525 = vmatpush.bf16.msra.mxu0 %v1635
    %2526 = vmatpush.bf16.msra.mxu0 %v1626
    %2527 = vmatpush.bf16.msra.mxu0 %v1617
    %2528 = vmatmul.bf16.gmra.mxu0 %v319
    %v2529 = vpop.f32.mrf.mxu0
    %v2530 = vadd.f32 %v2516, %v2529
    %v2531 = vpop.f32.mrf.mxu0
    %v2532 = vadd.f32 %v2518, %v2531
    %2533 = vdwg.mxu0
    %2534 = vmatpush.bf16.msra.mxu0 %v1752
    %2535 = vmatpush.bf16.msra.mxu0 %v1743
    %2536 = vmatpush.bf16.msra.mxu0 %v1734
    %2537 = vmatpush.bf16.msra.mxu0 %v1725
    %2538 = vmatpush.bf16.msra.mxu0 %v1716
    %2539 = vmatpush.bf16.msra.mxu0 %v1707
    %2540 = vmatpush.bf16.msra.mxu0 %v1698
    %2541 = vmatpush.bf16.msra.mxu0 %v1689
    %2542 = vmatmul.bf16.gmra.mxu0 %v320
    %v2543 = vpop.f32.mrf.mxu0
    %v2544 = vadd.f32 %v2530, %v2543
    %v2545 = vpop.f32.mrf.mxu0
    %v2546 = vadd.f32 %v2532, %v2545
    %2547 = vdwg.mxu0
    %2548 = vmatpush.bf16.msra.mxu0 %v1824
    %2549 = vmatpush.bf16.msra.mxu0 %v1815
    %2550 = vmatpush.bf16.msra.mxu0 %v1806
    %2551 = vmatpush.bf16.msra.mxu0 %v1797
    %2552 = vmatpush.bf16.msra.mxu0 %v1788
    %2553 = vmatpush.bf16.msra.mxu0 %v1779
    %2554 = vmatpush.bf16.msra.mxu0 %v1770
    %2555 = vmatpush.bf16.msra.mxu0 %v1761
    %2556 = vmatmul.bf16.gmra.mxu0 %v321
    %v2557 = vpop.f32.mrf.mxu0
    %v2558 = vadd.f32 %v2544, %v2557
    %v2559 = vpop.f32.mrf.mxu0
    %v2560 = vadd.f32 %v2546, %v2559
    %2561 = vdwg.mxu0
    %2562 = vmatpush.bf16.msra.mxu0 %v1609
    %2563 = vmatpush.bf16.msra.mxu0 %v1600
    %2564 = vmatpush.bf16.msra.mxu0 %v1591
    %2565 = vmatpush.bf16.msra.mxu0 %v1582
    %2566 = vmatpush.bf16.msra.mxu0 %v1573
    %2567 = vmatpush.bf16.msra.mxu0 %v1564
    %2568 = vmatpush.bf16.msra.mxu0 %v1555
    %2569 = vmatpush.bf16.msra.mxu0 %v1546
    %2570 = vmatmul.bf16.gmra.mxu0 %v318
    %v2571 = vpop.f32.mrf.mxu0
    %v2572 = vadd.f32 0.0, %v2571
    %v2573 = vpop.f32.mrf.mxu0
    %v2574 = vadd.f32 0.0, %v2573
    %2575 = vdwg.mxu0
    %2576 = vmatpush.bf16.msra.mxu0 %v1681
    %2577 = vmatpush.bf16.msra.mxu0 %v1672
    %2578 = vmatpush.bf16.msra.mxu0 %v1663
    %2579 = vmatpush.bf16.msra.mxu0 %v1654
    %2580 = vmatpush.bf16.msra.mxu0 %v1645
    %2581 = vmatpush.bf16.msra.mxu0 %v1636
    %2582 = vmatpush.bf16.msra.mxu0 %v1627
    %2583 = vmatpush.bf16.msra.mxu0 %v1618
    %2584 = vmatmul.bf16.gmra.mxu0 %v319
    %v2585 = vpop.f32.mrf.mxu0
    %v2586 = vadd.f32 %v2572, %v2585
    %v2587 = vpop.f32.mrf.mxu0
    %v2588 = vadd.f32 %v2574, %v2587
    %2589 = vdwg.mxu0
    %2590 = vmatpush.bf16.msra.mxu0 %v1753
    %2591 = vmatpush.bf16.msra.mxu0 %v1744
    %2592 = vmatpush.bf16.msra.mxu0 %v1735
    %2593 = vmatpush.bf16.msra.mxu0 %v1726
    %2594 = vmatpush.bf16.msra.mxu0 %v1717
    %2595 = vmatpush.bf16.msra.mxu0 %v1708
    %2596 = vmatpush.bf16.msra.mxu0 %v1699
    %2597 = vmatpush.bf16.msra.mxu0 %v1690
    %2598 = vmatmul.bf16.gmra.mxu0 %v320
    %v2599 = vpop.f32.mrf.mxu0
    %v2600 = vadd.f32 %v2586, %v2599
    %v2601 = vpop.f32.mrf.mxu0
    %v2602 = vadd.f32 %v2588, %v2601
    %2603 = vdwg.mxu0
    %2604 = vmatpush.bf16.msra.mxu0 %v1825
    %2605 = vmatpush.bf16.msra.mxu0 %v1816
    %2606 = vmatpush.bf16.msra.mxu0 %v1807
    %2607 = vmatpush.bf16.msra.mxu0 %v1798
    %2608 = vmatpush.bf16.msra.mxu0 %v1789
    %2609 = vmatpush.bf16.msra.mxu0 %v1780
    %2610 = vmatpush.bf16.msra.mxu0 %v1771
    %2611 = vmatpush.bf16.msra.mxu0 %v1762
    %2612 = vmatmul.bf16.gmra.mxu0 %v321
    %v2613 = vpop.f32.mrf.mxu0
    %v2614 = vadd.f32 %v2600, %v2613
    %v2615 = vpop.f32.mrf.mxu0
    %v2616 = vadd.f32 %v2602, %v2615
    %2617 = vdwg.mxu0
    %v2618 = vld [vmem:[#allocation4] sm:$0xff]
    %v2619 = vld [vmem:[#allocation4 + $0x8] sm:$0x1]
    %v2622 = vperm.slane %v2618, 0
    %v2623 = vperm.slane %v2618, 1
    %v2624 = vperm.slane %v2618, 2
    %v2625 = vperm.slane %v2618, 3
    %v2626 = vperm.slane %v2618, 4
    %v2627 = vperm.slane %v2618, 5
    %v2628 = vperm.slane %v2618, 6
    %v2629 = vperm.slane %v2618, 7
    %v2630 = vperm.slane %v2619, 0
    %v2640 = vmul.f32 %v2166, %v2622
    %v2641 = vmul.f32 %v2222, %v2623
    %v2642 = vmul.f32 %v2278, %v2624
    %v2643 = vmul.f32 %v2334, %v2625
    %v2644 = vmul.f32 %v2390, %v2626
    %v2645 = vmul.f32 %v2446, %v2627
    %v2646 = vmul.f32 %v2502, %v2628
    %v2647 = vmul.f32 %v2558, %v2629
    %v2648 = vmul.f32 %v2614, %v2630
    %v2649 = vmul.f32 %v2168, %v2622
    %v2650 = vmul.f32 %v2224, %v2623
    %v2651 = vmul.f32 %v2280, %v2624
    %v2652 = vmul.f32 %v2336, %v2625
    %v2653 = vmul.f32 %v2392, %v2626
    %v2654 = vmul.f32 %v2448, %v2627
    %v2655 = vmul.f32 %v2504, %v2628
    %v2656 = vmul.f32 %v2560, %v2629
    %v2657 = vmul.f32 %v2616, %v2630
    %v2658 = vld [vmem:[#allocation6] sm:$0xff]
    %v2659 = vld [vmem:[#allocation6 + $0x8] sm:$0x1]
    %v2662 = vperm.slane %v2658, 0
    %v2663 = vperm.slane %v2658, 1
    %v2664 = vperm.slane %v2658, 2
    %v2665 = vperm.slane %v2658, 3
    %v2666 = vperm.slane %v2658, 4
    %v2667 = vperm.slane %v2658, 5
    %v2668 = vperm.slane %v2658, 6
    %v2669 = vperm.slane %v2658, 7
    %v2670 = vperm.slane %v2659, 0
    %v2680 = vadd.f32 %v2640, %v2662
    %v2681 = vadd.f32 %v2641, %v2663
    %v2682 = vadd.f32 %v2642, %v2664
    %v2683 = vadd.f32 %v2643, %v2665
    %v2684 = vadd.f32 %v2644, %v2666
    %v2685 = vadd.f32 %v2645, %v2667
    %v2686 = vadd.f32 %v2646, %v2668
    %v2687 = vadd.f32 %v2647, %v2669
    %v2688 = vadd.f32 %v2648, %v2670
    %v2689 = vadd.f32 %v2649, %v2662
    %v2690 = vadd.f32 %v2650, %v2663
    %v2691 = vadd.f32 %v2651, %v2664
    %v2692 = vadd.f32 %v2652, %v2665
    %v2693 = vadd.f32 %v2653, %v2666
    %v2694 = vadd.f32 %v2654, %v2667
    %v2695 = vadd.f32 %v2655, %v2668
    %v2696 = vadd.f32 %v2656, %v2669
    %v2697 = vadd.f32 %v2657, %v2670
    %v2698 = vmax.f32 %v2680, 0.0
    %v2699 = vmax.f32 %v2681, 0.0
    %v2700 = vmax.f32 %v2682, 0.0
    %v2701 = vmax.f32 %v2683, 0.0
    %v2702 = vmax.f32 %v2684, 0.0
    %v2703 = vmax.f32 %v2685, 0.0
    %v2704 = vmax.f32 %v2686, 0.0
    %v2705 = vmax.f32 %v2687, 0.0
    %v2706 = vmax.f32 %v2688, 0.0
    %v2707 = vmax.f32 %v2689, 0.0
    %v2708 = vmax.f32 %v2690, 0.0
    %v2709 = vmax.f32 %v2691, 0.0
    %v2710 = vmax.f32 %v2692, 0.0
    %v2711 = vmax.f32 %v2693, 0.0
    %v2712 = vmax.f32 %v2694, 0.0
    %v2713 = vmax.f32 %v2695, 0.0
    %v2714 = vmax.f32 %v2696, 0.0
    %v2715 = vmax.f32 %v2697, 0.0
    %v2716 = vpack.c.bf16 %v2707, %v2698
    %v2717 = vpack.c.bf16 %v2708, %v2699
    %v2718 = vpack.c.bf16 %v2709, %v2700
    %v2719 = vpack.c.bf16 %v2710, %v2701
    %v2720 = vpack.c.bf16 %v2711, %v2702
    %v2721 = vpack.c.bf16 %v2712, %v2703
    %v2722 = vpack.c.bf16 %v2713, %v2704
    %v2723 = vpack.c.bf16 %v2714, %v2705
    %v2724 = vpack.c.bf16 %v2715, %v2706
    %v2725 = vld [vmem:[#allocation7] sm:$0xff]
    %v2726 = vld [vmem:[#allocation7 + $0x8] sm:$0xff]
    %v2727 = vld [vmem:[#allocation7 + $0x10] sm:$0xff]
    %v2728 = vld [vmem:[#allocation7 + $0x18] sm:$0xff]
    %v2729 = vld [vmem:[#allocation7 + $0x20] sm:$0xff]
    %v2730 = vld [vmem:[#allocation7 + $0x28] sm:$0xff]
    %v2731 = vld [vmem:[#allocation7 + $0x30] sm:$0xff]
    %v2732 = vld [vmem:[#allocation7 + $0x38] sm:$0xff]
    %v2733 = vld [vmem:[#allocation7 + $0x40] sm:$0xff]
    %v2734 = vld [vmem:[#allocation7 + $0x48] sm:$0xff]
    %v2735 = vld [vmem:[#allocation7 + $0x50] sm:$0xff]
    %v2736 = vld [vmem:[#allocation7 + $0x58] sm:$0xff]
    %v2737 = vld [vmem:[#allocation7 + $0x60] sm:$0xff]
    %v2738 = vld [vmem:[#allocation7 + $0x68] sm:$0xff]
    %v2739 = vld [vmem:[#allocation7 + $0x70] sm:$0xff]
    %v2740 = vld [vmem:[#allocation7 + $0x78] sm:$0xff]
    %v2741 = vld [vmem:[#allocation7 + $0x80] sm:$0xff]
    %v2742 = vld [vmem:[#allocation7 + $0x88] sm:$0xff]
    %v2743 = vld [vmem:[#allocation7 + $0x90] sm:$0xff]
    %v2744 = vld [vmem:[#allocation7 + $0x98] sm:$0xff]
    %v2745 = vld [vmem:[#allocation7 + $0xa0] sm:$0xff]
    %v2746 = vld [vmem:[#allocation7 + $0xa8] sm:$0xff]
    %v2747 = vld [vmem:[#allocation7 + $0xb0] sm:$0xff]
    %v2748 = vld [vmem:[#allocation7 + $0xb8] sm:$0xff]
    %v2749 = vld [vmem:[#allocation7 + $0xc0] sm:$0xff]
    %v2750 = vld [vmem:[#allocation7 + $0xc8] sm:$0xff]
    %v2751 = vld [vmem:[#allocation7 + $0xd0] sm:$0xff]
    %v2752 = vld [vmem:[#allocation7 + $0xd8] sm:$0xff]
    %v2753 = vld [vmem:[#allocation7 + $0xe0] sm:$0xff]
    %v2754 = vld [vmem:[#allocation7 + $0xe8] sm:$0xff]
    %v2755 = vld [vmem:[#allocation7 + $0xf0] sm:$0xff]
    %v2756 = vld [vmem:[#allocation7 + $0xf8] sm:$0xff]
    %v2757 = vld [vmem:[#allocation7 + $0x100] sm:$0xff]
    %v2758 = vld [vmem:[#allocation7 + $0x108] sm:$0xff]
    %v2759 = vld [vmem:[#allocation7 + $0x110] sm:$0xff]
    %v2760 = vld [vmem:[#allocation7 + $0x118] sm:$0xff]
    %v2761 = vld [vmem:[#allocation7 + $0x120] sm:$0xff]
    %v2762 = vld [vmem:[#allocation7 + $0x128] sm:$0xff]
    %v2763 = vld [vmem:[#allocation7 + $0x130] sm:$0xff]
    %v2764 = vld [vmem:[#allocation7 + $0x138] sm:$0xff]
    %v2765 = vld [vmem:[#allocation7 + $0x140] sm:$0xff]
    %v2766 = vld [vmem:[#allocation7 + $0x148] sm:$0xff]
    %v2767 = vld [vmem:[#allocation7 + $0x150] sm:$0xff]
    %v2768 = vld [vmem:[#allocation7 + $0x158] sm:$0xff]
    %v2769 = vld [vmem:[#allocation7 + $0x160] sm:$0xff]
    %v2770 = vld [vmem:[#allocation7 + $0x168] sm:$0xff]
    %v2771 = vld [vmem:[#allocation7 + $0x170] sm:$0xff]
    %v2772 = vld [vmem:[#allocation7 + $0x178] sm:$0xff]
    %v2773 = vld [vmem:[#allocation7 + $0x180] sm:$0xff]
    %v2774 = vld [vmem:[#allocation7 + $0x188] sm:$0xff]
    %v2775 = vld [vmem:[#allocation7 + $0x190] sm:$0xff]
    %v2776 = vld [vmem:[#allocation7 + $0x198] sm:$0xff]
    %v2777 = vld [vmem:[#allocation7 + $0x1a0] sm:$0xff]
    %v2778 = vld [vmem:[#allocation7 + $0x1a8] sm:$0xff]
    %v2779 = vld [vmem:[#allocation7 + $0x1b0] sm:$0xff]
    %v2780 = vld [vmem:[#allocation7 + $0x1b8] sm:$0xff]
    %v2781 = vld [vmem:[#allocation7 + $0x1c0] sm:$0xff]
    %v2782 = vld [vmem:[#allocation7 + $0x1c8] sm:$0xff]
    %v2783 = vld [vmem:[#allocation7 + $0x1d0] sm:$0xff]
    %v2784 = vld [vmem:[#allocation7 + $0x1d8] sm:$0xff]
    %v2785 = vld [vmem:[#allocation7 + $0x1e0] sm:$0xff]
    %v2786 = vld [vmem:[#allocation7 + $0x1e8] sm:$0xff]
    %v2787 = vld [vmem:[#allocation7 + $0x1f0] sm:$0xff]
    %v2788 = vld [vmem:[#allocation7 + $0x1f8] sm:$0xff]
    %v2789 = vld [vmem:[#allocation7 + $0x200] sm:$0xff]
    %v2790 = vld [vmem:[#allocation7 + $0x208] sm:$0xff]
    %v2791 = vld [vmem:[#allocation7 + $0x210] sm:$0xff]
    %v2792 = vld [vmem:[#allocation7 + $0x218] sm:$0xff]
    %v2793 = vld [vmem:[#allocation7 + $0x220] sm:$0xff]
    %v2794 = vld [vmem:[#allocation7 + $0x228] sm:$0xff]
    %v2795 = vld [vmem:[#allocation7 + $0x230] sm:$0xff]
    %v2796 = vld [vmem:[#allocation7 + $0x238] sm:$0xff]
    %v2797 = vld [vmem:[#allocation7 + $0x240] sm:$0xff]
    %v2798 = vld [vmem:[#allocation7 + $0x248] sm:$0xff]
    %v2799 = vld [vmem:[#allocation7 + $0x250] sm:$0xff]
    %v2800 = vld [vmem:[#allocation7 + $0x258] sm:$0xff]
    %v2801 = vld [vmem:[#allocation7 + $0x260] sm:$0xff]
    %v2802 = vld [vmem:[#allocation7 + $0x268] sm:$0xff]
    %v2803 = vld [vmem:[#allocation7 + $0x270] sm:$0xff]
    %v2804 = vld [vmem:[#allocation7 + $0x278] sm:$0xff]
    %v2805 = vld [vmem:[#allocation7 + $0x280] sm:$0xff]
    %v2806 = vld [vmem:[#allocation7 + $0x288] sm:$0xff]
    %v2807 = vld [vmem:[#allocation7 + $0x290] sm:$0xff]
    %v2808 = vld [vmem:[#allocation7 + $0x298] sm:$0xff]
    %v2809 = vld [vmem:[#allocation7 + $0x2a0] sm:$0xff]
    %v2810 = vld [vmem:[#allocation7 + $0x2a8] sm:$0xff]
    %v2811 = vld [vmem:[#allocation7 + $0x2b0] sm:$0xff]
    %v2812 = vld [vmem:[#allocation7 + $0x2b8] sm:$0xff]
    %v2813 = vld [vmem:[#allocation7 + $0x2c0] sm:$0xff]
    %v2814 = vld [vmem:[#allocation7 + $0x2c8] sm:$0xff]
    %v2815 = vld [vmem:[#allocation7 + $0x2d0] sm:$0xff]
    %v2816 = vld [vmem:[#allocation7 + $0x2d8] sm:$0xff]
    %v2817 = vld [vmem:[#allocation7 + $0x2e0] sm:$0xff]
    %v2818 = vld [vmem:[#allocation7 + $0x2e8] sm:$0xff]
    %v2819 = vld [vmem:[#allocation7 + $0x2f0] sm:$0xff]
    %v2820 = vld [vmem:[#allocation7 + $0x2f8] sm:$0xff]
    %v2821 = vld [vmem:[#allocation7 + $0x300] sm:$0xff]
    %v2822 = vld [vmem:[#allocation7 + $0x308] sm:$0xff]
    %v2823 = vld [vmem:[#allocation7 + $0x310] sm:$0xff]
    %v2824 = vld [vmem:[#allocation7 + $0x318] sm:$0xff]
    %v2825 = vld [vmem:[#allocation7 + $0x320] sm:$0xff]
    %v2826 = vld [vmem:[#allocation7 + $0x328] sm:$0xff]
    %v2827 = vld [vmem:[#allocation7 + $0x330] sm:$0xff]
    %v2828 = vld [vmem:[#allocation7 + $0x338] sm:$0xff]
    %v2829 = vld [vmem:[#allocation7 + $0x340] sm:$0xff]
    %v2830 = vld [vmem:[#allocation7 + $0x348] sm:$0xff]
    %v2831 = vld [vmem:[#allocation7 + $0x350] sm:$0xff]
    %v2832 = vld [vmem:[#allocation7 + $0x358] sm:$0xff]
    %v2833 = vld [vmem:[#allocation7 + $0x360] sm:$0xff]
    %v2834 = vld [vmem:[#allocation7 + $0x368] sm:$0xff]
    %v2835 = vld [vmem:[#allocation7 + $0x370] sm:$0xff]
    %v2836 = vld [vmem:[#allocation7 + $0x378] sm:$0xff]
    %v2837 = vld [vmem:[#allocation7 + $0x380] sm:$0xff]
    %v2838 = vld [vmem:[#allocation7 + $0x388] sm:$0xff]
    %v2839 = vld [vmem:[#allocation7 + $0x390] sm:$0xff]
    %v2840 = vld [vmem:[#allocation7 + $0x398] sm:$0xff]
    %v2841 = vld [vmem:[#allocation7 + $0x3a0] sm:$0xff]
    %v2842 = vld [vmem:[#allocation7 + $0x3a8] sm:$0xff]
    %v2843 = vld [vmem:[#allocation7 + $0x3b0] sm:$0xff]
    %v2844 = vld [vmem:[#allocation7 + $0x3b8] sm:$0xff]
    %v2845 = vld [vmem:[#allocation7 + $0x3c0] sm:$0xff]
    %v2846 = vld [vmem:[#allocation7 + $0x3c8] sm:$0xff]
    %v2847 = vld [vmem:[#allocation7 + $0x3d0] sm:$0xff]
    %v2848 = vld [vmem:[#allocation7 + $0x3d8] sm:$0xff]
    %v2849 = vld [vmem:[#allocation7 + $0x3e0] sm:$0xff]
    %v2850 = vld [vmem:[#allocation7 + $0x3e8] sm:$0xff]
    %v2851 = vld [vmem:[#allocation7 + $0x3f0] sm:$0xff]
    %v2852 = vld [vmem:[#allocation7 + $0x3f8] sm:$0xff]
    %v2853 = vld [vmem:[#allocation7 + $0x400] sm:$0xff]
    %v2854 = vld [vmem:[#allocation7 + $0x408] sm:$0xff]
    %v2855 = vld [vmem:[#allocation7 + $0x410] sm:$0xff]
    %v2856 = vld [vmem:[#allocation7 + $0x418] sm:$0xff]
    %v2857 = vld [vmem:[#allocation7 + $0x420] sm:$0xff]
    %v2858 = vld [vmem:[#allocation7 + $0x428] sm:$0xff]
    %v2859 = vld [vmem:[#allocation7 + $0x430] sm:$0xff]
    %v2860 = vld [vmem:[#allocation7 + $0x438] sm:$0xff]
    %v2861 = vld [vmem:[#allocation7 + $0x440] sm:$0xff]
    %v2862 = vld [vmem:[#allocation7 + $0x448] sm:$0xff]
    %v2863 = vld [vmem:[#allocation7 + $0x450] sm:$0xff]
    %v2864 = vld [vmem:[#allocation7 + $0x458] sm:$0xff]
    %v2865 = vld [vmem:[#allocation7 + $0x460] sm:$0xff]
    %v2866 = vld [vmem:[#allocation7 + $0x468] sm:$0xff]
    %v2867 = vld [vmem:[#allocation7 + $0x470] sm:$0xff]
    %v2868 = vld [vmem:[#allocation7 + $0x478] sm:$0xff]
    %v3013 = vunpack.c.l.b16 %v2725
    %v3014 = vunpack.c.h.b16 %v2725
    %v3015 = vunpack.c.l.b16 %v2726
    %v3016 = vunpack.c.h.b16 %v2726
    %v3017 = vunpack.c.l.b16 %v2727
    %v3018 = vunpack.c.h.b16 %v2727
    %v3019 = vunpack.c.l.b16 %v2728
    %v3020 = vunpack.c.h.b16 %v2728
    %v3021 = vunpack.c.l.b16 %v2729
    %v3022 = vunpack.c.h.b16 %v2729
    %v3023 = vunpack.c.l.b16 %v2730
    %v3024 = vunpack.c.h.b16 %v2730
    %v3025 = vunpack.c.l.b16 %v2731
    %v3026 = vunpack.c.h.b16 %v2731
    %v3027 = vunpack.c.l.b16 %v2732
    %v3028 = vunpack.c.h.b16 %v2732
    %v3029 = vunpack.c.l.b16 %v2733
    %v3030 = vunpack.c.h.b16 %v2733
    %v3031 = vunpack.c.l.b16 %v2734
    %v3032 = vunpack.c.h.b16 %v2734
    %v3033 = vunpack.c.l.b16 %v2735
    %v3034 = vunpack.c.h.b16 %v2735
    %v3035 = vunpack.c.l.b16 %v2736
    %v3036 = vunpack.c.h.b16 %v2736
    %v3037 = vunpack.c.l.b16 %v2737
    %v3038 = vunpack.c.h.b16 %v2737
    %v3039 = vunpack.c.l.b16 %v2738
    %v3040 = vunpack.c.h.b16 %v2738
    %v3041 = vunpack.c.l.b16 %v2739
    %v3042 = vunpack.c.h.b16 %v2739
    %v3043 = vunpack.c.l.b16 %v2740
    %v3044 = vunpack.c.h.b16 %v2740
    %v3045 = vunpack.c.l.b16 %v2741
    %v3046 = vunpack.c.h.b16 %v2741
    %v3047 = vunpack.c.l.b16 %v2742
    %v3048 = vunpack.c.h.b16 %v2742
    %v3049 = vunpack.c.l.b16 %v2743
    %v3050 = vunpack.c.h.b16 %v2743
    %v3051 = vunpack.c.l.b16 %v2744
    %v3052 = vunpack.c.h.b16 %v2744
    %v3053 = vunpack.c.l.b16 %v2745
    %v3054 = vunpack.c.h.b16 %v2745
    %v3055 = vunpack.c.l.b16 %v2746
    %v3056 = vunpack.c.h.b16 %v2746
    %v3057 = vunpack.c.l.b16 %v2747
    %v3058 = vunpack.c.h.b16 %v2747
    %v3059 = vunpack.c.l.b16 %v2748
    %v3060 = vunpack.c.h.b16 %v2748
    %v3061 = vunpack.c.l.b16 %v2749
    %v3062 = vunpack.c.h.b16 %v2749
    %v3063 = vunpack.c.l.b16 %v2750
    %v3064 = vunpack.c.h.b16 %v2750
    %v3065 = vunpack.c.l.b16 %v2751
    %v3066 = vunpack.c.h.b16 %v2751
    %v3067 = vunpack.c.l.b16 %v2752
    %v3068 = vunpack.c.h.b16 %v2752
    %v3069 = vunpack.c.l.b16 %v2753
    %v3070 = vunpack.c.h.b16 %v2753
    %v3071 = vunpack.c.l.b16 %v2754
    %v3072 = vunpack.c.h.b16 %v2754
    %v3073 = vunpack.c.l.b16 %v2755
    %v3074 = vunpack.c.h.b16 %v2755
    %v3075 = vunpack.c.l.b16 %v2756
    %v3076 = vunpack.c.h.b16 %v2756
    %v3077 = vunpack.c.l.b16 %v2757
    %v3078 = vunpack.c.h.b16 %v2757
    %v3079 = vunpack.c.l.b16 %v2758
    %v3080 = vunpack.c.h.b16 %v2758
    %v3081 = vunpack.c.l.b16 %v2759
    %v3082 = vunpack.c.h.b16 %v2759
    %v3083 = vunpack.c.l.b16 %v2760
    %v3084 = vunpack.c.h.b16 %v2760
    %v3085 = vunpack.c.l.b16 %v2761
    %v3086 = vunpack.c.h.b16 %v2761
    %v3087 = vunpack.c.l.b16 %v2762
    %v3088 = vunpack.c.h.b16 %v2762
    %v3089 = vunpack.c.l.b16 %v2763
    %v3090 = vunpack.c.h.b16 %v2763
    %v3091 = vunpack.c.l.b16 %v2764
    %v3092 = vunpack.c.h.b16 %v2764
    %v3093 = vunpack.c.l.b16 %v2765
    %v3094 = vunpack.c.h.b16 %v2765
    %v3095 = vunpack.c.l.b16 %v2766
    %v3096 = vunpack.c.h.b16 %v2766
    %v3097 = vunpack.c.l.b16 %v2767
    %v3098 = vunpack.c.h.b16 %v2767
    %v3099 = vunpack.c.l.b16 %v2768
    %v3100 = vunpack.c.h.b16 %v2768
    %v3101 = vunpack.c.l.b16 %v2769
    %v3102 = vunpack.c.h.b16 %v2769
    %v3103 = vunpack.c.l.b16 %v2770
    %v3104 = vunpack.c.h.b16 %v2770
    %v3105 = vunpack.c.l.b16 %v2771
    %v3106 = vunpack.c.h.b16 %v2771
    %v3107 = vunpack.c.l.b16 %v2772
    %v3108 = vunpack.c.h.b16 %v2772
    %v3109 = vunpack.c.l.b16 %v2773
    %v3110 = vunpack.c.h.b16 %v2773
    %v3111 = vunpack.c.l.b16 %v2774
    %v3112 = vunpack.c.h.b16 %v2774
    %v3113 = vunpack.c.l.b16 %v2775
    %v3114 = vunpack.c.h.b16 %v2775
    %v3115 = vunpack.c.l.b16 %v2776
    %v3116 = vunpack.c.h.b16 %v2776
    %v3117 = vunpack.c.l.b16 %v2777
    %v3118 = vunpack.c.h.b16 %v2777
    %v3119 = vunpack.c.l.b16 %v2778
    %v3120 = vunpack.c.h.b16 %v2778
    %v3121 = vunpack.c.l.b16 %v2779
    %v3122 = vunpack.c.h.b16 %v2779
    %v3123 = vunpack.c.l.b16 %v2780
    %v3124 = vunpack.c.h.b16 %v2780
    %v3125 = vunpack.c.l.b16 %v2781
    %v3126 = vunpack.c.h.b16 %v2781
    %v3127 = vunpack.c.l.b16 %v2782
    %v3128 = vunpack.c.h.b16 %v2782
    %v3129 = vunpack.c.l.b16 %v2783
    %v3130 = vunpack.c.h.b16 %v2783
    %v3131 = vunpack.c.l.b16 %v2784
    %v3132 = vunpack.c.h.b16 %v2784
    %v3133 = vunpack.c.l.b16 %v2785
    %v3134 = vunpack.c.h.b16 %v2785
    %v3135 = vunpack.c.l.b16 %v2786
    %v3136 = vunpack.c.h.b16 %v2786
    %v3137 = vunpack.c.l.b16 %v2787
    %v3138 = vunpack.c.h.b16 %v2787
    %v3139 = vunpack.c.l.b16 %v2788
    %v3140 = vunpack.c.h.b16 %v2788
    %v3141 = vunpack.c.l.b16 %v2789
    %v3142 = vunpack.c.h.b16 %v2789
    %v3143 = vunpack.c.l.b16 %v2790
    %v3144 = vunpack.c.h.b16 %v2790
    %v3145 = vunpack.c.l.b16 %v2791
    %v3146 = vunpack.c.h.b16 %v2791
    %v3147 = vunpack.c.l.b16 %v2792
    %v3148 = vunpack.c.h.b16 %v2792
    %v3149 = vunpack.c.l.b16 %v2793
    %v3150 = vunpack.c.h.b16 %v2793
    %v3151 = vunpack.c.l.b16 %v2794
    %v3152 = vunpack.c.h.b16 %v2794
    %v3153 = vunpack.c.l.b16 %v2795
    %v3154 = vunpack.c.h.b16 %v2795
    %v3155 = vunpack.c.l.b16 %v2796
    %v3156 = vunpack.c.h.b16 %v2796
    %v3157 = vunpack.c.l.b16 %v2797
    %v3158 = vunpack.c.h.b16 %v2797
    %v3159 = vunpack.c.l.b16 %v2798
    %v3160 = vunpack.c.h.b16 %v2798
    %v3161 = vunpack.c.l.b16 %v2799
    %v3162 = vunpack.c.h.b16 %v2799
    %v3163 = vunpack.c.l.b16 %v2800
    %v3164 = vunpack.c.h.b16 %v2800
    %v3165 = vunpack.c.l.b16 %v2801
    %v3166 = vunpack.c.h.b16 %v2801
    %v3167 = vunpack.c.l.b16 %v2802
    %v3168 = vunpack.c.h.b16 %v2802
    %v3169 = vunpack.c.l.b16 %v2803
    %v3170 = vunpack.c.h.b16 %v2803
    %v3171 = vunpack.c.l.b16 %v2804
    %v3172 = vunpack.c.h.b16 %v2804
    %v3173 = vunpack.c.l.b16 %v2805
    %v3174 = vunpack.c.h.b16 %v2805
    %v3175 = vunpack.c.l.b16 %v2806
    %v3176 = vunpack.c.h.b16 %v2806
    %v3177 = vunpack.c.l.b16 %v2807
    %v3178 = vunpack.c.h.b16 %v2807
    %v3179 = vunpack.c.l.b16 %v2808
    %v3180 = vunpack.c.h.b16 %v2808
    %v3181 = vunpack.c.l.b16 %v2809
    %v3182 = vunpack.c.h.b16 %v2809
    %v3183 = vunpack.c.l.b16 %v2810
    %v3184 = vunpack.c.h.b16 %v2810
    %v3185 = vunpack.c.l.b16 %v2811
    %v3186 = vunpack.c.h.b16 %v2811
    %v3187 = vunpack.c.l.b16 %v2812
    %v3188 = vunpack.c.h.b16 %v2812
    %v3189 = vunpack.c.l.b16 %v2813
    %v3190 = vunpack.c.h.b16 %v2813
    %v3191 = vunpack.c.l.b16 %v2814
    %v3192 = vunpack.c.h.b16 %v2814
    %v3193 = vunpack.c.l.b16 %v2815
    %v3194 = vunpack.c.h.b16 %v2815
    %v3195 = vunpack.c.l.b16 %v2816
    %v3196 = vunpack.c.h.b16 %v2816
    %v3197 = vunpack.c.l.b16 %v2817
    %v3198 = vunpack.c.h.b16 %v2817
    %v3199 = vunpack.c.l.b16 %v2818
    %v3200 = vunpack.c.h.b16 %v2818
    %v3201 = vunpack.c.l.b16 %v2819
    %v3202 = vunpack.c.h.b16 %v2819
    %v3203 = vunpack.c.l.b16 %v2820
    %v3204 = vunpack.c.h.b16 %v2820
    %v3205 = vunpack.c.l.b16 %v2821
    %v3206 = vunpack.c.h.b16 %v2821
    %v3207 = vunpack.c.l.b16 %v2822
    %v3208 = vunpack.c.h.b16 %v2822
    %v3209 = vunpack.c.l.b16 %v2823
    %v3210 = vunpack.c.h.b16 %v2823
    %v3211 = vunpack.c.l.b16 %v2824
    %v3212 = vunpack.c.h.b16 %v2824
    %v3213 = vunpack.c.l.b16 %v2825
    %v3214 = vunpack.c.h.b16 %v2825
    %v3215 = vunpack.c.l.b16 %v2826
    %v3216 = vunpack.c.h.b16 %v2826
    %v3217 = vunpack.c.l.b16 %v2827
    %v3218 = vunpack.c.h.b16 %v2827
    %v3219 = vunpack.c.l.b16 %v2828
    %v3220 = vunpack.c.h.b16 %v2828
    %v3221 = vunpack.c.l.b16 %v2829
    %v3222 = vunpack.c.h.b16 %v2829
    %v3223 = vunpack.c.l.b16 %v2830
    %v3224 = vunpack.c.h.b16 %v2830
    %v3225 = vunpack.c.l.b16 %v2831
    %v3226 = vunpack.c.h.b16 %v2831
    %v3227 = vunpack.c.l.b16 %v2832
    %v3228 = vunpack.c.h.b16 %v2832
    %v3229 = vunpack.c.l.b16 %v2833
    %v3230 = vunpack.c.h.b16 %v2833
    %v3231 = vunpack.c.l.b16 %v2834
    %v3232 = vunpack.c.h.b16 %v2834
    %v3233 = vunpack.c.l.b16 %v2835
    %v3234 = vunpack.c.h.b16 %v2835
    %v3235 = vunpack.c.l.b16 %v2836
    %v3236 = vunpack.c.h.b16 %v2836
    %v3237 = vunpack.c.l.b16 %v2837
    %v3238 = vunpack.c.h.b16 %v2837
    %v3239 = vunpack.c.l.b16 %v2838
    %v3240 = vunpack.c.h.b16 %v2838
    %v3241 = vunpack.c.l.b16 %v2839
    %v3242 = vunpack.c.h.b16 %v2839
    %v3243 = vunpack.c.l.b16 %v2840
    %v3244 = vunpack.c.h.b16 %v2840
    %v3245 = vunpack.c.l.b16 %v2841
    %v3246 = vunpack.c.h.b16 %v2841
    %v3247 = vunpack.c.l.b16 %v2842
    %v3248 = vunpack.c.h.b16 %v2842
    %v3249 = vunpack.c.l.b16 %v2843
    %v3250 = vunpack.c.h.b16 %v2843
    %v3251 = vunpack.c.l.b16 %v2844
    %v3252 = vunpack.c.h.b16 %v2844
    %v3253 = vunpack.c.l.b16 %v2845
    %v3254 = vunpack.c.h.b16 %v2845
    %v3255 = vunpack.c.l.b16 %v2846
    %v3256 = vunpack.c.h.b16 %v2846
    %v3257 = vunpack.c.l.b16 %v2847
    %v3258 = vunpack.c.h.b16 %v2847
    %v3259 = vunpack.c.l.b16 %v2848
    %v3260 = vunpack.c.h.b16 %v2848
    %v3261 = vunpack.c.l.b16 %v2849
    %v3262 = vunpack.c.h.b16 %v2849
    %v3263 = vunpack.c.l.b16 %v2850
    %v3264 = vunpack.c.h.b16 %v2850
    %v3265 = vunpack.c.l.b16 %v2851
    %v3266 = vunpack.c.h.b16 %v2851
    %v3267 = vunpack.c.l.b16 %v2852
    %v3268 = vunpack.c.h.b16 %v2852
    %v3269 = vunpack.c.l.b16 %v2853
    %v3270 = vunpack.c.h.b16 %v2853
    %v3271 = vunpack.c.l.b16 %v2854
    %v3272 = vunpack.c.h.b16 %v2854
    %v3273 = vunpack.c.l.b16 %v2855
    %v3274 = vunpack.c.h.b16 %v2855
    %v3275 = vunpack.c.l.b16 %v2856
    %v3276 = vunpack.c.h.b16 %v2856
    %v3277 = vunpack.c.l.b16 %v2857
    %v3278 = vunpack.c.h.b16 %v2857
    %v3279 = vunpack.c.l.b16 %v2858
    %v3280 = vunpack.c.h.b16 %v2858
    %v3281 = vunpack.c.l.b16 %v2859
    %v3282 = vunpack.c.h.b16 %v2859
    %v3283 = vunpack.c.l.b16 %v2860
    %v3284 = vunpack.c.h.b16 %v2860
    %v3285 = vunpack.c.l.b16 %v2861
    %v3286 = vunpack.c.h.b16 %v2861
    %v3287 = vunpack.c.l.b16 %v2862
    %v3288 = vunpack.c.h.b16 %v2862
    %v3289 = vunpack.c.l.b16 %v2863
    %v3290 = vunpack.c.h.b16 %v2863
    %v3291 = vunpack.c.l.b16 %v2864
    %v3292 = vunpack.c.h.b16 %v2864
    %v3293 = vunpack.c.l.b16 %v2865
    %v3294 = vunpack.c.h.b16 %v2865
    %v3295 = vunpack.c.l.b16 %v2866
    %v3296 = vunpack.c.h.b16 %v2866
    %v3297 = vunpack.c.l.b16 %v2867
    %v3298 = vunpack.c.h.b16 %v2867
    %v3299 = vunpack.c.l.b16 %v2868
    %v3300 = vunpack.c.h.b16 %v2868
    %v3301 = vpack.c.b16 %v3015, %v3013
    %v3302 = vpack.c.b16 %v3016, %v3014
    %v3303 = vpack.c.b16 %v3019, %v3017
    %v3304 = vpack.c.b16 %v3020, %v3018
    %v3305 = vpack.c.b16 %v3023, %v3021
    %v3306 = vpack.c.b16 %v3024, %v3022
    %v3307 = vpack.c.b16 %v3027, %v3025
    %v3308 = vpack.c.b16 %v3028, %v3026
    %v3309 = vpack.c.b16 %v3031, %v3029
    %v3310 = vpack.c.b16 %v3032, %v3030
    %v3311 = vpack.c.b16 %v3035, %v3033
    %v3312 = vpack.c.b16 %v3036, %v3034
    %v3313 = vpack.c.b16 %v3039, %v3037
    %v3314 = vpack.c.b16 %v3040, %v3038
    %v3315 = vpack.c.b16 %v3043, %v3041
    %v3316 = vpack.c.b16 %v3044, %v3042
    %v3317 = vpack.c.b16 %v3047, %v3045
    %v3318 = vpack.c.b16 %v3048, %v3046
    %v3319 = vpack.c.b16 %v3051, %v3049
    %v3320 = vpack.c.b16 %v3052, %v3050
    %v3321 = vpack.c.b16 %v3055, %v3053
    %v3322 = vpack.c.b16 %v3056, %v3054
    %v3323 = vpack.c.b16 %v3059, %v3057
    %v3324 = vpack.c.b16 %v3060, %v3058
    %v3325 = vpack.c.b16 %v3063, %v3061
    %v3326 = vpack.c.b16 %v3064, %v3062
    %v3327 = vpack.c.b16 %v3067, %v3065
    %v3328 = vpack.c.b16 %v3068, %v3066
    %v3329 = vpack.c.b16 %v3071, %v3069
    %v3330 = vpack.c.b16 %v3072, %v3070
    %v3331 = vpack.c.b16 %v3075, %v3073
    %v3332 = vpack.c.b16 %v3076, %v3074
    %v3333 = vpack.c.b16 %v3079, %v3077
    %v3334 = vpack.c.b16 %v3080, %v3078
    %v3335 = vpack.c.b16 %v3083, %v3081
    %v3336 = vpack.c.b16 %v3084, %v3082
    %v3337 = vpack.c.b16 %v3087, %v3085
    %v3338 = vpack.c.b16 %v3088, %v3086
    %v3339 = vpack.c.b16 %v3091, %v3089
    %v3340 = vpack.c.b16 %v3092, %v3090
    %v3341 = vpack.c.b16 %v3095, %v3093
    %v3342 = vpack.c.b16 %v3096, %v3094
    %v3343 = vpack.c.b16 %v3099, %v3097
    %v3344 = vpack.c.b16 %v3100, %v3098
    %v3345 = vpack.c.b16 %v3103, %v3101
    %v3346 = vpack.c.b16 %v3104, %v3102
    %v3347 = vpack.c.b16 %v3107, %v3105
    %v3348 = vpack.c.b16 %v3108, %v3106
    %v3349 = vpack.c.b16 %v3111, %v3109
    %v3350 = vpack.c.b16 %v3112, %v3110
    %v3351 = vpack.c.b16 %v3115, %v3113
    %v3352 = vpack.c.b16 %v3116, %v3114
    %v3353 = vpack.c.b16 %v3119, %v3117
    %v3354 = vpack.c.b16 %v3120, %v3118
    %v3355 = vpack.c.b16 %v3123, %v3121
    %v3356 = vpack.c.b16 %v3124, %v3122
    %v3357 = vpack.c.b16 %v3127, %v3125
    %v3358 = vpack.c.b16 %v3128, %v3126
    %v3359 = vpack.c.b16 %v3131, %v3129
    %v3360 = vpack.c.b16 %v3132, %v3130
    %v3361 = vpack.c.b16 %v3135, %v3133
    %v3362 = vpack.c.b16 %v3136, %v3134
    %v3363 = vpack.c.b16 %v3139, %v3137
    %v3364 = vpack.c.b16 %v3140, %v3138
    %v3365 = vpack.c.b16 %v3143, %v3141
    %v3366 = vpack.c.b16 %v3144, %v3142
    %v3367 = vpack.c.b16 %v3147, %v3145
    %v3368 = vpack.c.b16 %v3148, %v3146
    %v3369 = vpack.c.b16 %v3151, %v3149
    %v3370 = vpack.c.b16 %v3152, %v3150
    %v3371 = vpack.c.b16 %v3155, %v3153
    %v3372 = vpack.c.b16 %v3156, %v3154
    %v3373 = vpack.c.b16 %v3159, %v3157
    %v3374 = vpack.c.b16 %v3160, %v3158
    %v3375 = vpack.c.b16 %v3163, %v3161
    %v3376 = vpack.c.b16 %v3164, %v3162
    %v3377 = vpack.c.b16 %v3167, %v3165
    %v3378 = vpack.c.b16 %v3168, %v3166
    %v3379 = vpack.c.b16 %v3171, %v3169
    %v3380 = vpack.c.b16 %v3172, %v3170
    %v3381 = vpack.c.b16 %v3175, %v3173
    %v3382 = vpack.c.b16 %v3176, %v3174
    %v3383 = vpack.c.b16 %v3179, %v3177
    %v3384 = vpack.c.b16 %v3180, %v3178
    %v3385 = vpack.c.b16 %v3183, %v3181
    %v3386 = vpack.c.b16 %v3184, %v3182
    %v3387 = vpack.c.b16 %v3187, %v3185
    %v3388 = vpack.c.b16 %v3188, %v3186
    %v3389 = vpack.c.b16 %v3191, %v3189
    %v3390 = vpack.c.b16 %v3192, %v3190
    %v3391 = vpack.c.b16 %v3195, %v3193
    %v3392 = vpack.c.b16 %v3196, %v3194
    %v3393 = vpack.c.b16 %v3199, %v3197
    %v3394 = vpack.c.b16 %v3200, %v3198
    %v3395 = vpack.c.b16 %v3203, %v3201
    %v3396 = vpack.c.b16 %v3204, %v3202
    %v3397 = vpack.c.b16 %v3207, %v3205
    %v3398 = vpack.c.b16 %v3208, %v3206
    %v3399 = vpack.c.b16 %v3211, %v3209
    %v3400 = vpack.c.b16 %v3212, %v3210
    %v3401 = vpack.c.b16 %v3215, %v3213
    %v3402 = vpack.c.b16 %v3216, %v3214
    %v3403 = vpack.c.b16 %v3219, %v3217
    %v3404 = vpack.c.b16 %v3220, %v3218
    %v3405 = vpack.c.b16 %v3223, %v3221
    %v3406 = vpack.c.b16 %v3224, %v3222
    %v3407 = vpack.c.b16 %v3227, %v3225
    %v3408 = vpack.c.b16 %v3228, %v3226
    %v3409 = vpack.c.b16 %v3231, %v3229
    %v3410 = vpack.c.b16 %v3232, %v3230
    %v3411 = vpack.c.b16 %v3235, %v3233
    %v3412 = vpack.c.b16 %v3236, %v3234
    %v3413 = vpack.c.b16 %v3239, %v3237
    %v3414 = vpack.c.b16 %v3240, %v3238
    %v3415 = vpack.c.b16 %v3243, %v3241
    %v3416 = vpack.c.b16 %v3244, %v3242
    %v3417 = vpack.c.b16 %v3247, %v3245
    %v3418 = vpack.c.b16 %v3248, %v3246
    %v3419 = vpack.c.b16 %v3251, %v3249
    %v3420 = vpack.c.b16 %v3252, %v3250
    %v3421 = vpack.c.b16 %v3255, %v3253
    %v3422 = vpack.c.b16 %v3256, %v3254
    %v3423 = vpack.c.b16 %v3259, %v3257
    %v3424 = vpack.c.b16 %v3260, %v3258
    %v3425 = vpack.c.b16 %v3263, %v3261
    %v3426 = vpack.c.b16 %v3264, %v3262
    %v3427 = vpack.c.b16 %v3267, %v3265
    %v3428 = vpack.c.b16 %v3268, %v3266
    %v3429 = vpack.c.b16 %v3271, %v3269
    %v3430 = vpack.c.b16 %v3272, %v3270
    %v3431 = vpack.c.b16 %v3275, %v3273
    %v3432 = vpack.c.b16 %v3276, %v3274
    %v3433 = vpack.c.b16 %v3279, %v3277
    %v3434 = vpack.c.b16 %v3280, %v3278
    %v3435 = vpack.c.b16 %v3283, %v3281
    %v3436 = vpack.c.b16 %v3284, %v3282
    %v3437 = vpack.c.b16 %v3287, %v3285
    %v3438 = vpack.c.b16 %v3288, %v3286
    %v3439 = vpack.c.b16 %v3291, %v3289
    %v3440 = vpack.c.b16 %v3292, %v3290
    %v3441 = vpack.c.b16 %v3295, %v3293
    %v3442 = vpack.c.b16 %v3296, %v3294
    %v3443 = vpack.c.b16 %v3299, %v3297
    %v3444 = vpack.c.b16 %v3300, %v3298
    %3589 = vmatpush.bf16.msra.mxu0 %v3315
    %3590 = vmatpush.bf16.msra.mxu0 %v3313
    %3591 = vmatpush.bf16.msra.mxu0 %v3311
    %3592 = vmatpush.bf16.msra.mxu0 %v3309
    %3593 = vmatpush.bf16.msra.mxu0 %v3307
    %3594 = vmatpush.bf16.msra.mxu0 %v3305
    %3595 = vmatpush.bf16.msra.mxu0 %v3303
    %3596 = vmatpush.bf16.msra.mxu0 %v3301
    %3597 = vmatmul.bf16.gmra.mxu0 %v2716
    %v3598 = vpop.f32.mrf.mxu0
    %v3599 = vadd.f32 0.0, %v3598
    %v3600 = vpop.f32.mrf.mxu0
    %v3601 = vadd.f32 0.0, %v3600
    %3602 = vdwg.mxu0
    %3603 = vmatpush.bf16.msra.mxu0 %v3331
    %3604 = vmatpush.bf16.msra.mxu0 %v3329
    %3605 = vmatpush.bf16.msra.mxu0 %v3327
    %3606 = vmatpush.bf16.msra.mxu0 %v3325
    %3607 = vmatpush.bf16.msra.mxu0 %v3323
    %3608 = vmatpush.bf16.msra.mxu0 %v3321
    %3609 = vmatpush.bf16.msra.mxu0 %v3319
    %3610 = vmatpush.bf16.msra.mxu0 %v3317
    %3611 = vmatmul.bf16.gmra.mxu0 %v2717
    %v3612 = vpop.f32.mrf.mxu0
    %v3613 = vadd.f32 %v3599, %v3612
    %v3614 = vpop.f32.mrf.mxu0
    %v3615 = vadd.f32 %v3601, %v3614
    %3616 = vdwg.mxu0
    %3617 = vmatpush.bf16.msra.mxu0 %v3347
    %3618 = vmatpush.bf16.msra.mxu0 %v3345
    %3619 = vmatpush.bf16.msra.mxu0 %v3343
    %3620 = vmatpush.bf16.msra.mxu0 %v3341
    %3621 = vmatpush.bf16.msra.mxu0 %v3339
    %3622 = vmatpush.bf16.msra.mxu0 %v3337
    %3623 = vmatpush.bf16.msra.mxu0 %v3335
    %3624 = vmatpush.bf16.msra.mxu0 %v3333
    %3625 = vmatmul.bf16.gmra.mxu0 %v2718
    %v3626 = vpop.f32.mrf.mxu0
    %v3627 = vadd.f32 %v3613, %v3626
    %v3628 = vpop.f32.mrf.mxu0
    %v3629 = vadd.f32 %v3615, %v3628
    %3630 = vdwg.mxu0
    %3631 = vmatpush.bf16.msra.mxu0 %v3363
    %3632 = vmatpush.bf16.msra.mxu0 %v3361
    %3633 = vmatpush.bf16.msra.mxu0 %v3359
    %3634 = vmatpush.bf16.msra.mxu0 %v3357
    %3635 = vmatpush.bf16.msra.mxu0 %v3355
    %3636 = vmatpush.bf16.msra.mxu0 %v3353
    %3637 = vmatpush.bf16.msra.mxu0 %v3351
    %3638 = vmatpush.bf16.msra.mxu0 %v3349
    %3639 = vmatmul.bf16.gmra.mxu0 %v2719
    %v3640 = vpop.f32.mrf.mxu0
    %v3641 = vadd.f32 %v3627, %v3640
    %v3642 = vpop.f32.mrf.mxu0
    %v3643 = vadd.f32 %v3629, %v3642
    %3644 = vdwg.mxu0
    %3645 = vmatpush.bf16.msra.mxu0 %v3379
    %3646 = vmatpush.bf16.msra.mxu0 %v3377
    %3647 = vmatpush.bf16.msra.mxu0 %v3375
    %3648 = vmatpush.bf16.msra.mxu0 %v3373
    %3649 = vmatpush.bf16.msra.mxu0 %v3371
    %3650 = vmatpush.bf16.msra.mxu0 %v3369
    %3651 = vmatpush.bf16.msra.mxu0 %v3367
    %3652 = vmatpush.bf16.msra.mxu0 %v3365
    %3653 = vmatmul.bf16.gmra.mxu0 %v2720
    %v3654 = vpop.f32.mrf.mxu0
    %v3655 = vadd.f32 %v3641, %v3654
    %v3656 = vpop.f32.mrf.mxu0
    %v3657 = vadd.f32 %v3643, %v3656
    %3658 = vdwg.mxu0
    %3659 = vmatpush.bf16.msra.mxu0 %v3395
    %3660 = vmatpush.bf16.msra.mxu0 %v3393
    %3661 = vmatpush.bf16.msra.mxu0 %v3391
    %3662 = vmatpush.bf16.msra.mxu0 %v3389
    %3663 = vmatpush.bf16.msra.mxu0 %v3387
    %3664 = vmatpush.bf16.msra.mxu0 %v3385
    %3665 = vmatpush.bf16.msra.mxu0 %v3383
    %3666 = vmatpush.bf16.msra.mxu0 %v3381
    %3667 = vmatmul.bf16.gmra.mxu0 %v2721
    %v3668 = vpop.f32.mrf.mxu0
    %v3669 = vadd.f32 %v3655, %v3668
    %v3670 = vpop.f32.mrf.mxu0
    %v3671 = vadd.f32 %v3657, %v3670
    %3672 = vdwg.mxu0
    %3673 = vmatpush.bf16.msra.mxu0 %v3411
    %3674 = vmatpush.bf16.msra.mxu0 %v3409
    %3675 = vmatpush.bf16.msra.mxu0 %v3407
    %3676 = vmatpush.bf16.msra.mxu0 %v3405
    %3677 = vmatpush.bf16.msra.mxu0 %v3403
    %3678 = vmatpush.bf16.msra.mxu0 %v3401
    %3679 = vmatpush.bf16.msra.mxu0 %v3399
    %3680 = vmatpush.bf16.msra.mxu0 %v3397
    %3681 = vmatmul.bf16.gmra.mxu0 %v2722
    %v3682 = vpop.f32.mrf.mxu0
    %v3683 = vadd.f32 %v3669, %v3682
    %v3684 = vpop.f32.mrf.mxu0
    %v3685 = vadd.f32 %v3671, %v3684
    %3686 = vdwg.mxu0
    %3687 = vmatpush.bf16.msra.mxu0 %v3427
    %3688 = vmatpush.bf16.msra.mxu0 %v3425
    %3689 = vmatpush.bf16.msra.mxu0 %v3423
    %3690 = vmatpush.bf16.msra.mxu0 %v3421
    %3691 = vmatpush.bf16.msra.mxu0 %v3419
    %3692 = vmatpush.bf16.msra.mxu0 %v3417
    %3693 = vmatpush.bf16.msra.mxu0 %v3415
    %3694 = vmatpush.bf16.msra.mxu0 %v3413
    %3695 = vmatmul.bf16.gmra.mxu0 %v2723
    %v3696 = vpop.f32.mrf.mxu0
    %v3697 = vadd.f32 %v3683, %v3696
    %v3698 = vpop.f32.mrf.mxu0
    %v3699 = vadd.f32 %v3685, %v3698
    %3700 = vdwg.mxu0
    %3701 = vmatpush.bf16.msra.mxu0 %v3443
    %3702 = vmatpush.bf16.msra.mxu0 %v3441
    %3703 = vmatpush.bf16.msra.mxu0 %v3439
    %3704 = vmatpush.bf16.msra.mxu0 %v3437
    %3705 = vmatpush.bf16.msra.mxu0 %v3435
    %3706 = vmatpush.bf16.msra.mxu0 %v3433
    %3707 = vmatpush.bf16.msra.mxu0 %v3431
    %3708 = vmatpush.bf16.msra.mxu0 %v3429
    %3709 = vmatmul.bf16.gmra.mxu0 %v2724
    %v3710 = vpop.f32.mrf.mxu0
    %v3711 = vadd.f32 %v3697, %v3710
    %v3712 = vpop.f32.mrf.mxu0
    %v3713 = vadd.f32 %v3699, %v3712
    %3714 = vdwg.mxu0
    %3715 = vmatpush.bf16.msra.mxu0 %v3316
    %3716 = vmatpush.bf16.msra.mxu0 %v3314
    %3717 = vmatpush.bf16.msra.mxu0 %v3312
    %3718 = vmatpush.bf16.msra.mxu0 %v3310
    %3719 = vmatpush.bf16.msra.mxu0 %v3308
    %3720 = vmatpush.bf16.msra.mxu0 %v3306
    %3721 = vmatpush.bf16.msra.mxu0 %v3304
    %3722 = vmatpush.bf16.msra.mxu0 %v3302
    %3723 = vmatmul.bf16.gmra.mxu0 %v2716
    %v3724 = vpop.f32.mrf.mxu0
    %v3725 = vadd.f32 0.0, %v3724
    %v3726 = vpop.f32.mrf.mxu0
    %v3727 = vadd.f32 0.0, %v3726
    %3728 = vdwg.mxu0
    %3729 = vmatpush.bf16.msra.mxu0 %v3332
    %3730 = vmatpush.bf16.msra.mxu0 %v3330
    %3731 = vmatpush.bf16.msra.mxu0 %v3328
    %3732 = vmatpush.bf16.msra.mxu0 %v3326
    %3733 = vmatpush.bf16.msra.mxu0 %v3324
    %3734 = vmatpush.bf16.msra.mxu0 %v3322
    %3735 = vmatpush.bf16.msra.mxu0 %v3320
    %3736 = vmatpush.bf16.msra.mxu0 %v3318
    %3737 = vmatmul.bf16.gmra.mxu0 %v2717
    %v3738 = vpop.f32.mrf.mxu0
    %v3739 = vadd.f32 %v3725, %v3738
    %v3740 = vpop.f32.mrf.mxu0
    %v3741 = vadd.f32 %v3727, %v3740
    %3742 = vdwg.mxu0
    %3743 = vmatpush.bf16.msra.mxu0 %v3348
    %3744 = vmatpush.bf16.msra.mxu0 %v3346
    %3745 = vmatpush.bf16.msra.mxu0 %v3344
    %3746 = vmatpush.bf16.msra.mxu0 %v3342
    %3747 = vmatpush.bf16.msra.mxu0 %v3340
    %3748 = vmatpush.bf16.msra.mxu0 %v3338
    %3749 = vmatpush.bf16.msra.mxu0 %v3336
    %3750 = vmatpush.bf16.msra.mxu0 %v3334
    %3751 = vmatmul.bf16.gmra.mxu0 %v2718
    %v3752 = vpop.f32.mrf.mxu0
    %v3753 = vadd.f32 %v3739, %v3752
    %v3754 = vpop.f32.mrf.mxu0
    %v3755 = vadd.f32 %v3741, %v3754
    %3756 = vdwg.mxu0
    %3757 = vmatpush.bf16.msra.mxu0 %v3364
    %3758 = vmatpush.bf16.msra.mxu0 %v3362
    %3759 = vmatpush.bf16.msra.mxu0 %v3360
    %3760 = vmatpush.bf16.msra.mxu0 %v3358
    %3761 = vmatpush.bf16.msra.mxu0 %v3356
    %3762 = vmatpush.bf16.msra.mxu0 %v3354
    %3763 = vmatpush.bf16.msra.mxu0 %v3352
    %3764 = vmatpush.bf16.msra.mxu0 %v3350
    %3765 = vmatmul.bf16.gmra.mxu0 %v2719
    %v3766 = vpop.f32.mrf.mxu0
    %v3767 = vadd.f32 %v3753, %v3766
    %v3768 = vpop.f32.mrf.mxu0
    %v3769 = vadd.f32 %v3755, %v3768
    %3770 = vdwg.mxu0
    %3771 = vmatpush.bf16.msra.mxu0 %v3380
    %3772 = vmatpush.bf16.msra.mxu0 %v3378
    %3773 = vmatpush.bf16.msra.mxu0 %v3376
    %3774 = vmatpush.bf16.msra.mxu0 %v3374
    %3775 = vmatpush.bf16.msra.mxu0 %v3372
    %3776 = vmatpush.bf16.msra.mxu0 %v3370
    %3777 = vmatpush.bf16.msra.mxu0 %v3368
    %3778 = vmatpush.bf16.msra.mxu0 %v3366
    %3779 = vmatmul.bf16.gmra.mxu0 %v2720
    %v3780 = vpop.f32.mrf.mxu0
    %v3781 = vadd.f32 %v3767, %v3780
    %v3782 = vpop.f32.mrf.mxu0
    %v3783 = vadd.f32 %v3769, %v3782
    %3784 = vdwg.mxu0
    %3785 = vmatpush.bf16.msra.mxu0 %v3396
    %3786 = vmatpush.bf16.msra.mxu0 %v3394
    %3787 = vmatpush.bf16.msra.mxu0 %v3392
    %3788 = vmatpush.bf16.msra.mxu0 %v3390
    %3789 = vmatpush.bf16.msra.mxu0 %v3388
    %3790 = vmatpush.bf16.msra.mxu0 %v3386
    %3791 = vmatpush.bf16.msra.mxu0 %v3384
    %3792 = vmatpush.bf16.msra.mxu0 %v3382
    %3793 = vmatmul.bf16.gmra.mxu0 %v2721
    %v3794 = vpop.f32.mrf.mxu0
    %v3795 = vadd.f32 %v3781, %v3794
    %v3796 = vpop.f32.mrf.mxu0
    %v3797 = vadd.f32 %v3783, %v3796
    %3798 = vdwg.mxu0
    %3799 = vmatpush.bf16.msra.mxu0 %v3412
    %3800 = vmatpush.bf16.msra.mxu0 %v3410
    %3801 = vmatpush.bf16.msra.mxu0 %v3408
    %3802 = vmatpush.bf16.msra.mxu0 %v3406
    %3803 = vmatpush.bf16.msra.mxu0 %v3404
    %3804 = vmatpush.bf16.msra.mxu0 %v3402
    %3805 = vmatpush.bf16.msra.mxu0 %v3400
    %3806 = vmatpush.bf16.msra.mxu0 %v3398
    %3807 = vmatmul.bf16.gmra.mxu0 %v2722
    %v3808 = vpop.f32.mrf.mxu0
    %v3809 = vadd.f32 %v3795, %v3808
    %v3810 = vpop.f32.mrf.mxu0
    %v3811 = vadd.f32 %v3797, %v3810
    %3812 = vdwg.mxu0
    %3813 = vmatpush.bf16.msra.mxu0 %v3428
    %3814 = vmatpush.bf16.msra.mxu0 %v3426
    %3815 = vmatpush.bf16.msra.mxu0 %v3424
    %3816 = vmatpush.bf16.msra.mxu0 %v3422
    %3817 = vmatpush.bf16.msra.mxu0 %v3420
    %3818 = vmatpush.bf16.msra.mxu0 %v3418
    %3819 = vmatpush.bf16.msra.mxu0 %v3416
    %3820 = vmatpush.bf16.msra.mxu0 %v3414
    %3821 = vmatmul.bf16.gmra.mxu0 %v2723
    %v3822 = vpop.f32.mrf.mxu0
    %v3823 = vadd.f32 %v3809, %v3822
    %v3824 = vpop.f32.mrf.mxu0
    %v3825 = vadd.f32 %v3811, %v3824
    %3826 = vdwg.mxu0
    %3827 = vmatpush.bf16.msra.mxu0 %v3444
    %3828 = vmatpush.bf16.msra.mxu0 %v3442
    %3829 = vmatpush.bf16.msra.mxu0 %v3440
    %3830 = vmatpush.bf16.msra.mxu0 %v3438
    %3831 = vmatpush.bf16.msra.mxu0 %v3436
    %3832 = vmatpush.bf16.msra.mxu0 %v3434
    %3833 = vmatpush.bf16.msra.mxu0 %v3432
    %3834 = vmatpush.bf16.msra.mxu0 %v3430
    %3835 = vmatmul.bf16.gmra.mxu0 %v2724
    %v3836 = vpop.f32.mrf.mxu0
    %v3837 = vadd.f32 %v3823, %v3836
    %v3838 = vpop.f32.mrf.mxu0
    %v3839 = vadd.f32 %v3825, %v3838
    %3840 = vdwg.mxu0
    %v3841 = vld [vmem:[#allocation9] sm:$0x3]
    %v3843 = vperm.slane %v3841, 0
    %v3844 = vperm.slane %v3841, 1
    %v3847 = vmul.f32 %v3711, %v3843
    %v3848 = vmul.f32 %v3837, %v3844
    %v3849 = vmul.f32 %v3713, %v3843
    %v3850 = vmul.f32 %v3839, %v3844
    %v3851 = vld [vmem:[#allocation10] sm:$0x3]
    %v3853 = vperm.slane %v3851, 0
    %v3854 = vperm.slane %v3851, 1
    %v3857 = vadd.f32 %v3847, %v3853
    %v3858 = vadd.f32 %v3848, %v3854
    %v3859 = vadd.f32 %v3849, %v3853
    %v3860 = vadd.f32 %v3850, %v3854
    %v3861 = vmax.f32 %v3857, 0.0
    %v3862 = vmax.f32 %v3858, 0.0
    %v3863 = vmax.f32 %v3859, 0.0
    %v3864 = vmax.f32 %v3860, 0.0
    %v3865 = vpack.c.bf16 %v3863, %v3861
    %v3866 = vpack.c.bf16 %v3864, %v3862
    %v3867 = vld [vmem:[#allocation12] sm:$0xf]
    %v3868 = vld [vmem:[#allocation12 + $0x4] sm:$0xf]
    %v3869 = vld [vmem:[#allocation12 + $0x8] sm:$0xf]
    %v3870 = vld [vmem:[#allocation12 + $0xc] sm:$0xf]
    %v3871 = vld [vmem:[#allocation12 + $0x10] sm:$0xf]
    %v3872 = vld [vmem:[#allocation12 + $0x14] sm:$0xf]
    %v3873 = vld [vmem:[#allocation12 + $0x18] sm:$0xf]
    %v3874 = vld [vmem:[#allocation12 + $0x1c] sm:$0xf]
    %v3875 = vld [vmem:[#allocation12 + $0x20] sm:$0xf]
    %v3876 = vld [vmem:[#allocation12 + $0x24] sm:$0xf]
    %v3877 = vld [vmem:[#allocation12 + $0x28] sm:$0xf]
    %v3878 = vld [vmem:[#allocation12 + $0x2c] sm:$0xf]
    %v3879 = vld [vmem:[#allocation12 + $0x30] sm:$0xf]
    %v3880 = vld [vmem:[#allocation12 + $0x34] sm:$0xf]
    %v3881 = vld [vmem:[#allocation12 + $0x38] sm:$0xf]
    %v3882 = vld [vmem:[#allocation12 + $0x3c] sm:$0xf]
    %v3883 = vld [vmem:[#allocation12 + $0x40] sm:$0xf]
    %v3884 = vld [vmem:[#allocation12 + $0x44] sm:$0xf]
    %v3885 = vld [vmem:[#allocation12 + $0x48] sm:$0xf]
    %v3886 = vld [vmem:[#allocation12 + $0x4c] sm:$0xf]
    %v3887 = vld [vmem:[#allocation12 + $0x50] sm:$0xf]
    %v3888 = vld [vmem:[#allocation12 + $0x54] sm:$0xf]
    %v3889 = vld [vmem:[#allocation12 + $0x58] sm:$0xf]
    %v3890 = vld [vmem:[#allocation12 + $0x5c] sm:$0xf]
    %v3891 = vld [vmem:[#allocation12 + $0x60] sm:$0xf]
    %v3892 = vld [vmem:[#allocation12 + $0x64] sm:$0xf]
    %v3893 = vld [vmem:[#allocation12 + $0x68] sm:$0xf]
    %v3894 = vld [vmem:[#allocation12 + $0x6c] sm:$0xf]
    %v3895 = vld [vmem:[#allocation12 + $0x70] sm:$0xf]
    %v3896 = vld [vmem:[#allocation12 + $0x74] sm:$0xf]
    %v3897 = vld [vmem:[#allocation12 + $0x78] sm:$0xf]
    %v3898 = vld [vmem:[#allocation12 + $0x7c] sm:$0xf]
    %v3899 = vld [vmem:[#allocation13] sm:$0x1]
    %v3901 = vperm.slane %v3899, 0
    %v3935 = vunpack.c.l.b16 %v3867
    %v3936 = vunpack.c.l.b16 %v3868
    %v3937 = vunpack.c.l.b16 %v3869
    %v3938 = vunpack.c.l.b16 %v3870
    %v3939 = vunpack.c.l.b16 %v3871
    %v3940 = vunpack.c.l.b16 %v3872
    %v3941 = vunpack.c.l.b16 %v3873
    %v3942 = vunpack.c.l.b16 %v3874
    %v3943 = vunpack.c.l.b16 %v3875
    %v3944 = vunpack.c.l.b16 %v3876
    %v3945 = vunpack.c.l.b16 %v3877
    %v3946 = vunpack.c.l.b16 %v3878
    %v3947 = vunpack.c.l.b16 %v3879
    %v3948 = vunpack.c.l.b16 %v3880
    %v3949 = vunpack.c.l.b16 %v3881
    %v3950 = vunpack.c.l.b16 %v3882
    %v3951 = vunpack.c.l.b16 %v3883
    %v3952 = vunpack.c.l.b16 %v3884
    %v3953 = vunpack.c.l.b16 %v3885
    %v3954 = vunpack.c.l.b16 %v3886
    %v3955 = vunpack.c.l.b16 %v3887
    %v3956 = vunpack.c.l.b16 %v3888
    %v3957 = vunpack.c.l.b16 %v3889
    %v3958 = vunpack.c.l.b16 %v3890
    %v3959 = vunpack.c.l.b16 %v3891
    %v3960 = vunpack.c.l.b16 %v3892
    %v3961 = vunpack.c.l.b16 %v3893
    %v3962 = vunpack.c.l.b16 %v3894
    %v3963 = vunpack.c.l.b16 %v3895
    %v3964 = vunpack.c.l.b16 %v3896
    %v3965 = vunpack.c.l.b16 %v3897
    %v3966 = vunpack.c.l.b16 %v3898
    %v3967 = vpack.c.b16 %v3936, %v3935
    %v3968 = vpack.c.b16 %v3938, %v3937
    %v3969 = vpack.c.b16 %v3940, %v3939
    %v3970 = vpack.c.b16 %v3942, %v3941
    %v3971 = vpack.c.b16 %v3944, %v3943
    %v3972 = vpack.c.b16 %v3946, %v3945
    %v3973 = vpack.c.b16 %v3948, %v3947
    %v3974 = vpack.c.b16 %v3950, %v3949
    %v3975 = vpack.c.b16 %v3952, %v3951
    %v3976 = vpack.c.b16 %v3954, %v3953
    %v3977 = vpack.c.b16 %v3956, %v3955
    %v3978 = vpack.c.b16 %v3958, %v3957
    %v3979 = vpack.c.b16 %v3960, %v3959
    %v3980 = vpack.c.b16 %v3962, %v3961
    %v3981 = vpack.c.b16 %v3964, %v3963
    %v3982 = vpack.c.b16 %v3966, %v3965
    %3999 = vmatpush.bf16.msra.mxu0 %v3974
    %4000 = vmatpush.bf16.msra.mxu0 %v3973
    %4001 = vmatpush.bf16.msra.mxu0 %v3972
    %4002 = vmatpush.bf16.msra.mxu0 %v3971
    %4003 = vmatpush.bf16.msra.mxu0 %v3970
    %4004 = vmatpush.bf16.msra.mxu0 %v3969
    %4005 = vmatpush.bf16.msra.mxu0 %v3968
    %4006 = vmatpush.bf16.msra.mxu0 %v3967
    %4007 = vmatmul.bf16.gmra.mxu0 %v3865
    %v4008 = vpop.f32.mrf.mxu0
    %v4009 = vadd.f32 %v3901, %v4008
    %v4010 = vpop.f32.mrf.mxu0
    %v4011 = vadd.f32 %v3901, %v4010
    %4012 = vdwg.mxu0
    %4013 = vmatpush.bf16.msra.mxu0 %v3982
    %4014 = vmatpush.bf16.msra.mxu0 %v3981
    %4015 = vmatpush.bf16.msra.mxu0 %v3980
    %4016 = vmatpush.bf16.msra.mxu0 %v3979
    %4017 = vmatpush.bf16.msra.mxu0 %v3978
    %4018 = vmatpush.bf16.msra.mxu0 %v3977
    %4019 = vmatpush.bf16.msra.mxu0 %v3976
    %4020 = vmatpush.bf16.msra.mxu0 %v3975
    %4021 = vmatmul.bf16.gmra.mxu0 %v3866
    %v4022 = vpop.f32.mrf.mxu0
    %v4023 = vadd.f32 %v4009, %v4022
    %v4024 = vpop.f32.mrf.mxu0
    %v4025 = vadd.f32 %v4011, %v4024
    %4026 = vdwg.mxu0
    %v4027 = vmax.f32 %v4023, 0.0
    %v4028 = vmax.f32 %v4025, 0.0
    %v4029 = vpack.c.bf16 %v4028, %v4027
    %v4030 = vld [vmem:[#allocation15] sm:$0xff]
    %v4031 = vld [vmem:[#allocation15 + $0x8] sm:$0xff]
    %v4032 = vld [vmem:[#allocation15 + $0x10] sm:$0xff]
    %v4033 = vld [vmem:[#allocation15 + $0x18] sm:$0xff]
    %v4034 = vld [vmem:[#allocation15 + $0x20] sm:$0xff]
    %v4035 = vld [vmem:[#allocation15 + $0x28] sm:$0xff]
    %v4036 = vld [vmem:[#allocation15 + $0x30] sm:$0xff]
    %v4037 = vld [vmem:[#allocation15 + $0x38] sm:$0xff]
    %v4038 = vld [vmem:[#allocation15 + $0x40] sm:$0xff]
    %v4039 = vld [vmem:[#allocation15 + $0x48] sm:$0xff]
    %v4040 = vld [vmem:[#allocation15 + $0x50] sm:$0xff]
    %v4041 = vld [vmem:[#allocation15 + $0x58] sm:$0xff]
    %v4042 = vld [vmem:[#allocation15 + $0x60] sm:$0xff]
    %v4043 = vld [vmem:[#allocation15 + $0x68] sm:$0xff]
    %v4044 = vld [vmem:[#allocation15 + $0x70] sm:$0xff]
    %v4045 = vld [vmem:[#allocation15 + $0x78] sm:$0xff]
    %v4046 = vld [vmem:[#allocation15 + $0x80] sm:$0xff]
    %v4047 = vld [vmem:[#allocation15 + $0x88] sm:$0xff]
    %v4048 = vld [vmem:[#allocation15 + $0x90] sm:$0xff]
    %v4049 = vld [vmem:[#allocation15 + $0x98] sm:$0xff]
    %v4050 = vld [vmem:[#allocation15 + $0xa0] sm:$0xff]
    %v4051 = vld [vmem:[#allocation15 + $0xa8] sm:$0xff]
    %v4052 = vld [vmem:[#allocation15 + $0xb0] sm:$0xff]
    %v4053 = vld [vmem:[#allocation15 + $0xb8] sm:$0xff]
    %v4054 = vld [vmem:[#allocation15 + $0xc0] sm:$0xff]
    %v4055 = vld [vmem:[#allocation15 + $0xc8] sm:$0xff]
    %v4056 = vld [vmem:[#allocation15 + $0xd0] sm:$0xff]
    %v4057 = vld [vmem:[#allocation15 + $0xd8] sm:$0xff]
    %v4058 = vld [vmem:[#allocation15 + $0xe0] sm:$0xff]
    %v4059 = vld [vmem:[#allocation15 + $0xe8] sm:$0xff]
    %v4060 = vld [vmem:[#allocation15 + $0xf0] sm:$0xff]
    %v4061 = vld [vmem:[#allocation15 + $0xf8] sm:$0xff]
    %v4062 = vld [vmem:[#allocation16] sm:$0xf]
    %v4064 = vperm.slane %v4062, 0
    %v4065 = vperm.slane %v4062, 1
    %v4066 = vperm.slane %v4062, 2
    %v4067 = vperm.slane %v4062, 3
    %v4104 = vunpack.c.l.b16 %v4030
    %v4105 = vunpack.c.h.b16 %v4030
    %v4106 = vunpack.c.l.b16 %v4031
    %v4107 = vunpack.c.h.b16 %v4031
    %v4108 = vunpack.c.l.b16 %v4032
    %v4109 = vunpack.c.h.b16 %v4032
    %v4110 = vunpack.c.l.b16 %v4033
    %v4111 = vunpack.c.h.b16 %v4033
    %v4112 = vunpack.c.l.b16 %v4034
    %v4113 = vunpack.c.h.b16 %v4034
    %v4114 = vunpack.c.l.b16 %v4035
    %v4115 = vunpack.c.h.b16 %v4035
    %v4116 = vunpack.c.l.b16 %v4036
    %v4117 = vunpack.c.h.b16 %v4036
    %v4118 = vunpack.c.l.b16 %v4037
    %v4119 = vunpack.c.h.b16 %v4037
    %v4120 = vunpack.c.l.b16 %v4038
    %v4121 = vunpack.c.h.b16 %v4038
    %v4122 = vunpack.c.l.b16 %v4039
    %v4123 = vunpack.c.h.b16 %v4039
    %v4124 = vunpack.c.l.b16 %v4040
    %v4125 = vunpack.c.h.b16 %v4040
    %v4126 = vunpack.c.l.b16 %v4041
    %v4127 = vunpack.c.h.b16 %v4041
    %v4128 = vunpack.c.l.b16 %v4042
    %v4129 = vunpack.c.h.b16 %v4042
    %v4130 = vunpack.c.l.b16 %v4043
    %v4131 = vunpack.c.h.b16 %v4043
    %v4132 = vunpack.c.l.b16 %v4044
    %v4133 = vunpack.c.h.b16 %v4044
    %v4134 = vunpack.c.l.b16 %v4045
    %v4135 = vunpack.c.h.b16 %v4045
    %v4136 = vunpack.c.l.b16 %v4046
    %v4137 = vunpack.c.h.b16 %v4046
    %v4138 = vunpack.c.l.b16 %v4047
    %v4139 = vunpack.c.h.b16 %v4047
    %v4140 = vunpack.c.l.b16 %v4048
    %v4141 = vunpack.c.h.b16 %v4048
    %v4142 = vunpack.c.l.b16 %v4049
    %v4143 = vunpack.c.h.b16 %v4049
    %v4144 = vunpack.c.l.b16 %v4050
    %v4145 = vunpack.c.h.b16 %v4050
    %v4146 = vunpack.c.l.b16 %v4051
    %v4147 = vunpack.c.h.b16 %v4051
    %v4148 = vunpack.c.l.b16 %v4052
    %v4149 = vunpack.c.h.b16 %v4052
    %v4150 = vunpack.c.l.b16 %v4053
    %v4151 = vunpack.c.h.b16 %v4053
    %v4152 = vunpack.c.l.b16 %v4054
    %v4153 = vunpack.c.h.b16 %v4054
    %v4154 = vunpack.c.l.b16 %v4055
    %v4155 = vunpack.c.h.b16 %v4055
    %v4156 = vunpack.c.l.b16 %v4056
    %v4157 = vunpack.c.h.b16 %v4056
    %v4158 = vunpack.c.l.b16 %v4057
    %v4159 = vunpack.c.h.b16 %v4057
    %v4160 = vunpack.c.l.b16 %v4058
    %v4161 = vunpack.c.h.b16 %v4058
    %v4162 = vunpack.c.l.b16 %v4059
    %v4163 = vunpack.c.h.b16 %v4059
    %v4164 = vunpack.c.l.b16 %v4060
    %v4165 = vunpack.c.h.b16 %v4060
    %v4166 = vunpack.c.l.b16 %v4061
    %v4167 = vunpack.c.h.b16 %v4061
    %v4168 = vpack.c.b16 %v4108, %v4104
    %v4169 = vpack.c.b16 %v4109, %v4105
    %v4170 = vpack.c.b16 %v4110, %v4106
    %v4171 = vpack.c.b16 %v4111, %v4107
    %v4172 = vpack.c.b16 %v4116, %v4112
    %v4173 = vpack.c.b16 %v4117, %v4113
    %v4174 = vpack.c.b16 %v4118, %v4114
    %v4175 = vpack.c.b16 %v4119, %v4115
    %v4176 = vpack.c.b16 %v4124, %v4120
    %v4177 = vpack.c.b16 %v4125, %v4121
    %v4178 = vpack.c.b16 %v4126, %v4122
    %v4179 = vpack.c.b16 %v4127, %v4123
    %v4180 = vpack.c.b16 %v4132, %v4128
    %v4181 = vpack.c.b16 %v4133, %v4129
    %v4182 = vpack.c.b16 %v4134, %v4130
    %v4183 = vpack.c.b16 %v4135, %v4131
    %v4184 = vpack.c.b16 %v4140, %v4136
    %v4185 = vpack.c.b16 %v4141, %v4137
    %v4186 = vpack.c.b16 %v4142, %v4138
    %v4187 = vpack.c.b16 %v4143, %v4139
    %v4188 = vpack.c.b16 %v4148, %v4144
    %v4189 = vpack.c.b16 %v4149, %v4145
    %v4190 = vpack.c.b16 %v4150, %v4146
    %v4191 = vpack.c.b16 %v4151, %v4147
    %v4192 = vpack.c.b16 %v4156, %v4152
    %v4193 = vpack.c.b16 %v4157, %v4153
    %v4194 = vpack.c.b16 %v4158, %v4154
    %v4195 = vpack.c.b16 %v4159, %v4155
    %v4196 = vpack.c.b16 %v4164, %v4160
    %v4197 = vpack.c.b16 %v4165, %v4161
    %v4198 = vpack.c.b16 %v4166, %v4162
    %v4199 = vpack.c.b16 %v4167, %v4163
    %4232 = vmatpush.bf16.msra.mxu0 %v4196
    %4233 = vmatpush.bf16.msra.mxu0 %v4192
    %4234 = vmatpush.bf16.msra.mxu0 %v4188
    %4235 = vmatpush.bf16.msra.mxu0 %v4184
    %4236 = vmatpush.bf16.msra.mxu0 %v4180
    %4237 = vmatpush.bf16.msra.mxu0 %v4176
    %4238 = vmatpush.bf16.msra.mxu0 %v4172
    %4239 = vmatpush.bf16.msra.mxu0 %v4168
    %4240 = vmatmul.bf16.gmra.mxu0 %v4029
    %v4241 = vpop.f32.mrf.mxu0
    %v4242 = vadd.f32 %v4064, %v4241
    %v4243 = vpop.f32.mrf.mxu0
    %v4244 = vadd.f32 %v4064, %v4243
    %4245 = vdwg.mxu0
    %4246 = vmatpush.bf16.msra.mxu0 %v4197
    %4247 = vmatpush.bf16.msra.mxu0 %v4193
    %4248 = vmatpush.bf16.msra.mxu0 %v4189
    %4249 = vmatpush.bf16.msra.mxu0 %v4185
    %4250 = vmatpush.bf16.msra.mxu0 %v4181
    %4251 = vmatpush.bf16.msra.mxu0 %v4177
    %4252 = vmatpush.bf16.msra.mxu0 %v4173
    %4253 = vmatpush.bf16.msra.mxu0 %v4169
    %4254 = vmatmul.bf16.gmra.mxu0 %v4029
    %v4255 = vpop.f32.mrf.mxu0
    %v4256 = vadd.f32 %v4065, %v4255
    %v4257 = vpop.f32.mrf.mxu0
    %v4258 = vadd.f32 %v4065, %v4257
    %4259 = vdwg.mxu0
    %4260 = vmatpush.bf16.msra.mxu0 %v4198
    %4261 = vmatpush.bf16.msra.mxu0 %v4194
    %4262 = vmatpush.bf16.msra.mxu0 %v4190
    %4263 = vmatpush.bf16.msra.mxu0 %v4186
    %4264 = vmatpush.bf16.msra.mxu0 %v4182
    %4265 = vmatpush.bf16.msra.mxu0 %v4178
    %4266 = vmatpush.bf16.msra.mxu0 %v4174
    %4267 = vmatpush.bf16.msra.mxu0 %v4170
    %4268 = vmatmul.bf16.gmra.mxu0 %v4029
    %v4269 = vpop.f32.mrf.mxu0
    %v4270 = vadd.f32 %v4066, %v4269
    %v4271 = vpop.f32.mrf.mxu0
    %v4272 = vadd.f32 %v4066, %v4271
    %4273 = vdwg.mxu0
    %4274 = vmatpush.bf16.msra.mxu0 %v4199
    %4275 = vmatpush.bf16.msra.mxu0 %v4195
    %4276 = vmatpush.bf16.msra.mxu0 %v4191
    %4277 = vmatpush.bf16.msra.mxu0 %v4187
    %4278 = vmatpush.bf16.msra.mxu0 %v4183
    %4279 = vmatpush.bf16.msra.mxu0 %v4179
    %4280 = vmatpush.bf16.msra.mxu0 %v4175
    %4281 = vmatpush.bf16.msra.mxu0 %v4171
    %4282 = vmatmul.bf16.gmra.mxu0 %v4029
    %v4283 = vpop.f32.mrf.mxu0
    %v4284 = vadd.f32 %v4067, %v4283
    %v4285 = vpop.f32.mrf.mxu0
    %v4286 = vadd.f32 %v4067, %v4285
    %4287 = vdwg.mxu0
    %v4288 = vld [vmem:[#allocation18] sm:$0xff]
    %v4289 = vld [vmem:[#allocation18 + $0x8] sm:$0xff]
    %v4290 = vld [vmem:[#allocation18 + $0x10] sm:$0xff]
    %v4291 = vld [vmem:[#allocation18 + $0x18] sm:$0xff]
    %v4292 = vld [vmem:[#allocation18 + $0x20] sm:$0xff]
    %v4293 = vld [vmem:[#allocation18 + $0x28] sm:$0xff]
    %v4294 = vld [vmem:[#allocation18 + $0x30] sm:$0xff]
    %v4295 = vld [vmem:[#allocation18 + $0x38] sm:$0xff]
    %v4296 = vld [vmem:[#allocation18 + $0x40] sm:$0xff]
    %v4297 = vld [vmem:[#allocation18 + $0x48] sm:$0xff]
    %v4298 = vld [vmem:[#allocation18 + $0x50] sm:$0xff]
    %v4299 = vld [vmem:[#allocation18 + $0x58] sm:$0xff]
    %v4300 = vld [vmem:[#allocation18 + $0x60] sm:$0xff]
    %v4301 = vld [vmem:[#allocation18 + $0x68] sm:$0xff]
    %v4302 = vld [vmem:[#allocation18 + $0x70] sm:$0xff]
    %v4303 = vld [vmem:[#allocation18 + $0x78] sm:$0xff]
    %v4304 = vld [vmem:[#allocation18 + $0x80] sm:$0xff]
    %v4305 = vld [vmem:[#allocation18 + $0x88] sm:$0xff]
    %v4306 = vld [vmem:[#allocation18 + $0x90] sm:$0xff]
    %v4307 = vld [vmem:[#allocation18 + $0x98] sm:$0xff]
    %v4308 = vld [vmem:[#allocation18 + $0xa0] sm:$0xff]
    %v4309 = vld [vmem:[#allocation18 + $0xa8] sm:$0xff]
    %v4310 = vld [vmem:[#allocation18 + $0xb0] sm:$0xff]
    %v4311 = vld [vmem:[#allocation18 + $0xb8] sm:$0xff]
    %v4312 = vld [vmem:[#allocation18 + $0xc0] sm:$0xff]
    %v4313 = vld [vmem:[#allocation18 + $0xc8] sm:$0xff]
    %v4314 = vld [vmem:[#allocation18 + $0xd0] sm:$0xff]
    %v4315 = vld [vmem:[#allocation18 + $0xd8] sm:$0xff]
    %v4316 = vld [vmem:[#allocation18 + $0xe0] sm:$0xff]
    %v4317 = vld [vmem:[#allocation18 + $0xe8] sm:$0xff]
    %v4318 = vld [vmem:[#allocation18 + $0xf0] sm:$0xff]
    %v4319 = vld [vmem:[#allocation18 + $0xf8] sm:$0xff]
    %v4320 = vld [vmem:[#allocation19] sm:$0xff]
    %v4321 = vld [vmem:[#allocation19 + $0x8] sm:$0xff]
    %v4322 = vld [vmem:[#allocation19 + $0x10] sm:$0xff]
    %v4323 = vld [vmem:[#allocation19 + $0x18] sm:$0xff]
    %v4324 = vld [vmem:[#allocation19 + $0x20] sm:$0xff]
    %v4325 = vld [vmem:[#allocation19 + $0x28] sm:$0xff]
    %v4326 = vld [vmem:[#allocation19 + $0x30] sm:$0xff]
    %v4327 = vld [vmem:[#allocation19 + $0x38] sm:$0xff]
    %v4328 = vld [vmem:[#allocation19 + $0x40] sm:$0xff]
    %v4329 = vld [vmem:[#allocation19 + $0x48] sm:$0xff]
    %v4330 = vld [vmem:[#allocation19 + $0x50] sm:$0xff]
    %v4331 = vld [vmem:[#allocation19 + $0x58] sm:$0xff]
    %v4332 = vld [vmem:[#allocation19 + $0x60] sm:$0xff]
    %v4333 = vld [vmem:[#allocation19 + $0x68] sm:$0xff]
    %v4334 = vld [vmem:[#allocation19 + $0x70] sm:$0xff]
    %v4335 = vld [vmem:[#allocation19 + $0x78] sm:$0xff]
    %v4336 = vld [vmem:[#allocation19 + $0x80] sm:$0xff]
    %v4337 = vld [vmem:[#allocation19 + $0x88] sm:$0xff]
    %v4338 = vld [vmem:[#allocation19 + $0x90] sm:$0xff]
    %v4339 = vld [vmem:[#allocation19 + $0x98] sm:$0xff]
    %v4340 = vld [vmem:[#allocation19 + $0xa0] sm:$0xff]
    %v4341 = vld [vmem:[#allocation19 + $0xa8] sm:$0xff]
    %v4342 = vld [vmem:[#allocation19 + $0xb0] sm:$0xff]
    %v4343 = vld [vmem:[#allocation19 + $0xb8] sm:$0xff]
    %v4344 = vld [vmem:[#allocation19 + $0xc0] sm:$0xff]
    %v4345 = vld [vmem:[#allocation19 + $0xc8] sm:$0xff]
    %v4346 = vld [vmem:[#allocation19 + $0xd0] sm:$0xff]
    %v4347 = vld [vmem:[#allocation19 + $0xd8] sm:$0xff]
    %v4348 = vld [vmem:[#allocation19 + $0xe0] sm:$0xff]
    %v4349 = vld [vmem:[#allocation19 + $0xe8] sm:$0xff]
    %v4350 = vld [vmem:[#allocation19 + $0xf0] sm:$0xff]
    %v4351 = vld [vmem:[#allocation19 + $0xf8] sm:$0xff]
    %v4352 = vld [vmem:[#allocation19 + $0x100] sm:$0xff]
    %v4353 = vld [vmem:[#allocation19 + $0x108] sm:$0xff]
    %v4354 = vld [vmem:[#allocation19 + $0x110] sm:$0xff]
    %v4355 = vld [vmem:[#allocation19 + $0x118] sm:$0xff]
    %v4356 = vld [vmem:[#allocation19 + $0x120] sm:$0xff]
    %v4357 = vld [vmem:[#allocation19 + $0x128] sm:$0xff]
    %v4358 = vld [vmem:[#allocation19 + $0x130] sm:$0xff]
    %v4359 = vld [vmem:[#allocation19 + $0x138] sm:$0xff]
    %v4360 = vld [vmem:[#allocation19 + $0x140] sm:$0xff]
    %v4361 = vld [vmem:[#allocation19 + $0x148] sm:$0xff]
    %v4362 = vld [vmem:[#allocation19 + $0x150] sm:$0xff]
    %v4363 = vld [vmem:[#allocation19 + $0x158] sm:$0xff]
    %v4364 = vld [vmem:[#allocation19 + $0x160] sm:$0xff]
    %v4365 = vld [vmem:[#allocation19 + $0x168] sm:$0xff]
    %v4366 = vld [vmem:[#allocation19 + $0x170] sm:$0xff]
    %v4367 = vld [vmem:[#allocation19 + $0x178] sm:$0xff]
    %v4368 = vld [vmem:[#allocation19 + $0x180] sm:$0xff]
    %v4369 = vld [vmem:[#allocation19 + $0x188] sm:$0xff]
    %v4370 = vld [vmem:[#allocation19 + $0x190] sm:$0xff]
    %v4371 = vld [vmem:[#allocation19 + $0x198] sm:$0xff]
    %v4372 = vld [vmem:[#allocation19 + $0x1a0] sm:$0xff]
    %v4373 = vld [vmem:[#allocation19 + $0x1a8] sm:$0xff]
    %v4374 = vld [vmem:[#allocation19 + $0x1b0] sm:$0xff]
    %v4375 = vld [vmem:[#allocation19 + $0x1b8] sm:$0xff]
    %v4376 = vld [vmem:[#allocation19 + $0x1c0] sm:$0xff]
    %v4377 = vld [vmem:[#allocation19 + $0x1c8] sm:$0xff]
    %v4378 = vld [vmem:[#allocation19 + $0x1d0] sm:$0xff]
    %v4379 = vld [vmem:[#allocation19 + $0x1d8] sm:$0xff]
    %v4380 = vld [vmem:[#allocation19 + $0x1e0] sm:$0xff]
    %v4381 = vld [vmem:[#allocation19 + $0x1e8] sm:$0xff]
    %v4382 = vld [vmem:[#allocation19 + $0x1f0] sm:$0xff]
    %v4383 = vld [vmem:[#allocation19 + $0x1f8] sm:$0xff]
    %v4384 = vld [vmem:[#allocation21] sm:$0xf]
    %v4417 = vunpack.c.l.b16 %v4288
    %v4418 = vunpack.c.h.b16 %v4288
    %v4419 = vunpack.c.l.b16 %v4289
    %v4420 = vunpack.c.h.b16 %v4289
    %v4421 = vunpack.c.l.b16 %v4290
    %v4422 = vunpack.c.h.b16 %v4290
    %v4423 = vunpack.c.l.b16 %v4291
    %v4424 = vunpack.c.h.b16 %v4291
    %v4425 = vunpack.c.l.b16 %v4292
    %v4426 = vunpack.c.h.b16 %v4292
    %v4427 = vunpack.c.l.b16 %v4293
    %v4428 = vunpack.c.h.b16 %v4293
    %v4429 = vunpack.c.l.b16 %v4294
    %v4430 = vunpack.c.h.b16 %v4294
    %v4431 = vunpack.c.l.b16 %v4295
    %v4432 = vunpack.c.h.b16 %v4295
    %v4433 = vunpack.c.l.b16 %v4296
    %v4434 = vunpack.c.h.b16 %v4296
    %v4435 = vunpack.c.l.b16 %v4297
    %v4436 = vunpack.c.h.b16 %v4297
    %v4437 = vunpack.c.l.b16 %v4298
    %v4438 = vunpack.c.h.b16 %v4298
    %v4439 = vunpack.c.l.b16 %v4299
    %v4440 = vunpack.c.h.b16 %v4299
    %v4441 = vunpack.c.l.b16 %v4300
    %v4442 = vunpack.c.h.b16 %v4300
    %v4443 = vunpack.c.l.b16 %v4301
    %v4444 = vunpack.c.h.b16 %v4301
    %v4445 = vunpack.c.l.b16 %v4302
    %v4446 = vunpack.c.h.b16 %v4302
    %v4447 = vunpack.c.l.b16 %v4303
    %v4448 = vunpack.c.h.b16 %v4303
    %v4449 = vunpack.c.l.b16 %v4304
    %v4450 = vunpack.c.h.b16 %v4304
    %v4451 = vunpack.c.l.b16 %v4305
    %v4452 = vunpack.c.h.b16 %v4305
    %v4453 = vunpack.c.l.b16 %v4306
    %v4454 = vunpack.c.h.b16 %v4306
    %v4455 = vunpack.c.l.b16 %v4307
    %v4456 = vunpack.c.h.b16 %v4307
    %v4457 = vunpack.c.l.b16 %v4308
    %v4458 = vunpack.c.h.b16 %v4308
    %v4459 = vunpack.c.l.b16 %v4309
    %v4460 = vunpack.c.h.b16 %v4309
    %v4461 = vunpack.c.l.b16 %v4310
    %v4462 = vunpack.c.h.b16 %v4310
    %v4463 = vunpack.c.l.b16 %v4311
    %v4464 = vunpack.c.h.b16 %v4311
    %v4465 = vunpack.c.l.b16 %v4312
    %v4466 = vunpack.c.h.b16 %v4312
    %v4467 = vunpack.c.l.b16 %v4313
    %v4468 = vunpack.c.h.b16 %v4313
    %v4469 = vunpack.c.l.b16 %v4314
    %v4470 = vunpack.c.h.b16 %v4314
    %v4471 = vunpack.c.l.b16 %v4315
    %v4472 = vunpack.c.h.b16 %v4315
    %v4473 = vunpack.c.l.b16 %v4316
    %v4474 = vunpack.c.h.b16 %v4316
    %v4475 = vunpack.c.l.b16 %v4317
    %v4476 = vunpack.c.h.b16 %v4317
    %v4477 = vunpack.c.l.b16 %v4318
    %v4478 = vunpack.c.h.b16 %v4318
    %v4479 = vunpack.c.l.b16 %v4319
    %v4480 = vunpack.c.h.b16 %v4319
    %v4481 = vpack.c.b16 %v4421, %v4417
    %v4482 = vpack.c.b16 %v4422, %v4418
    %v4483 = vpack.c.b16 %v4423, %v4419
    %v4484 = vpack.c.b16 %v4424, %v4420
    %v4485 = vpack.c.b16 %v4429, %v4425
    %v4486 = vpack.c.b16 %v4430, %v4426
    %v4487 = vpack.c.b16 %v4431, %v4427
    %v4488 = vpack.c.b16 %v4432, %v4428
    %v4489 = vpack.c.b16 %v4437, %v4433
    %v4490 = vpack.c.b16 %v4438, %v4434
    %v4491 = vpack.c.b16 %v4439, %v4435
    %v4492 = vpack.c.b16 %v4440, %v4436
    %v4493 = vpack.c.b16 %v4445, %v4441
    %v4494 = vpack.c.b16 %v4446, %v4442
    %v4495 = vpack.c.b16 %v4447, %v4443
    %v4496 = vpack.c.b16 %v4448, %v4444
    %v4497 = vpack.c.b16 %v4453, %v4449
    %v4498 = vpack.c.b16 %v4454, %v4450
    %v4499 = vpack.c.b16 %v4455, %v4451
    %v4500 = vpack.c.b16 %v4456, %v4452
    %v4501 = vpack.c.b16 %v4461, %v4457
    %v4502 = vpack.c.b16 %v4462, %v4458
    %v4503 = vpack.c.b16 %v4463, %v4459
    %v4504 = vpack.c.b16 %v4464, %v4460
    %v4505 = vpack.c.b16 %v4469, %v4465
    %v4506 = vpack.c.b16 %v4470, %v4466
    %v4507 = vpack.c.b16 %v4471, %v4467
    %v4508 = vpack.c.b16 %v4472, %v4468
    %v4509 = vpack.c.b16 %v4477, %v4473
    %v4510 = vpack.c.b16 %v4478, %v4474
    %v4511 = vpack.c.b16 %v4479, %v4475
    %v4512 = vpack.c.b16 %v4480, %v4476
    %4545 = vmatpush.bf16.msra.mxu0 %v4509
    %4546 = vmatpush.bf16.msra.mxu0 %v4505
    %4547 = vmatpush.bf16.msra.mxu0 %v4501
    %4548 = vmatpush.bf16.msra.mxu0 %v4497
    %4549 = vmatpush.bf16.msra.mxu0 %v4493
    %4550 = vmatpush.bf16.msra.mxu0 %v4489
    %4551 = vmatpush.bf16.msra.mxu0 %v4485
    %4552 = vmatpush.bf16.msra.mxu0 %v4481
    %4553 = vmatmul.bf16.gmra.mxu0 0
    %v4554 = vpop.f32.mrf.mxu0
    %v4555 = vadd.f32 0.0, %v4554
    %v4556 = vpop.f32.mrf.mxu0
    %4557 = vdwg.mxu0
    %4558 = vmatpush.bf16.msra.mxu0 %v4510
    %4559 = vmatpush.bf16.msra.mxu0 %v4506
    %4560 = vmatpush.bf16.msra.mxu0 %v4502
    %4561 = vmatpush.bf16.msra.mxu0 %v4498
    %4562 = vmatpush.bf16.msra.mxu0 %v4494
    %4563 = vmatpush.bf16.msra.mxu0 %v4490
    %4564 = vmatpush.bf16.msra.mxu0 %v4486
    %4565 = vmatpush.bf16.msra.mxu0 %v4482
    %4566 = vmatmul.bf16.gmra.mxu0 0
    %v4567 = vpop.f32.mrf.mxu0
    %v4568 = vadd.f32 0.0, %v4567
    %v4569 = vpop.f32.mrf.mxu0
    %4570 = vdwg.mxu0
    %4571 = vmatpush.bf16.msra.mxu0 %v4511
    %4572 = vmatpush.bf16.msra.mxu0 %v4507
    %4573 = vmatpush.bf16.msra.mxu0 %v4503
    %4574 = vmatpush.bf16.msra.mxu0 %v4499
    %4575 = vmatpush.bf16.msra.mxu0 %v4495
    %4576 = vmatpush.bf16.msra.mxu0 %v4491
    %4577 = vmatpush.bf16.msra.mxu0 %v4487
    %4578 = vmatpush.bf16.msra.mxu0 %v4483
    %4579 = vmatmul.bf16.gmra.mxu0 0
    %v4580 = vpop.f32.mrf.mxu0
    %v4581 = vadd.f32 0.0, %v4580
    %v4582 = vpop.f32.mrf.mxu0
    %4583 = vdwg.mxu0
    %4584 = vmatpush.bf16.msra.mxu0 %v4512
    %4585 = vmatpush.bf16.msra.mxu0 %v4508
    %4586 = vmatpush.bf16.msra.mxu0 %v4504
    %4587 = vmatpush.bf16.msra.mxu0 %v4500
    %4588 = vmatpush.bf16.msra.mxu0 %v4496
    %4589 = vmatpush.bf16.msra.mxu0 %v4492
    %4590 = vmatpush.bf16.msra.mxu0 %v4488
    %4591 = vmatpush.bf16.msra.mxu0 %v4484
    %4592 = vmatmul.bf16.gmra.mxu0 0
    %v4593 = vpop.f32.mrf.mxu0
    %v4594 = vadd.f32 0.0, %v4593
    %v4595 = vpop.f32.mrf.mxu0
    %4596 = vdwg.mxu0
    %v4601 = vrot.slane %v4555, 1
    %v4602 = vrot.slane %v4568, 1
    %v4603 = vrot.slane %v4581, 1
    %v4604 = vrot.slane %v4594, 1
    %v4613 = vadd.f32 %v4242, %v4555
    %v4614 = vadd.f32 %v4256, %v4568
    %v4615 = vadd.f32 %v4270, %v4581
    %v4616 = vadd.f32 %v4284, %v4594
    %v4617 = vadd.f32 %v4244, %v4601
    %v4618 = vadd.f32 %v4258, %v4602
    %v4619 = vadd.f32 %v4272, %v4603
    %v4620 = vadd.f32 %v4286, %v4604
    %v4621 = vxor.u32 %v4613, 2147483648
    %v4622 = vxor.u32 %v4617, 2147483648
    %v4623 = vmul.f32 %v4621, 1.442695
    %v4624 = vpow.pop %v4623
    %v4625 = vmul.f32 %v4622, 1.442695
    %v4626 = vpow.pop %v4625
    %v4627 = vadd.f32 %v4624, 1.0
    %v4628 = vadd.f32 %v4626, 1.0
    %v4629 = vrcp.pop %v4627
    %v4630 = vmul.f32 %v4627, %v4629
    %v4631 = vsub.f32 1.0, %v4630
    %v4632 = vmul.f32 %v4629, %v4631
    %v4633 = vadd.f32 %v4629, %v4632
    %vm4634 = vweird.f32 %v4627
    %vm4635 = vweird.f32 %v4629
    %vm4636 = vmor %vm4634, %vm4635
    %v4637 = vsel %vm4636, %v4629, %v4633
    %v4638 = vand.u32 2147483647, %v4627
    %vm4639 = vcmp.eq.f32.partialorder %v4638, 8.507059e+37
    %v4640 = vand.u32 %v4627, 2147483648
    %v4641 = vor.u32 1.1754944e-38, %v4640
    %v4642 = vsel %vm4639, %v4641, %v4637
    %v4643 = vmul.f32 1.0, %v4642
    %v4644 = vrcp.pop %v4628
    %v4645 = vmul.f32 %v4628, %v4644
    %v4646 = vsub.f32 1.0, %v4645
    %v4647 = vmul.f32 %v4644, %v4646
    %v4648 = vadd.f32 %v4644, %v4647
    %vm4649 = vweird.f32 %v4628
    %vm4650 = vweird.f32 %v4644
    %vm4651 = vmor %vm4649, %vm4650
    %v4652 = vsel %vm4651, %v4644, %v4648
    %v4653 = vand.u32 2147483647, %v4628
    %vm4654 = vcmp.eq.f32.partialorder %v4653, 8.507059e+37
    %v4655 = vand.u32 %v4628, 2147483648
    %v4656 = vor.u32 1.1754944e-38, %v4655
    %v4657 = vsel %vm4654, %v4656, %v4652
    %v4658 = vmul.f32 1.0, %v4657
    %v4659 = vxor.u32 %v4614, 2147483648
    %v4660 = vxor.u32 %v4618, 2147483648
    %v4661 = vmul.f32 %v4659, 1.442695
    %v4662 = vpow.pop %v4661
    %v4663 = vmul.f32 %v4660, 1.442695
    %v4664 = vpow.pop %v4663
    %v4665 = vadd.f32 %v4662, 1.0
    %v4666 = vadd.f32 %v4664, 1.0
    %v4667 = vrcp.pop %v4665
    %v4668 = vmul.f32 %v4665, %v4667
    %v4669 = vsub.f32 1.0, %v4668
    %v4670 = vmul.f32 %v4667, %v4669
    %v4671 = vadd.f32 %v4667, %v4670
    %vm4672 = vweird.f32 %v4665
    %vm4673 = vweird.f32 %v4667
    %vm4674 = vmor %vm4672, %vm4673
    %v4675 = vsel %vm4674, %v4667, %v4671
    %v4676 = vand.u32 2147483647, %v4665
    %vm4677 = vcmp.eq.f32.partialorder %v4676, 8.507059e+37
    %v4678 = vand.u32 %v4665, 2147483648
    %v4679 = vor.u32 1.1754944e-38, %v4678
    %v4680 = vsel %vm4677, %v4679, %v4675
    %v4681 = vmul.f32 1.0, %v4680
    %v4682 = vrcp.pop %v4666
    %v4683 = vmul.f32 %v4666, %v4682
    %v4684 = vsub.f32 1.0, %v4683
    %v4685 = vmul.f32 %v4682, %v4684
    %v4686 = vadd.f32 %v4682, %v4685
    %vm4687 = vweird.f32 %v4666
    %vm4688 = vweird.f32 %v4682
    %vm4689 = vmor %vm4687, %vm4688
    %v4690 = vsel %vm4689, %v4682, %v4686
    %v4691 = vand.u32 2147483647, %v4666
    %vm4692 = vcmp.eq.f32.partialorder %v4691, 8.507059e+37
    %v4693 = vand.u32 %v4666, 2147483648
    %v4694 = vor.u32 1.1754944e-38, %v4693
    %v4695 = vsel %vm4692, %v4694, %v4690
    %v4696 = vmul.f32 1.0, %v4695
    %v4697 = vtanh.pop %v4615
    %v4698 = vtanh.pop %v4619
    %v4699 = vxor.u32 %v4616, 2147483648
    %v4700 = vxor.u32 %v4620, 2147483648
    %v4701 = vmul.f32 %v4699, 1.442695
    %v4702 = vpow.pop %v4701
    %v4703 = vmul.f32 %v4700, 1.442695
    %v4704 = vpow.pop %v4703
    %v4705 = vadd.f32 %v4702, 1.0
    %v4706 = vadd.f32 %v4704, 1.0
    %v4707 = vrcp.pop %v4705
    %v4708 = vmul.f32 %v4705, %v4707
    %v4709 = vsub.f32 1.0, %v4708
    %v4710 = vmul.f32 %v4707, %v4709
    %v4711 = vadd.f32 %v4707, %v4710
    %vm4712 = vweird.f32 %v4705
    %vm4713 = vweird.f32 %v4707
    %vm4714 = vmor %vm4712, %vm4713
    %v4715 = vsel %vm4714, %v4707, %v4711
    %v4716 = vand.u32 2147483647, %v4705
    %vm4717 = vcmp.eq.f32.partialorder %v4716, 8.507059e+37
    %v4718 = vand.u32 %v4705, 2147483648
    %v4719 = vor.u32 1.1754944e-38, %v4718
    %v4720 = vsel %vm4717, %v4719, %v4715
    %v4721 = vmul.f32 1.0, %v4720
    %v4722 = vrcp.pop %v4706
    %v4723 = vmul.f32 %v4706, %v4722
    %v4724 = vsub.f32 1.0, %v4723
    %v4725 = vmul.f32 %v4722, %v4724
    %v4726 = vadd.f32 %v4722, %v4725
    %vm4727 = vweird.f32 %v4706
    %vm4728 = vweird.f32 %v4722
    %vm4729 = vmor %vm4727, %vm4728
    %v4730 = vsel %vm4729, %v4722, %v4726
    %v4731 = vand.u32 2147483647, %v4706
    %vm4732 = vcmp.eq.f32.partialorder %v4731, 8.507059e+37
    %v4733 = vand.u32 %v4706, 2147483648
    %v4734 = vor.u32 1.1754944e-38, %v4733
    %v4735 = vsel %vm4732, %v4734, %v4730
    %v4736 = vmul.f32 1.0, %v4735
    %v4737 = vmul.f32 %v4681, 0.0
    %v4738 = vmul.f32 %v4696, 0.0
    %v4739 = vmul.f32 %v4643, %v4697
    %v4740 = vmul.f32 %v4658, %v4698
    %v4741 = vadd.f32 %v4737, %v4739
    %v4742 = vadd.f32 %v4738, %v4740
    %v4743 = vtanh.pop %v4741
    %v4744 = vtanh.pop %v4742
    %v4745 = vmul.f32 %v4721, %v4743
    %v4746 = vmul.f32 %v4736, %v4744
    %v4749 = vrot.slane %v4746, 7
    %vm4750 = vcmask 1041409
    %v4751 = vsel %vm4750, %v4749, %v4745
    %v4753 = vpack.c.bf16 %v4751, %v4751
    %v4754 = vpack.c.bf16 0.0, 0.0
    %v4756 = vperm.slane %v4384, 0
    %v4757 = vperm.slane %v4384, 1
    %v4758 = vperm.slane %v4384, 2
    %v4759 = vperm.slane %v4384, 3
    %v4828 = vunpack.c.l.b16 %v4320
    %v4829 = vunpack.c.h.b16 %v4320
    %v4830 = vunpack.c.l.b16 %v4321
    %v4831 = vunpack.c.h.b16 %v4321
    %v4832 = vunpack.c.l.b16 %v4322
    %v4833 = vunpack.c.h.b16 %v4322
    %v4834 = vunpack.c.l.b16 %v4323
    %v4835 = vunpack.c.h.b16 %v4323
    %v4836 = vunpack.c.l.b16 %v4324
    %v4837 = vunpack.c.h.b16 %v4324
    %v4838 = vunpack.c.l.b16 %v4325
    %v4839 = vunpack.c.h.b16 %v4325
    %v4840 = vunpack.c.l.b16 %v4326
    %v4841 = vunpack.c.h.b16 %v4326
    %v4842 = vunpack.c.l.b16 %v4327
    %v4843 = vunpack.c.h.b16 %v4327
    %v4844 = vunpack.c.l.b16 %v4328
    %v4845 = vunpack.c.h.b16 %v4328
    %v4846 = vunpack.c.l.b16 %v4329
    %v4847 = vunpack.c.h.b16 %v4329
    %v4848 = vunpack.c.l.b16 %v4330
    %v4849 = vunpack.c.h.b16 %v4330
    %v4850 = vunpack.c.l.b16 %v4331
    %v4851 = vunpack.c.h.b16 %v4331
    %v4852 = vunpack.c.l.b16 %v4332
    %v4853 = vunpack.c.h.b16 %v4332
    %v4854 = vunpack.c.l.b16 %v4333
    %v4855 = vunpack.c.h.b16 %v4333
    %v4856 = vunpack.c.l.b16 %v4334
    %v4857 = vunpack.c.h.b16 %v4334
    %v4858 = vunpack.c.l.b16 %v4335
    %v4859 = vunpack.c.h.b16 %v4335
    %v4860 = vunpack.c.l.b16 %v4336
    %v4861 = vunpack.c.h.b16 %v4336
    %v4862 = vunpack.c.l.b16 %v4337
    %v4863 = vunpack.c.h.b16 %v4337
    %v4864 = vunpack.c.l.b16 %v4338
    %v4865 = vunpack.c.h.b16 %v4338
    %v4866 = vunpack.c.l.b16 %v4339
    %v4867 = vunpack.c.h.b16 %v4339
    %v4868 = vunpack.c.l.b16 %v4340
    %v4869 = vunpack.c.h.b16 %v4340
    %v4870 = vunpack.c.l.b16 %v4341
    %v4871 = vunpack.c.h.b16 %v4341
    %v4872 = vunpack.c.l.b16 %v4342
    %v4873 = vunpack.c.h.b16 %v4342
    %v4874 = vunpack.c.l.b16 %v4343
    %v4875 = vunpack.c.h.b16 %v4343
    %v4876 = vunpack.c.l.b16 %v4344
    %v4877 = vunpack.c.h.b16 %v4344
    %v4878 = vunpack.c.l.b16 %v4345
    %v4879 = vunpack.c.h.b16 %v4345
    %v4880 = vunpack.c.l.b16 %v4346
    %v4881 = vunpack.c.h.b16 %v4346
    %v4882 = vunpack.c.l.b16 %v4347
    %v4883 = vunpack.c.h.b16 %v4347
    %v4884 = vunpack.c.l.b16 %v4348
    %v4885 = vunpack.c.h.b16 %v4348
    %v4886 = vunpack.c.l.b16 %v4349
    %v4887 = vunpack.c.h.b16 %v4349
    %v4888 = vunpack.c.l.b16 %v4350
    %v4889 = vunpack.c.h.b16 %v4350
    %v4890 = vunpack.c.l.b16 %v4351
    %v4891 = vunpack.c.h.b16 %v4351
    %v4892 = vunpack.c.l.b16 %v4352
    %v4893 = vunpack.c.h.b16 %v4352
    %v4894 = vunpack.c.l.b16 %v4353
    %v4895 = vunpack.c.h.b16 %v4353
    %v4896 = vunpack.c.l.b16 %v4354
    %v4897 = vunpack.c.h.b16 %v4354
    %v4898 = vunpack.c.l.b16 %v4355
    %v4899 = vunpack.c.h.b16 %v4355
    %v4900 = vunpack.c.l.b16 %v4356
    %v4901 = vunpack.c.h.b16 %v4356
    %v4902 = vunpack.c.l.b16 %v4357
    %v4903 = vunpack.c.h.b16 %v4357
    %v4904 = vunpack.c.l.b16 %v4358
    %v4905 = vunpack.c.h.b16 %v4358
    %v4906 = vunpack.c.l.b16 %v4359
    %v4907 = vunpack.c.h.b16 %v4359
    %v4908 = vunpack.c.l.b16 %v4360
    %v4909 = vunpack.c.h.b16 %v4360
    %v4910 = vunpack.c.l.b16 %v4361
    %v4911 = vunpack.c.h.b16 %v4361
    %v4912 = vunpack.c.l.b16 %v4362
    %v4913 = vunpack.c.h.b16 %v4362
    %v4914 = vunpack.c.l.b16 %v4363
    %v4915 = vunpack.c.h.b16 %v4363
    %v4916 = vunpack.c.l.b16 %v4364
    %v4917 = vunpack.c.h.b16 %v4364
    %v4918 = vunpack.c.l.b16 %v4365
    %v4919 = vunpack.c.h.b16 %v4365
    %v4920 = vunpack.c.l.b16 %v4366
    %v4921 = vunpack.c.h.b16 %v4366
    %v4922 = vunpack.c.l.b16 %v4367
    %v4923 = vunpack.c.h.b16 %v4367
    %v4924 = vunpack.c.l.b16 %v4368
    %v4925 = vunpack.c.h.b16 %v4368
    %v4926 = vunpack.c.l.b16 %v4369
    %v4927 = vunpack.c.h.b16 %v4369
    %v4928 = vunpack.c.l.b16 %v4370
    %v4929 = vunpack.c.h.b16 %v4370
    %v4930 = vunpack.c.l.b16 %v4371
    %v4931 = vunpack.c.h.b16 %v4371
    %v4932 = vunpack.c.l.b16 %v4372
    %v4933 = vunpack.c.h.b16 %v4372
    %v4934 = vunpack.c.l.b16 %v4373
    %v4935 = vunpack.c.h.b16 %v4373
    %v4936 = vunpack.c.l.b16 %v4374
    %v4937 = vunpack.c.h.b16 %v4374
    %v4938 = vunpack.c.l.b16 %v4375
    %v4939 = vunpack.c.h.b16 %v4375
    %v4940 = vunpack.c.l.b16 %v4376
    %v4941 = vunpack.c.h.b16 %v4376
    %v4942 = vunpack.c.l.b16 %v4377
    %v4943 = vunpack.c.h.b16 %v4377
    %v4944 = vunpack.c.l.b16 %v4378
    %v4945 = vunpack.c.h.b16 %v4378
    %v4946 = vunpack.c.l.b16 %v4379
    %v4947 = vunpack.c.h.b16 %v4379
    %v4948 = vunpack.c.l.b16 %v4380
    %v4949 = vunpack.c.h.b16 %v4380
    %v4950 = vunpack.c.l.b16 %v4381
    %v4951 = vunpack.c.h.b16 %v4381
    %v4952 = vunpack.c.l.b16 %v4382
    %v4953 = vunpack.c.h.b16 %v4382
    %v4954 = vunpack.c.l.b16 %v4383
    %v4955 = vunpack.c.h.b16 %v4383
    %v4956 = vpack.c.b16 %v4832, %v4828
    %v4957 = vpack.c.b16 %v4833, %v4829
    %v4958 = vpack.c.b16 %v4834, %v4830
    %v4959 = vpack.c.b16 %v4835, %v4831
    %v4960 = vpack.c.b16 %v4840, %v4836
    %v4961 = vpack.c.b16 %v4841, %v4837
    %v4962 = vpack.c.b16 %v4842, %v4838
    %v4963 = vpack.c.b16 %v4843, %v4839
    %v4964 = vpack.c.b16 %v4848, %v4844
    %v4965 = vpack.c.b16 %v4849, %v4845
    %v4966 = vpack.c.b16 %v4850, %v4846
    %v4967 = vpack.c.b16 %v4851, %v4847
    %v4968 = vpack.c.b16 %v4856, %v4852
    %v4969 = vpack.c.b16 %v4857, %v4853
    %v4970 = vpack.c.b16 %v4858, %v4854
    %v4971 = vpack.c.b16 %v4859, %v4855
    %v4972 = vpack.c.b16 %v4864, %v4860
    %v4973 = vpack.c.b16 %v4865, %v4861
    %v4974 = vpack.c.b16 %v4866, %v4862
    %v4975 = vpack.c.b16 %v4867, %v4863
    %v4976 = vpack.c.b16 %v4872, %v4868
    %v4977 = vpack.c.b16 %v4873, %v4869
    %v4978 = vpack.c.b16 %v4874, %v4870
    %v4979 = vpack.c.b16 %v4875, %v4871
    %v4980 = vpack.c.b16 %v4880, %v4876
    %v4981 = vpack.c.b16 %v4881, %v4877
    %v4982 = vpack.c.b16 %v4882, %v4878
    %v4983 = vpack.c.b16 %v4883, %v4879
    %v4984 = vpack.c.b16 %v4888, %v4884
    %v4985 = vpack.c.b16 %v4889, %v4885
    %v4986 = vpack.c.b16 %v4890, %v4886
    %v4987 = vpack.c.b16 %v4891, %v4887
    %v4988 = vpack.c.b16 %v4896, %v4892
    %v4989 = vpack.c.b16 %v4897, %v4893
    %v4990 = vpack.c.b16 %v4898, %v4894
    %v4991 = vpack.c.b16 %v4899, %v4895
    %v4992 = vpack.c.b16 %v4904, %v4900
    %v4993 = vpack.c.b16 %v4905, %v4901
    %v4994 = vpack.c.b16 %v4906, %v4902
    %v4995 = vpack.c.b16 %v4907, %v4903
    %v4996 = vpack.c.b16 %v4912, %v4908
    %v4997 = vpack.c.b16 %v4913, %v4909
    %v4998 = vpack.c.b16 %v4914, %v4910
    %v4999 = vpack.c.b16 %v4915, %v4911
    %v5000 = vpack.c.b16 %v4920, %v4916
    %v5001 = vpack.c.b16 %v4921, %v4917
    %v5002 = vpack.c.b16 %v4922, %v4918
    %v5003 = vpack.c.b16 %v4923, %v4919
    %v5004 = vpack.c.b16 %v4928, %v4924
    %v5005 = vpack.c.b16 %v4929, %v4925
    %v5006 = vpack.c.b16 %v4930, %v4926
    %v5007 = vpack.c.b16 %v4931, %v4927
    %v5008 = vpack.c.b16 %v4936, %v4932
    %v5009 = vpack.c.b16 %v4937, %v4933
    %v5010 = vpack.c.b16 %v4938, %v4934
    %v5011 = vpack.c.b16 %v4939, %v4935
    %v5012 = vpack.c.b16 %v4944, %v4940
    %v5013 = vpack.c.b16 %v4945, %v4941
    %v5014 = vpack.c.b16 %v4946, %v4942
    %v5015 = vpack.c.b16 %v4947, %v4943
    %v5016 = vpack.c.b16 %v4952, %v4948
    %v5017 = vpack.c.b16 %v4953, %v4949
    %v5018 = vpack.c.b16 %v4954, %v4950
    %v5019 = vpack.c.b16 %v4955, %v4951
    %5084 = vmatpush.bf16.msra.mxu0 %v4984
    %5085 = vmatpush.bf16.msra.mxu0 %v4980
    %5086 = vmatpush.bf16.msra.mxu0 %v4976
    %5087 = vmatpush.bf16.msra.mxu0 %v4972
    %5088 = vmatpush.bf16.msra.mxu0 %v4968
    %5089 = vmatpush.bf16.msra.mxu0 %v4964
    %5090 = vmatpush.bf16.msra.mxu0 %v4960
    %5091 = vmatpush.bf16.msra.mxu0 %v4956
    %5092 = vmatmul.bf16.gmra.mxu0 %v4753
    %v5093 = vpop.f32.mrf.mxu0
    %v5094 = vadd.f32 %v4756, %v5093
    %v5095 = vpop.f32.mrf.mxu0
    %5096 = vdwg.mxu0
    %5097 = vmatpush.bf16.msra.mxu0 %v5016
    %5098 = vmatpush.bf16.msra.mxu0 %v5012
    %5099 = vmatpush.bf16.msra.mxu0 %v5008
    %5100 = vmatpush.bf16.msra.mxu0 %v5004
    %5101 = vmatpush.bf16.msra.mxu0 %v5000
    %5102 = vmatpush.bf16.msra.mxu0 %v4996
    %5103 = vmatpush.bf16.msra.mxu0 %v4992
    %5104 = vmatpush.bf16.msra.mxu0 %v4988
    %5105 = vmatmul.bf16.gmra.mxu0 %v4754
    %v5106 = vpop.f32.mrf.mxu0
    %v5107 = vadd.f32 %v5094, %v5106
    %v5108 = vpop.f32.mrf.mxu0
    %5109 = vdwg.mxu0
    %5110 = vmatpush.bf16.msra.mxu0 %v4985
    %5111 = vmatpush.bf16.msra.mxu0 %v4981
    %5112 = vmatpush.bf16.msra.mxu0 %v4977
    %5113 = vmatpush.bf16.msra.mxu0 %v4973
    %5114 = vmatpush.bf16.msra.mxu0 %v4969
    %5115 = vmatpush.bf16.msra.mxu0 %v4965
    %5116 = vmatpush.bf16.msra.mxu0 %v4961
    %5117 = vmatpush.bf16.msra.mxu0 %v4957
    %5118 = vmatmul.bf16.gmra.mxu0 %v4753
    %v5119 = vpop.f32.mrf.mxu0
    %v5120 = vadd.f32 %v4757, %v5119
    %v5121 = vpop.f32.mrf.mxu0
    %5122 = vdwg.mxu0
    %5123 = vmatpush.bf16.msra.mxu0 %v5017
    %5124 = vmatpush.bf16.msra.mxu0 %v5013
    %5125 = vmatpush.bf16.msra.mxu0 %v5009
    %5126 = vmatpush.bf16.msra.mxu0 %v5005
    %5127 = vmatpush.bf16.msra.mxu0 %v5001
    %5128 = vmatpush.bf16.msra.mxu0 %v4997
    %5129 = vmatpush.bf16.msra.mxu0 %v4993
    %5130 = vmatpush.bf16.msra.mxu0 %v4989
    %5131 = vmatmul.bf16.gmra.mxu0 %v4754
    %v5132 = vpop.f32.mrf.mxu0
    %v5133 = vadd.f32 %v5120, %v5132
    %v5134 = vpop.f32.mrf.mxu0
    %5135 = vdwg.mxu0
    %5136 = vmatpush.bf16.msra.mxu0 %v4986
    %5137 = vmatpush.bf16.msra.mxu0 %v4982
    %5138 = vmatpush.bf16.msra.mxu0 %v4978
    %5139 = vmatpush.bf16.msra.mxu0 %v4974
    %5140 = vmatpush.bf16.msra.mxu0 %v4970
    %5141 = vmatpush.bf16.msra.mxu0 %v4966
    %5142 = vmatpush.bf16.msra.mxu0 %v4962
    %5143 = vmatpush.bf16.msra.mxu0 %v4958
    %5144 = vmatmul.bf16.gmra.mxu0 %v4753
    %v5145 = vpop.f32.mrf.mxu0
    %v5146 = vadd.f32 %v4758, %v5145
    %v5147 = vpop.f32.mrf.mxu0
    %5148 = vdwg.mxu0
    %5149 = vmatpush.bf16.msra.mxu0 %v5018
    %5150 = vmatpush.bf16.msra.mxu0 %v5014
    %5151 = vmatpush.bf16.msra.mxu0 %v5010
    %5152 = vmatpush.bf16.msra.mxu0 %v5006
    %5153 = vmatpush.bf16.msra.mxu0 %v5002
    %5154 = vmatpush.bf16.msra.mxu0 %v4998
    %5155 = vmatpush.bf16.msra.mxu0 %v4994
    %5156 = vmatpush.bf16.msra.mxu0 %v4990
    %5157 = vmatmul.bf16.gmra.mxu0 %v4754
    %v5158 = vpop.f32.mrf.mxu0
    %v5159 = vadd.f32 %v5146, %v5158
    %v5160 = vpop.f32.mrf.mxu0
    %5161 = vdwg.mxu0
    %5162 = vmatpush.bf16.msra.mxu0 %v4987
    %5163 = vmatpush.bf16.msra.mxu0 %v4983
    %5164 = vmatpush.bf16.msra.mxu0 %v4979
    %5165 = vmatpush.bf16.msra.mxu0 %v4975
    %5166 = vmatpush.bf16.msra.mxu0 %v4971
    %5167 = vmatpush.bf16.msra.mxu0 %v4967
    %5168 = vmatpush.bf16.msra.mxu0 %v4963
    %5169 = vmatpush.bf16.msra.mxu0 %v4959
    %5170 = vmatmul.bf16.gmra.mxu0 %v4753
    %v5171 = vpop.f32.mrf.mxu0
    %v5172 = vadd.f32 %v4759, %v5171
    %v5173 = vpop.f32.mrf.mxu0
    %5174 = vdwg.mxu0
    %5175 = vmatpush.bf16.msra.mxu0 %v5019
    %5176 = vmatpush.bf16.msra.mxu0 %v5015
    %5177 = vmatpush.bf16.msra.mxu0 %v5011
    %5178 = vmatpush.bf16.msra.mxu0 %v5007
    %5179 = vmatpush.bf16.msra.mxu0 %v5003
    %5180 = vmatpush.bf16.msra.mxu0 %v4999
    %5181 = vmatpush.bf16.msra.mxu0 %v4995
    %5182 = vmatpush.bf16.msra.mxu0 %v4991
    %5183 = vmatmul.bf16.gmra.mxu0 %v4754
    %v5184 = vpop.f32.mrf.mxu0
    %v5185 = vadd.f32 %v5172, %v5184
    %v5186 = vpop.f32.mrf.mxu0
    %5187 = vdwg.mxu0
    %v5188 = vxor.u32 %v5107, 2147483648
    %v5189 = vmul.f32 %v5188, 1.442695
    %v5190 = vpow.pop %v5189
    %v5191 = vadd.f32 %v5190, 1.0
    %v5192 = vrcp.pop %v5191
    %v5193 = vmul.f32 %v5191, %v5192
    %v5194 = vsub.f32 1.0, %v5193
    %v5195 = vmul.f32 %v5192, %v5194
    %v5196 = vadd.f32 %v5192, %v5195
    %vm5197 = vweird.f32 %v5191
    %vm5198 = vweird.f32 %v5192
    %vm5199 = vmor %vm5197, %vm5198
    %v5200 = vsel %vm5199, %v5192, %v5196
    %v5201 = vand.u32 2147483647, %v5191
    %vm5202 = vcmp.eq.f32.partialorder %v5201, 8.507059e+37
    %v5203 = vand.u32 %v5191, 2147483648
    %v5204 = vor.u32 1.1754944e-38, %v5203
    %v5205 = vsel %vm5202, %v5204, %v5200
    %v5206 = vmul.f32 1.0, %v5205
    %v5207 = vxor.u32 %v5133, 2147483648
    %v5208 = vmul.f32 %v5207, 1.442695
    %v5209 = vpow.pop %v5208
    %v5210 = vadd.f32 %v5209, 1.0
    %v5211 = vrcp.pop %v5210
    %v5212 = vmul.f32 %v5210, %v5211
    %v5213 = vsub.f32 1.0, %v5212
    %v5214 = vmul.f32 %v5211, %v5213
    %v5215 = vadd.f32 %v5211, %v5214
    %vm5216 = vweird.f32 %v5210
    %vm5217 = vweird.f32 %v5211
    %vm5218 = vmor %vm5216, %vm5217
    %v5219 = vsel %vm5218, %v5211, %v5215
    %v5220 = vand.u32 2147483647, %v5210
    %vm5221 = vcmp.eq.f32.partialorder %v5220, 8.507059e+37
    %v5222 = vand.u32 %v5210, 2147483648
    %v5223 = vor.u32 1.1754944e-38, %v5222
    %v5224 = vsel %vm5221, %v5223, %v5219
    %v5225 = vmul.f32 1.0, %v5224
    %v5226 = vtanh.pop %v5159
    %v5227 = vxor.u32 %v5185, 2147483648
    %v5228 = vmul.f32 %v5227, 1.442695
    %v5229 = vpow.pop %v5228
    %v5230 = vadd.f32 %v5229, 1.0
    %v5231 = vrcp.pop %v5230
    %v5232 = vmul.f32 %v5230, %v5231
    %v5233 = vsub.f32 1.0, %v5232
    %v5234 = vmul.f32 %v5231, %v5233
    %v5235 = vadd.f32 %v5231, %v5234
    %vm5236 = vweird.f32 %v5230
    %vm5237 = vweird.f32 %v5231
    %vm5238 = vmor %vm5236, %vm5237
    %v5239 = vsel %vm5238, %v5231, %v5235
    %v5240 = vand.u32 2147483647, %v5230
    %vm5241 = vcmp.eq.f32.partialorder %v5240, 8.507059e+37
    %v5242 = vand.u32 %v5230, 2147483648
    %v5243 = vor.u32 1.1754944e-38, %v5242
    %v5244 = vsel %vm5241, %v5243, %v5239
    %v5245 = vmul.f32 1.0, %v5244
    %v5246 = vmul.f32 %v5225, 0.0
    %v5247 = vmul.f32 %v5206, %v5226
    %v5248 = vadd.f32 %v5246, %v5247
    %v5249 = vtanh.pop %v5248
    %v5250 = vmul.f32 %v5245, %v5249
    %v5251 = vpack.c.bf16 %v4745, %v4745
    %v5252 = vpack.c.bf16 %v4746, %v4746
    %v5255 = vunpack.c.l.b16 %v5251
    %v5256 = vunpack.c.l.b16 %v5252
    %v5257 = vrot.slane %v5256, 7
    %v5258 = vsel %vm4750, %v5257, %v5255
    %v5259 = vpack.c.b16 %v5258, %v5258
    %5261 = vmatpush.bf16.msra.mxu0 %v4509
    %5262 = vmatpush.bf16.msra.mxu0 %v4505
    %5263 = vmatpush.bf16.msra.mxu0 %v4501
    %5264 = vmatpush.bf16.msra.mxu0 %v4497
    %5265 = vmatpush.bf16.msra.mxu0 %v4493
    %5266 = vmatpush.bf16.msra.mxu0 %v4489
    %5267 = vmatpush.bf16.msra.mxu0 %v4485
    %5268 = vmatpush.bf16.msra.mxu0 %v4481
    %5269 = vmatmul.bf16.gmra.mxu0 %v5259
    %v5270 = vpop.f32.mrf.mxu0
    %v5271 = vadd.f32 0.0, %v5270
    %v5272 = vpop.f32.mrf.mxu0
    %5273 = vdwg.mxu0
    %5274 = vmatpush.bf16.msra.mxu0 %v4510
    %5275 = vmatpush.bf16.msra.mxu0 %v4506
    %5276 = vmatpush.bf16.msra.mxu0 %v4502
    %5277 = vmatpush.bf16.msra.mxu0 %v4498
    %5278 = vmatpush.bf16.msra.mxu0 %v4494
    %5279 = vmatpush.bf16.msra.mxu0 %v4490
    %5280 = vmatpush.bf16.msra.mxu0 %v4486
    %5281 = vmatpush.bf16.msra.mxu0 %v4482
    %5282 = vmatmul.bf16.gmra.mxu0 %v5259
    %v5283 = vpop.f32.mrf.mxu0
    %v5284 = vadd.f32 0.0, %v5283
    %v5285 = vpop.f32.mrf.mxu0
    %5286 = vdwg.mxu0
    %5287 = vmatpush.bf16.msra.mxu0 %v4511
    %5288 = vmatpush.bf16.msra.mxu0 %v4507
    %5289 = vmatpush.bf16.msra.mxu0 %v4503
    %5290 = vmatpush.bf16.msra.mxu0 %v4499
    %5291 = vmatpush.bf16.msra.mxu0 %v4495
    %5292 = vmatpush.bf16.msra.mxu0 %v4491
    %5293 = vmatpush.bf16.msra.mxu0 %v4487
    %5294 = vmatpush.bf16.msra.mxu0 %v4483
    %5295 = vmatmul.bf16.gmra.mxu0 %v5259
    %v5296 = vpop.f32.mrf.mxu0
    %v5297 = vadd.f32 0.0, %v5296
    %v5298 = vpop.f32.mrf.mxu0
    %5299 = vdwg.mxu0
    %5300 = vmatpush.bf16.msra.mxu0 %v4512
    %5301 = vmatpush.bf16.msra.mxu0 %v4508
    %5302 = vmatpush.bf16.msra.mxu0 %v4504
    %5303 = vmatpush.bf16.msra.mxu0 %v4500
    %5304 = vmatpush.bf16.msra.mxu0 %v4496
    %5305 = vmatpush.bf16.msra.mxu0 %v4492
    %5306 = vmatpush.bf16.msra.mxu0 %v4488
    %5307 = vmatpush.bf16.msra.mxu0 %v4484
    %5308 = vmatmul.bf16.gmra.mxu0 %v5259
    %v5309 = vpop.f32.mrf.mxu0
    %v5310 = vadd.f32 0.0, %v5309
    %v5311 = vpop.f32.mrf.mxu0
    %5312 = vdwg.mxu0
    %v5317 = vrot.slane %v5271, 7
    %v5318 = vrot.slane %v5284, 7
    %v5319 = vrot.slane %v5297, 7
    %v5320 = vrot.slane %v5310, 7
    %v5329 = vadd.f32 %v4242, %v5317
    %v5330 = vadd.f32 %v4256, %v5318
    %v5331 = vadd.f32 %v4270, %v5319
    %v5332 = vadd.f32 %v4284, %v5320
    %v5333 = vadd.f32 %v4244, %v5271
    %v5334 = vadd.f32 %v4258, %v5284
    %v5335 = vadd.f32 %v4272, %v5297
    %v5336 = vadd.f32 %v4286, %v5310
    %v5337 = vxor.u32 %v5329, 2147483648
    %v5338 = vxor.u32 %v5333, 2147483648
    %v5339 = vmul.f32 %v5337, 1.442695
    %v5340 = vpow.pop %v5339
    %v5341 = vmul.f32 %v5338, 1.442695
    %v5342 = vpow.pop %v5341
    %v5343 = vadd.f32 %v5340, 1.0
    %v5344 = vadd.f32 %v5342, 1.0
    %v5345 = vrcp.pop %v5343
    %v5346 = vmul.f32 %v5343, %v5345
    %v5347 = vsub.f32 1.0, %v5346
    %v5348 = vmul.f32 %v5345, %v5347
    %v5349 = vadd.f32 %v5345, %v5348
    %vm5350 = vweird.f32 %v5343
    %vm5351 = vweird.f32 %v5345
    %vm5352 = vmor %vm5350, %vm5351
    %v5353 = vsel %vm5352, %v5345, %v5349
    %v5354 = vand.u32 2147483647, %v5343
    %vm5355 = vcmp.eq.f32.partialorder %v5354, 8.507059e+37
    %v5356 = vand.u32 %v5343, 2147483648
    %v5357 = vor.u32 1.1754944e-38, %v5356
    %v5358 = vsel %vm5355, %v5357, %v5353
    %v5359 = vmul.f32 1.0, %v5358
    %v5360 = vrcp.pop %v5344
    %v5361 = vmul.f32 %v5344, %v5360
    %v5362 = vsub.f32 1.0, %v5361
    %v5363 = vmul.f32 %v5360, %v5362
    %v5364 = vadd.f32 %v5360, %v5363
    %vm5365 = vweird.f32 %v5344
    %vm5366 = vweird.f32 %v5360
    %vm5367 = vmor %vm5365, %vm5366
    %v5368 = vsel %vm5367, %v5360, %v5364
    %v5369 = vand.u32 2147483647, %v5344
    %vm5370 = vcmp.eq.f32.partialorder %v5369, 8.507059e+37
    %v5371 = vand.u32 %v5344, 2147483648
    %v5372 = vor.u32 1.1754944e-38, %v5371
    %v5373 = vsel %vm5370, %v5372, %v5368
    %v5374 = vmul.f32 1.0, %v5373
    %v5375 = vxor.u32 %v5330, 2147483648
    %v5376 = vxor.u32 %v5334, 2147483648
    %v5377 = vmul.f32 %v5375, 1.442695
    %v5378 = vpow.pop %v5377
    %v5379 = vmul.f32 %v5376, 1.442695
    %v5380 = vpow.pop %v5379
    %v5381 = vadd.f32 %v5378, 1.0
    %v5382 = vadd.f32 %v5380, 1.0
    %v5383 = vrcp.pop %v5381
    %v5384 = vmul.f32 %v5381, %v5383
    %v5385 = vsub.f32 1.0, %v5384
    %v5386 = vmul.f32 %v5383, %v5385
    %v5387 = vadd.f32 %v5383, %v5386
    %vm5388 = vweird.f32 %v5381
    %vm5389 = vweird.f32 %v5383
    %vm5390 = vmor %vm5388, %vm5389
    %v5391 = vsel %vm5390, %v5383, %v5387
    %v5392 = vand.u32 2147483647, %v5381
    %vm5393 = vcmp.eq.f32.partialorder %v5392, 8.507059e+37
    %v5394 = vand.u32 %v5381, 2147483648
    %v5395 = vor.u32 1.1754944e-38, %v5394
    %v5396 = vsel %vm5393, %v5395, %v5391
    %v5397 = vmul.f32 1.0, %v5396
    %v5398 = vrcp.pop %v5382
    %v5399 = vmul.f32 %v5382, %v5398
    %v5400 = vsub.f32 1.0, %v5399
    %v5401 = vmul.f32 %v5398, %v5400
    %v5402 = vadd.f32 %v5398, %v5401
    %vm5403 = vweird.f32 %v5382
    %vm5404 = vweird.f32 %v5398
    %vm5405 = vmor %vm5403, %vm5404
    %v5406 = vsel %vm5405, %v5398, %v5402
    %v5407 = vand.u32 2147483647, %v5382
    %vm5408 = vcmp.eq.f32.partialorder %v5407, 8.507059e+37
    %v5409 = vand.u32 %v5382, 2147483648
    %v5410 = vor.u32 1.1754944e-38, %v5409
    %v5411 = vsel %vm5408, %v5410, %v5406
    %v5412 = vmul.f32 1.0, %v5411
    %v5413 = vtanh.pop %v5331
    %v5414 = vtanh.pop %v5335
    %v5415 = vxor.u32 %v5332, 2147483648
    %v5416 = vxor.u32 %v5336, 2147483648
    %v5417 = vmul.f32 %v5415, 1.442695
    %v5418 = vpow.pop %v5417
    %v5419 = vmul.f32 %v5416, 1.442695
    %v5420 = vpow.pop %v5419
    %v5421 = vadd.f32 %v5418, 1.0
    %v5422 = vadd.f32 %v5420, 1.0
    %v5423 = vrcp.pop %v5421
    %v5424 = vmul.f32 %v5421, %v5423
    %v5425 = vsub.f32 1.0, %v5424
    %v5426 = vmul.f32 %v5423, %v5425
    %v5427 = vadd.f32 %v5423, %v5426
    %vm5428 = vweird.f32 %v5421
    %vm5429 = vweird.f32 %v5423
    %vm5430 = vmor %vm5428, %vm5429
    %v5431 = vsel %vm5430, %v5423, %v5427
    %v5432 = vand.u32 2147483647, %v5421
    %vm5433 = vcmp.eq.f32.partialorder %v5432, 8.507059e+37
    %v5434 = vand.u32 %v5421, 2147483648
    %v5435 = vor.u32 1.1754944e-38, %v5434
    %v5436 = vsel %vm5433, %v5435, %v5431
    %v5437 = vmul.f32 1.0, %v5436
    %v5438 = vrcp.pop %v5422
    %v5439 = vmul.f32 %v5422, %v5438
    %v5440 = vsub.f32 1.0, %v5439
    %v5441 = vmul.f32 %v5438, %v5440
    %v5442 = vadd.f32 %v5438, %v5441
    %vm5443 = vweird.f32 %v5422
    %vm5444 = vweird.f32 %v5438
    %vm5445 = vmor %vm5443, %vm5444
    %v5446 = vsel %vm5445, %v5438, %v5442
    %v5447 = vand.u32 2147483647, %v5422
    %vm5448 = vcmp.eq.f32.partialorder %v5447, 8.507059e+37
    %v5449 = vand.u32 %v5422, 2147483648
    %v5450 = vor.u32 1.1754944e-38, %v5449
    %v5451 = vsel %vm5448, %v5450, %v5446
    %v5452 = vmul.f32 1.0, %v5451
    %v5455 = vrot.slane %v4741, 7
    %v5456 = vrot.slane %v4742, 7
    %v5459 = vmul.f32 %v5397, %v5455
    %v5460 = vmul.f32 %v5412, %v5456
    %v5461 = vmul.f32 %v5359, %v5413
    %v5462 = vmul.f32 %v5374, %v5414
    %v5463 = vadd.f32 %v5459, %v5461
    %v5464 = vadd.f32 %v5460, %v5462
    %v5465 = vtanh.pop %v5463
    %v5466 = vtanh.pop %v5464
    %v5467 = vmul.f32 %v5437, %v5465
    %v5468 = vmul.f32 %v5452, %v5466
    %v5471 = vrot.slane %v5468, 7
    %vm5472 = vcmask 1042434
    %v5473 = vsel %vm5472, %v5471, %v5467
    %v5476 = vrot.slane %v5250, 7
    %v5478 = vpack.c.bf16 %v5473, %v5473
    %v5479 = vpack.c.bf16 %v5476, %v5476
    %v5481 = vshrl.u32 %v5478, 16
    %v5483 = vshll.u32 %v5478, 16
    %v5485 = vrot.slane %v5483, 1
    %v5486 = vor.u32 %v5481, %v5485
    %v5488 = vshrl.u32 %v5479, 16
    %v5490 = vshll.u32 %v5479, 16
    %v5492 = vrot.slane %v5490, 1
    %v5493 = vor.u32 %v5488, %v5492
    %5496 = vmatpush.bf16.msra.mxu0 %v4984
    %5497 = vmatpush.bf16.msra.mxu0 %v4980
    %5498 = vmatpush.bf16.msra.mxu0 %v4976
    %5499 = vmatpush.bf16.msra.mxu0 %v4972
    %5500 = vmatpush.bf16.msra.mxu0 %v4968
    %5501 = vmatpush.bf16.msra.mxu0 %v4964
    %5502 = vmatpush.bf16.msra.mxu0 %v4960
    %5503 = vmatpush.bf16.msra.mxu0 %v4956
    %5504 = vmatmul.bf16.gmra.mxu0 %v5486
    %v5505 = vpop.f32.mrf.mxu0
    %v5506 = vadd.f32 %v4756, %v5505
    %v5507 = vpop.f32.mrf.mxu0
    %5508 = vdwg.mxu0
    %5509 = vmatpush.bf16.msra.mxu0 %v5016
    %5510 = vmatpush.bf16.msra.mxu0 %v5012
    %5511 = vmatpush.bf16.msra.mxu0 %v5008
    %5512 = vmatpush.bf16.msra.mxu0 %v5004
    %5513 = vmatpush.bf16.msra.mxu0 %v5000
    %5514 = vmatpush.bf16.msra.mxu0 %v4996
    %5515 = vmatpush.bf16.msra.mxu0 %v4992
    %5516 = vmatpush.bf16.msra.mxu0 %v4988
    %5517 = vmatmul.bf16.gmra.mxu0 %v5493
    %v5518 = vpop.f32.mrf.mxu0
    %v5519 = vadd.f32 %v5506, %v5518
    %v5520 = vpop.f32.mrf.mxu0
    %5521 = vdwg.mxu0
    %5522 = vmatpush.bf16.msra.mxu0 %v4985
    %5523 = vmatpush.bf16.msra.mxu0 %v4981
    %5524 = vmatpush.bf16.msra.mxu0 %v4977
    %5525 = vmatpush.bf16.msra.mxu0 %v4973
    %5526 = vmatpush.bf16.msra.mxu0 %v4969
    %5527 = vmatpush.bf16.msra.mxu0 %v4965
    %5528 = vmatpush.bf16.msra.mxu0 %v4961
    %5529 = vmatpush.bf16.msra.mxu0 %v4957
    %5530 = vmatmul.bf16.gmra.mxu0 %v5486
    %v5531 = vpop.f32.mrf.mxu0
    %v5532 = vadd.f32 %v4757, %v5531
    %v5533 = vpop.f32.mrf.mxu0
    %5534 = vdwg.mxu0
    %5535 = vmatpush.bf16.msra.mxu0 %v5017
    %5536 = vmatpush.bf16.msra.mxu0 %v5013
    %5537 = vmatpush.bf16.msra.mxu0 %v5009
    %5538 = vmatpush.bf16.msra.mxu0 %v5005
    %5539 = vmatpush.bf16.msra.mxu0 %v5001
    %5540 = vmatpush.bf16.msra.mxu0 %v4997
    %5541 = vmatpush.bf16.msra.mxu0 %v4993
    %5542 = vmatpush.bf16.msra.mxu0 %v4989
    %5543 = vmatmul.bf16.gmra.mxu0 %v5493
    %v5544 = vpop.f32.mrf.mxu0
    %v5545 = vadd.f32 %v5532, %v5544
    %v5546 = vpop.f32.mrf.mxu0
    %5547 = vdwg.mxu0
    %5548 = vmatpush.bf16.msra.mxu0 %v4986
    %5549 = vmatpush.bf16.msra.mxu0 %v4982
    %5550 = vmatpush.bf16.msra.mxu0 %v4978
    %5551 = vmatpush.bf16.msra.mxu0 %v4974
    %5552 = vmatpush.bf16.msra.mxu0 %v4970
    %5553 = vmatpush.bf16.msra.mxu0 %v4966
    %5554 = vmatpush.bf16.msra.mxu0 %v4962
    %5555 = vmatpush.bf16.msra.mxu0 %v4958
    %5556 = vmatmul.bf16.gmra.mxu0 %v5486
    %v5557 = vpop.f32.mrf.mxu0
    %v5558 = vadd.f32 %v4758, %v5557
    %v5559 = vpop.f32.mrf.mxu0
    %5560 = vdwg.mxu0
    %5561 = vmatpush.bf16.msra.mxu0 %v5018
    %5562 = vmatpush.bf16.msra.mxu0 %v5014
    %5563 = vmatpush.bf16.msra.mxu0 %v5010
    %5564 = vmatpush.bf16.msra.mxu0 %v5006
    %5565 = vmatpush.bf16.msra.mxu0 %v5002
    %5566 = vmatpush.bf16.msra.mxu0 %v4998
    %5567 = vmatpush.bf16.msra.mxu0 %v4994
    %5568 = vmatpush.bf16.msra.mxu0 %v4990
    %5569 = vmatmul.bf16.gmra.mxu0 %v5493
    %v5570 = vpop.f32.mrf.mxu0
    %v5571 = vadd.f32 %v5558, %v5570
    %v5572 = vpop.f32.mrf.mxu0
    %5573 = vdwg.mxu0
    %5574 = vmatpush.bf16.msra.mxu0 %v4987
    %5575 = vmatpush.bf16.msra.mxu0 %v4983
    %5576 = vmatpush.bf16.msra.mxu0 %v4979
    %5577 = vmatpush.bf16.msra.mxu0 %v4975
    %5578 = vmatpush.bf16.msra.mxu0 %v4971
    %5579 = vmatpush.bf16.msra.mxu0 %v4967
    %5580 = vmatpush.bf16.msra.mxu0 %v4963
    %5581 = vmatpush.bf16.msra.mxu0 %v4959
    %5582 = vmatmul.bf16.gmra.mxu0 %v5486
    %v5583 = vpop.f32.mrf.mxu0
    %v5584 = vadd.f32 %v4759, %v5583
    %v5585 = vpop.f32.mrf.mxu0
    %5586 = vdwg.mxu0
    %5587 = vmatpush.bf16.msra.mxu0 %v5019
    %5588 = vmatpush.bf16.msra.mxu0 %v5015
    %5589 = vmatpush.bf16.msra.mxu0 %v5011
    %5590 = vmatpush.bf16.msra.mxu0 %v5007
    %5591 = vmatpush.bf16.msra.mxu0 %v5003
    %5592 = vmatpush.bf16.msra.mxu0 %v4999
    %5593 = vmatpush.bf16.msra.mxu0 %v4995
    %5594 = vmatpush.bf16.msra.mxu0 %v4991
    %5595 = vmatmul.bf16.gmra.mxu0 %v5493
    %v5596 = vpop.f32.mrf.mxu0
    %v5597 = vadd.f32 %v5584, %v5596
    %v5598 = vpop.f32.mrf.mxu0
    %5599 = vdwg.mxu0
    %v5600 = vxor.u32 %v5519, 2147483648
    %v5601 = vmul.f32 %v5600, 1.442695
    %v5602 = vpow.pop %v5601
    %v5603 = vadd.f32 %v5602, 1.0
    %v5604 = vrcp.pop %v5603
    %v5605 = vmul.f32 %v5603, %v5604
    %v5606 = vsub.f32 1.0, %v5605
    %v5607 = vmul.f32 %v5604, %v5606
    %v5608 = vadd.f32 %v5604, %v5607
    %vm5609 = vweird.f32 %v5603
    %vm5610 = vweird.f32 %v5604
    %vm5611 = vmor %vm5609, %vm5610
    %v5612 = vsel %vm5611, %v5604, %v5608
    %v5613 = vand.u32 2147483647, %v5603
    %vm5614 = vcmp.eq.f32.partialorder %v5613, 8.507059e+37
    %v5615 = vand.u32 %v5603, 2147483648
    %v5616 = vor.u32 1.1754944e-38, %v5615
    %v5617 = vsel %vm5614, %v5616, %v5612
    %v5618 = vmul.f32 1.0, %v5617
    %v5619 = vxor.u32 %v5545, 2147483648
    %v5620 = vmul.f32 %v5619, 1.442695
    %v5621 = vpow.pop %v5620
    %v5622 = vadd.f32 %v5621, 1.0
    %v5623 = vrcp.pop %v5622
    %v5624 = vmul.f32 %v5622, %v5623
    %v5625 = vsub.f32 1.0, %v5624
    %v5626 = vmul.f32 %v5623, %v5625
    %v5627 = vadd.f32 %v5623, %v5626
    %vm5628 = vweird.f32 %v5622
    %vm5629 = vweird.f32 %v5623
    %vm5630 = vmor %vm5628, %vm5629
    %v5631 = vsel %vm5630, %v5623, %v5627
    %v5632 = vand.u32 2147483647, %v5622
    %vm5633 = vcmp.eq.f32.partialorder %v5632, 8.507059e+37
    %v5634 = vand.u32 %v5622, 2147483648
    %v5635 = vor.u32 1.1754944e-38, %v5634
    %v5636 = vsel %vm5633, %v5635, %v5631
    %v5637 = vmul.f32 1.0, %v5636
    %v5638 = vtanh.pop %v5571
    %v5639 = vxor.u32 %v5597, 2147483648
    %v5640 = vmul.f32 %v5639, 1.442695
    %v5641 = vpow.pop %v5640
    %v5642 = vadd.f32 %v5641, 1.0
    %v5643 = vrcp.pop %v5642
    %v5644 = vmul.f32 %v5642, %v5643
    %v5645 = vsub.f32 1.0, %v5644
    %v5646 = vmul.f32 %v5643, %v5645
    %v5647 = vadd.f32 %v5643, %v5646
    %vm5648 = vweird.f32 %v5642
    %vm5649 = vweird.f32 %v5643
    %vm5650 = vmor %vm5648, %vm5649
    %v5651 = vsel %vm5650, %v5643, %v5647
    %v5652 = vand.u32 2147483647, %v5642
    %vm5653 = vcmp.eq.f32.partialorder %v5652, 8.507059e+37
    %v5654 = vand.u32 %v5642, 2147483648
    %v5655 = vor.u32 1.1754944e-38, %v5654
    %v5656 = vsel %vm5653, %v5655, %v5651
    %v5657 = vmul.f32 1.0, %v5656
    %v5658 = vmul.f32 %v5637, %v5248
    %v5659 = vmul.f32 %v5618, %v5638
    %v5660 = vadd.f32 %v5658, %v5659
    %v5661 = vtanh.pop %v5660
    %v5662 = vmul.f32 %v5657, %v5661
    %v5663 = vpack.c.bf16 %v5467, %v5467
    %v5664 = vpack.c.bf16 %v5468, %v5468
    %v5667 = vunpack.c.l.b16 %v5663
    %v5668 = vunpack.c.l.b16 %v5664
    %v5669 = vrot.slane %v5667, 1
    %v5670 = vsel %vm4750, %v5668, %v5669
    %v5671 = vpack.c.b16 %v5670, %v5670
    %5673 = vmatpush.bf16.msra.mxu0 %v4509
    %5674 = vmatpush.bf16.msra.mxu0 %v4505
    %5675 = vmatpush.bf16.msra.mxu0 %v4501
    %5676 = vmatpush.bf16.msra.mxu0 %v4497
    %5677 = vmatpush.bf16.msra.mxu0 %v4493
    %5678 = vmatpush.bf16.msra.mxu0 %v4489
    %5679 = vmatpush.bf16.msra.mxu0 %v4485
    %5680 = vmatpush.bf16.msra.mxu0 %v4481
    %5681 = vmatmul.bf16.gmra.mxu0 %v5671
    %v5682 = vpop.f32.mrf.mxu0
    %v5683 = vadd.f32 0.0, %v5682
    %v5684 = vpop.f32.mrf.mxu0
    %5685 = vdwg.mxu0
    %5686 = vmatpush.bf16.msra.mxu0 %v4510
    %5687 = vmatpush.bf16.msra.mxu0 %v4506
    %5688 = vmatpush.bf16.msra.mxu0 %v4502
    %5689 = vmatpush.bf16.msra.mxu0 %v4498
    %5690 = vmatpush.bf16.msra.mxu0 %v4494
    %5691 = vmatpush.bf16.msra.mxu0 %v4490
    %5692 = vmatpush.bf16.msra.mxu0 %v4486
    %5693 = vmatpush.bf16.msra.mxu0 %v4482
    %5694 = vmatmul.bf16.gmra.mxu0 %v5671
    %v5695 = vpop.f32.mrf.mxu0
    %v5696 = vadd.f32 0.0, %v5695
    %v5697 = vpop.f32.mrf.mxu0
    %5698 = vdwg.mxu0
    %5699 = vmatpush.bf16.msra.mxu0 %v4511
    %5700 = vmatpush.bf16.msra.mxu0 %v4507
    %5701 = vmatpush.bf16.msra.mxu0 %v4503
    %5702 = vmatpush.bf16.msra.mxu0 %v4499
    %5703 = vmatpush.bf16.msra.mxu0 %v4495
    %5704 = vmatpush.bf16.msra.mxu0 %v4491
    %5705 = vmatpush.bf16.msra.mxu0 %v4487
    %5706 = vmatpush.bf16.msra.mxu0 %v4483
    %5707 = vmatmul.bf16.gmra.mxu0 %v5671
    %v5708 = vpop.f32.mrf.mxu0
    %v5709 = vadd.f32 0.0, %v5708
    %v5710 = vpop.f32.mrf.mxu0
    %5711 = vdwg.mxu0
    %5712 = vmatpush.bf16.msra.mxu0 %v4512
    %5713 = vmatpush.bf16.msra.mxu0 %v4508
    %5714 = vmatpush.bf16.msra.mxu0 %v4504
    %5715 = vmatpush.bf16.msra.mxu0 %v4500
    %5716 = vmatpush.bf16.msra.mxu0 %v4496
    %5717 = vmatpush.bf16.msra.mxu0 %v4492
    %5718 = vmatpush.bf16.msra.mxu0 %v4488
    %5719 = vmatpush.bf16.msra.mxu0 %v4484
    %5720 = vmatmul.bf16.gmra.mxu0 %v5671
    %v5721 = vpop.f32.mrf.mxu0
    %v5722 = vadd.f32 0.0, %v5721
    %v5723 = vpop.f32.mrf.mxu0
    %5724 = vdwg.mxu0
    %v5729 = vrot.slane %v5683, 6
    %v5730 = vrot.slane %v5696, 6
    %v5731 = vrot.slane %v5709, 6
    %v5732 = vrot.slane %v5722, 6
    %v5733 = vrot.slane %v5683, 7
    %v5734 = vrot.slane %v5696, 7
    %v5735 = vrot.slane %v5709, 7
    %v5736 = vrot.slane %v5722, 7
    %v5745 = vadd.f32 %v4242, %v5729
    %v5746 = vadd.f32 %v4256, %v5730
    %v5747 = vadd.f32 %v4270, %v5731
    %v5748 = vadd.f32 %v4284, %v5732
    %v5749 = vadd.f32 %v4244, %v5733
    %v5750 = vadd.f32 %v4258, %v5734
    %v5751 = vadd.f32 %v4272, %v5735
    %v5752 = vadd.f32 %v4286, %v5736
    %v5753 = vxor.u32 %v5745, 2147483648
    %v5754 = vxor.u32 %v5749, 2147483648
    %v5755 = vmul.f32 %v5753, 1.442695
    %v5756 = vpow.pop %v5755
    %v5757 = vmul.f32 %v5754, 1.442695
    %v5758 = vpow.pop %v5757
    %v5759 = vadd.f32 %v5756, 1.0
    %v5760 = vadd.f32 %v5758, 1.0
    %v5761 = vrcp.pop %v5759
    %v5762 = vmul.f32 %v5759, %v5761
    %v5763 = vsub.f32 1.0, %v5762
    %v5764 = vmul.f32 %v5761, %v5763
    %v5765 = vadd.f32 %v5761, %v5764
    %vm5766 = vweird.f32 %v5759
    %vm5767 = vweird.f32 %v5761
    %vm5768 = vmor %vm5766, %vm5767
    %v5769 = vsel %vm5768, %v5761, %v5765
    %v5770 = vand.u32 2147483647, %v5759
    %vm5771 = vcmp.eq.f32.partialorder %v5770, 8.507059e+37
    %v5772 = vand.u32 %v5759, 2147483648
    %v5773 = vor.u32 1.1754944e-38, %v5772
    %v5774 = vsel %vm5771, %v5773, %v5769
    %v5775 = vmul.f32 1.0, %v5774
    %v5776 = vrcp.pop %v5760
    %v5777 = vmul.f32 %v5760, %v5776
    %v5778 = vsub.f32 1.0, %v5777
    %v5779 = vmul.f32 %v5776, %v5778
    %v5780 = vadd.f32 %v5776, %v5779
    %vm5781 = vweird.f32 %v5760
    %vm5782 = vweird.f32 %v5776
    %vm5783 = vmor %vm5781, %vm5782
    %v5784 = vsel %vm5783, %v5776, %v5780
    %v5785 = vand.u32 2147483647, %v5760
    %vm5786 = vcmp.eq.f32.partialorder %v5785, 8.507059e+37
    %v5787 = vand.u32 %v5760, 2147483648
    %v5788 = vor.u32 1.1754944e-38, %v5787
    %v5789 = vsel %vm5786, %v5788, %v5784
    %v5790 = vmul.f32 1.0, %v5789
    %v5791 = vxor.u32 %v5746, 2147483648
    %v5792 = vxor.u32 %v5750, 2147483648
    %v5793 = vmul.f32 %v5791, 1.442695
    %v5794 = vpow.pop %v5793
    %v5795 = vmul.f32 %v5792, 1.442695
    %v5796 = vpow.pop %v5795
    %v5797 = vadd.f32 %v5794, 1.0
    %v5798 = vadd.f32 %v5796, 1.0
    %v5799 = vrcp.pop %v5797
    %v5800 = vmul.f32 %v5797, %v5799
    %v5801 = vsub.f32 1.0, %v5800
    %v5802 = vmul.f32 %v5799, %v5801
    %v5803 = vadd.f32 %v5799, %v5802
    %vm5804 = vweird.f32 %v5797
    %vm5805 = vweird.f32 %v5799
    %vm5806 = vmor %vm5804, %vm5805
    %v5807 = vsel %vm5806, %v5799, %v5803
    %v5808 = vand.u32 2147483647, %v5797
    %vm5809 = vcmp.eq.f32.partialorder %v5808, 8.507059e+37
    %v5810 = vand.u32 %v5797, 2147483648
    %v5811 = vor.u32 1.1754944e-38, %v5810
    %v5812 = vsel %vm5809, %v5811, %v5807
    %v5813 = vmul.f32 1.0, %v5812
    %v5814 = vrcp.pop %v5798
    %v5815 = vmul.f32 %v5798, %v5814
    %v5816 = vsub.f32 1.0, %v5815
    %v5817 = vmul.f32 %v5814, %v5816
    %v5818 = vadd.f32 %v5814, %v5817
    %vm5819 = vweird.f32 %v5798
    %vm5820 = vweird.f32 %v5814
    %vm5821 = vmor %vm5819, %vm5820
    %v5822 = vsel %vm5821, %v5814, %v5818
    %v5823 = vand.u32 2147483647, %v5798
    %vm5824 = vcmp.eq.f32.partialorder %v5823, 8.507059e+37
    %v5825 = vand.u32 %v5798, 2147483648
    %v5826 = vor.u32 1.1754944e-38, %v5825
    %v5827 = vsel %vm5824, %v5826, %v5822
    %v5828 = vmul.f32 1.0, %v5827
    %v5829 = vtanh.pop %v5747
    %v5830 = vtanh.pop %v5751
    %v5831 = vxor.u32 %v5748, 2147483648
    %v5832 = vxor.u32 %v5752, 2147483648
    %v5833 = vmul.f32 %v5831, 1.442695
    %v5834 = vpow.pop %v5833
    %v5835 = vmul.f32 %v5832, 1.442695
    %v5836 = vpow.pop %v5835
    %v5837 = vadd.f32 %v5834, 1.0
    %v5838 = vadd.f32 %v5836, 1.0
    %v5839 = vrcp.pop %v5837
    %v5840 = vmul.f32 %v5837, %v5839
    %v5841 = vsub.f32 1.0, %v5840
    %v5842 = vmul.f32 %v5839, %v5841
    %v5843 = vadd.f32 %v5839, %v5842
    %vm5844 = vweird.f32 %v5837
    %vm5845 = vweird.f32 %v5839
    %vm5846 = vmor %vm5844, %vm5845
    %v5847 = vsel %vm5846, %v5839, %v5843
    %v5848 = vand.u32 2147483647, %v5837
    %vm5849 = vcmp.eq.f32.partialorder %v5848, 8.507059e+37
    %v5850 = vand.u32 %v5837, 2147483648
    %v5851 = vor.u32 1.1754944e-38, %v5850
    %v5852 = vsel %vm5849, %v5851, %v5847
    %v5853 = vmul.f32 1.0, %v5852
    %v5854 = vrcp.pop %v5838
    %v5855 = vmul.f32 %v5838, %v5854
    %v5856 = vsub.f32 1.0, %v5855
    %v5857 = vmul.f32 %v5854, %v5856
    %v5858 = vadd.f32 %v5854, %v5857
    %vm5859 = vweird.f32 %v5838
    %vm5860 = vweird.f32 %v5854
    %vm5861 = vmor %vm5859, %vm5860
    %v5862 = vsel %vm5861, %v5854, %v5858
    %v5863 = vand.u32 2147483647, %v5838
    %vm5864 = vcmp.eq.f32.partialorder %v5863, 8.507059e+37
    %v5865 = vand.u32 %v5838, 2147483648
    %v5866 = vor.u32 1.1754944e-38, %v5865
    %v5867 = vsel %vm5864, %v5866, %v5862
    %v5868 = vmul.f32 1.0, %v5867
    %v5871 = vrot.slane %v5463, 7
    %v5872 = vrot.slane %v5464, 7
    %v5875 = vmul.f32 %v5813, %v5871
    %v5876 = vmul.f32 %v5828, %v5872
    %v5877 = vmul.f32 %v5775, %v5829
    %v5878 = vmul.f32 %v5790, %v5830
    %v5879 = vadd.f32 %v5875, %v5877
    %v5880 = vadd.f32 %v5876, %v5878
    %v5881 = vtanh.pop %v5879
    %v5882 = vtanh.pop %v5880
    %v5883 = vmul.f32 %v5853, %v5881
    %v5884 = vmul.f32 %v5868, %v5882
    %v5887 = vrot.slane %v5884, 7
    %vm5888 = vcmask 1043459
    %v5889 = vsel %vm5888, %v5887, %v5883
    %v5892 = vrot.slane %v5662, 6
    %v5894 = vpack.c.bf16 %v5889, %v5889
    %v5895 = vpack.c.bf16 %v5892, %v5892
    %v5898 = vrot.slane %v5894, 1
    %v5899 = vrot.slane %v5895, 1
    %5902 = vmatpush.bf16.msra.mxu0 %v4984
    %5903 = vmatpush.bf16.msra.mxu0 %v4980
    %5904 = vmatpush.bf16.msra.mxu0 %v4976
    %5905 = vmatpush.bf16.msra.mxu0 %v4972
    %5906 = vmatpush.bf16.msra.mxu0 %v4968
    %5907 = vmatpush.bf16.msra.mxu0 %v4964
    %5908 = vmatpush.bf16.msra.mxu0 %v4960
    %5909 = vmatpush.bf16.msra.mxu0 %v4956
    %5910 = vmatmul.bf16.gmra.mxu0 %v5898
    %v5911 = vpop.f32.mrf.mxu0
    %v5912 = vadd.f32 %v4756, %v5911
    %v5913 = vpop.f32.mrf.mxu0
    %5914 = vdwg.mxu0
    %5915 = vmatpush.bf16.msra.mxu0 %v5016
    %5916 = vmatpush.bf16.msra.mxu0 %v5012
    %5917 = vmatpush.bf16.msra.mxu0 %v5008
    %5918 = vmatpush.bf16.msra.mxu0 %v5004
    %5919 = vmatpush.bf16.msra.mxu0 %v5000
    %5920 = vmatpush.bf16.msra.mxu0 %v4996
    %5921 = vmatpush.bf16.msra.mxu0 %v4992
    %5922 = vmatpush.bf16.msra.mxu0 %v4988
    %5923 = vmatmul.bf16.gmra.mxu0 %v5899
    %v5924 = vpop.f32.mrf.mxu0
    %v5925 = vadd.f32 %v5912, %v5924
    %v5926 = vpop.f32.mrf.mxu0
    %5927 = vdwg.mxu0
    %5928 = vmatpush.bf16.msra.mxu0 %v4985
    %5929 = vmatpush.bf16.msra.mxu0 %v4981
    %5930 = vmatpush.bf16.msra.mxu0 %v4977
    %5931 = vmatpush.bf16.msra.mxu0 %v4973
    %5932 = vmatpush.bf16.msra.mxu0 %v4969
    %5933 = vmatpush.bf16.msra.mxu0 %v4965
    %5934 = vmatpush.bf16.msra.mxu0 %v4961
    %5935 = vmatpush.bf16.msra.mxu0 %v4957
    %5936 = vmatmul.bf16.gmra.mxu0 %v5898
    %v5937 = vpop.f32.mrf.mxu0
    %v5938 = vadd.f32 %v4757, %v5937
    %v5939 = vpop.f32.mrf.mxu0
    %5940 = vdwg.mxu0
    %5941 = vmatpush.bf16.msra.mxu0 %v5017
    %5942 = vmatpush.bf16.msra.mxu0 %v5013
    %5943 = vmatpush.bf16.msra.mxu0 %v5009
    %5944 = vmatpush.bf16.msra.mxu0 %v5005
    %5945 = vmatpush.bf16.msra.mxu0 %v5001
    %5946 = vmatpush.bf16.msra.mxu0 %v4997
    %5947 = vmatpush.bf16.msra.mxu0 %v4993
    %5948 = vmatpush.bf16.msra.mxu0 %v4989
    %5949 = vmatmul.bf16.gmra.mxu0 %v5899
    %v5950 = vpop.f32.mrf.mxu0
    %v5951 = vadd.f32 %v5938, %v5950
    %v5952 = vpop.f32.mrf.mxu0
    %5953 = vdwg.mxu0
    %5954 = vmatpush.bf16.msra.mxu0 %v4986
    %5955 = vmatpush.bf16.msra.mxu0 %v4982
    %5956 = vmatpush.bf16.msra.mxu0 %v4978
    %5957 = vmatpush.bf16.msra.mxu0 %v4974
    %5958 = vmatpush.bf16.msra.mxu0 %v4970
    %5959 = vmatpush.bf16.msra.mxu0 %v4966
    %5960 = vmatpush.bf16.msra.mxu0 %v4962
    %5961 = vmatpush.bf16.msra.mxu0 %v4958
    %5962 = vmatmul.bf16.gmra.mxu0 %v5898
    %v5963 = vpop.f32.mrf.mxu0
    %v5964 = vadd.f32 %v4758, %v5963
    %v5965 = vpop.f32.mrf.mxu0
    %5966 = vdwg.mxu0
    %5967 = vmatpush.bf16.msra.mxu0 %v5018
    %5968 = vmatpush.bf16.msra.mxu0 %v5014
    %5969 = vmatpush.bf16.msra.mxu0 %v5010
    %5970 = vmatpush.bf16.msra.mxu0 %v5006
    %5971 = vmatpush.bf16.msra.mxu0 %v5002
    %5972 = vmatpush.bf16.msra.mxu0 %v4998
    %5973 = vmatpush.bf16.msra.mxu0 %v4994
    %5974 = vmatpush.bf16.msra.mxu0 %v4990
    %5975 = vmatmul.bf16.gmra.mxu0 %v5899
    %v5976 = vpop.f32.mrf.mxu0
    %v5977 = vadd.f32 %v5964, %v5976
    %v5978 = vpop.f32.mrf.mxu0
    %5979 = vdwg.mxu0
    %5980 = vmatpush.bf16.msra.mxu0 %v4987
    %5981 = vmatpush.bf16.msra.mxu0 %v4983
    %5982 = vmatpush.bf16.msra.mxu0 %v4979
    %5983 = vmatpush.bf16.msra.mxu0 %v4975
    %5984 = vmatpush.bf16.msra.mxu0 %v4971
    %5985 = vmatpush.bf16.msra.mxu0 %v4967
    %5986 = vmatpush.bf16.msra.mxu0 %v4963
    %5987 = vmatpush.bf16.msra.mxu0 %v4959
    %5988 = vmatmul.bf16.gmra.mxu0 %v5898
    %v5989 = vpop.f32.mrf.mxu0
    %v5990 = vadd.f32 %v4759, %v5989
    %v5991 = vpop.f32.mrf.mxu0
    %5992 = vdwg.mxu0
    %5993 = vmatpush.bf16.msra.mxu0 %v5019
    %5994 = vmatpush.bf16.msra.mxu0 %v5015
    %5995 = vmatpush.bf16.msra.mxu0 %v5011
    %5996 = vmatpush.bf16.msra.mxu0 %v5007
    %5997 = vmatpush.bf16.msra.mxu0 %v5003
    %5998 = vmatpush.bf16.msra.mxu0 %v4999
    %5999 = vmatpush.bf16.msra.mxu0 %v4995
    %6000 = vmatpush.bf16.msra.mxu0 %v4991
    %6001 = vmatmul.bf16.gmra.mxu0 %v5899
    %v6002 = vpop.f32.mrf.mxu0
    %v6003 = vadd.f32 %v5990, %v6002
    %v6004 = vpop.f32.mrf.mxu0
    %6005 = vdwg.mxu0
    %v6006 = vxor.u32 %v5925, 2147483648
    %v6007 = vmul.f32 %v6006, 1.442695
    %v6008 = vpow.pop %v6007
    %v6009 = vadd.f32 %v6008, 1.0
    %v6010 = vrcp.pop %v6009
    %v6011 = vmul.f32 %v6009, %v6010
    %v6012 = vsub.f32 1.0, %v6011
    %v6013 = vmul.f32 %v6010, %v6012
    %v6014 = vadd.f32 %v6010, %v6013
    %vm6015 = vweird.f32 %v6009
    %vm6016 = vweird.f32 %v6010
    %vm6017 = vmor %vm6015, %vm6016
    %v6018 = vsel %vm6017, %v6010, %v6014
    %v6019 = vand.u32 2147483647, %v6009
    %vm6020 = vcmp.eq.f32.partialorder %v6019, 8.507059e+37
    %v6021 = vand.u32 %v6009, 2147483648
    %v6022 = vor.u32 1.1754944e-38, %v6021
    %v6023 = vsel %vm6020, %v6022, %v6018
    %v6024 = vmul.f32 1.0, %v6023
    %v6025 = vxor.u32 %v5951, 2147483648
    %v6026 = vmul.f32 %v6025, 1.442695
    %v6027 = vpow.pop %v6026
    %v6028 = vadd.f32 %v6027, 1.0
    %v6029 = vrcp.pop %v6028
    %v6030 = vmul.f32 %v6028, %v6029
    %v6031 = vsub.f32 1.0, %v6030
    %v6032 = vmul.f32 %v6029, %v6031
    %v6033 = vadd.f32 %v6029, %v6032
    %vm6034 = vweird.f32 %v6028
    %vm6035 = vweird.f32 %v6029
    %vm6036 = vmor %vm6034, %vm6035
    %v6037 = vsel %vm6036, %v6029, %v6033
    %v6038 = vand.u32 2147483647, %v6028
    %vm6039 = vcmp.eq.f32.partialorder %v6038, 8.507059e+37
    %v6040 = vand.u32 %v6028, 2147483648
    %v6041 = vor.u32 1.1754944e-38, %v6040
    %v6042 = vsel %vm6039, %v6041, %v6037
    %v6043 = vmul.f32 1.0, %v6042
    %v6044 = vtanh.pop %v5977
    %v6045 = vxor.u32 %v6003, 2147483648
    %v6046 = vmul.f32 %v6045, 1.442695
    %v6047 = vpow.pop %v6046
    %v6048 = vadd.f32 %v6047, 1.0
    %v6049 = vrcp.pop %v6048
    %v6050 = vmul.f32 %v6048, %v6049
    %v6051 = vsub.f32 1.0, %v6050
    %v6052 = vmul.f32 %v6049, %v6051
    %v6053 = vadd.f32 %v6049, %v6052
    %vm6054 = vweird.f32 %v6048
    %vm6055 = vweird.f32 %v6049
    %vm6056 = vmor %vm6054, %vm6055
    %v6057 = vsel %vm6056, %v6049, %v6053
    %v6058 = vand.u32 2147483647, %v6048
    %vm6059 = vcmp.eq.f32.partialorder %v6058, 8.507059e+37
    %v6060 = vand.u32 %v6048, 2147483648
    %v6061 = vor.u32 1.1754944e-38, %v6060
    %v6062 = vsel %vm6059, %v6061, %v6057
    %v6063 = vmul.f32 1.0, %v6062
    %v6064 = vmul.f32 %v6043, %v5660
    %v6065 = vmul.f32 %v6024, %v6044
    %v6066 = vadd.f32 %v6064, %v6065
    %v6067 = vtanh.pop %v6066
    %v6068 = vmul.f32 %v6063, %v6067
    %v6069 = vpack.c.bf16 %v5883, %v5883
    %v6070 = vpack.c.bf16 %v5884, %v5884
    %v6073 = vunpack.c.l.b16 %v6069
    %v6074 = vunpack.c.l.b16 %v6070
    %v6075 = vrot.slane %v6073, 2
    %v6076 = vrot.slane %v6074, 1
    %v6077 = vsel %vm4750, %v6076, %v6075
    %v6078 = vpack.c.b16 %v6077, %v6077
    %6080 = vmatpush.bf16.msra.mxu0 %v4509
    %6081 = vmatpush.bf16.msra.mxu0 %v4505
    %6082 = vmatpush.bf16.msra.mxu0 %v4501
    %6083 = vmatpush.bf16.msra.mxu0 %v4497
    %6084 = vmatpush.bf16.msra.mxu0 %v4493
    %6085 = vmatpush.bf16.msra.mxu0 %v4489
    %6086 = vmatpush.bf16.msra.mxu0 %v4485
    %6087 = vmatpush.bf16.msra.mxu0 %v4481
    %6088 = vmatmul.bf16.gmra.mxu0 %v6078
    %v6089 = vpop.f32.mrf.mxu0
    %v6090 = vadd.f32 0.0, %v6089
    %v6091 = vpop.f32.mrf.mxu0
    %6092 = vdwg.mxu0
    %6093 = vmatpush.bf16.msra.mxu0 %v4510
    %6094 = vmatpush.bf16.msra.mxu0 %v4506
    %6095 = vmatpush.bf16.msra.mxu0 %v4502
    %6096 = vmatpush.bf16.msra.mxu0 %v4498
    %6097 = vmatpush.bf16.msra.mxu0 %v4494
    %6098 = vmatpush.bf16.msra.mxu0 %v4490
    %6099 = vmatpush.bf16.msra.mxu0 %v4486
    %6100 = vmatpush.bf16.msra.mxu0 %v4482
    %6101 = vmatmul.bf16.gmra.mxu0 %v6078
    %v6102 = vpop.f32.mrf.mxu0
    %v6103 = vadd.f32 0.0, %v6102
    %v6104 = vpop.f32.mrf.mxu0
    %6105 = vdwg.mxu0
    %6106 = vmatpush.bf16.msra.mxu0 %v4511
    %6107 = vmatpush.bf16.msra.mxu0 %v4507
    %6108 = vmatpush.bf16.msra.mxu0 %v4503
    %6109 = vmatpush.bf16.msra.mxu0 %v4499
    %6110 = vmatpush.bf16.msra.mxu0 %v4495
    %6111 = vmatpush.bf16.msra.mxu0 %v4491
    %6112 = vmatpush.bf16.msra.mxu0 %v4487
    %6113 = vmatpush.bf16.msra.mxu0 %v4483
    %6114 = vmatmul.bf16.gmra.mxu0 %v6078
    %v6115 = vpop.f32.mrf.mxu0
    %v6116 = vadd.f32 0.0, %v6115
    %v6117 = vpop.f32.mrf.mxu0
    %6118 = vdwg.mxu0
    %6119 = vmatpush.bf16.msra.mxu0 %v4512
    %6120 = vmatpush.bf16.msra.mxu0 %v4508
    %6121 = vmatpush.bf16.msra.mxu0 %v4504
    %6122 = vmatpush.bf16.msra.mxu0 %v4500
    %6123 = vmatpush.bf16.msra.mxu0 %v4496
    %6124 = vmatpush.bf16.msra.mxu0 %v4492
    %6125 = vmatpush.bf16.msra.mxu0 %v4488
    %6126 = vmatpush.bf16.msra.mxu0 %v4484
    %6127 = vmatmul.bf16.gmra.mxu0 %v6078
    %v6128 = vpop.f32.mrf.mxu0
    %v6129 = vadd.f32 0.0, %v6128
    %v6130 = vpop.f32.mrf.mxu0
    %6131 = vdwg.mxu0
    %v6136 = vrot.slane %v6090, 5
    %v6137 = vrot.slane %v6103, 5
    %v6138 = vrot.slane %v6116, 5
    %v6139 = vrot.slane %v6129, 5
    %v6140 = vrot.slane %v6090, 6
    %v6141 = vrot.slane %v6103, 6
    %v6142 = vrot.slane %v6116, 6
    %v6143 = vrot.slane %v6129, 6
    %v6152 = vadd.f32 %v4242, %v6136
    %v6153 = vadd.f32 %v4256, %v6137
    %v6154 = vadd.f32 %v4270, %v6138
    %v6155 = vadd.f32 %v4284, %v6139
    %v6156 = vadd.f32 %v4244, %v6140
    %v6157 = vadd.f32 %v4258, %v6141
    %v6158 = vadd.f32 %v4272, %v6142
    %v6159 = vadd.f32 %v4286, %v6143
    %v6160 = vxor.u32 %v6152, 2147483648
    %v6161 = vxor.u32 %v6156, 2147483648
    %v6162 = vmul.f32 %v6160, 1.442695
    %v6163 = vpow.pop %v6162
    %v6164 = vmul.f32 %v6161, 1.442695
    %v6165 = vpow.pop %v6164
    %v6166 = vadd.f32 %v6163, 1.0
    %v6167 = vadd.f32 %v6165, 1.0
    %v6168 = vrcp.pop %v6166
    %v6169 = vmul.f32 %v6166, %v6168
    %v6170 = vsub.f32 1.0, %v6169
    %v6171 = vmul.f32 %v6168, %v6170
    %v6172 = vadd.f32 %v6168, %v6171
    %vm6173 = vweird.f32 %v6166
    %vm6174 = vweird.f32 %v6168
    %vm6175 = vmor %vm6173, %vm6174
    %v6176 = vsel %vm6175, %v6168, %v6172
    %v6177 = vand.u32 2147483647, %v6166
    %vm6178 = vcmp.eq.f32.partialorder %v6177, 8.507059e+37
    %v6179 = vand.u32 %v6166, 2147483648
    %v6180 = vor.u32 1.1754944e-38, %v6179
    %v6181 = vsel %vm6178, %v6180, %v6176
    %v6182 = vmul.f32 1.0, %v6181
    %v6183 = vrcp.pop %v6167
    %v6184 = vmul.f32 %v6167, %v6183
    %v6185 = vsub.f32 1.0, %v6184
    %v6186 = vmul.f32 %v6183, %v6185
    %v6187 = vadd.f32 %v6183, %v6186
    %vm6188 = vweird.f32 %v6167
    %vm6189 = vweird.f32 %v6183
    %vm6190 = vmor %vm6188, %vm6189
    %v6191 = vsel %vm6190, %v6183, %v6187
    %v6192 = vand.u32 2147483647, %v6167
    %vm6193 = vcmp.eq.f32.partialorder %v6192, 8.507059e+37
    %v6194 = vand.u32 %v6167, 2147483648
    %v6195 = vor.u32 1.1754944e-38, %v6194
    %v6196 = vsel %vm6193, %v6195, %v6191
    %v6197 = vmul.f32 1.0, %v6196
    %v6198 = vxor.u32 %v6153, 2147483648
    %v6199 = vxor.u32 %v6157, 2147483648
    %v6200 = vmul.f32 %v6198, 1.442695
    %v6201 = vpow.pop %v6200
    %v6202 = vmul.f32 %v6199, 1.442695
    %v6203 = vpow.pop %v6202
    %v6204 = vadd.f32 %v6201, 1.0
    %v6205 = vadd.f32 %v6203, 1.0
    %v6206 = vrcp.pop %v6204
    %v6207 = vmul.f32 %v6204, %v6206
    %v6208 = vsub.f32 1.0, %v6207
    %v6209 = vmul.f32 %v6206, %v6208
    %v6210 = vadd.f32 %v6206, %v6209
    %vm6211 = vweird.f32 %v6204
    %vm6212 = vweird.f32 %v6206
    %vm6213 = vmor %vm6211, %vm6212
    %v6214 = vsel %vm6213, %v6206, %v6210
    %v6215 = vand.u32 2147483647, %v6204
    %vm6216 = vcmp.eq.f32.partialorder %v6215, 8.507059e+37
    %v6217 = vand.u32 %v6204, 2147483648
    %v6218 = vor.u32 1.1754944e-38, %v6217
    %v6219 = vsel %vm6216, %v6218, %v6214
    %v6220 = vmul.f32 1.0, %v6219
    %v6221 = vrcp.pop %v6205
    %v6222 = vmul.f32 %v6205, %v6221
    %v6223 = vsub.f32 1.0, %v6222
    %v6224 = vmul.f32 %v6221, %v6223
    %v6225 = vadd.f32 %v6221, %v6224
    %vm6226 = vweird.f32 %v6205
    %vm6227 = vweird.f32 %v6221
    %vm6228 = vmor %vm6226, %vm6227
    %v6229 = vsel %vm6228, %v6221, %v6225
    %v6230 = vand.u32 2147483647, %v6205
    %vm6231 = vcmp.eq.f32.partialorder %v6230, 8.507059e+37
    %v6232 = vand.u32 %v6205, 2147483648
    %v6233 = vor.u32 1.1754944e-38, %v6232
    %v6234 = vsel %vm6231, %v6233, %v6229
    %v6235 = vmul.f32 1.0, %v6234
    %v6236 = vtanh.pop %v6154
    %v6237 = vtanh.pop %v6158
    %v6238 = vxor.u32 %v6155, 2147483648
    %v6239 = vxor.u32 %v6159, 2147483648
    %v6240 = vmul.f32 %v6238, 1.442695
    %v6241 = vpow.pop %v6240
    %v6242 = vmul.f32 %v6239, 1.442695
    %v6243 = vpow.pop %v6242
    %v6244 = vadd.f32 %v6241, 1.0
    %v6245 = vadd.f32 %v6243, 1.0
    %v6246 = vrcp.pop %v6244
    %v6247 = vmul.f32 %v6244, %v6246
    %v6248 = vsub.f32 1.0, %v6247
    %v6249 = vmul.f32 %v6246, %v6248
    %v6250 = vadd.f32 %v6246, %v6249
    %vm6251 = vweird.f32 %v6244
    %vm6252 = vweird.f32 %v6246
    %vm6253 = vmor %vm6251, %vm6252
    %v6254 = vsel %vm6253, %v6246, %v6250
    %v6255 = vand.u32 2147483647, %v6244
    %vm6256 = vcmp.eq.f32.partialorder %v6255, 8.507059e+37
    %v6257 = vand.u32 %v6244, 2147483648
    %v6258 = vor.u32 1.1754944e-38, %v6257
    %v6259 = vsel %vm6256, %v6258, %v6254
    %v6260 = vmul.f32 1.0, %v6259
    %v6261 = vrcp.pop %v6245
    %v6262 = vmul.f32 %v6245, %v6261
    %v6263 = vsub.f32 1.0, %v6262
    %v6264 = vmul.f32 %v6261, %v6263
    %v6265 = vadd.f32 %v6261, %v6264
    %vm6266 = vweird.f32 %v6245
    %vm6267 = vweird.f32 %v6261
    %vm6268 = vmor %vm6266, %vm6267
    %v6269 = vsel %vm6268, %v6261, %v6265
    %v6270 = vand.u32 2147483647, %v6245
    %vm6271 = vcmp.eq.f32.partialorder %v6270, 8.507059e+37
    %v6272 = vand.u32 %v6245, 2147483648
    %v6273 = vor.u32 1.1754944e-38, %v6272
    %v6274 = vsel %vm6271, %v6273, %v6269
    %v6275 = vmul.f32 1.0, %v6274
    %v6278 = vrot.slane %v5879, 7
    %v6279 = vrot.slane %v5880, 7
    %v6282 = vmul.f32 %v6220, %v6278
    %v6283 = vmul.f32 %v6235, %v6279
    %v6284 = vmul.f32 %v6182, %v6236
    %v6285 = vmul.f32 %v6197, %v6237
    %v6286 = vadd.f32 %v6282, %v6284
    %v6287 = vadd.f32 %v6283, %v6285
    %v6288 = vtanh.pop %v6286
    %v6289 = vtanh.pop %v6287
    %v6290 = vmul.f32 %v6260, %v6288
    %v6291 = vmul.f32 %v6275, %v6289
    %v6294 = vrot.slane %v6291, 7
    %vm6295 = vcmask 1044484
    %v6296 = vsel %vm6295, %v6294, %v6290
    %v6299 = vrot.slane %v6068, 5
    %v6301 = vpack.c.bf16 %v6296, %v6296
    %v6302 = vpack.c.bf16 %v6299, %v6299
    %v6304 = vshrl.u32 %v6301, 16
    %v6306 = vrot.slane %v6304, 1
    %v6307 = vshll.u32 %v6301, 16
    %v6309 = vrot.slane %v6307, 2
    %v6310 = vor.u32 %v6306, %v6309
    %v6312 = vshrl.u32 %v6302, 16
    %v6314 = vrot.slane %v6312, 1
    %v6315 = vshll.u32 %v6302, 16
    %v6317 = vrot.slane %v6315, 2
    %v6318 = vor.u32 %v6314, %v6317
    %6321 = vmatpush.bf16.msra.mxu0 %v4984
    %6322 = vmatpush.bf16.msra.mxu0 %v4980
    %6323 = vmatpush.bf16.msra.mxu0 %v4976
    %6324 = vmatpush.bf16.msra.mxu0 %v4972
    %6325 = vmatpush.bf16.msra.mxu0 %v4968
    %6326 = vmatpush.bf16.msra.mxu0 %v4964
    %6327 = vmatpush.bf16.msra.mxu0 %v4960
    %6328 = vmatpush.bf16.msra.mxu0 %v4956
    %6329 = vmatmul.bf16.gmra.mxu0 %v6310
    %v6330 = vpop.f32.mrf.mxu0
    %v6331 = vadd.f32 %v4756, %v6330
    %v6332 = vpop.f32.mrf.mxu0
    %6333 = vdwg.mxu0
    %6334 = vmatpush.bf16.msra.mxu0 %v5016
    %6335 = vmatpush.bf16.msra.mxu0 %v5012
    %6336 = vmatpush.bf16.msra.mxu0 %v5008
    %6337 = vmatpush.bf16.msra.mxu0 %v5004
    %6338 = vmatpush.bf16.msra.mxu0 %v5000
    %6339 = vmatpush.bf16.msra.mxu0 %v4996
    %6340 = vmatpush.bf16.msra.mxu0 %v4992
    %6341 = vmatpush.bf16.msra.mxu0 %v4988
    %6342 = vmatmul.bf16.gmra.mxu0 %v6318
    %v6343 = vpop.f32.mrf.mxu0
    %v6344 = vadd.f32 %v6331, %v6343
    %v6345 = vpop.f32.mrf.mxu0
    %6346 = vdwg.mxu0
    %6347 = vmatpush.bf16.msra.mxu0 %v4985
    %6348 = vmatpush.bf16.msra.mxu0 %v4981
    %6349 = vmatpush.bf16.msra.mxu0 %v4977
    %6350 = vmatpush.bf16.msra.mxu0 %v4973
    %6351 = vmatpush.bf16.msra.mxu0 %v4969
    %6352 = vmatpush.bf16.msra.mxu0 %v4965
    %6353 = vmatpush.bf16.msra.mxu0 %v4961
    %6354 = vmatpush.bf16.msra.mxu0 %v4957
    %6355 = vmatmul.bf16.gmra.mxu0 %v6310
    %v6356 = vpop.f32.mrf.mxu0
    %v6357 = vadd.f32 %v4757, %v6356
    %v6358 = vpop.f32.mrf.mxu0
    %6359 = vdwg.mxu0
    %6360 = vmatpush.bf16.msra.mxu0 %v5017
    %6361 = vmatpush.bf16.msra.mxu0 %v5013
    %6362 = vmatpush.bf16.msra.mxu0 %v5009
    %6363 = vmatpush.bf16.msra.mxu0 %v5005
    %6364 = vmatpush.bf16.msra.mxu0 %v5001
    %6365 = vmatpush.bf16.msra.mxu0 %v4997
    %6366 = vmatpush.bf16.msra.mxu0 %v4993
    %6367 = vmatpush.bf16.msra.mxu0 %v4989
    %6368 = vmatmul.bf16.gmra.mxu0 %v6318
    %v6369 = vpop.f32.mrf.mxu0
    %v6370 = vadd.f32 %v6357, %v6369
    %v6371 = vpop.f32.mrf.mxu0
    %6372 = vdwg.mxu0
    %6373 = vmatpush.bf16.msra.mxu0 %v4986
    %6374 = vmatpush.bf16.msra.mxu0 %v4982
    %6375 = vmatpush.bf16.msra.mxu0 %v4978
    %6376 = vmatpush.bf16.msra.mxu0 %v4974
    %6377 = vmatpush.bf16.msra.mxu0 %v4970
    %6378 = vmatpush.bf16.msra.mxu0 %v4966
    %6379 = vmatpush.bf16.msra.mxu0 %v4962
    %6380 = vmatpush.bf16.msra.mxu0 %v4958
    %6381 = vmatmul.bf16.gmra.mxu0 %v6310
    %v6382 = vpop.f32.mrf.mxu0
    %v6383 = vadd.f32 %v4758, %v6382
    %v6384 = vpop.f32.mrf.mxu0
    %6385 = vdwg.mxu0
    %6386 = vmatpush.bf16.msra.mxu0 %v5018
    %6387 = vmatpush.bf16.msra.mxu0 %v5014
    %6388 = vmatpush.bf16.msra.mxu0 %v5010
    %6389 = vmatpush.bf16.msra.mxu0 %v5006
    %6390 = vmatpush.bf16.msra.mxu0 %v5002
    %6391 = vmatpush.bf16.msra.mxu0 %v4998
    %6392 = vmatpush.bf16.msra.mxu0 %v4994
    %6393 = vmatpush.bf16.msra.mxu0 %v4990
    %6394 = vmatmul.bf16.gmra.mxu0 %v6318
    %v6395 = vpop.f32.mrf.mxu0
    %v6396 = vadd.f32 %v6383, %v6395
    %v6397 = vpop.f32.mrf.mxu0
    %6398 = vdwg.mxu0
    %6399 = vmatpush.bf16.msra.mxu0 %v4987
    %6400 = vmatpush.bf16.msra.mxu0 %v4983
    %6401 = vmatpush.bf16.msra.mxu0 %v4979
    %6402 = vmatpush.bf16.msra.mxu0 %v4975
    %6403 = vmatpush.bf16.msra.mxu0 %v4971
    %6404 = vmatpush.bf16.msra.mxu0 %v4967
    %6405 = vmatpush.bf16.msra.mxu0 %v4963
    %6406 = vmatpush.bf16.msra.mxu0 %v4959
    %6407 = vmatmul.bf16.gmra.mxu0 %v6310
    %v6408 = vpop.f32.mrf.mxu0
    %v6409 = vadd.f32 %v4759, %v6408
    %v6410 = vpop.f32.mrf.mxu0
    %6411 = vdwg.mxu0
    %6412 = vmatpush.bf16.msra.mxu0 %v5019
    %6413 = vmatpush.bf16.msra.mxu0 %v5015
    %6414 = vmatpush.bf16.msra.mxu0 %v5011
    %6415 = vmatpush.bf16.msra.mxu0 %v5007
    %6416 = vmatpush.bf16.msra.mxu0 %v5003
    %6417 = vmatpush.bf16.msra.mxu0 %v4999
    %6418 = vmatpush.bf16.msra.mxu0 %v4995
    %6419 = vmatpush.bf16.msra.mxu0 %v4991
    %6420 = vmatmul.bf16.gmra.mxu0 %v6318
    %v6421 = vpop.f32.mrf.mxu0
    %v6422 = vadd.f32 %v6409, %v6421
    %v6423 = vpop.f32.mrf.mxu0
    %6424 = vdwg.mxu0
    %v6425 = vxor.u32 %v6344, 2147483648
    %v6426 = vmul.f32 %v6425, 1.442695
    %v6427 = vpow.pop %v6426
    %v6428 = vadd.f32 %v6427, 1.0
    %v6429 = vrcp.pop %v6428
    %v6430 = vmul.f32 %v6428, %v6429
    %v6431 = vsub.f32 1.0, %v6430
    %v6432 = vmul.f32 %v6429, %v6431
    %v6433 = vadd.f32 %v6429, %v6432
    %vm6434 = vweird.f32 %v6428
    %vm6435 = vweird.f32 %v6429
    %vm6436 = vmor %vm6434, %vm6435
    %v6437 = vsel %vm6436, %v6429, %v6433
    %v6438 = vand.u32 2147483647, %v6428
    %vm6439 = vcmp.eq.f32.partialorder %v6438, 8.507059e+37
    %v6440 = vand.u32 %v6428, 2147483648
    %v6441 = vor.u32 1.1754944e-38, %v6440
    %v6442 = vsel %vm6439, %v6441, %v6437
    %v6443 = vmul.f32 1.0, %v6442
    %v6444 = vxor.u32 %v6370, 2147483648
    %v6445 = vmul.f32 %v6444, 1.442695
    %v6446 = vpow.pop %v6445
    %v6447 = vadd.f32 %v6446, 1.0
    %v6448 = vrcp.pop %v6447
    %v6449 = vmul.f32 %v6447, %v6448
    %v6450 = vsub.f32 1.0, %v6449
    %v6451 = vmul.f32 %v6448, %v6450
    %v6452 = vadd.f32 %v6448, %v6451
    %vm6453 = vweird.f32 %v6447
    %vm6454 = vweird.f32 %v6448
    %vm6455 = vmor %vm6453, %vm6454
    %v6456 = vsel %vm6455, %v6448, %v6452
    %v6457 = vand.u32 2147483647, %v6447
    %vm6458 = vcmp.eq.f32.partialorder %v6457, 8.507059e+37
    %v6459 = vand.u32 %v6447, 2147483648
    %v6460 = vor.u32 1.1754944e-38, %v6459
    %v6461 = vsel %vm6458, %v6460, %v6456
    %v6462 = vmul.f32 1.0, %v6461
    %v6463 = vtanh.pop %v6396
    %v6464 = vxor.u32 %v6422, 2147483648
    %v6465 = vmul.f32 %v6464, 1.442695
    %v6466 = vpow.pop %v6465
    %v6467 = vadd.f32 %v6466, 1.0
    %v6468 = vrcp.pop %v6467
    %v6469 = vmul.f32 %v6467, %v6468
    %v6470 = vsub.f32 1.0, %v6469
    %v6471 = vmul.f32 %v6468, %v6470
    %v6472 = vadd.f32 %v6468, %v6471
    %vm6473 = vweird.f32 %v6467
    %vm6474 = vweird.f32 %v6468
    %vm6475 = vmor %vm6473, %vm6474
    %v6476 = vsel %vm6475, %v6468, %v6472
    %v6477 = vand.u32 2147483647, %v6467
    %vm6478 = vcmp.eq.f32.partialorder %v6477, 8.507059e+37
    %v6479 = vand.u32 %v6467, 2147483648
    %v6480 = vor.u32 1.1754944e-38, %v6479
    %v6481 = vsel %vm6478, %v6480, %v6476
    %v6482 = vmul.f32 1.0, %v6481
    %v6483 = vmul.f32 %v6462, %v6066
    %v6484 = vmul.f32 %v6443, %v6463
    %v6485 = vadd.f32 %v6483, %v6484
    %v6486 = vtanh.pop %v6485
    %v6487 = vmul.f32 %v6482, %v6486
    %v6488 = vpack.c.bf16 %v6290, %v6290
    %v6489 = vpack.c.bf16 %v6291, %v6291
    %v6492 = vunpack.c.l.b16 %v6488
    %v6493 = vunpack.c.l.b16 %v6489
    %v6494 = vrot.slane %v6492, 3
    %v6495 = vrot.slane %v6493, 2
    %v6496 = vsel %vm4750, %v6495, %v6494
    %v6497 = vpack.c.b16 %v6496, %v6496
    %6499 = vmatpush.bf16.msra.mxu0 %v4509
    %6500 = vmatpush.bf16.msra.mxu0 %v4505
    %6501 = vmatpush.bf16.msra.mxu0 %v4501
    %6502 = vmatpush.bf16.msra.mxu0 %v4497
    %6503 = vmatpush.bf16.msra.mxu0 %v4493
    %6504 = vmatpush.bf16.msra.mxu0 %v4489
    %6505 = vmatpush.bf16.msra.mxu0 %v4485
    %6506 = vmatpush.bf16.msra.mxu0 %v4481
    %6507 = vmatmul.bf16.gmra.mxu0 %v6497
    %v6508 = vpop.f32.mrf.mxu0
    %v6509 = vadd.f32 0.0, %v6508
    %v6510 = vpop.f32.mrf.mxu0
    %6511 = vdwg.mxu0
    %6512 = vmatpush.bf16.msra.mxu0 %v4510
    %6513 = vmatpush.bf16.msra.mxu0 %v4506
    %6514 = vmatpush.bf16.msra.mxu0 %v4502
    %6515 = vmatpush.bf16.msra.mxu0 %v4498
    %6516 = vmatpush.bf16.msra.mxu0 %v4494
    %6517 = vmatpush.bf16.msra.mxu0 %v4490
    %6518 = vmatpush.bf16.msra.mxu0 %v4486
    %6519 = vmatpush.bf16.msra.mxu0 %v4482
    %6520 = vmatmul.bf16.gmra.mxu0 %v6497
    %v6521 = vpop.f32.mrf.mxu0
    %v6522 = vadd.f32 0.0, %v6521
    %v6523 = vpop.f32.mrf.mxu0
    %6524 = vdwg.mxu0
    %6525 = vmatpush.bf16.msra.mxu0 %v4511
    %6526 = vmatpush.bf16.msra.mxu0 %v4507
    %6527 = vmatpush.bf16.msra.mxu0 %v4503
    %6528 = vmatpush.bf16.msra.mxu0 %v4499
    %6529 = vmatpush.bf16.msra.mxu0 %v4495
    %6530 = vmatpush.bf16.msra.mxu0 %v4491
    %6531 = vmatpush.bf16.msra.mxu0 %v4487
    %6532 = vmatpush.bf16.msra.mxu0 %v4483
    %6533 = vmatmul.bf16.gmra.mxu0 %v6497
    %v6534 = vpop.f32.mrf.mxu0
    %v6535 = vadd.f32 0.0, %v6534
    %v6536 = vpop.f32.mrf.mxu0
    %6537 = vdwg.mxu0
    %6538 = vmatpush.bf16.msra.mxu0 %v4512
    %6539 = vmatpush.bf16.msra.mxu0 %v4508
    %6540 = vmatpush.bf16.msra.mxu0 %v4504
    %6541 = vmatpush.bf16.msra.mxu0 %v4500
    %6542 = vmatpush.bf16.msra.mxu0 %v4496
    %6543 = vmatpush.bf16.msra.mxu0 %v4492
    %6544 = vmatpush.bf16.msra.mxu0 %v4488
    %6545 = vmatpush.bf16.msra.mxu0 %v4484
    %6546 = vmatmul.bf16.gmra.mxu0 %v6497
    %v6547 = vpop.f32.mrf.mxu0
    %v6548 = vadd.f32 0.0, %v6547
    %v6549 = vpop.f32.mrf.mxu0
    %6550 = vdwg.mxu0
    %v6555 = vrot.slane %v6509, 4
    %v6556 = vrot.slane %v6522, 4
    %v6557 = vrot.slane %v6535, 4
    %v6558 = vrot.slane %v6548, 4
    %v6559 = vrot.slane %v6509, 5
    %v6560 = vrot.slane %v6522, 5
    %v6561 = vrot.slane %v6535, 5
    %v6562 = vrot.slane %v6548, 5
    %v6571 = vadd.f32 %v4242, %v6555
    %v6572 = vadd.f32 %v4256, %v6556
    %v6573 = vadd.f32 %v4270, %v6557
    %v6574 = vadd.f32 %v4284, %v6558
    %v6575 = vadd.f32 %v4244, %v6559
    %v6576 = vadd.f32 %v4258, %v6560
    %v6577 = vadd.f32 %v4272, %v6561
    %v6578 = vadd.f32 %v4286, %v6562
    %v6579 = vxor.u32 %v6571, 2147483648
    %v6580 = vxor.u32 %v6575, 2147483648
    %v6581 = vmul.f32 %v6579, 1.442695
    %v6582 = vpow.pop %v6581
    %v6583 = vmul.f32 %v6580, 1.442695
    %v6584 = vpow.pop %v6583
    %v6585 = vadd.f32 %v6582, 1.0
    %v6586 = vadd.f32 %v6584, 1.0
    %v6587 = vrcp.pop %v6585
    %v6588 = vmul.f32 %v6585, %v6587
    %v6589 = vsub.f32 1.0, %v6588
    %v6590 = vmul.f32 %v6587, %v6589
    %v6591 = vadd.f32 %v6587, %v6590
    %vm6592 = vweird.f32 %v6585
    %vm6593 = vweird.f32 %v6587
    %vm6594 = vmor %vm6592, %vm6593
    %v6595 = vsel %vm6594, %v6587, %v6591
    %v6596 = vand.u32 2147483647, %v6585
    %vm6597 = vcmp.eq.f32.partialorder %v6596, 8.507059e+37
    %v6598 = vand.u32 %v6585, 2147483648
    %v6599 = vor.u32 1.1754944e-38, %v6598
    %v6600 = vsel %vm6597, %v6599, %v6595
    %v6601 = vmul.f32 1.0, %v6600
    %v6602 = vrcp.pop %v6586
    %v6603 = vmul.f32 %v6586, %v6602
    %v6604 = vsub.f32 1.0, %v6603
    %v6605 = vmul.f32 %v6602, %v6604
    %v6606 = vadd.f32 %v6602, %v6605
    %vm6607 = vweird.f32 %v6586
    %vm6608 = vweird.f32 %v6602
    %vm6609 = vmor %vm6607, %vm6608
    %v6610 = vsel %vm6609, %v6602, %v6606
    %v6611 = vand.u32 2147483647, %v6586
    %vm6612 = vcmp.eq.f32.partialorder %v6611, 8.507059e+37
    %v6613 = vand.u32 %v6586, 2147483648
    %v6614 = vor.u32 1.1754944e-38, %v6613
    %v6615 = vsel %vm6612, %v6614, %v6610
    %v6616 = vmul.f32 1.0, %v6615
    %v6617 = vxor.u32 %v6572, 2147483648
    %v6618 = vxor.u32 %v6576, 2147483648
    %v6619 = vmul.f32 %v6617, 1.442695
    %v6620 = vpow.pop %v6619
    %v6621 = vmul.f32 %v6618, 1.442695
    %v6622 = vpow.pop %v6621
    %v6623 = vadd.f32 %v6620, 1.0
    %v6624 = vadd.f32 %v6622, 1.0
    %v6625 = vrcp.pop %v6623
    %v6626 = vmul.f32 %v6623, %v6625
    %v6627 = vsub.f32 1.0, %v6626
    %v6628 = vmul.f32 %v6625, %v6627
    %v6629 = vadd.f32 %v6625, %v6628
    %vm6630 = vweird.f32 %v6623
    %vm6631 = vweird.f32 %v6625
    %vm6632 = vmor %vm6630, %vm6631
    %v6633 = vsel %vm6632, %v6625, %v6629
    %v6634 = vand.u32 2147483647, %v6623
    %vm6635 = vcmp.eq.f32.partialorder %v6634, 8.507059e+37
    %v6636 = vand.u32 %v6623, 2147483648
    %v6637 = vor.u32 1.1754944e-38, %v6636
    %v6638 = vsel %vm6635, %v6637, %v6633
    %v6639 = vmul.f32 1.0, %v6638
    %v6640 = vrcp.pop %v6624
    %v6641 = vmul.f32 %v6624, %v6640
    %v6642 = vsub.f32 1.0, %v6641
    %v6643 = vmul.f32 %v6640, %v6642
    %v6644 = vadd.f32 %v6640, %v6643
    %vm6645 = vweird.f32 %v6624
    %vm6646 = vweird.f32 %v6640
    %vm6647 = vmor %vm6645, %vm6646
    %v6648 = vsel %vm6647, %v6640, %v6644
    %v6649 = vand.u32 2147483647, %v6624
    %vm6650 = vcmp.eq.f32.partialorder %v6649, 8.507059e+37
    %v6651 = vand.u32 %v6624, 2147483648
    %v6652 = vor.u32 1.1754944e-38, %v6651
    %v6653 = vsel %vm6650, %v6652, %v6648
    %v6654 = vmul.f32 1.0, %v6653
    %v6655 = vtanh.pop %v6573
    %v6656 = vtanh.pop %v6577
    %v6657 = vxor.u32 %v6574, 2147483648
    %v6658 = vxor.u32 %v6578, 2147483648
    %v6659 = vmul.f32 %v6657, 1.442695
    %v6660 = vpow.pop %v6659
    %v6661 = vmul.f32 %v6658, 1.442695
    %v6662 = vpow.pop %v6661
    %v6663 = vadd.f32 %v6660, 1.0
    %v6664 = vadd.f32 %v6662, 1.0
    %v6665 = vrcp.pop %v6663
    %v6666 = vmul.f32 %v6663, %v6665
    %v6667 = vsub.f32 1.0, %v6666
    %v6668 = vmul.f32 %v6665, %v6667
    %v6669 = vadd.f32 %v6665, %v6668
    %vm6670 = vweird.f32 %v6663
    %vm6671 = vweird.f32 %v6665
    %vm6672 = vmor %vm6670, %vm6671
    %v6673 = vsel %vm6672, %v6665, %v6669
    %v6674 = vand.u32 2147483647, %v6663
    %vm6675 = vcmp.eq.f32.partialorder %v6674, 8.507059e+37
    %v6676 = vand.u32 %v6663, 2147483648
    %v6677 = vor.u32 1.1754944e-38, %v6676
    %v6678 = vsel %vm6675, %v6677, %v6673
    %v6679 = vmul.f32 1.0, %v6678
    %v6680 = vrcp.pop %v6664
    %v6681 = vmul.f32 %v6664, %v6680
    %v6682 = vsub.f32 1.0, %v6681
    %v6683 = vmul.f32 %v6680, %v6682
    %v6684 = vadd.f32 %v6680, %v6683
    %vm6685 = vweird.f32 %v6664
    %vm6686 = vweird.f32 %v6680
    %vm6687 = vmor %vm6685, %vm6686
    %v6688 = vsel %vm6687, %v6680, %v6684
    %v6689 = vand.u32 2147483647, %v6664
    %vm6690 = vcmp.eq.f32.partialorder %v6689, 8.507059e+37
    %v6691 = vand.u32 %v6664, 2147483648
    %v6692 = vor.u32 1.1754944e-38, %v6691
    %v6693 = vsel %vm6690, %v6692, %v6688
    %v6694 = vmul.f32 1.0, %v6693
    %v6697 = vrot.slane %v6286, 7
    %v6698 = vrot.slane %v6287, 7
    %v6701 = vmul.f32 %v6639, %v6697
    %v6702 = vmul.f32 %v6654, %v6698
    %v6703 = vmul.f32 %v6601, %v6655
    %v6704 = vmul.f32 %v6616, %v6656
    %v6705 = vadd.f32 %v6701, %v6703
    %v6706 = vadd.f32 %v6702, %v6704
    %v6707 = vtanh.pop %v6705
    %v6708 = vtanh.pop %v6706
    %v6709 = vmul.f32 %v6679, %v6707
    %v6710 = vmul.f32 %v6694, %v6708
    %v6713 = vrot.slane %v6710, 7
    %vm6714 = vcmask 1045509
    %v6715 = vsel %vm6714, %v6713, %v6709
    %v6718 = vrot.slane %v6487, 4
    %v6720 = vpack.c.bf16 %v6715, %v6715
    %v6721 = vpack.c.bf16 %v6718, %v6718
    %v6724 = vrot.slane %v6720, 2
    %v6725 = vrot.slane %v6721, 2
    %6728 = vmatpush.bf16.msra.mxu0 %v4984
    %6729 = vmatpush.bf16.msra.mxu0 %v4980
    %6730 = vmatpush.bf16.msra.mxu0 %v4976
    %6731 = vmatpush.bf16.msra.mxu0 %v4972
    %6732 = vmatpush.bf16.msra.mxu0 %v4968
    %6733 = vmatpush.bf16.msra.mxu0 %v4964
    %6734 = vmatpush.bf16.msra.mxu0 %v4960
    %6735 = vmatpush.bf16.msra.mxu0 %v4956
    %6736 = vmatmul.bf16.gmra.mxu0 %v6724
    %v6737 = vpop.f32.mrf.mxu0
    %v6738 = vadd.f32 %v4756, %v6737
    %v6739 = vpop.f32.mrf.mxu0
    %6740 = vdwg.mxu0
    %6741 = vmatpush.bf16.msra.mxu0 %v5016
    %6742 = vmatpush.bf16.msra.mxu0 %v5012
    %6743 = vmatpush.bf16.msra.mxu0 %v5008
    %6744 = vmatpush.bf16.msra.mxu0 %v5004
    %6745 = vmatpush.bf16.msra.mxu0 %v5000
    %6746 = vmatpush.bf16.msra.mxu0 %v4996
    %6747 = vmatpush.bf16.msra.mxu0 %v4992
    %6748 = vmatpush.bf16.msra.mxu0 %v4988
    %6749 = vmatmul.bf16.gmra.mxu0 %v6725
    %v6750 = vpop.f32.mrf.mxu0
    %v6751 = vadd.f32 %v6738, %v6750
    %v6752 = vpop.f32.mrf.mxu0
    %6753 = vdwg.mxu0
    %6754 = vmatpush.bf16.msra.mxu0 %v4985
    %6755 = vmatpush.bf16.msra.mxu0 %v4981
    %6756 = vmatpush.bf16.msra.mxu0 %v4977
    %6757 = vmatpush.bf16.msra.mxu0 %v4973
    %6758 = vmatpush.bf16.msra.mxu0 %v4969
    %6759 = vmatpush.bf16.msra.mxu0 %v4965
    %6760 = vmatpush.bf16.msra.mxu0 %v4961
    %6761 = vmatpush.bf16.msra.mxu0 %v4957
    %6762 = vmatmul.bf16.gmra.mxu0 %v6724
    %v6763 = vpop.f32.mrf.mxu0
    %v6764 = vadd.f32 %v4757, %v6763
    %v6765 = vpop.f32.mrf.mxu0
    %6766 = vdwg.mxu0
    %6767 = vmatpush.bf16.msra.mxu0 %v5017
    %6768 = vmatpush.bf16.msra.mxu0 %v5013
    %6769 = vmatpush.bf16.msra.mxu0 %v5009
    %6770 = vmatpush.bf16.msra.mxu0 %v5005
    %6771 = vmatpush.bf16.msra.mxu0 %v5001
    %6772 = vmatpush.bf16.msra.mxu0 %v4997
    %6773 = vmatpush.bf16.msra.mxu0 %v4993
    %6774 = vmatpush.bf16.msra.mxu0 %v4989
    %6775 = vmatmul.bf16.gmra.mxu0 %v6725
    %v6776 = vpop.f32.mrf.mxu0
    %v6777 = vadd.f32 %v6764, %v6776
    %v6778 = vpop.f32.mrf.mxu0
    %6779 = vdwg.mxu0
    %6780 = vmatpush.bf16.msra.mxu0 %v4986
    %6781 = vmatpush.bf16.msra.mxu0 %v4982
    %6782 = vmatpush.bf16.msra.mxu0 %v4978
    %6783 = vmatpush.bf16.msra.mxu0 %v4974
    %6784 = vmatpush.bf16.msra.mxu0 %v4970
    %6785 = vmatpush.bf16.msra.mxu0 %v4966
    %6786 = vmatpush.bf16.msra.mxu0 %v4962
    %6787 = vmatpush.bf16.msra.mxu0 %v4958
    %6788 = vmatmul.bf16.gmra.mxu0 %v6724
    %v6789 = vpop.f32.mrf.mxu0
    %v6790 = vadd.f32 %v4758, %v6789
    %v6791 = vpop.f32.mrf.mxu0
    %6792 = vdwg.mxu0
    %6793 = vmatpush.bf16.msra.mxu0 %v5018
    %6794 = vmatpush.bf16.msra.mxu0 %v5014
    %6795 = vmatpush.bf16.msra.mxu0 %v5010
    %6796 = vmatpush.bf16.msra.mxu0 %v5006
    %6797 = vmatpush.bf16.msra.mxu0 %v5002
    %6798 = vmatpush.bf16.msra.mxu0 %v4998
    %6799 = vmatpush.bf16.msra.mxu0 %v4994
    %6800 = vmatpush.bf16.msra.mxu0 %v4990
    %6801 = vmatmul.bf16.gmra.mxu0 %v6725
    %v6802 = vpop.f32.mrf.mxu0
    %v6803 = vadd.f32 %v6790, %v6802
    %v6804 = vpop.f32.mrf.mxu0
    %6805 = vdwg.mxu0
    %6806 = vmatpush.bf16.msra.mxu0 %v4987
    %6807 = vmatpush.bf16.msra.mxu0 %v4983
    %6808 = vmatpush.bf16.msra.mxu0 %v4979
    %6809 = vmatpush.bf16.msra.mxu0 %v4975
    %6810 = vmatpush.bf16.msra.mxu0 %v4971
    %6811 = vmatpush.bf16.msra.mxu0 %v4967
    %6812 = vmatpush.bf16.msra.mxu0 %v4963
    %6813 = vmatpush.bf16.msra.mxu0 %v4959
    %6814 = vmatmul.bf16.gmra.mxu0 %v6724
    %v6815 = vpop.f32.mrf.mxu0
    %v6816 = vadd.f32 %v4759, %v6815
    %v6817 = vpop.f32.mrf.mxu0
    %6818 = vdwg.mxu0
    %6819 = vmatpush.bf16.msra.mxu0 %v5019
    %6820 = vmatpush.bf16.msra.mxu0 %v5015
    %6821 = vmatpush.bf16.msra.mxu0 %v5011
    %6822 = vmatpush.bf16.msra.mxu0 %v5007
    %6823 = vmatpush.bf16.msra.mxu0 %v5003
    %6824 = vmatpush.bf16.msra.mxu0 %v4999
    %6825 = vmatpush.bf16.msra.mxu0 %v4995
    %6826 = vmatpush.bf16.msra.mxu0 %v4991
    %6827 = vmatmul.bf16.gmra.mxu0 %v6725
    %v6828 = vpop.f32.mrf.mxu0
    %v6829 = vadd.f32 %v6816, %v6828
    %v6830 = vpop.f32.mrf.mxu0
    %6831 = vdwg.mxu0
    %v6832 = vxor.u32 %v6751, 2147483648
    %v6833 = vmul.f32 %v6832, 1.442695
    %v6834 = vpow.pop %v6833
    %v6835 = vadd.f32 %v6834, 1.0
    %v6836 = vrcp.pop %v6835
    %v6837 = vmul.f32 %v6835, %v6836
    %v6838 = vsub.f32 1.0, %v6837
    %v6839 = vmul.f32 %v6836, %v6838
    %v6840 = vadd.f32 %v6836, %v6839
    %vm6841 = vweird.f32 %v6835
    %vm6842 = vweird.f32 %v6836
    %vm6843 = vmor %vm6841, %vm6842
    %v6844 = vsel %vm6843, %v6836, %v6840
    %v6845 = vand.u32 2147483647, %v6835
    %vm6846 = vcmp.eq.f32.partialorder %v6845, 8.507059e+37
    %v6847 = vand.u32 %v6835, 2147483648
    %v6848 = vor.u32 1.1754944e-38, %v6847
    %v6849 = vsel %vm6846, %v6848, %v6844
    %v6850 = vmul.f32 1.0, %v6849
    %v6851 = vxor.u32 %v6777, 2147483648
    %v6852 = vmul.f32 %v6851, 1.442695
    %v6853 = vpow.pop %v6852
    %v6854 = vadd.f32 %v6853, 1.0
    %v6855 = vrcp.pop %v6854
    %v6856 = vmul.f32 %v6854, %v6855
    %v6857 = vsub.f32 1.0, %v6856
    %v6858 = vmul.f32 %v6855, %v6857
    %v6859 = vadd.f32 %v6855, %v6858
    %vm6860 = vweird.f32 %v6854
    %vm6861 = vweird.f32 %v6855
    %vm6862 = vmor %vm6860, %vm6861
    %v6863 = vsel %vm6862, %v6855, %v6859
    %v6864 = vand.u32 2147483647, %v6854
    %vm6865 = vcmp.eq.f32.partialorder %v6864, 8.507059e+37
    %v6866 = vand.u32 %v6854, 2147483648
    %v6867 = vor.u32 1.1754944e-38, %v6866
    %v6868 = vsel %vm6865, %v6867, %v6863
    %v6869 = vmul.f32 1.0, %v6868
    %v6870 = vtanh.pop %v6803
    %v6871 = vxor.u32 %v6829, 2147483648
    %v6872 = vmul.f32 %v6871, 1.442695
    %v6873 = vpow.pop %v6872
    %v6874 = vadd.f32 %v6873, 1.0
    %v6875 = vrcp.pop %v6874
    %v6876 = vmul.f32 %v6874, %v6875
    %v6877 = vsub.f32 1.0, %v6876
    %v6878 = vmul.f32 %v6875, %v6877
    %v6879 = vadd.f32 %v6875, %v6878
    %vm6880 = vweird.f32 %v6874
    %vm6881 = vweird.f32 %v6875
    %vm6882 = vmor %vm6880, %vm6881
    %v6883 = vsel %vm6882, %v6875, %v6879
    %v6884 = vand.u32 2147483647, %v6874
    %vm6885 = vcmp.eq.f32.partialorder %v6884, 8.507059e+37
    %v6886 = vand.u32 %v6874, 2147483648
    %v6887 = vor.u32 1.1754944e-38, %v6886
    %v6888 = vsel %vm6885, %v6887, %v6883
    %v6889 = vmul.f32 1.0, %v6888
    %v6890 = vmul.f32 %v6869, %v6485
    %v6891 = vmul.f32 %v6850, %v6870
    %v6892 = vadd.f32 %v6890, %v6891
    %v6893 = vtanh.pop %v6892
    %v6894 = vmul.f32 %v6889, %v6893
    %v6895 = vpack.c.bf16 %v6709, %v6709
    %v6896 = vpack.c.bf16 %v6710, %v6710
    %v6899 = vunpack.c.l.b16 %v6895
    %v6900 = vunpack.c.l.b16 %v6896
    %v6901 = vrot.slane %v6899, 4
    %v6902 = vrot.slane %v6900, 3
    %v6903 = vsel %vm4750, %v6902, %v6901
    %v6904 = vpack.c.b16 %v6903, %v6903
    %6906 = vmatpush.bf16.msra.mxu0 %v4509
    %6907 = vmatpush.bf16.msra.mxu0 %v4505
    %6908 = vmatpush.bf16.msra.mxu0 %v4501
    %6909 = vmatpush.bf16.msra.mxu0 %v4497
    %6910 = vmatpush.bf16.msra.mxu0 %v4493
    %6911 = vmatpush.bf16.msra.mxu0 %v4489
    %6912 = vmatpush.bf16.msra.mxu0 %v4485
    %6913 = vmatpush.bf16.msra.mxu0 %v4481
    %6914 = vmatmul.bf16.gmra.mxu0 %v6904
    %v6915 = vpop.f32.mrf.mxu0
    %v6916 = vadd.f32 0.0, %v6915
    %v6917 = vpop.f32.mrf.mxu0
    %6918 = vdwg.mxu0
    %6919 = vmatpush.bf16.msra.mxu0 %v4510
    %6920 = vmatpush.bf16.msra.mxu0 %v4506
    %6921 = vmatpush.bf16.msra.mxu0 %v4502
    %6922 = vmatpush.bf16.msra.mxu0 %v4498
    %6923 = vmatpush.bf16.msra.mxu0 %v4494
    %6924 = vmatpush.bf16.msra.mxu0 %v4490
    %6925 = vmatpush.bf16.msra.mxu0 %v4486
    %6926 = vmatpush.bf16.msra.mxu0 %v4482
    %6927 = vmatmul.bf16.gmra.mxu0 %v6904
    %v6928 = vpop.f32.mrf.mxu0
    %v6929 = vadd.f32 0.0, %v6928
    %v6930 = vpop.f32.mrf.mxu0
    %6931 = vdwg.mxu0
    %6932 = vmatpush.bf16.msra.mxu0 %v4511
    %6933 = vmatpush.bf16.msra.mxu0 %v4507
    %6934 = vmatpush.bf16.msra.mxu0 %v4503
    %6935 = vmatpush.bf16.msra.mxu0 %v4499
    %6936 = vmatpush.bf16.msra.mxu0 %v4495
    %6937 = vmatpush.bf16.msra.mxu0 %v4491
    %6938 = vmatpush.bf16.msra.mxu0 %v4487
    %6939 = vmatpush.bf16.msra.mxu0 %v4483
    %6940 = vmatmul.bf16.gmra.mxu0 %v6904
    %v6941 = vpop.f32.mrf.mxu0
    %v6942 = vadd.f32 0.0, %v6941
    %v6943 = vpop.f32.mrf.mxu0
    %6944 = vdwg.mxu0
    %6945 = vmatpush.bf16.msra.mxu0 %v4512
    %6946 = vmatpush.bf16.msra.mxu0 %v4508
    %6947 = vmatpush.bf16.msra.mxu0 %v4504
    %6948 = vmatpush.bf16.msra.mxu0 %v4500
    %6949 = vmatpush.bf16.msra.mxu0 %v4496
    %6950 = vmatpush.bf16.msra.mxu0 %v4492
    %6951 = vmatpush.bf16.msra.mxu0 %v4488
    %6952 = vmatpush.bf16.msra.mxu0 %v4484
    %6953 = vmatmul.bf16.gmra.mxu0 %v6904
    %v6954 = vpop.f32.mrf.mxu0
    %v6955 = vadd.f32 0.0, %v6954
    %v6956 = vpop.f32.mrf.mxu0
    %6957 = vdwg.mxu0
    %v6962 = vrot.slane %v6916, 3
    %v6963 = vrot.slane %v6929, 3
    %v6964 = vrot.slane %v6942, 3
    %v6965 = vrot.slane %v6955, 3
    %v6966 = vrot.slane %v6916, 4
    %v6967 = vrot.slane %v6929, 4
    %v6968 = vrot.slane %v6942, 4
    %v6969 = vrot.slane %v6955, 4
    %v6978 = vadd.f32 %v4242, %v6962
    %v6979 = vadd.f32 %v4256, %v6963
    %v6980 = vadd.f32 %v4270, %v6964
    %v6981 = vadd.f32 %v4284, %v6965
    %v6982 = vadd.f32 %v4244, %v6966
    %v6983 = vadd.f32 %v4258, %v6967
    %v6984 = vadd.f32 %v4272, %v6968
    %v6985 = vadd.f32 %v4286, %v6969
    %v6986 = vxor.u32 %v6978, 2147483648
    %v6987 = vxor.u32 %v6982, 2147483648
    %v6988 = vmul.f32 %v6986, 1.442695
    %v6989 = vpow.pop %v6988
    %v6990 = vmul.f32 %v6987, 1.442695
    %v6991 = vpow.pop %v6990
    %v6992 = vadd.f32 %v6989, 1.0
    %v6993 = vadd.f32 %v6991, 1.0
    %v6994 = vrcp.pop %v6992
    %v6995 = vmul.f32 %v6992, %v6994
    %v6996 = vsub.f32 1.0, %v6995
    %v6997 = vmul.f32 %v6994, %v6996
    %v6998 = vadd.f32 %v6994, %v6997
    %vm6999 = vweird.f32 %v6992
    %vm7000 = vweird.f32 %v6994
    %vm7001 = vmor %vm6999, %vm7000
    %v7002 = vsel %vm7001, %v6994, %v6998
    %v7003 = vand.u32 2147483647, %v6992
    %vm7004 = vcmp.eq.f32.partialorder %v7003, 8.507059e+37
    %v7005 = vand.u32 %v6992, 2147483648
    %v7006 = vor.u32 1.1754944e-38, %v7005
    %v7007 = vsel %vm7004, %v7006, %v7002
    %v7008 = vmul.f32 1.0, %v7007
    %v7009 = vrcp.pop %v6993
    %v7010 = vmul.f32 %v6993, %v7009
    %v7011 = vsub.f32 1.0, %v7010
    %v7012 = vmul.f32 %v7009, %v7011
    %v7013 = vadd.f32 %v7009, %v7012
    %vm7014 = vweird.f32 %v6993
    %vm7015 = vweird.f32 %v7009
    %vm7016 = vmor %vm7014, %vm7015
    %v7017 = vsel %vm7016, %v7009, %v7013
    %v7018 = vand.u32 2147483647, %v6993
    %vm7019 = vcmp.eq.f32.partialorder %v7018, 8.507059e+37
    %v7020 = vand.u32 %v6993, 2147483648
    %v7021 = vor.u32 1.1754944e-38, %v7020
    %v7022 = vsel %vm7019, %v7021, %v7017
    %v7023 = vmul.f32 1.0, %v7022
    %v7024 = vxor.u32 %v6979, 2147483648
    %v7025 = vxor.u32 %v6983, 2147483648
    %v7026 = vmul.f32 %v7024, 1.442695
    %v7027 = vpow.pop %v7026
    %v7028 = vmul.f32 %v7025, 1.442695
    %v7029 = vpow.pop %v7028
    %v7030 = vadd.f32 %v7027, 1.0
    %v7031 = vadd.f32 %v7029, 1.0
    %v7032 = vrcp.pop %v7030
    %v7033 = vmul.f32 %v7030, %v7032
    %v7034 = vsub.f32 1.0, %v7033
    %v7035 = vmul.f32 %v7032, %v7034
    %v7036 = vadd.f32 %v7032, %v7035
    %vm7037 = vweird.f32 %v7030
    %vm7038 = vweird.f32 %v7032
    %vm7039 = vmor %vm7037, %vm7038
    %v7040 = vsel %vm7039, %v7032, %v7036
    %v7041 = vand.u32 2147483647, %v7030
    %vm7042 = vcmp.eq.f32.partialorder %v7041, 8.507059e+37
    %v7043 = vand.u32 %v7030, 2147483648
    %v7044 = vor.u32 1.1754944e-38, %v7043
    %v7045 = vsel %vm7042, %v7044, %v7040
    %v7046 = vmul.f32 1.0, %v7045
    %v7047 = vrcp.pop %v7031
    %v7048 = vmul.f32 %v7031, %v7047
    %v7049 = vsub.f32 1.0, %v7048
    %v7050 = vmul.f32 %v7047, %v7049
    %v7051 = vadd.f32 %v7047, %v7050
    %vm7052 = vweird.f32 %v7031
    %vm7053 = vweird.f32 %v7047
    %vm7054 = vmor %vm7052, %vm7053
    %v7055 = vsel %vm7054, %v7047, %v7051
    %v7056 = vand.u32 2147483647, %v7031
    %vm7057 = vcmp.eq.f32.partialorder %v7056, 8.507059e+37
    %v7058 = vand.u32 %v7031, 2147483648
    %v7059 = vor.u32 1.1754944e-38, %v7058
    %v7060 = vsel %vm7057, %v7059, %v7055
    %v7061 = vmul.f32 1.0, %v7060
    %v7062 = vtanh.pop %v6980
    %v7063 = vtanh.pop %v6984
    %v7064 = vxor.u32 %v6981, 2147483648
    %v7065 = vxor.u32 %v6985, 2147483648
    %v7066 = vmul.f32 %v7064, 1.442695
    %v7067 = vpow.pop %v7066
    %v7068 = vmul.f32 %v7065, 1.442695
    %v7069 = vpow.pop %v7068
    %v7070 = vadd.f32 %v7067, 1.0
    %v7071 = vadd.f32 %v7069, 1.0
    %v7072 = vrcp.pop %v7070
    %v7073 = vmul.f32 %v7070, %v7072
    %v7074 = vsub.f32 1.0, %v7073
    %v7075 = vmul.f32 %v7072, %v7074
    %v7076 = vadd.f32 %v7072, %v7075
    %vm7077 = vweird.f32 %v7070
    %vm7078 = vweird.f32 %v7072
    %vm7079 = vmor %vm7077, %vm7078
    %v7080 = vsel %vm7079, %v7072, %v7076
    %v7081 = vand.u32 2147483647, %v7070
    %vm7082 = vcmp.eq.f32.partialorder %v7081, 8.507059e+37
    %v7083 = vand.u32 %v7070, 2147483648
    %v7084 = vor.u32 1.1754944e-38, %v7083
    %v7085 = vsel %vm7082, %v7084, %v7080
    %v7086 = vmul.f32 1.0, %v7085
    %v7087 = vrcp.pop %v7071
    %v7088 = vmul.f32 %v7071, %v7087
    %v7089 = vsub.f32 1.0, %v7088
    %v7090 = vmul.f32 %v7087, %v7089
    %v7091 = vadd.f32 %v7087, %v7090
    %vm7092 = vweird.f32 %v7071
    %vm7093 = vweird.f32 %v7087
    %vm7094 = vmor %vm7092, %vm7093
    %v7095 = vsel %vm7094, %v7087, %v7091
    %v7096 = vand.u32 2147483647, %v7071
    %vm7097 = vcmp.eq.f32.partialorder %v7096, 8.507059e+37
    %v7098 = vand.u32 %v7071, 2147483648
    %v7099 = vor.u32 1.1754944e-38, %v7098
    %v7100 = vsel %vm7097, %v7099, %v7095
    %v7101 = vmul.f32 1.0, %v7100
    %v7104 = vrot.slane %v6705, 7
    %v7105 = vrot.slane %v6706, 7
    %v7108 = vmul.f32 %v7046, %v7104
    %v7109 = vmul.f32 %v7061, %v7105
    %v7110 = vmul.f32 %v7008, %v7062
    %v7111 = vmul.f32 %v7023, %v7063
    %v7112 = vadd.f32 %v7108, %v7110
    %v7113 = vadd.f32 %v7109, %v7111
    %v7114 = vtanh.pop %v7112
    %v7115 = vtanh.pop %v7113
    %v7116 = vmul.f32 %v7086, %v7114
    %v7117 = vmul.f32 %v7101, %v7115
    %v7120 = vrot.slane %v7117, 7
    %vm7121 = vcmask 1046534
    %v7122 = vsel %vm7121, %v7120, %v7116
    %v7125 = vrot.slane %v6894, 3
    %v7127 = vpack.c.bf16 %v7122, %v7122
    %v7128 = vpack.c.bf16 %v7125, %v7125
    %v7130 = vshrl.u32 %v7127, 16
    %v7132 = vrot.slane %v7130, 2
    %v7133 = vshll.u32 %v7127, 16
    %v7135 = vrot.slane %v7133, 3
    %v7136 = vor.u32 %v7132, %v7135
    %v7138 = vshrl.u32 %v7128, 16
    %v7140 = vrot.slane %v7138, 2
    %v7141 = vshll.u32 %v7128, 16
    %v7143 = vrot.slane %v7141, 3
    %v7144 = vor.u32 %v7140, %v7143
    %7147 = vmatpush.bf16.msra.mxu0 %v4984
    %7148 = vmatpush.bf16.msra.mxu0 %v4980
    %7149 = vmatpush.bf16.msra.mxu0 %v4976
    %7150 = vmatpush.bf16.msra.mxu0 %v4972
    %7151 = vmatpush.bf16.msra.mxu0 %v4968
    %7152 = vmatpush.bf16.msra.mxu0 %v4964
    %7153 = vmatpush.bf16.msra.mxu0 %v4960
    %7154 = vmatpush.bf16.msra.mxu0 %v4956
    %7155 = vmatmul.bf16.gmra.mxu0 %v7136
    %v7156 = vpop.f32.mrf.mxu0
    %v7157 = vadd.f32 %v4756, %v7156
    %v7158 = vpop.f32.mrf.mxu0
    %7159 = vdwg.mxu0
    %7160 = vmatpush.bf16.msra.mxu0 %v5016
    %7161 = vmatpush.bf16.msra.mxu0 %v5012
    %7162 = vmatpush.bf16.msra.mxu0 %v5008
    %7163 = vmatpush.bf16.msra.mxu0 %v5004
    %7164 = vmatpush.bf16.msra.mxu0 %v5000
    %7165 = vmatpush.bf16.msra.mxu0 %v4996
    %7166 = vmatpush.bf16.msra.mxu0 %v4992
    %7167 = vmatpush.bf16.msra.mxu0 %v4988
    %7168 = vmatmul.bf16.gmra.mxu0 %v7144
    %v7169 = vpop.f32.mrf.mxu0
    %v7170 = vadd.f32 %v7157, %v7169
    %v7171 = vpop.f32.mrf.mxu0
    %7172 = vdwg.mxu0
    %7173 = vmatpush.bf16.msra.mxu0 %v4985
    %7174 = vmatpush.bf16.msra.mxu0 %v4981
    %7175 = vmatpush.bf16.msra.mxu0 %v4977
    %7176 = vmatpush.bf16.msra.mxu0 %v4973
    %7177 = vmatpush.bf16.msra.mxu0 %v4969
    %7178 = vmatpush.bf16.msra.mxu0 %v4965
    %7179 = vmatpush.bf16.msra.mxu0 %v4961
    %7180 = vmatpush.bf16.msra.mxu0 %v4957
    %7181 = vmatmul.bf16.gmra.mxu0 %v7136
    %v7182 = vpop.f32.mrf.mxu0
    %v7183 = vadd.f32 %v4757, %v7182
    %v7184 = vpop.f32.mrf.mxu0
    %7185 = vdwg.mxu0
    %7186 = vmatpush.bf16.msra.mxu0 %v5017
    %7187 = vmatpush.bf16.msra.mxu0 %v5013
    %7188 = vmatpush.bf16.msra.mxu0 %v5009
    %7189 = vmatpush.bf16.msra.mxu0 %v5005
    %7190 = vmatpush.bf16.msra.mxu0 %v5001
    %7191 = vmatpush.bf16.msra.mxu0 %v4997
    %7192 = vmatpush.bf16.msra.mxu0 %v4993
    %7193 = vmatpush.bf16.msra.mxu0 %v4989
    %7194 = vmatmul.bf16.gmra.mxu0 %v7144
    %v7195 = vpop.f32.mrf.mxu0
    %v7196 = vadd.f32 %v7183, %v7195
    %v7197 = vpop.f32.mrf.mxu0
    %7198 = vdwg.mxu0
    %7199 = vmatpush.bf16.msra.mxu0 %v4986
    %7200 = vmatpush.bf16.msra.mxu0 %v4982
    %7201 = vmatpush.bf16.msra.mxu0 %v4978
    %7202 = vmatpush.bf16.msra.mxu0 %v4974
    %7203 = vmatpush.bf16.msra.mxu0 %v4970
    %7204 = vmatpush.bf16.msra.mxu0 %v4966
    %7205 = vmatpush.bf16.msra.mxu0 %v4962
    %7206 = vmatpush.bf16.msra.mxu0 %v4958
    %7207 = vmatmul.bf16.gmra.mxu0 %v7136
    %v7208 = vpop.f32.mrf.mxu0
    %v7209 = vadd.f32 %v4758, %v7208
    %v7210 = vpop.f32.mrf.mxu0
    %7211 = vdwg.mxu0
    %7212 = vmatpush.bf16.msra.mxu0 %v5018
    %7213 = vmatpush.bf16.msra.mxu0 %v5014
    %7214 = vmatpush.bf16.msra.mxu0 %v5010
    %7215 = vmatpush.bf16.msra.mxu0 %v5006
    %7216 = vmatpush.bf16.msra.mxu0 %v5002
    %7217 = vmatpush.bf16.msra.mxu0 %v4998
    %7218 = vmatpush.bf16.msra.mxu0 %v4994
    %7219 = vmatpush.bf16.msra.mxu0 %v4990
    %7220 = vmatmul.bf16.gmra.mxu0 %v7144
    %v7221 = vpop.f32.mrf.mxu0
    %v7222 = vadd.f32 %v7209, %v7221
    %v7223 = vpop.f32.mrf.mxu0
    %7224 = vdwg.mxu0
    %7225 = vmatpush.bf16.msra.mxu0 %v4987
    %7226 = vmatpush.bf16.msra.mxu0 %v4983
    %7227 = vmatpush.bf16.msra.mxu0 %v4979
    %7228 = vmatpush.bf16.msra.mxu0 %v4975
    %7229 = vmatpush.bf16.msra.mxu0 %v4971
    %7230 = vmatpush.bf16.msra.mxu0 %v4967
    %7231 = vmatpush.bf16.msra.mxu0 %v4963
    %7232 = vmatpush.bf16.msra.mxu0 %v4959
    %7233 = vmatmul.bf16.gmra.mxu0 %v7136
    %v7234 = vpop.f32.mrf.mxu0
    %v7235 = vadd.f32 %v4759, %v7234
    %v7236 = vpop.f32.mrf.mxu0
    %7237 = vdwg.mxu0
    %7238 = vmatpush.bf16.msra.mxu0 %v5019
    %7239 = vmatpush.bf16.msra.mxu0 %v5015
    %7240 = vmatpush.bf16.msra.mxu0 %v5011
    %7241 = vmatpush.bf16.msra.mxu0 %v5007
    %7242 = vmatpush.bf16.msra.mxu0 %v5003
    %7243 = vmatpush.bf16.msra.mxu0 %v4999
    %7244 = vmatpush.bf16.msra.mxu0 %v4995
    %7245 = vmatpush.bf16.msra.mxu0 %v4991
    %7246 = vmatmul.bf16.gmra.mxu0 %v7144
    %v7247 = vpop.f32.mrf.mxu0
    %v7248 = vadd.f32 %v7235, %v7247
    %v7249 = vpop.f32.mrf.mxu0
    %7250 = vdwg.mxu0
    %v7251 = vxor.u32 %v7170, 2147483648
    %v7252 = vmul.f32 %v7251, 1.442695
    %v7253 = vpow.pop %v7252
    %v7254 = vadd.f32 %v7253, 1.0
    %v7255 = vrcp.pop %v7254
    %v7256 = vmul.f32 %v7254, %v7255
    %v7257 = vsub.f32 1.0, %v7256
    %v7258 = vmul.f32 %v7255, %v7257
    %v7259 = vadd.f32 %v7255, %v7258
    %vm7260 = vweird.f32 %v7254
    %vm7261 = vweird.f32 %v7255
    %vm7262 = vmor %vm7260, %vm7261
    %v7263 = vsel %vm7262, %v7255, %v7259
    %v7264 = vand.u32 2147483647, %v7254
    %vm7265 = vcmp.eq.f32.partialorder %v7264, 8.507059e+37
    %v7266 = vand.u32 %v7254, 2147483648
    %v7267 = vor.u32 1.1754944e-38, %v7266
    %v7268 = vsel %vm7265, %v7267, %v7263
    %v7269 = vmul.f32 1.0, %v7268
    %v7270 = vxor.u32 %v7196, 2147483648
    %v7271 = vmul.f32 %v7270, 1.442695
    %v7272 = vpow.pop %v7271
    %v7273 = vadd.f32 %v7272, 1.0
    %v7274 = vrcp.pop %v7273
    %v7275 = vmul.f32 %v7273, %v7274
    %v7276 = vsub.f32 1.0, %v7275
    %v7277 = vmul.f32 %v7274, %v7276
    %v7278 = vadd.f32 %v7274, %v7277
    %vm7279 = vweird.f32 %v7273
    %vm7280 = vweird.f32 %v7274
    %vm7281 = vmor %vm7279, %vm7280
    %v7282 = vsel %vm7281, %v7274, %v7278
    %v7283 = vand.u32 2147483647, %v7273
    %vm7284 = vcmp.eq.f32.partialorder %v7283, 8.507059e+37
    %v7285 = vand.u32 %v7273, 2147483648
    %v7286 = vor.u32 1.1754944e-38, %v7285
    %v7287 = vsel %vm7284, %v7286, %v7282
    %v7288 = vmul.f32 1.0, %v7287
    %v7289 = vtanh.pop %v7222
    %v7290 = vxor.u32 %v7248, 2147483648
    %v7291 = vmul.f32 %v7290, 1.442695
    %v7292 = vpow.pop %v7291
    %v7293 = vadd.f32 %v7292, 1.0
    %v7294 = vrcp.pop %v7293
    %v7295 = vmul.f32 %v7293, %v7294
    %v7296 = vsub.f32 1.0, %v7295
    %v7297 = vmul.f32 %v7294, %v7296
    %v7298 = vadd.f32 %v7294, %v7297
    %vm7299 = vweird.f32 %v7293
    %vm7300 = vweird.f32 %v7294
    %vm7301 = vmor %vm7299, %vm7300
    %v7302 = vsel %vm7301, %v7294, %v7298
    %v7303 = vand.u32 2147483647, %v7293
    %vm7304 = vcmp.eq.f32.partialorder %v7303, 8.507059e+37
    %v7305 = vand.u32 %v7293, 2147483648
    %v7306 = vor.u32 1.1754944e-38, %v7305
    %v7307 = vsel %vm7304, %v7306, %v7302
    %v7308 = vmul.f32 1.0, %v7307
    %v7309 = vmul.f32 %v7288, %v6892
    %v7310 = vmul.f32 %v7269, %v7289
    %v7311 = vadd.f32 %v7309, %v7310
    %v7312 = vtanh.pop %v7311
    %v7313 = vmul.f32 %v7308, %v7312
    %v7314 = vpack.c.bf16 %v7116, %v7116
    %v7315 = vpack.c.bf16 %v7117, %v7117
    %v7318 = vunpack.c.l.b16 %v7314
    %v7319 = vunpack.c.l.b16 %v7315
    %v7320 = vrot.slane %v7318, 5
    %v7321 = vrot.slane %v7319, 4
    %v7322 = vsel %vm4750, %v7321, %v7320
    %v7323 = vpack.c.b16 %v7322, %v7322
    %7325 = vmatpush.bf16.msra.mxu0 %v4509
    %7326 = vmatpush.bf16.msra.mxu0 %v4505
    %7327 = vmatpush.bf16.msra.mxu0 %v4501
    %7328 = vmatpush.bf16.msra.mxu0 %v4497
    %7329 = vmatpush.bf16.msra.mxu0 %v4493
    %7330 = vmatpush.bf16.msra.mxu0 %v4489
    %7331 = vmatpush.bf16.msra.mxu0 %v4485
    %7332 = vmatpush.bf16.msra.mxu0 %v4481
    %7333 = vmatmul.bf16.gmra.mxu0 %v7323
    %v7334 = vpop.f32.mrf.mxu0
    %v7335 = vadd.f32 0.0, %v7334
    %v7336 = vpop.f32.mrf.mxu0
    %7337 = vdwg.mxu0
    %7338 = vmatpush.bf16.msra.mxu0 %v4510
    %7339 = vmatpush.bf16.msra.mxu0 %v4506
    %7340 = vmatpush.bf16.msra.mxu0 %v4502
    %7341 = vmatpush.bf16.msra.mxu0 %v4498
    %7342 = vmatpush.bf16.msra.mxu0 %v4494
    %7343 = vmatpush.bf16.msra.mxu0 %v4490
    %7344 = vmatpush.bf16.msra.mxu0 %v4486
    %7345 = vmatpush.bf16.msra.mxu0 %v4482
    %7346 = vmatmul.bf16.gmra.mxu0 %v7323
    %v7347 = vpop.f32.mrf.mxu0
    %v7348 = vadd.f32 0.0, %v7347
    %v7349 = vpop.f32.mrf.mxu0
    %7350 = vdwg.mxu0
    %7351 = vmatpush.bf16.msra.mxu0 %v4511
    %7352 = vmatpush.bf16.msra.mxu0 %v4507
    %7353 = vmatpush.bf16.msra.mxu0 %v4503
    %7354 = vmatpush.bf16.msra.mxu0 %v4499
    %7355 = vmatpush.bf16.msra.mxu0 %v4495
    %7356 = vmatpush.bf16.msra.mxu0 %v4491
    %7357 = vmatpush.bf16.msra.mxu0 %v4487
    %7358 = vmatpush.bf16.msra.mxu0 %v4483
    %7359 = vmatmul.bf16.gmra.mxu0 %v7323
    %v7360 = vpop.f32.mrf.mxu0
    %v7361 = vadd.f32 0.0, %v7360
    %v7362 = vpop.f32.mrf.mxu0
    %7363 = vdwg.mxu0
    %7364 = vmatpush.bf16.msra.mxu0 %v4512
    %7365 = vmatpush.bf16.msra.mxu0 %v4508
    %7366 = vmatpush.bf16.msra.mxu0 %v4504
    %7367 = vmatpush.bf16.msra.mxu0 %v4500
    %7368 = vmatpush.bf16.msra.mxu0 %v4496
    %7369 = vmatpush.bf16.msra.mxu0 %v4492
    %7370 = vmatpush.bf16.msra.mxu0 %v4488
    %7371 = vmatpush.bf16.msra.mxu0 %v4484
    %7372 = vmatmul.bf16.gmra.mxu0 %v7323
    %v7373 = vpop.f32.mrf.mxu0
    %v7374 = vadd.f32 0.0, %v7373
    %v7375 = vpop.f32.mrf.mxu0
    %7376 = vdwg.mxu0
    %v7381 = vrot.slane %v7335, 2
    %v7382 = vrot.slane %v7348, 2
    %v7383 = vrot.slane %v7361, 2
    %v7384 = vrot.slane %v7374, 2
    %v7385 = vrot.slane %v7335, 3
    %v7386 = vrot.slane %v7348, 3
    %v7387 = vrot.slane %v7361, 3
    %v7388 = vrot.slane %v7374, 3
    %v7397 = vadd.f32 %v4242, %v7381
    %v7398 = vadd.f32 %v4256, %v7382
    %v7399 = vadd.f32 %v4270, %v7383
    %v7400 = vadd.f32 %v4284, %v7384
    %v7401 = vadd.f32 %v4244, %v7385
    %v7402 = vadd.f32 %v4258, %v7386
    %v7403 = vadd.f32 %v4272, %v7387
    %v7404 = vadd.f32 %v4286, %v7388
    %v7405 = vxor.u32 %v7397, 2147483648
    %v7406 = vxor.u32 %v7401, 2147483648
    %v7407 = vmul.f32 %v7405, 1.442695
    %v7408 = vpow.pop %v7407
    %v7409 = vmul.f32 %v7406, 1.442695
    %v7410 = vpow.pop %v7409
    %v7411 = vadd.f32 %v7408, 1.0
    %v7412 = vadd.f32 %v7410, 1.0
    %v7413 = vrcp.pop %v7411
    %v7414 = vmul.f32 %v7411, %v7413
    %v7415 = vsub.f32 1.0, %v7414
    %v7416 = vmul.f32 %v7413, %v7415
    %v7417 = vadd.f32 %v7413, %v7416
    %vm7418 = vweird.f32 %v7411
    %vm7419 = vweird.f32 %v7413
    %vm7420 = vmor %vm7418, %vm7419
    %v7421 = vsel %vm7420, %v7413, %v7417
    %v7422 = vand.u32 2147483647, %v7411
    %vm7423 = vcmp.eq.f32.partialorder %v7422, 8.507059e+37
    %v7424 = vand.u32 %v7411, 2147483648
    %v7425 = vor.u32 1.1754944e-38, %v7424
    %v7426 = vsel %vm7423, %v7425, %v7421
    %v7427 = vmul.f32 1.0, %v7426
    %v7428 = vrcp.pop %v7412
    %v7429 = vmul.f32 %v7412, %v7428
    %v7430 = vsub.f32 1.0, %v7429
    %v7431 = vmul.f32 %v7428, %v7430
    %v7432 = vadd.f32 %v7428, %v7431
    %vm7433 = vweird.f32 %v7412
    %vm7434 = vweird.f32 %v7428
    %vm7435 = vmor %vm7433, %vm7434
    %v7436 = vsel %vm7435, %v7428, %v7432
    %v7437 = vand.u32 2147483647, %v7412
    %vm7438 = vcmp.eq.f32.partialorder %v7437, 8.507059e+37
    %v7439 = vand.u32 %v7412, 2147483648
    %v7440 = vor.u32 1.1754944e-38, %v7439
    %v7441 = vsel %vm7438, %v7440, %v7436
    %v7442 = vmul.f32 1.0, %v7441
    %v7443 = vxor.u32 %v7398, 2147483648
    %v7444 = vxor.u32 %v7402, 2147483648
    %v7445 = vmul.f32 %v7443, 1.442695
    %v7446 = vpow.pop %v7445
    %v7447 = vmul.f32 %v7444, 1.442695
    %v7448 = vpow.pop %v7447
    %v7449 = vadd.f32 %v7446, 1.0
    %v7450 = vadd.f32 %v7448, 1.0
    %v7451 = vrcp.pop %v7449
    %v7452 = vmul.f32 %v7449, %v7451
    %v7453 = vsub.f32 1.0, %v7452
    %v7454 = vmul.f32 %v7451, %v7453
    %v7455 = vadd.f32 %v7451, %v7454
    %vm7456 = vweird.f32 %v7449
    %vm7457 = vweird.f32 %v7451
    %vm7458 = vmor %vm7456, %vm7457
    %v7459 = vsel %vm7458, %v7451, %v7455
    %v7460 = vand.u32 2147483647, %v7449
    %vm7461 = vcmp.eq.f32.partialorder %v7460, 8.507059e+37
    %v7462 = vand.u32 %v7449, 2147483648
    %v7463 = vor.u32 1.1754944e-38, %v7462
    %v7464 = vsel %vm7461, %v7463, %v7459
    %v7465 = vmul.f32 1.0, %v7464
    %v7466 = vrcp.pop %v7450
    %v7467 = vmul.f32 %v7450, %v7466
    %v7468 = vsub.f32 1.0, %v7467
    %v7469 = vmul.f32 %v7466, %v7468
    %v7470 = vadd.f32 %v7466, %v7469
    %vm7471 = vweird.f32 %v7450
    %vm7472 = vweird.f32 %v7466
    %vm7473 = vmor %vm7471, %vm7472
    %v7474 = vsel %vm7473, %v7466, %v7470
    %v7475 = vand.u32 2147483647, %v7450
    %vm7476 = vcmp.eq.f32.partialorder %v7475, 8.507059e+37
    %v7477 = vand.u32 %v7450, 2147483648
    %v7478 = vor.u32 1.1754944e-38, %v7477
    %v7479 = vsel %vm7476, %v7478, %v7474
    %v7480 = vmul.f32 1.0, %v7479
    %v7481 = vtanh.pop %v7399
    %v7482 = vtanh.pop %v7403
    %v7483 = vxor.u32 %v7400, 2147483648
    %v7484 = vxor.u32 %v7404, 2147483648
    %v7485 = vmul.f32 %v7483, 1.442695
    %v7486 = vpow.pop %v7485
    %v7487 = vmul.f32 %v7484, 1.442695
    %v7488 = vpow.pop %v7487
    %v7489 = vadd.f32 %v7486, 1.0
    %v7490 = vadd.f32 %v7488, 1.0
    %v7491 = vrcp.pop %v7489
    %v7492 = vmul.f32 %v7489, %v7491
    %v7493 = vsub.f32 1.0, %v7492
    %v7494 = vmul.f32 %v7491, %v7493
    %v7495 = vadd.f32 %v7491, %v7494
    %vm7496 = vweird.f32 %v7489
    %vm7497 = vweird.f32 %v7491
    %vm7498 = vmor %vm7496, %vm7497
    %v7499 = vsel %vm7498, %v7491, %v7495
    %v7500 = vand.u32 2147483647, %v7489
    %vm7501 = vcmp.eq.f32.partialorder %v7500, 8.507059e+37
    %v7502 = vand.u32 %v7489, 2147483648
    %v7503 = vor.u32 1.1754944e-38, %v7502
    %v7504 = vsel %vm7501, %v7503, %v7499
    %v7505 = vmul.f32 1.0, %v7504
    %v7506 = vrcp.pop %v7490
    %v7507 = vmul.f32 %v7490, %v7506
    %v7508 = vsub.f32 1.0, %v7507
    %v7509 = vmul.f32 %v7506, %v7508
    %v7510 = vadd.f32 %v7506, %v7509
    %vm7511 = vweird.f32 %v7490
    %vm7512 = vweird.f32 %v7506
    %vm7513 = vmor %vm7511, %vm7512
    %v7514 = vsel %vm7513, %v7506, %v7510
    %v7515 = vand.u32 2147483647, %v7490
    %vm7516 = vcmp.eq.f32.partialorder %v7515, 8.507059e+37
    %v7517 = vand.u32 %v7490, 2147483648
    %v7518 = vor.u32 1.1754944e-38, %v7517
    %v7519 = vsel %vm7516, %v7518, %v7514
    %v7520 = vmul.f32 1.0, %v7519
    %v7523 = vrot.slane %v7112, 7
    %v7524 = vrot.slane %v7113, 7
    %v7527 = vmul.f32 %v7465, %v7523
    %v7528 = vmul.f32 %v7480, %v7524
    %v7529 = vmul.f32 %v7427, %v7481
    %v7530 = vmul.f32 %v7442, %v7482
    %v7531 = vadd.f32 %v7527, %v7529
    %v7532 = vadd.f32 %v7528, %v7530
    %v7533 = vtanh.pop %v7531
    %v7534 = vtanh.pop %v7532
    %v7535 = vmul.f32 %v7505, %v7533
    %v7536 = vmul.f32 %v7520, %v7534
    %v7539 = vrot.slane %v7536, 7
    %vm7540 = vcmask 1047559
    %v7541 = vsel %vm7540, %v7539, %v7535
    %v7544 = vrot.slane %v7313, 2
    %v7546 = vpack.c.bf16 %v7541, %v7541
    %v7547 = vpack.c.bf16 %v7544, %v7544
    %v7550 = vrot.slane %v7546, 3
    %v7551 = vrot.slane %v7547, 3
    %7554 = vmatpush.bf16.msra.mxu0 %v4984
    %7555 = vmatpush.bf16.msra.mxu0 %v4980
    %7556 = vmatpush.bf16.msra.mxu0 %v4976
    %7557 = vmatpush.bf16.msra.mxu0 %v4972
    %7558 = vmatpush.bf16.msra.mxu0 %v4968
    %7559 = vmatpush.bf16.msra.mxu0 %v4964
    %7560 = vmatpush.bf16.msra.mxu0 %v4960
    %7561 = vmatpush.bf16.msra.mxu0 %v4956
    %7562 = vmatmul.bf16.gmra.mxu0 %v7550
    %v7563 = vpop.f32.mrf.mxu0
    %v7564 = vadd.f32 %v4756, %v7563
    %v7565 = vpop.f32.mrf.mxu0
    %7566 = vdwg.mxu0
    %7567 = vmatpush.bf16.msra.mxu0 %v5016
    %7568 = vmatpush.bf16.msra.mxu0 %v5012
    %7569 = vmatpush.bf16.msra.mxu0 %v5008
    %7570 = vmatpush.bf16.msra.mxu0 %v5004
    %7571 = vmatpush.bf16.msra.mxu0 %v5000
    %7572 = vmatpush.bf16.msra.mxu0 %v4996
    %7573 = vmatpush.bf16.msra.mxu0 %v4992
    %7574 = vmatpush.bf16.msra.mxu0 %v4988
    %7575 = vmatmul.bf16.gmra.mxu0 %v7551
    %v7576 = vpop.f32.mrf.mxu0
    %v7577 = vadd.f32 %v7564, %v7576
    %v7578 = vpop.f32.mrf.mxu0
    %7579 = vdwg.mxu0
    %7580 = vmatpush.bf16.msra.mxu0 %v4985
    %7581 = vmatpush.bf16.msra.mxu0 %v4981
    %7582 = vmatpush.bf16.msra.mxu0 %v4977
    %7583 = vmatpush.bf16.msra.mxu0 %v4973
    %7584 = vmatpush.bf16.msra.mxu0 %v4969
    %7585 = vmatpush.bf16.msra.mxu0 %v4965
    %7586 = vmatpush.bf16.msra.mxu0 %v4961
    %7587 = vmatpush.bf16.msra.mxu0 %v4957
    %7588 = vmatmul.bf16.gmra.mxu0 %v7550
    %v7589 = vpop.f32.mrf.mxu0
    %v7590 = vadd.f32 %v4757, %v7589
    %v7591 = vpop.f32.mrf.mxu0
    %7592 = vdwg.mxu0
    %7593 = vmatpush.bf16.msra.mxu0 %v5017
    %7594 = vmatpush.bf16.msra.mxu0 %v5013
    %7595 = vmatpush.bf16.msra.mxu0 %v5009
    %7596 = vmatpush.bf16.msra.mxu0 %v5005
    %7597 = vmatpush.bf16.msra.mxu0 %v5001
    %7598 = vmatpush.bf16.msra.mxu0 %v4997
    %7599 = vmatpush.bf16.msra.mxu0 %v4993
    %7600 = vmatpush.bf16.msra.mxu0 %v4989
    %7601 = vmatmul.bf16.gmra.mxu0 %v7551
    %v7602 = vpop.f32.mrf.mxu0
    %v7603 = vadd.f32 %v7590, %v7602
    %v7604 = vpop.f32.mrf.mxu0
    %7605 = vdwg.mxu0
    %7606 = vmatpush.bf16.msra.mxu0 %v4986
    %7607 = vmatpush.bf16.msra.mxu0 %v4982
    %7608 = vmatpush.bf16.msra.mxu0 %v4978
    %7609 = vmatpush.bf16.msra.mxu0 %v4974
    %7610 = vmatpush.bf16.msra.mxu0 %v4970
    %7611 = vmatpush.bf16.msra.mxu0 %v4966
    %7612 = vmatpush.bf16.msra.mxu0 %v4962
    %7613 = vmatpush.bf16.msra.mxu0 %v4958
    %7614 = vmatmul.bf16.gmra.mxu0 %v7550
    %v7615 = vpop.f32.mrf.mxu0
    %v7616 = vadd.f32 %v4758, %v7615
    %v7617 = vpop.f32.mrf.mxu0
    %7618 = vdwg.mxu0
    %7619 = vmatpush.bf16.msra.mxu0 %v5018
    %7620 = vmatpush.bf16.msra.mxu0 %v5014
    %7621 = vmatpush.bf16.msra.mxu0 %v5010
    %7622 = vmatpush.bf16.msra.mxu0 %v5006
    %7623 = vmatpush.bf16.msra.mxu0 %v5002
    %7624 = vmatpush.bf16.msra.mxu0 %v4998
    %7625 = vmatpush.bf16.msra.mxu0 %v4994
    %7626 = vmatpush.bf16.msra.mxu0 %v4990
    %7627 = vmatmul.bf16.gmra.mxu0 %v7551
    %v7628 = vpop.f32.mrf.mxu0
    %v7629 = vadd.f32 %v7616, %v7628
    %v7630 = vpop.f32.mrf.mxu0
    %7631 = vdwg.mxu0
    %7632 = vmatpush.bf16.msra.mxu0 %v4987
    %7633 = vmatpush.bf16.msra.mxu0 %v4983
    %7634 = vmatpush.bf16.msra.mxu0 %v4979
    %7635 = vmatpush.bf16.msra.mxu0 %v4975
    %7636 = vmatpush.bf16.msra.mxu0 %v4971
    %7637 = vmatpush.bf16.msra.mxu0 %v4967
    %7638 = vmatpush.bf16.msra.mxu0 %v4963
    %7639 = vmatpush.bf16.msra.mxu0 %v4959
    %7640 = vmatmul.bf16.gmra.mxu0 %v7550
    %v7641 = vpop.f32.mrf.mxu0
    %v7642 = vadd.f32 %v4759, %v7641
    %v7643 = vpop.f32.mrf.mxu0
    %7644 = vdwg.mxu0
    %7645 = vmatpush.bf16.msra.mxu0 %v5019
    %7646 = vmatpush.bf16.msra.mxu0 %v5015
    %7647 = vmatpush.bf16.msra.mxu0 %v5011
    %7648 = vmatpush.bf16.msra.mxu0 %v5007
    %7649 = vmatpush.bf16.msra.mxu0 %v5003
    %7650 = vmatpush.bf16.msra.mxu0 %v4999
    %7651 = vmatpush.bf16.msra.mxu0 %v4995
    %7652 = vmatpush.bf16.msra.mxu0 %v4991
    %7653 = vmatmul.bf16.gmra.mxu0 %v7551
    %v7654 = vpop.f32.mrf.mxu0
    %v7655 = vadd.f32 %v7642, %v7654
    %v7656 = vpop.f32.mrf.mxu0
    %7657 = vdwg.mxu0
    %v7658 = vxor.u32 %v7577, 2147483648
    %v7659 = vmul.f32 %v7658, 1.442695
    %v7660 = vpow.pop %v7659
    %v7661 = vadd.f32 %v7660, 1.0
    %v7662 = vrcp.pop %v7661
    %v7663 = vmul.f32 %v7661, %v7662
    %v7664 = vsub.f32 1.0, %v7663
    %v7665 = vmul.f32 %v7662, %v7664
    %v7666 = vadd.f32 %v7662, %v7665
    %vm7667 = vweird.f32 %v7661
    %vm7668 = vweird.f32 %v7662
    %vm7669 = vmor %vm7667, %vm7668
    %v7670 = vsel %vm7669, %v7662, %v7666
    %v7671 = vand.u32 2147483647, %v7661
    %vm7672 = vcmp.eq.f32.partialorder %v7671, 8.507059e+37
    %v7673 = vand.u32 %v7661, 2147483648
    %v7674 = vor.u32 1.1754944e-38, %v7673
    %v7675 = vsel %vm7672, %v7674, %v7670
    %v7676 = vmul.f32 1.0, %v7675
    %v7677 = vxor.u32 %v7603, 2147483648
    %v7678 = vmul.f32 %v7677, 1.442695
    %v7679 = vpow.pop %v7678
    %v7680 = vadd.f32 %v7679, 1.0
    %v7681 = vrcp.pop %v7680
    %v7682 = vmul.f32 %v7680, %v7681
    %v7683 = vsub.f32 1.0, %v7682
    %v7684 = vmul.f32 %v7681, %v7683
    %v7685 = vadd.f32 %v7681, %v7684
    %vm7686 = vweird.f32 %v7680
    %vm7687 = vweird.f32 %v7681
    %vm7688 = vmor %vm7686, %vm7687
    %v7689 = vsel %vm7688, %v7681, %v7685
    %v7690 = vand.u32 2147483647, %v7680
    %vm7691 = vcmp.eq.f32.partialorder %v7690, 8.507059e+37
    %v7692 = vand.u32 %v7680, 2147483648
    %v7693 = vor.u32 1.1754944e-38, %v7692
    %v7694 = vsel %vm7691, %v7693, %v7689
    %v7695 = vmul.f32 1.0, %v7694
    %v7696 = vtanh.pop %v7629
    %v7697 = vxor.u32 %v7655, 2147483648
    %v7698 = vmul.f32 %v7697, 1.442695
    %v7699 = vpow.pop %v7698
    %v7700 = vadd.f32 %v7699, 1.0
    %v7701 = vrcp.pop %v7700
    %v7702 = vmul.f32 %v7700, %v7701
    %v7703 = vsub.f32 1.0, %v7702
    %v7704 = vmul.f32 %v7701, %v7703
    %v7705 = vadd.f32 %v7701, %v7704
    %vm7706 = vweird.f32 %v7700
    %vm7707 = vweird.f32 %v7701
    %vm7708 = vmor %vm7706, %vm7707
    %v7709 = vsel %vm7708, %v7701, %v7705
    %v7710 = vand.u32 2147483647, %v7700
    %vm7711 = vcmp.eq.f32.partialorder %v7710, 8.507059e+37
    %v7712 = vand.u32 %v7700, 2147483648
    %v7713 = vor.u32 1.1754944e-38, %v7712
    %v7714 = vsel %vm7711, %v7713, %v7709
    %v7715 = vmul.f32 1.0, %v7714
    %v7716 = vmul.f32 %v7695, %v7311
    %v7717 = vmul.f32 %v7676, %v7696
    %v7718 = vadd.f32 %v7716, %v7717
    %v7719 = vtanh.pop %v7718
    %v7720 = vmul.f32 %v7715, %v7719
    %v7721 = vpack.c.bf16 %v7535, %v7535
    %v7722 = vpack.c.bf16 %v7536, %v7536
    %v7725 = vunpack.c.l.b16 %v7721
    %v7726 = vunpack.c.l.b16 %v7722
    %v7727 = vrot.slane %v7725, 6
    %v7728 = vrot.slane %v7726, 5
    %v7729 = vsel %vm4750, %v7728, %v7727
    %v7730 = vpack.c.b16 %v7729, %v7729
    %7732 = vmatpush.bf16.msra.mxu0 %v4509
    %7733 = vmatpush.bf16.msra.mxu0 %v4505
    %7734 = vmatpush.bf16.msra.mxu0 %v4501
    %7735 = vmatpush.bf16.msra.mxu0 %v4497
    %7736 = vmatpush.bf16.msra.mxu0 %v4493
    %7737 = vmatpush.bf16.msra.mxu0 %v4489
    %7738 = vmatpush.bf16.msra.mxu0 %v4485
    %7739 = vmatpush.bf16.msra.mxu0 %v4481
    %7740 = vmatmul.bf16.gmra.mxu0 %v7730
    %v7741 = vpop.f32.mrf.mxu0
    %v7742 = vadd.f32 0.0, %v7741
    %v7743 = vpop.f32.mrf.mxu0
    %7744 = vdwg.mxu0
    %7745 = vmatpush.bf16.msra.mxu0 %v4510
    %7746 = vmatpush.bf16.msra.mxu0 %v4506
    %7747 = vmatpush.bf16.msra.mxu0 %v4502
    %7748 = vmatpush.bf16.msra.mxu0 %v4498
    %7749 = vmatpush.bf16.msra.mxu0 %v4494
    %7750 = vmatpush.bf16.msra.mxu0 %v4490
    %7751 = vmatpush.bf16.msra.mxu0 %v4486
    %7752 = vmatpush.bf16.msra.mxu0 %v4482
    %7753 = vmatmul.bf16.gmra.mxu0 %v7730
    %v7754 = vpop.f32.mrf.mxu0
    %v7755 = vadd.f32 0.0, %v7754
    %v7756 = vpop.f32.mrf.mxu0
    %7757 = vdwg.mxu0
    %7758 = vmatpush.bf16.msra.mxu0 %v4511
    %7759 = vmatpush.bf16.msra.mxu0 %v4507
    %7760 = vmatpush.bf16.msra.mxu0 %v4503
    %7761 = vmatpush.bf16.msra.mxu0 %v4499
    %7762 = vmatpush.bf16.msra.mxu0 %v4495
    %7763 = vmatpush.bf16.msra.mxu0 %v4491
    %7764 = vmatpush.bf16.msra.mxu0 %v4487
    %7765 = vmatpush.bf16.msra.mxu0 %v4483
    %7766 = vmatmul.bf16.gmra.mxu0 %v7730
    %v7767 = vpop.f32.mrf.mxu0
    %v7768 = vadd.f32 0.0, %v7767
    %v7769 = vpop.f32.mrf.mxu0
    %7770 = vdwg.mxu0
    %7771 = vmatpush.bf16.msra.mxu0 %v4512
    %7772 = vmatpush.bf16.msra.mxu0 %v4508
    %7773 = vmatpush.bf16.msra.mxu0 %v4504
    %7774 = vmatpush.bf16.msra.mxu0 %v4500
    %7775 = vmatpush.bf16.msra.mxu0 %v4496
    %7776 = vmatpush.bf16.msra.mxu0 %v4492
    %7777 = vmatpush.bf16.msra.mxu0 %v4488
    %7778 = vmatpush.bf16.msra.mxu0 %v4484
    %7779 = vmatmul.bf16.gmra.mxu0 %v7730
    %v7780 = vpop.f32.mrf.mxu0
    %v7781 = vadd.f32 0.0, %v7780
    %v7782 = vpop.f32.mrf.mxu0
    %7783 = vdwg.mxu0
    %v7788 = vrot.slane %v7742, 1
    %v7789 = vrot.slane %v7755, 1
    %v7790 = vrot.slane %v7768, 1
    %v7791 = vrot.slane %v7781, 1
    %v7792 = vrot.slane %v7742, 2
    %v7793 = vrot.slane %v7755, 2
    %v7794 = vrot.slane %v7768, 2
    %v7795 = vrot.slane %v7781, 2
    %v7804 = vadd.f32 %v4242, %v7788
    %v7805 = vadd.f32 %v4256, %v7789
    %v7806 = vadd.f32 %v4270, %v7790
    %v7807 = vadd.f32 %v4284, %v7791
    %v7808 = vadd.f32 %v4244, %v7792
    %v7809 = vadd.f32 %v4258, %v7793
    %v7810 = vadd.f32 %v4272, %v7794
    %v7811 = vadd.f32 %v4286, %v7795
    %v7812 = vxor.u32 %v7804, 2147483648
    %v7813 = vxor.u32 %v7808, 2147483648
    %v7814 = vmul.f32 %v7812, 1.442695
    %v7815 = vpow.pop %v7814
    %v7816 = vmul.f32 %v7813, 1.442695
    %v7817 = vpow.pop %v7816
    %v7818 = vadd.f32 %v7815, 1.0
    %v7819 = vadd.f32 %v7817, 1.0
    %v7820 = vrcp.pop %v7818
    %v7821 = vmul.f32 %v7818, %v7820
    %v7822 = vsub.f32 1.0, %v7821
    %v7823 = vmul.f32 %v7820, %v7822
    %v7824 = vadd.f32 %v7820, %v7823
    %vm7825 = vweird.f32 %v7818
    %vm7826 = vweird.f32 %v7820
    %vm7827 = vmor %vm7825, %vm7826
    %v7828 = vsel %vm7827, %v7820, %v7824
    %v7829 = vand.u32 2147483647, %v7818
    %vm7830 = vcmp.eq.f32.partialorder %v7829, 8.507059e+37
    %v7831 = vand.u32 %v7818, 2147483648
    %v7832 = vor.u32 1.1754944e-38, %v7831
    %v7833 = vsel %vm7830, %v7832, %v7828
    %v7834 = vmul.f32 1.0, %v7833
    %v7835 = vrcp.pop %v7819
    %v7836 = vmul.f32 %v7819, %v7835
    %v7837 = vsub.f32 1.0, %v7836
    %v7838 = vmul.f32 %v7835, %v7837
    %v7839 = vadd.f32 %v7835, %v7838
    %vm7840 = vweird.f32 %v7819
    %vm7841 = vweird.f32 %v7835
    %vm7842 = vmor %vm7840, %vm7841
    %v7843 = vsel %vm7842, %v7835, %v7839
    %v7844 = vand.u32 2147483647, %v7819
    %vm7845 = vcmp.eq.f32.partialorder %v7844, 8.507059e+37
    %v7846 = vand.u32 %v7819, 2147483648
    %v7847 = vor.u32 1.1754944e-38, %v7846
    %v7848 = vsel %vm7845, %v7847, %v7843
    %v7849 = vmul.f32 1.0, %v7848
    %v7850 = vxor.u32 %v7805, 2147483648
    %v7851 = vxor.u32 %v7809, 2147483648
    %v7852 = vmul.f32 %v7850, 1.442695
    %v7853 = vpow.pop %v7852
    %v7854 = vmul.f32 %v7851, 1.442695
    %v7855 = vpow.pop %v7854
    %v7856 = vadd.f32 %v7853, 1.0
    %v7857 = vadd.f32 %v7855, 1.0
    %v7858 = vrcp.pop %v7856
    %v7859 = vmul.f32 %v7856, %v7858
    %v7860 = vsub.f32 1.0, %v7859
    %v7861 = vmul.f32 %v7858, %v7860
    %v7862 = vadd.f32 %v7858, %v7861
    %vm7863 = vweird.f32 %v7856
    %vm7864 = vweird.f32 %v7858
    %vm7865 = vmor %vm7863, %vm7864
    %v7866 = vsel %vm7865, %v7858, %v7862
    %v7867 = vand.u32 2147483647, %v7856
    %vm7868 = vcmp.eq.f32.partialorder %v7867, 8.507059e+37
    %v7869 = vand.u32 %v7856, 2147483648
    %v7870 = vor.u32 1.1754944e-38, %v7869
    %v7871 = vsel %vm7868, %v7870, %v7866
    %v7872 = vmul.f32 1.0, %v7871
    %v7873 = vrcp.pop %v7857
    %v7874 = vmul.f32 %v7857, %v7873
    %v7875 = vsub.f32 1.0, %v7874
    %v7876 = vmul.f32 %v7873, %v7875
    %v7877 = vadd.f32 %v7873, %v7876
    %vm7878 = vweird.f32 %v7857
    %vm7879 = vweird.f32 %v7873
    %vm7880 = vmor %vm7878, %vm7879
    %v7881 = vsel %vm7880, %v7873, %v7877
    %v7882 = vand.u32 2147483647, %v7857
    %vm7883 = vcmp.eq.f32.partialorder %v7882, 8.507059e+37
    %v7884 = vand.u32 %v7857, 2147483648
    %v7885 = vor.u32 1.1754944e-38, %v7884
    %v7886 = vsel %vm7883, %v7885, %v7881
    %v7887 = vmul.f32 1.0, %v7886
    %v7888 = vtanh.pop %v7806
    %v7889 = vtanh.pop %v7810
    %v7890 = vxor.u32 %v7807, 2147483648
    %v7891 = vxor.u32 %v7811, 2147483648
    %v7892 = vmul.f32 %v7890, 1.442695
    %v7893 = vpow.pop %v7892
    %v7894 = vmul.f32 %v7891, 1.442695
    %v7895 = vpow.pop %v7894
    %v7896 = vadd.f32 %v7893, 1.0
    %v7897 = vadd.f32 %v7895, 1.0
    %v7898 = vrcp.pop %v7896
    %v7899 = vmul.f32 %v7896, %v7898
    %v7900 = vsub.f32 1.0, %v7899
    %v7901 = vmul.f32 %v7898, %v7900
    %v7902 = vadd.f32 %v7898, %v7901
    %vm7903 = vweird.f32 %v7896
    %vm7904 = vweird.f32 %v7898
    %vm7905 = vmor %vm7903, %vm7904
    %v7906 = vsel %vm7905, %v7898, %v7902
    %v7907 = vand.u32 2147483647, %v7896
    %vm7908 = vcmp.eq.f32.partialorder %v7907, 8.507059e+37
    %v7909 = vand.u32 %v7896, 2147483648
    %v7910 = vor.u32 1.1754944e-38, %v7909
    %v7911 = vsel %vm7908, %v7910, %v7906
    %v7912 = vmul.f32 1.0, %v7911
    %v7913 = vrcp.pop %v7897
    %v7914 = vmul.f32 %v7897, %v7913
    %v7915 = vsub.f32 1.0, %v7914
    %v7916 = vmul.f32 %v7913, %v7915
    %v7917 = vadd.f32 %v7913, %v7916
    %vm7918 = vweird.f32 %v7897
    %vm7919 = vweird.f32 %v7913
    %vm7920 = vmor %vm7918, %vm7919
    %v7921 = vsel %vm7920, %v7913, %v7917
    %v7922 = vand.u32 2147483647, %v7897
    %vm7923 = vcmp.eq.f32.partialorder %v7922, 8.507059e+37
    %v7924 = vand.u32 %v7897, 2147483648
    %v7925 = vor.u32 1.1754944e-38, %v7924
    %v7926 = vsel %vm7923, %v7925, %v7921
    %v7927 = vmul.f32 1.0, %v7926
    %v7930 = vrot.slane %v7531, 7
    %v7931 = vrot.slane %v7532, 7
    %v7934 = vmul.f32 %v7872, %v7930
    %v7935 = vmul.f32 %v7887, %v7931
    %v7936 = vmul.f32 %v7834, %v7888
    %v7937 = vmul.f32 %v7849, %v7889
    %v7938 = vadd.f32 %v7934, %v7936
    %v7939 = vadd.f32 %v7935, %v7937
    %v7940 = vtanh.pop %v7938
    %v7941 = vtanh.pop %v7939
    %v7942 = vmul.f32 %v7912, %v7940
    %v7943 = vmul.f32 %v7927, %v7941
    %v7946 = vrot.slane %v7943, 7
    %v7950 = vrot.slane %v7720, 1
    %v7952 = vpack.c.bf16 %v7946, %v7942
    %v7953 = vpack.c.bf16 %v7950, %v7950
    %v7955 = vshrl.u32 %v7952, 16
    %v7957 = vrot.slane %v7955, 3
    %v7958 = vshll.u32 %v7952, 16
    %v7960 = vrot.slane %v7958, 4
    %v7961 = vor.u32 %v7957, %v7960
    %v7963 = vshrl.u32 %v7953, 16
    %v7965 = vrot.slane %v7963, 3
    %v7966 = vshll.u32 %v7953, 16
    %v7968 = vrot.slane %v7966, 4
    %v7969 = vor.u32 %v7965, %v7968
    %7972 = vmatpush.bf16.msra.mxu0 %v4984
    %7973 = vmatpush.bf16.msra.mxu0 %v4980
    %7974 = vmatpush.bf16.msra.mxu0 %v4976
    %7975 = vmatpush.bf16.msra.mxu0 %v4972
    %7976 = vmatpush.bf16.msra.mxu0 %v4968
    %7977 = vmatpush.bf16.msra.mxu0 %v4964
    %7978 = vmatpush.bf16.msra.mxu0 %v4960
    %7979 = vmatpush.bf16.msra.mxu0 %v4956
    %7980 = vmatmul.bf16.gmra.mxu0 %v7961
    %v7981 = vpop.f32.mrf.mxu0
    %v7982 = vadd.f32 %v4756, %v7981
    %v7983 = vpop.f32.mrf.mxu0
    %7984 = vdwg.mxu0
    %7985 = vmatpush.bf16.msra.mxu0 %v5016
    %7986 = vmatpush.bf16.msra.mxu0 %v5012
    %7987 = vmatpush.bf16.msra.mxu0 %v5008
    %7988 = vmatpush.bf16.msra.mxu0 %v5004
    %7989 = vmatpush.bf16.msra.mxu0 %v5000
    %7990 = vmatpush.bf16.msra.mxu0 %v4996
    %7991 = vmatpush.bf16.msra.mxu0 %v4992
    %7992 = vmatpush.bf16.msra.mxu0 %v4988
    %7993 = vmatmul.bf16.gmra.mxu0 %v7969
    %v7994 = vpop.f32.mrf.mxu0
    %v7995 = vadd.f32 %v7982, %v7994
    %v7996 = vpop.f32.mrf.mxu0
    %7997 = vdwg.mxu0
    %7998 = vmatpush.bf16.msra.mxu0 %v4985
    %7999 = vmatpush.bf16.msra.mxu0 %v4981
    %8000 = vmatpush.bf16.msra.mxu0 %v4977
    %8001 = vmatpush.bf16.msra.mxu0 %v4973
    %8002 = vmatpush.bf16.msra.mxu0 %v4969
    %8003 = vmatpush.bf16.msra.mxu0 %v4965
    %8004 = vmatpush.bf16.msra.mxu0 %v4961
    %8005 = vmatpush.bf16.msra.mxu0 %v4957
    %8006 = vmatmul.bf16.gmra.mxu0 %v7961
    %v8007 = vpop.f32.mrf.mxu0
    %v8008 = vadd.f32 %v4757, %v8007
    %v8009 = vpop.f32.mrf.mxu0
    %8010 = vdwg.mxu0
    %8011 = vmatpush.bf16.msra.mxu0 %v5017
    %8012 = vmatpush.bf16.msra.mxu0 %v5013
    %8013 = vmatpush.bf16.msra.mxu0 %v5009
    %8014 = vmatpush.bf16.msra.mxu0 %v5005
    %8015 = vmatpush.bf16.msra.mxu0 %v5001
    %8016 = vmatpush.bf16.msra.mxu0 %v4997
    %8017 = vmatpush.bf16.msra.mxu0 %v4993
    %8018 = vmatpush.bf16.msra.mxu0 %v4989
    %8019 = vmatmul.bf16.gmra.mxu0 %v7969
    %v8020 = vpop.f32.mrf.mxu0
    %v8021 = vadd.f32 %v8008, %v8020
    %v8022 = vpop.f32.mrf.mxu0
    %8023 = vdwg.mxu0
    %8024 = vmatpush.bf16.msra.mxu0 %v4986
    %8025 = vmatpush.bf16.msra.mxu0 %v4982
    %8026 = vmatpush.bf16.msra.mxu0 %v4978
    %8027 = vmatpush.bf16.msra.mxu0 %v4974
    %8028 = vmatpush.bf16.msra.mxu0 %v4970
    %8029 = vmatpush.bf16.msra.mxu0 %v4966
    %8030 = vmatpush.bf16.msra.mxu0 %v4962
    %8031 = vmatpush.bf16.msra.mxu0 %v4958
    %8032 = vmatmul.bf16.gmra.mxu0 %v7961
    %v8033 = vpop.f32.mrf.mxu0
    %v8034 = vadd.f32 %v4758, %v8033
    %v8035 = vpop.f32.mrf.mxu0
    %8036 = vdwg.mxu0
    %8037 = vmatpush.bf16.msra.mxu0 %v5018
    %8038 = vmatpush.bf16.msra.mxu0 %v5014
    %8039 = vmatpush.bf16.msra.mxu0 %v5010
    %8040 = vmatpush.bf16.msra.mxu0 %v5006
    %8041 = vmatpush.bf16.msra.mxu0 %v5002
    %8042 = vmatpush.bf16.msra.mxu0 %v4998
    %8043 = vmatpush.bf16.msra.mxu0 %v4994
    %8044 = vmatpush.bf16.msra.mxu0 %v4990
    %8045 = vmatmul.bf16.gmra.mxu0 %v7969
    %v8046 = vpop.f32.mrf.mxu0
    %v8047 = vadd.f32 %v8034, %v8046
    %v8048 = vpop.f32.mrf.mxu0
    %8049 = vdwg.mxu0
    %8050 = vmatpush.bf16.msra.mxu0 %v4987
    %8051 = vmatpush.bf16.msra.mxu0 %v4983
    %8052 = vmatpush.bf16.msra.mxu0 %v4979
    %8053 = vmatpush.bf16.msra.mxu0 %v4975
    %8054 = vmatpush.bf16.msra.mxu0 %v4971
    %8055 = vmatpush.bf16.msra.mxu0 %v4967
    %8056 = vmatpush.bf16.msra.mxu0 %v4963
    %8057 = vmatpush.bf16.msra.mxu0 %v4959
    %8058 = vmatmul.bf16.gmra.mxu0 %v7961
    %v8059 = vpop.f32.mrf.mxu0
    %v8060 = vadd.f32 %v4759, %v8059
    %v8061 = vpop.f32.mrf.mxu0
    %8062 = vdwg.mxu0
    %8063 = vmatpush.bf16.msra.mxu0 %v5019
    %8064 = vmatpush.bf16.msra.mxu0 %v5015
    %8065 = vmatpush.bf16.msra.mxu0 %v5011
    %8066 = vmatpush.bf16.msra.mxu0 %v5007
    %8067 = vmatpush.bf16.msra.mxu0 %v5003
    %8068 = vmatpush.bf16.msra.mxu0 %v4999
    %8069 = vmatpush.bf16.msra.mxu0 %v4995
    %8070 = vmatpush.bf16.msra.mxu0 %v4991
    %8071 = vmatmul.bf16.gmra.mxu0 %v7969
    %v8072 = vpop.f32.mrf.mxu0
    %v8073 = vadd.f32 %v8060, %v8072
    %v8074 = vpop.f32.mrf.mxu0
    %8075 = vdwg.mxu0
    %v8076 = vxor.u32 %v7995, 2147483648
    %v8077 = vmul.f32 %v8076, 1.442695
    %v8078 = vpow.pop %v8077
    %v8079 = vadd.f32 %v8078, 1.0
    %v8080 = vrcp.pop %v8079
    %v8081 = vmul.f32 %v8079, %v8080
    %v8082 = vsub.f32 1.0, %v8081
    %v8083 = vmul.f32 %v8080, %v8082
    %v8084 = vadd.f32 %v8080, %v8083
    %vm8085 = vweird.f32 %v8079
    %vm8086 = vweird.f32 %v8080
    %vm8087 = vmor %vm8085, %vm8086
    %v8088 = vsel %vm8087, %v8080, %v8084
    %v8089 = vand.u32 2147483647, %v8079
    %vm8090 = vcmp.eq.f32.partialorder %v8089, 8.507059e+37
    %v8091 = vand.u32 %v8079, 2147483648
    %v8092 = vor.u32 1.1754944e-38, %v8091
    %v8093 = vsel %vm8090, %v8092, %v8088
    %v8094 = vmul.f32 1.0, %v8093
    %v8095 = vxor.u32 %v8021, 2147483648
    %v8096 = vmul.f32 %v8095, 1.442695
    %v8097 = vpow.pop %v8096
    %v8098 = vadd.f32 %v8097, 1.0
    %v8099 = vrcp.pop %v8098
    %v8100 = vmul.f32 %v8098, %v8099
    %v8101 = vsub.f32 1.0, %v8100
    %v8102 = vmul.f32 %v8099, %v8101
    %v8103 = vadd.f32 %v8099, %v8102
    %vm8104 = vweird.f32 %v8098
    %vm8105 = vweird.f32 %v8099
    %vm8106 = vmor %vm8104, %vm8105
    %v8107 = vsel %vm8106, %v8099, %v8103
    %v8108 = vand.u32 2147483647, %v8098
    %vm8109 = vcmp.eq.f32.partialorder %v8108, 8.507059e+37
    %v8110 = vand.u32 %v8098, 2147483648
    %v8111 = vor.u32 1.1754944e-38, %v8110
    %v8112 = vsel %vm8109, %v8111, %v8107
    %v8113 = vmul.f32 1.0, %v8112
    %v8114 = vtanh.pop %v8047
    %v8115 = vxor.u32 %v8073, 2147483648
    %v8116 = vmul.f32 %v8115, 1.442695
    %v8117 = vpow.pop %v8116
    %v8118 = vadd.f32 %v8117, 1.0
    %v8119 = vrcp.pop %v8118
    %v8120 = vmul.f32 %v8118, %v8119
    %v8121 = vsub.f32 1.0, %v8120
    %v8122 = vmul.f32 %v8119, %v8121
    %v8123 = vadd.f32 %v8119, %v8122
    %vm8124 = vweird.f32 %v8118
    %vm8125 = vweird.f32 %v8119
    %vm8126 = vmor %vm8124, %vm8125
    %v8127 = vsel %vm8126, %v8119, %v8123
    %v8128 = vand.u32 2147483647, %v8118
    %vm8129 = vcmp.eq.f32.partialorder %v8128, 8.507059e+37
    %v8130 = vand.u32 %v8118, 2147483648
    %v8131 = vor.u32 1.1754944e-38, %v8130
    %v8132 = vsel %vm8129, %v8131, %v8127
    %v8133 = vmul.f32 1.0, %v8132
    %v8134 = vmul.f32 %v8113, %v7718
    %v8135 = vmul.f32 %v8094, %v8114
    %v8136 = vadd.f32 %v8134, %v8135
    %v8137 = vtanh.pop %v8136
    %v8138 = vmul.f32 %v8133, %v8137
    %v8139 = vpack.c.bf16 %v8138, %v8138
    %v8140 = vld [vmem:[#allocation22] sm:$0xf]
    %v8141 = vld [vmem:[#allocation22 + $0x4] sm:$0xf]
    %v8142 = vld [vmem:[#allocation22 + $0x8] sm:$0xf]
    %v8143 = vld [vmem:[#allocation22 + $0xc] sm:$0xf]
    %v8144 = vld [vmem:[#allocation22 + $0x10] sm:$0xf]
    %v8145 = vld [vmem:[#allocation22 + $0x14] sm:$0xf]
    %v8146 = vld [vmem:[#allocation22 + $0x18] sm:$0xf]
    %v8147 = vld [vmem:[#allocation22 + $0x1c] sm:$0xf]
    %v8148 = vld [vmem:[#allocation22 + $0x20] sm:$0xf]
    %v8149 = vld [vmem:[#allocation22 + $0x24] sm:$0xf]
    %v8150 = vld [vmem:[#allocation22 + $0x28] sm:$0xf]
    %v8151 = vld [vmem:[#allocation22 + $0x2c] sm:$0xf]
    %v8152 = vld [vmem:[#allocation22 + $0x30] sm:$0xf]
    %v8153 = vld [vmem:[#allocation22 + $0x34] sm:$0xf]
    %v8154 = vld [vmem:[#allocation22 + $0x38] sm:$0xf]
    %v8155 = vld [vmem:[#allocation22 + $0x3c] sm:$0xf]
    %v8156 = vld [vmem:[#allocation24] sm:$0x1]
    %v8158 = vperm.slane %v8156, 0
    %v8176 = vunpack.c.l.b16 %v8140
    %v8177 = vunpack.c.l.b16 %v8141
    %v8178 = vunpack.c.l.b16 %v8142
    %v8179 = vunpack.c.l.b16 %v8143
    %v8180 = vunpack.c.l.b16 %v8144
    %v8181 = vunpack.c.l.b16 %v8145
    %v8182 = vunpack.c.l.b16 %v8146
    %v8183 = vunpack.c.l.b16 %v8147
    %v8184 = vunpack.c.l.b16 %v8148
    %v8185 = vunpack.c.l.b16 %v8149
    %v8186 = vunpack.c.l.b16 %v8150
    %v8187 = vunpack.c.l.b16 %v8151
    %v8188 = vunpack.c.l.b16 %v8152
    %v8189 = vunpack.c.l.b16 %v8153
    %v8190 = vunpack.c.l.b16 %v8154
    %v8191 = vunpack.c.l.b16 %v8155
    %v8192 = vpack.c.b16 %v8177, %v8176
    %v8193 = vpack.c.b16 %v8179, %v8178
    %v8194 = vpack.c.b16 %v8181, %v8180
    %v8195 = vpack.c.b16 %v8183, %v8182
    %v8196 = vpack.c.b16 %v8185, %v8184
    %v8197 = vpack.c.b16 %v8187, %v8186
    %v8198 = vpack.c.b16 %v8189, %v8188
    %v8199 = vpack.c.b16 %v8191, %v8190
    %8208 = vmatpush.bf16.msra.mxu0 %v8199
    %8209 = vmatpush.bf16.msra.mxu0 %v8198
    %8210 = vmatpush.bf16.msra.mxu0 %v8197
    %8211 = vmatpush.bf16.msra.mxu0 %v8196
    %8212 = vmatpush.bf16.msra.mxu0 %v8195
    %8213 = vmatpush.bf16.msra.mxu0 %v8194
    %8214 = vmatpush.bf16.msra.mxu0 %v8193
    %8215 = vmatpush.bf16.msra.mxu0 %v8192
    %8216 = vmatmul.bf16.gmra.mxu0 %v8139
    %v8217 = vpop.f32.mrf.mxu0
    %v8218 = vadd.f32 %v8158, %v8217
    %v8219 = vpop.f32.mrf.mxu0
    %8220 = vdwg.mxu0
    %v8221 = vmax.f32 %v8218, 0.0
    %v8222 = vpack.c.bf16 %v8221, %v8221
    %v8223 = vld [vmem:[%s16] sm:$0xf]
    %v8224 = vld [vmem:[%s16 + $0x4] sm:$0xf]
    %v8225 = vld [vmem:[%s16 + $0x8] sm:$0xf]
    %v8226 = vld [vmem:[%s16 + $0xc] sm:$0xf]
    %v8227 = vld [vmem:[%s16 + $0x10] sm:$0xf]
    %v8228 = vld [vmem:[%s16 + $0x14] sm:$0xf]
    %v8229 = vld [vmem:[%s16 + $0x18] sm:$0xf]
    %v8230 = vld [vmem:[%s16 + $0x1c] sm:$0xf]
    %v8231 = vld [vmem:[%s16 + $0x20] sm:$0xf]
    %v8232 = vld [vmem:[%s16 + $0x24] sm:$0xf]
    %v8233 = vld [vmem:[%s16 + $0x28] sm:$0xf]
    %v8234 = vld [vmem:[%s16 + $0x2c] sm:$0xf]
    %v8235 = vld [vmem:[%s16 + $0x30] sm:$0xf]
    %v8236 = vld [vmem:[%s16 + $0x34] sm:$0xf]
    %v8237 = vld [vmem:[%s16 + $0x38] sm:$0xf]
    %v8238 = vld [vmem:[%s16 + $0x3c] sm:$0xf]
    %v8239 = vld [vmem:[#allocation25] sm:$0x1]
    %v8241 = vperm.slane %v8239, 0
    %v8259 = vunpack.c.l.b16 %v8223
    %v8260 = vunpack.c.l.b16 %v8224
    %v8261 = vunpack.c.l.b16 %v8225
    %v8262 = vunpack.c.l.b16 %v8226
    %v8263 = vunpack.c.l.b16 %v8227
    %v8264 = vunpack.c.l.b16 %v8228
    %v8265 = vunpack.c.l.b16 %v8229
    %v8266 = vunpack.c.l.b16 %v8230
    %v8267 = vunpack.c.l.b16 %v8231
    %v8268 = vunpack.c.l.b16 %v8232
    %v8269 = vunpack.c.l.b16 %v8233
    %v8270 = vunpack.c.l.b16 %v8234
    %v8271 = vunpack.c.l.b16 %v8235
    %v8272 = vunpack.c.l.b16 %v8236
    %v8273 = vunpack.c.l.b16 %v8237
    %v8274 = vunpack.c.l.b16 %v8238
    %v8275 = vpack.c.b16 %v8260, %v8259
    %v8276 = vpack.c.b16 %v8262, %v8261
    %v8277 = vpack.c.b16 %v8264, %v8263
    %v8278 = vpack.c.b16 %v8266, %v8265
    %v8279 = vpack.c.b16 %v8268, %v8267
    %v8280 = vpack.c.b16 %v8270, %v8269
    %v8281 = vpack.c.b16 %v8272, %v8271
    %v8282 = vpack.c.b16 %v8274, %v8273
    %8291 = vmatpush.bf16.msra.mxu0 %v8282
    %8292 = vmatpush.bf16.msra.mxu0 %v8281
    %8293 = vmatpush.bf16.msra.mxu0 %v8280
    %8294 = vmatpush.bf16.msra.mxu0 %v8279
    %8295 = vmatpush.bf16.msra.mxu0 %v8278
    %8296 = vmatpush.bf16.msra.mxu0 %v8277
    %8297 = vmatpush.bf16.msra.mxu0 %v8276
    %8298 = vmatpush.bf16.msra.mxu0 %v8275
    %8299 = vmatmul.bf16.gmra.mxu0 %v8222
    %v8300 = vpop.f32.mrf.mxu0
    %v8301 = vadd.f32 %v8241, %v8300
    %v8302 = vpop.f32.mrf.mxu0
    %8303 = vdwg.mxu0
    %v8304 = vmax.f32 %v8301, 0.0
    %v8305 = vpack.c.bf16 %v8304, %v8304
    %v8306 = vld [vmem:[%s18] sm:$0xf]
    %v8307 = vld [vmem:[%s18 + $0x4] sm:$0xf]
    %v8308 = vld [vmem:[%s18 + $0x8] sm:$0xf]
    %v8309 = vld [vmem:[%s18 + $0xc] sm:$0xf]
    %v8310 = vld [vmem:[%s18 + $0x10] sm:$0xf]
    %v8311 = vld [vmem:[%s18 + $0x14] sm:$0xf]
    %v8312 = vld [vmem:[%s18 + $0x18] sm:$0xf]
    %v8313 = vld [vmem:[%s18 + $0x1c] sm:$0xf]
    %v8314 = vld [vmem:[#allocation27] sm:$0x1]
    %v8316 = vperm.slane %v8314, 0
    %v8326 = vunpack.c.l.b16 %v8306
    %v8327 = vunpack.c.l.b16 %v8307
    %v8328 = vunpack.c.l.b16 %v8308
    %v8329 = vunpack.c.l.b16 %v8309
    %v8330 = vunpack.c.l.b16 %v8310
    %v8331 = vunpack.c.l.b16 %v8311
    %v8332 = vunpack.c.l.b16 %v8312
    %v8333 = vunpack.c.l.b16 %v8313
    %v8334 = vpack.c.b16 %v8327, %v8326
    %v8335 = vpack.c.b16 %v8329, %v8328
    %v8336 = vpack.c.b16 %v8331, %v8330
    %v8337 = vpack.c.b16 %v8333, %v8332
    %vm8342 = vcmask 523264
    %v8344 = vsel %vm8342, %v8305, 0
    %8346 = vmatpush.bf16.msra.mxu0 0
    %8347 = vmatpush.bf16.msra.mxu0 0
    %8348 = vmatpush.bf16.msra.mxu0 0
    %8349 = vmatpush.bf16.msra.mxu0 0
    %8350 = vmatpush.bf16.msra.mxu0 %v8337
    %8351 = vmatpush.bf16.msra.mxu0 %v8336
    %8352 = vmatpush.bf16.msra.mxu0 %v8335
    %8353 = vmatpush.bf16.msra.mxu0 %v8334
    %8354 = vmatmul.bf16.gmra.mxu0 %v8344
    %v8355 = vpop.f32.mrf.mxu0
    %v8356 = vadd.f32 %v8316, %v8355
    %v8357 = vpop.f32.mrf.mxu0
    %8358 = vdwg.mxu0
    %v8359 = vmul.f32 %v8356, %v8356
    %vm8360 = vcmask 17408
    %v8361 = vsel %vm8360, %v8359, 0.0
    %8362 = vadd.xlane.f32.xlu0 %v8361
    %v8363 = vpop.xlane.xlu0 %8362
    %v8364 = vrsqrt.pop %v8363
    %v8365 = vmul.f32 %v8364, %v8363
    %v8366 = vmul.f32 %v8365, %v8364
    %v8367 = vmul.f32 0.5, %v8366
    %v8368 = vsub.f32 1.5, %v8367
    %v8369 = vmul.f32 %v8364, %v8368
    %v8370 = vmul.f32 %v8363, %v8369
    %vm8371 = vcmp.eq.f32.partialorder %v8363, inf
    %v8372 = vsel %vm8371, %v8363, %v8370
    %vm8373 = vcmp.eq.f32.partialorder %v8363, 0.0
    %v8374 = vand.u32 %v8363, 2147483648
    %v8375 = vsel %vm8373, %v8374, %v8372
    %v8376 = vmax.f32 %v8375, 1e-08
    %v8377 = vrcp.pop %v8376
    %v8378 = vmul.f32 %v8376, %v8377
    %v8379 = vsub.f32 1.0, %v8378
    %v8380 = vmul.f32 %v8377, %v8379
    %v8381 = vadd.f32 %v8377, %v8380
    %vm8382 = vweird.f32 %v8376
    %vm8383 = vweird.f32 %v8377
    %vm8384 = vmor %vm8382, %vm8383
    %v8385 = vsel %vm8384, %v8377, %v8381
    %v8386 = vand.u32 2147483647, %v8376
    %vm8387 = vcmp.eq.f32.partialorder %v8386, 8.507059e+37
    %v8388 = vand.u32 %v8376, 2147483648
    %v8389 = vor.u32 1.1754944e-38, %v8388
    %v8390 = vsel %vm8387, %v8389, %v8385
    %v8391 = vmul.f32 %v8356, %v8390
    %8393 = vrot.lane.b32.xlu0 %v8356, 124
    %v8394 = vpop.permute.xlu0 %8393
    %v8396 = vmul.f32 %v8391, %v8394
    %8397 = vrot.lane.b32.xlu0 %v8356, 126
    %v8398 = vpop.permute.xlu0 %8397
    %v8400 = vmul.f32 %v8391, %v8398
    %8402 = vrot.lane.b32.xlu0 %v8400, 127
    %v8403 = vpop.permute.xlu0 %8402
    %v8405 = vsub.f32 %v8396, %v8403
    %8406 = vrot.lane.b32.xlu0 %v8356, 127
    %v8407 = vpop.permute.xlu0 %8406
    %v8409 = vmul.f32 %v8391, %v8407
    %8410 = vrot.lane.b32.xlu0 %v8356, 123
    %v8411 = vpop.permute.xlu0 %8410
    %v8413 = vmul.f32 %v8391, %v8411
    %8415 = vrot.lane.b32.xlu0 %v8413, 2
    %v8416 = vpop.permute.xlu0 %8415
    %v8418 = vsub.f32 %v8409, %v8416
    %8420 = vrot.lane.b32.xlu0 %v8405, 127
    %v8421 = vpop.permute.xlu0 %8420
    %8424 = vrot.lane.b32.xlu0 %v8418, 127
    %v8425 = vpop.permute.xlu0 %8424
    %8427 = vrot.lane.b32.xlu0 %v8405, 2
    %v8428 = vpop.permute.xlu0 %8427
    %vm8430 = vcmask 7168
    %v8431 = vsel %vm8430, %v8421, %v8425
    %vm8432 = vcmask 15360
    %v8433 = vsel %vm8432, %v8431, %v8428
    %v8434 = vmul.f32 %v8433, %v8433
    %v8435 = vsel %vm8360, %v8434, 0.0
    %8436 = vadd.xlane.f32.xlu0 %v8435
    %v8437 = vpop.xlane.xlu0 %8436
    %v8438 = vrsqrt.pop %v8437
    %v8439 = vmul.f32 %v8438, %v8437
    %v8440 = vmul.f32 %v8439, %v8438
    %v8441 = vmul.f32 0.5, %v8440
    %v8442 = vsub.f32 1.5, %v8441
    %v8443 = vmul.f32 %v8438, %v8442
    %v8444 = vmul.f32 %v8437, %v8443
    %vm8445 = vcmp.eq.f32.partialorder %v8437, inf
    %v8446 = vsel %vm8445, %v8437, %v8444
    %vm8447 = vcmp.eq.f32.partialorder %v8437, 0.0
    %v8448 = vand.u32 %v8437, 2147483648
    %v8449 = vsel %vm8447, %v8448, %v8446
    %v8450 = vmax.f32 %v8449, 1e-08
    %v8451 = vrcp.pop %v8450
    %v8452 = vmul.f32 %v8450, %v8451
    %v8453 = vsub.f32 1.0, %v8452
    %v8454 = vmul.f32 %v8451, %v8453
    %v8455 = vadd.f32 %v8451, %v8454
    %vm8456 = vweird.f32 %v8450
    %vm8457 = vweird.f32 %v8451
    %vm8458 = vmor %vm8456, %vm8457
    %v8459 = vsel %vm8458, %v8451, %v8455
    %v8460 = vand.u32 2147483647, %v8450
    %vm8461 = vcmp.eq.f32.partialorder %v8460, 8.507059e+37
    %v8462 = vand.u32 %v8450, 2147483648
    %v8463 = vor.u32 1.1754944e-38, %v8462
    %v8464 = vsel %vm8461, %v8463, %v8459
    %v8465 = vmul.f32 %v8433, %v8464
    %8467 = vrot.lane.b32.xlu0 %v8391, 127
    %v8468 = vpop.permute.xlu0 %8467
    %v8470 = vmul.f32 %v8465, %v8468
    %8471 = vrot.lane.b32.xlu0 %v8391, 1
    %v8472 = vpop.permute.xlu0 %8471
    %v8474 = vmul.f32 %v8465, %v8472
    %8476 = vrot.lane.b32.xlu0 %v8474, 127
    %v8477 = vpop.permute.xlu0 %8476
    %v8479 = vsub.f32 %v8470, %v8477
    %8480 = vrot.lane.b32.xlu0 %v8391, 2
    %v8481 = vpop.permute.xlu0 %8480
    %v8483 = vmul.f32 %v8465, %v8481
    %8484 = vrot.lane.b32.xlu0 %v8391, 126
    %v8485 = vpop.permute.xlu0 %8484
    %v8487 = vmul.f32 %v8465, %v8485
    %8489 = vrot.lane.b32.xlu0 %v8487, 2
    %v8490 = vpop.permute.xlu0 %8489
    %v8492 = vsub.f32 %v8483, %v8490
    %8494 = vrot.lane.b32.xlu0 %v8479, 127
    %v8495 = vpop.permute.xlu0 %8494
    %8498 = vrot.lane.b32.xlu0 %v8492, 127
    %v8499 = vpop.permute.xlu0 %8498
    %8501 = vrot.lane.b32.xlu0 %v8479, 2
    %v8502 = vpop.permute.xlu0 %8501
    %v8504 = vsel %vm8430, %v8495, %v8499
    %v8505 = vsel %vm8432, %v8504, %v8502
    %8507 = vrot.lane.b32.xlu0 %v8505, 1
    %v8508 = vpop.permute.xlu0 %8507
    %8511 = vrot.lane.b32.xlu0 %v8465, 2
    %v8512 = vpop.permute.xlu0 %8511
    %8514 = vrot.lane.b32.xlu0 %v8505, 3
    %v8515 = vpop.permute.xlu0 %8514
    %8517 = vrot.lane.b32.xlu0 %v8465, 4
    %v8518 = vpop.permute.xlu0 %8517
    %8520 = vrot.lane.b32.xlu0 %v8391, 4
    %v8521 = vpop.permute.xlu0 %8520
    %8523 = vrot.lane.b32.xlu0 %v8505, 5
    %v8524 = vpop.permute.xlu0 %8523
    %8526 = vrot.lane.b32.xlu0 %v8465, 6
    %v8527 = vpop.permute.xlu0 %8526
    %v8529 = vsel %vm8430, %v8391, %v8508
    %v8530 = vsel %vm8432, %v8529, %v8512
    %vm8531 = vcmask 23552
    %v8532 = vsel %vm8531, %v8530, %v8481
    %vm8533 = vcmask 31744
    %v8534 = vsel %vm8533, %v8532, %v8515
    %vm8535 = vcmask 39936
    %v8536 = vsel %vm8535, %v8534, %v8518
    %vm8537 = vcmask 48128
    %v8538 = vsel %vm8537, %v8536, %v8521
    %vm8539 = vcmask 56320
    %v8540 = vsel %vm8539, %v8538, %v8524
    %vm8541 = vcmask 64512
    %v8542 = vsel %vm8541, %v8540, %v8527
    %vm8543 = vcmask 66560
    %8544 = vst.msk [vmem:[%s20] sm:$0x3] %vm8543, %v8542
    // Predicated region
    $region150: #{tactile_placing_net_forward.1} parent=1 // pred_check
      _
    $region151: #{tactile_placing_net_forward.1} parent=1 // pred_check_branch
      %8546 = sbr.rel (0) target = $region153
    $region152: #{tactile_placing_net_forward.1} parent=1 // pred_region
      _
    $region153: #{tactile_placing_net_forward.1} parent=1 // pred_fallthru
      _
    // Predicated region
    $region154: #{tactile_placing_net_forward.1} parent=1 // pred_check
      _
    $region155: #{tactile_placing_net_forward.1} parent=1 // pred_check_branch
      %8548 = sbr.rel (0) target = $region157
    $region156: #{tactile_placing_net_forward.1} parent=1 // pred_region
      _
    $region157: #{tactile_placing_net_forward.1} parent=1 // pred_fallthru
      _
    %8549 = vsyncpa [#allocation3], 1
    %8550 = vsyncpa [#allocation5], 1
    %8551 = vsyncpa [#allocation8], 1
    %8552 = vsyncpa [#allocation11], 1
    %8553 = vsyncpa [#allocation14], 1
    %8554 = vsyncpa [#allocation17], 1
    %8555 = vsyncpa [#allocation20], 1
    %8556 = vsyncpa [#allocation23], 1
    %8557 = vsyncpa [#allocation26], 1

</llo_original>
